<compile_context>
chip_gen: v5e
topology: v5e:2x2
jax: 0.10.0
libtpu: 0.0.40
codegen_flags: <defaults>
</compile_context>

<pallas_src>
import functools

import jax
import jax.numpy as jnp
from jax.experimental import pallas as pl
from jax.experimental.pallas import tpu as pltpu

EPS = 1e-5                # nn.BatchNorm2d default
_DEF_TILE_ROWS = 1024     # row tile for the (M, C) row-wise kernels
_MAX_TILE_H = 64          # output-row tile for the dilated conv kernels


# ---------------------------------------------------------------------------
# Pallas kernels
# ---------------------------------------------------------------------------
def _matmul_kernel(x_ref, w_ref, o_ref):
    """1x1 conv as a row-tiled matmul: (tile, Cin) @ (Cin, Cout)."""
    o_ref[...] = jnp.dot(x_ref[...], w_ref[...],
                         preferred_element_type=jnp.float32)


def _dilated_conv_stats_kernel(*refs, n_inputs, tile_h, out_w):
    """Rate-2 dilated 3x3 conv on a haloed row block + BN-stats epilogue.

    refs = (x_ref_0..x_ref_{n-1}, w_ref_0..w_ref_{n-1}, y_ref, sum_ref, sq_ref)
      x_ref_k: (1, 1, tile_h+4, W+4, C_k)   haloed, zero-padded input block
      w_ref_k: (9, C_k, Cout)               flattened 3x3 taps
      y_ref:   (1, tile_h, W, Cout)
      sum/sq:  (1, 1, 1, Cout)              per-tile partial BN statistics
    """
    x_refs = refs[:n_inputs]
    w_refs = refs[n_inputs:2 * n_inputs]
    y_ref, sum_ref, sq_ref = refs[2 * n_inputs:]

    acc = None
    for x_ref, w_ref in zip(x_refs, w_refs):
        for kh in range(3):
            for kw in range(3):
                # Slice the dilated tap directly out of the VMEM halo tile.
                tap = x_ref[0, 0, 2 * kh:2 * kh + tile_h,
                            2 * kw:2 * kw + out_w, :]
                tap = tap.reshape(tile_h * out_w, tap.shape[-1])
                d = jnp.dot(tap, w_ref[3 * kh + kw],
                            preferred_element_type=jnp.float32)
                acc = d if acc is None else acc + d

    y_ref[0] = acc.reshape(tile_h, out_w, acc.shape[-1])
    # Fused epilogue: per-tile partial sums for the following training-mode BN
    # (the conv bias is omitted because this BN cancels it exactly).
    sum_ref[0, 0] = jnp.sum(acc, axis=0, keepdims=True)
    sq_ref[0, 0] = jnp.sum(acc * acc, axis=0, keepdims=True)


def _bn_stats_kernel(x_ref, sum_ref, sq_ref):
    """Per-tile partial sum / sum-of-squares over rows of an (M, C) slab."""
    x = x_ref[...]
    sum_ref[0] = jnp.sum(x, axis=0, keepdims=True)
    sq_ref[0] = jnp.sum(x * x, axis=0, keepdims=True)


def _scale_shift_relu_kernel(x_ref, scale_ref, shift_ref, o_ref):
    """Folded BatchNorm (y = x*scale + shift) + ReLU, row-tiled."""
    o_ref[...] = jnp.maximum(x_ref[...] * scale_ref[...] + shift_ref[...], 0.0)


# ---------------------------------------------------------------------------
# Small host-side helpers (shape plumbing only)
# ---------------------------------------------------------------------------
def _round_up(x, m):
    return ((x + m - 1) // m) * m


def _row_tile(m, cap=_DEF_TILE_ROWS):
    return min(cap, _round_up(m, 8))


def _as_rows(x_nhwc):
    n, h, w, c = x_nhwc.shape
    return x_nhwc.reshape(n * h * w, c), n * h * w


def _pad_rows(xm, tile):
    m = xm.shape[0]
    mp = _round_up(m, tile)
    if mp != m:
        xm = jnp.pad(xm, ((0, mp - m), (0, 0)))
    return xm, mp


# ---------------------------------------------------------------------------
# Pallas wrappers
# ---------------------------------------------------------------------------
def conv1x1(x, w):
    """x: (N,H,W,Cin), w: (Cin,Cout) -> (N,H,W,Cout). Bias-free (BN cancels)."""
    n, h, wd, cin = x.shape
    cout = w.shape[-1]
    xm, m = _as_rows(x)
    tile = _row_tile(m)
    xm, mp = _pad_rows(xm, tile)
    out = pl.pallas_call(
        _matmul_kernel,
        out_shape=jax.ShapeDtypeStruct((mp, cout), jnp.float32),
        grid=(mp // tile,),
        in_specs=[pl.BlockSpec((tile, cin), lambda i: (i, 0)),
                  pl.BlockSpec((cin, cout), lambda i: (0, 0))],
        out_specs=pl.BlockSpec((tile, cout), lambda i: (i, 0)),
        compiler_params=pltpu.CompilerParams(
            dimension_semantics=("parallel",)),
    )(xm, w)
    return out[:m].reshape(n, h, wd, cout)


def bn_stats(x):
    """x: (N,H,W,C) -> (sum_c, sumsq_c) over N,H,W, each shaped (C,)."""
    xm, m = _as_rows(x)
    c = xm.shape[-1]
    tile = _row_tile(m)
    xm, mp = _pad_rows(xm, tile)      # zero rows do not change sum / sumsq
    nt = mp // tile
    s, sq = pl.pallas_call(
        _bn_stats_kernel,
        out_shape=(jax.ShapeDtypeStruct((nt, 1, c), jnp.float32),
                   jax.ShapeDtypeStruct((nt, 1, c), jnp.float32)),
        grid=(nt,),
        in_specs=[pl.BlockSpec((tile, c), lambda i: (i, 0))],
        out_specs=(pl.BlockSpec((1, 1, c), lambda i: (i, 0, 0)),
                   pl.BlockSpec((1, 1, c), lambda i: (i, 0, 0))),
        compiler_params=pltpu.CompilerParams(
            dimension_semantics=("parallel",)),
    )(xm)
    return jnp.sum(s, axis=(0, 1)), jnp.sum(sq, axis=(0, 1))


def scale_shift_relu(x, scale, shift):
    """relu(x * scale + shift) with per-channel scale/shift; x: (N,H,W,C)."""
    n, h, w, c = x.shape
    xm, m = _as_rows(x)
    tile = _row_tile(m)
    xm, mp = _pad_rows(xm, tile)
    out = pl.pallas_call(
        _scale_shift_relu_kernel,
        out_shape=jax.ShapeDtypeStruct((mp, c), jnp.float32),
        grid=(mp // tile,),
        in_specs=[pl.BlockSpec((tile, c), lambda i: (i, 0)),
                  pl.BlockSpec((1, c), lambda i: (0, 0)),
                  pl.BlockSpec((1, c), lambda i: (0, 0))],
        out_specs=pl.BlockSpec((tile, c), lambda i: (i, 0)),
        compiler_params=pltpu.CompilerParams(
            dimension_semantics=("parallel",)),
    )(xm, scale.reshape(1, c), shift.reshape(1, c))
    return out[:m].reshape(n, h, w, c)


def _pick_tile_h(h, cap=_MAX_TILE_H):
    if h <= cap:
        return h
    for t in range(cap, 0, -1):
        if h % t == 0:
            return t
    return h


def _halo_row_tiles(x, tile_h):
    """Zero-pad by 2 (H and W) and restructure into overlapping row blocks
    with a 4-row halo: (N, n_h, tile_h+4, W+4, C).  Halo duplication is only
    ~4/tile_h of the tensor (vs. the 9x of an im2col materialization)."""
    xp = jnp.pad(x, ((0, 0), (2, 2), (2, 2), (0, 0)))
    n, hp, wp, c = xp.shape
    n_h = (hp - 4) // tile_h
    if n_h == 1:
        return xp[:, None]
    tiles = [xp[:, i * tile_h:i * tile_h + tile_h + 4] for i in range(n_h)]
    return jnp.stack(tiles, axis=1)


def dilated_conv3x3_stats(xs, ws):
    """3x3 conv, stride 1, dilation 2, padding 2 (same spatial size), summed
    over several input tensors (== conv over their channel concatenation,
    without materializing the concat).  Also returns the per-channel sum and
    sum-of-squares of the conv output (fused BatchNorm-stats epilogue).

    xs: list of (N,H,W,Ci);  ws: list of (3,3,Ci,Cout)
    -> (N,H,W,Cout), (Cout,), (Cout,)
    """
    n, h, w, _ = xs[0].shape
    cout = ws[0].shape[-1]
    tile_h = _pick_tile_h(h)
    n_h = h // tile_h
    wp = w + 4

    x_tiles = [_halo_row_tiles(x, tile_h) for x in xs]
    w_flat = [wk.reshape(9, wk.shape[2], cout) for wk in ws]

    in_specs = []
    for x in xs:
        ci = x.shape[-1]
        in_specs.append(
            pl.BlockSpec((1, 1, tile_h + 4, wp, ci),
                         lambda b, i: (b, i, 0, 0, 0)))
    for wk in w_flat:
        in_specs.append(pl.BlockSpec(wk.shape, lambda b, i: (0, 0, 0)))

    kernel = functools.partial(_dilated_conv_stats_kernel,
                               n_inputs=len(xs), tile_h=tile_h, out_w=w)
    y, s, sq = pl.pallas_call(
        kernel,
        out_shape=(jax.ShapeDtypeStruct((n, h, w, cout), jnp.float32),
                   jax.ShapeDtypeStruct((n, n_h, 1, cout), jnp.float32),
                   jax.ShapeDtypeStruct((n, n_h, 1, cout), jnp.float32)),
        grid=(n, n_h),
        in_specs=in_specs,
        out_specs=(pl.BlockSpec((1, tile_h, w, cout),
                                lambda b, i: (b, i, 0, 0)),
                   pl.BlockSpec((1, 1, 1, cout), lambda b, i: (b, i, 0, 0)),
                   pl.BlockSpec((1, 1, 1, cout), lambda b, i: (b, i, 0, 0))),
        compiler_params=pltpu.CompilerParams(
            dimension_semantics=("parallel", "parallel"),
            vmem_limit_bytes=48 * 1024 * 1024),
    )(*x_tiles, *w_flat)
    return y, jnp.sum(s, axis=(0, 1, 2)), jnp.sum(sq, axis=(0, 1, 2))


# ---------------------------------------------------------------------------
# Glue: bilinear x2 upsample (align_corners=True) and folded-BN affine.
# ---------------------------------------------------------------------------
def _interp_matrix(n_in, n_out):
    """align_corners=True bilinear interpolation matrix, shape (n_out, n_in)."""
    if n_in == 1:
        return jnp.ones((n_out, 1), jnp.float32)
    idx = jnp.arange(n_out, dtype=jnp.float32)
    src = idx * (n_in - 1) / (n_out - 1)
    i0 = jnp.clip(jnp.floor(src).astype(jnp.int32), 0, n_in - 2)
    frac = src - i0.astype(jnp.float32)
    rows = jnp.arange(n_out)
    u = jnp.zeros((n_out, n_in), jnp.float32)
    u = u.at[rows, i0].add(1.0 - frac)
    u = u.at[rows, i0 + 1].add(frac)
    return u


def upsample_bilinear_x2(x):
    # TODO(synk): plain-JAX glue (separable interpolation matrices), not a
    #             Pallas kernel.
    n, h, w, c = x.shape
    uh = _interp_matrix(h, 2 * h)
    uw = _interp_matrix(w, 2 * w)
    y = jnp.einsum('oh,nhwc->nowc', uh, x)
    y = jnp.einsum('pw,nowc->nopc', uw, y)
    return y


def _bn_affine(s, sq, count, gamma, beta):
    """Training-mode (biased) BatchNorm folded into per-channel scale/shift."""
    mean = s / count
    var = jnp.maximum(sq / count - mean * mean, 0.0)
    scale = gamma.reshape(-1) * jax.lax.rsqrt(var + EPS)
    shift = beta.reshape(-1) - mean * scale
    return scale, shift


# ---------------------------------------------------------------------------
# Full Up.forward
# ---------------------------------------------------------------------------
@jax.jit
def up_forward(params, x1_nchw, x2_nchw):
    # NCHW (PyTorch) -> NHWC (kernel layout)
    x1 = jnp.transpose(x1_nchw, (0, 2, 3, 1)).astype(jnp.float32)
    x2 = jnp.transpose(x2_nchw, (0, 2, 3, 1)).astype(jnp.float32)

    # conv1 (1x1) commuted before the upsample (both linear, disjoint axes ->
    # identical result), then bilinear x2, then training-mode BN1 + ReLU.
    y1 = conv1x1(x1, params['w1'])
    y1 = upsample_bilinear_x2(y1)
    n, h2, w2, _ = y1.shape
    count = n * h2 * w2
    s1, sq1 = bn_stats(y1)
    scale1, shift1 = _bn_affine(s1, sq1, count, params['g1'], params['beta1'])
    x1n = scale_shift_relu(y1, scale1, shift1)

    # conv2 over concat([x1n, x2], channel) WITHOUT materializing the concat:
    # two inputs + split weights; BN2 statistics fused into the conv epilogue.
    c1 = x1n.shape[-1]
    w2k = params['w2']
    y2, s2, sq2 = dilated_conv3x3_stats(
        [x1n, x2], [w2k[:, :, :c1, :], w2k[:, :, c1:, :]])
    scale2, shift2 = _bn_affine(s2, sq2, count, params['g2'], params['beta2'])
    x2n = scale_shift_relu(y2, scale2, shift2)

    # conv3 + BN3 + ReLU (BN3 statistics again fused into the conv epilogue).
    y3, s3, sq3 = dilated_conv3x3_stats([x2n], [params['w3']])
    scale3, shift3 = _bn_affine(s3, sq3, count, params['g3'], params['beta3'])
    out = scale_shift_relu(y3, scale3, shift3)

    # NHWC -> NCHW
    return jnp.transpose(out, (0, 3, 1, 2))


def init_params(key, in_channels, out_channels):
    ks = jax.random.split(key, 12)
    f32 = jnp.float32
    # Conv biases are intentionally omitted: each conv feeds a training-mode
    # BatchNorm whose mean subtraction cancels a per-channel bias exactly.
    return {
        # conv1: 1x1, in_channels -> out_channels (HWIO collapsed to IO)
        'w1': 0.1 * jax.random.normal(ks[0], (in_channels, out_channels), f32),
        'g1': 1.0 + 0.1 * jax.random.normal(ks[2], (1, out_channels), f32),
        'beta1': 0.1 * jax.random.normal(ks[3], (1, out_channels), f32),
        # conv2: 3x3 dil=2, 2*out_channels -> out_channels (HWIO)
        'w2': 0.1 * jax.random.normal(
            ks[4], (3, 3, 2 * out_channels, out_channels), f32),
        'g2': 1.0 + 0.1 * jax.random.normal(ks[6], (1, out_channels), f32),
        'beta2': 0.1 * jax.random.normal(ks[7], (1, out_channels), f32),
        # conv3: 3x3 dil=2, out_channels -> out_channels (HWIO)
        'w3': 0.1 * jax.random.normal(
            ks[8], (3, 3, out_channels, out_channels), f32),
        'g3': 1.0 + 0.1 * jax.random.normal(ks[10], (1, out_channels), f32),
        'beta3': 0.1 * jax.random.normal(ks[11], (1, out_channels), f32),
    }


if __name__ == "__main__":
    key = jax.random.PRNGKey(0)
    k_p, k_x1, k_x2 = jax.random.split(key, 3)

    in_channels, out_channels = 4, 8
    n, h, w = 2, 8, 8            # x1 spatial; x2 is at 2x resolution

    x1 = jax.random.normal(k_x1, (n, in_channels, h, w), jnp.float32)
    x2 = jax.random.normal(k_x2, (n, out_channels, 2 * h, 2 * w), jnp.float32)
    params = init_params(k_p, in_channels, out_channels)

    out = up_forward(params, x1, x2)
    out = jax.block_until_ready(out)
    assert out.shape == (n, out_channels, 2 * h, 2 * w), out.shape
    assert bool(jnp.all(jnp.isfinite(out)))
    print("KERNEL_OK")
</pallas_src>

<mosaic_0001>
module attributes {stable_mosaic.version = 11 : i64} {
  func.func @_matmul_kernel(%arg0: i32, %arg1: memref<128x4xf32, #tpu.memory_space<vmem>>, %arg2: memref<4x8xf32, #tpu.memory_space<vmem>>, %arg3: memref<128x8xf32, #tpu.memory_space<vmem>>) attributes {dimension_semantics = [#tpu.dimension_semantics<parallel>], iteration_bounds = array<i64: 1>, scalar_prefetch = 0 : i64, scratch_operands = 0 : i64, tpu.core_type = #tpu.core_type<tc>, window_params = [{transform_indices = @transform_0, window_bounds = array<i64: 128, 4>}, {pipeline_mode = #tpu.pipeline_mode<synchronous>, transform_indices = @transform_1, window_bounds = array<i64: 4, 8>}, {transform_indices = @transform_2, window_bounds = array<i64: 128, 8>}]} {
    %c0 = arith.constant 0 : index
    %c0_0 = arith.constant 0 : index
    %0 = vector.load %arg1[%c0, %c0_0] : memref<128x4xf32, #tpu.memory_space<vmem>>, vector<128x4xf32>
    %c0_1 = arith.constant 0 : index
    %c0_2 = arith.constant 0 : index
    %1 = vector.load %arg2[%c0_1, %c0_2] : memref<4x8xf32, #tpu.memory_space<vmem>>, vector<4x8xf32>
    %cst = arith.constant dense<0.000000e+00> : vector<128x8xf32>
    %2 = tpu.matmul %0, %1, %cst {dimension_numbers = #tpu.dot_dimension_numbers<[1], [0], [0], [1], [0, 0, 1, 1], [], []>} : vector<128x4xf32>, vector<4x8xf32>, vector<128x8xf32> -> vector<128x8xf32>
    %c0_3 = arith.constant 0 : index
    %c0_4 = arith.constant 0 : index
    %3 = vector.load %arg3[%c0_3, %c0_4] : memref<128x8xf32, #tpu.memory_space<vmem>>, vector<128x8xf32>
    tpu.vector_store %arg3[%c0_3, %c0_4], %2 {strides = array<i32>} : memref<128x8xf32, #tpu.memory_space<vmem>>, vector<128x8xf32>,
    return
  }
  func.func @transform_0(%arg0: i32) -> (i32, i32) {
    %c0_i32 = arith.constant 0 : i32
    %c0_i32_0 = arith.constant 0 : i32
    return %arg0, %c0_i32 : i32, i32
  }
  func.func @transform_1(%arg0: i32) -> (i32, i32) {
    %c0_i32 = arith.constant 0 : i32
    %c0_i32_0 = arith.constant 0 : i32
    %c0_i32_1 = arith.constant 0 : i32
    return %c0_i32, %c0_i32_0 : i32, i32
  }
  func.func @transform_2(%arg0: i32) -> (i32, i32) {
    %c0_i32 = arith.constant 0 : i32
    %c0_i32_0 = arith.constant 0 : i32
    return %arg0, %c0_i32 : i32, i32
  }
}

module attributes {stable_mosaic.version = 11 : i64} {
  func.func @_bn_stats_kernel(%arg0: i32, %arg1: memref<512x8xf32, #tpu.memory_space<vmem>>, %arg2: memref<1x1x8xf32, #tpu.memory_space<vmem>>, %arg3: memref<1x1x8xf32, #tpu.memory_space<vmem>>) attributes {dimension_semantics = [#tpu.dimension_semantics<parallel>], iteration_bounds = array<i64: 1>, scalar_prefetch = 0 : i64, scratch_operands = 0 : i64, tpu.core_type = #tpu.core_type<tc>, window_params = [{transform_indices = @transform_0, window_bounds = array<i64: 512, 8>}, {transform_indices = @transform_1, window_bounds = array<i64: 1, 1, 8>}, {transform_indices = @transform_2, window_bounds = array<i64: 1, 1, 8>}]} {
    %c0 = arith.constant 0 : index
    %c0_0 = arith.constant 0 : index
    %0 = vector.load %arg1[%c0, %c0_0] : memref<512x8xf32, #tpu.memory_space<vmem>>, vector<512x8xf32>
    %cst = arith.constant dense<0.000000e+00> : vector<8xf32>
    %1 = vector.multi_reduction <add>, %0, %cst [0] : vector<512x8xf32> to vector<8xf32>
    %2 = vector.shape_cast %1 : vector<8xf32> to vector<1x8xf32>
    %c0_1 = arith.constant 0 : index
    %c0_2 = arith.constant 0 : index
    %c0_3 = arith.constant 0 : index
    %3 = vector.load %arg2[%c0_1, %c0_2, %c0_3] : memref<1x1x8xf32, #tpu.memory_space<vmem>>, vector<1x1x8xf32>
    %4 = vector.shape_cast %3 : vector<1x1x8xf32> to vector<1x8xf32>
    %5 = vector.shape_cast %2 : vector<1x8xf32> to vector<1x1x8xf32>
    tpu.vector_store %arg2[%c0_1, %c0_2, %c0_3], %5 {strides = array<i32>} : memref<1x1x8xf32, #tpu.memory_space<vmem>>, vector<1x1x8xf32>,
    %6 = arith.mulf %0, %0 : vector<512x8xf32>
    %cst_4 = arith.constant dense<0.000000e+00> : vector<8xf32>
    %7 = vector.multi_reduction <add>, %6, %cst_4 [0] : vector<512x8xf32> to vector<8xf32>
    %8 = vector.shape_cast %7 : vector<8xf32> to vector<1x8xf32>
    %c0_5 = arith.constant 0 : index
    %c0_6 = arith.constant 0 : index
    %c0_7 = arith.constant 0 : index
    %9 = vector.load %arg3[%c0_5, %c0_6, %c0_7] : memref<1x1x8xf32, #tpu.memory_space<vmem>>, vector<1x1x8xf32>
    %10 = vector.shape_cast %9 : vector<1x1x8xf32> to vector<1x8xf32>
    %11 = vector.shape_cast %8 : vector<1x8xf32> to vector<1x1x8xf32>
    tpu.vector_store %arg3[%c0_5, %c0_6, %c0_7], %11 {strides = array<i32>} : memref<1x1x8xf32, #tpu.memory_space<vmem>>, vector<1x1x8xf32>,
    return
  }
  func.func @transform_0(%arg0: i32) -> (i32, i32) {
    %c0_i32 = arith.constant 0 : i32
    %c0_i32_0 = arith.constant 0 : i32
    return %arg0, %c0_i32 : i32, i32
  }
  func.func @transform_1(%arg0: i32) -> (i32, i32, i32) {
    %c0_i32 = arith.constant 0 : i32
    %c0_i32_0 = arith.constant 0 : i32
    %c0_i32_1 = arith.constant 0 : i32
    return %arg0, %c0_i32, %c0_i32_0 : i32, i32, i32
  }
  func.func @transform_2(%arg0: i32) -> (i32, i32, i32) {
    %c0_i32 = arith.constant 0 : i32
    %c0_i32_0 = arith.constant 0 : i32
    %c0_i32_1 = arith.constant 0 : i32
    return %arg0, %c0_i32, %c0_i32_0 : i32, i32, i32
  }
}

module attributes {stable_mosaic.version = 11 : i64} {
  func.func @_scale_shift_relu_kernel(%arg0: i32, %arg1: memref<512x8xf32, #tpu.memory_space<vmem>>, %arg2: memref<1x8xf32, #tpu.memory_space<vmem>>, %arg3: memref<1x8xf32, #tpu.memory_space<vmem>>, %arg4: memref<512x8xf32, #tpu.memory_space<vmem>>) attributes {dimension_semantics = [#tpu.dimension_semantics<parallel>], iteration_bounds = array<i64: 1>, scalar_prefetch = 0 : i64, scratch_operands = 0 : i64, tpu.core_type = #tpu.core_type<tc>, window_params = [{transform_indices = @transform_0, window_bounds = array<i64: 512, 8>}, {pipeline_mode = #tpu.pipeline_mode<synchronous>, transform_indices = @transform_1, window_bounds = array<i64: 1, 8>}, {pipeline_mode = #tpu.pipeline_mode<synchronous>, transform_indices = @transform_2, window_bounds = array<i64: 1, 8>}, {transform_indices = @transform_3, window_bounds = array<i64: 512, 8>}]} {
    %c0 = arith.constant 0 : index
    %c0_0 = arith.constant 0 : index
    %0 = vector.load %arg1[%c0, %c0_0] : memref<512x8xf32, #tpu.memory_space<vmem>>, vector<512x8xf32>
    %c0_1 = arith.constant 0 : index
    %c0_2 = arith.constant 0 : index
    %1 = vector.load %arg2[%c0_1, %c0_2] : memref<1x8xf32, #tpu.memory_space<vmem>>, vector<1x8xf32>
    %2 = vector.broadcast %1 : vector<1x8xf32> to vector<512x8xf32>
    %3 = arith.mulf %0, %2 : vector<512x8xf32>
    %c0_3 = arith.constant 0 : index
    %c0_4 = arith.constant 0 : index
    %4 = vector.load %arg3[%c0_3, %c0_4] : memref<1x8xf32, #tpu.memory_space<vmem>>, vector<1x8xf32>
    %5 = vector.broadcast %4 : vector<1x8xf32> to vector<512x8xf32>
    %6 = arith.addf %3, %5 : vector<512x8xf32>
    %cst = arith.constant 0.000000e+00 : f32
    %7 = vector.broadcast %cst : f32 to vector<512x8xf32>
    %8 = arith.maximumf %6, %7 : vector<512x8xf32>
    %c0_5 = arith.constant 0 : index
    %c0_6 = arith.constant 0 : index
    %9 = vector.load %arg4[%c0_5, %c0_6] : memref<512x8xf32, #tpu.memory_space<vmem>>, vector<512x8xf32>
    tpu.vector_store %arg4[%c0_5, %c0_6], %8 {strides = array<i32>} : memref<512x8xf32, #tpu.memory_space<vmem>>, vector<512x8xf32>,
    return
  }
  func.func @transform_0(%arg0: i32) -> (i32, i32) {
    %c0_i32 = arith.constant 0 : i32
    %c0_i32_0 = arith.constant 0 : i32
    return %arg0, %c0_i32 : i32, i32
  }
  func.func @transform_1(%arg0: i32) -> (i32, i32) {
    %c0_i32 = arith.constant 0 : i32
    %c0_i32_0 = arith.constant 0 : i32
    %c0_i32_1 = arith.constant 0 : i32
    return %c0_i32, %c0_i32_0 : i32, i32
  }
  func.func @transform_2(%arg0: i32) -> (i32, i32) {
    %c0_i32 = arith.constant 0 : i32
    %c0_i32_0 = arith.constant 0 : i32
    %c0_i32_1 = arith.constant 0 : i32
    return %c0_i32, %c0_i32_0 : i32, i32
  }
  func.func @transform_3(%arg0: i32) -> (i32, i32) {
    %c0_i32 = arith.constant 0 : i32
    %c0_i32_0 = arith.constant 0 : i32
    return %arg0, %c0_i32 : i32, i32
  }
}

module attributes {stable_mosaic.version = 11 : i64} {
  func.func @_dilated_conv_stats_kernel(%arg0: i32, %arg1: i32, %arg2: memref<1x1x20x20x8xf32, #tpu.memory_space<vmem>>, %arg3: memref<1x1x20x20x8xf32, #tpu.memory_space<vmem>>, %arg4: memref<9x8x8xf32, #tpu.memory_space<vmem>>, %arg5: memref<9x8x8xf32, #tpu.memory_space<vmem>>, %arg6: memref<1x16x16x8xf32, #tpu.memory_space<vmem>>, %arg7: memref<1x1x1x8xf32, #tpu.memory_space<vmem>>, %arg8: memref<1x1x1x8xf32, #tpu.memory_space<vmem>>) attributes {dimension_semantics = [#tpu.dimension_semantics<parallel>, #tpu.dimension_semantics<parallel>], iteration_bounds = array<i64: 2, 1>, scalar_prefetch = 0 : i64, scratch_operands = 0 : i64, tpu.core_type = #tpu.core_type<tc>, window_params = [{transform_indices = @transform_0, window_bounds = array<i64: 1, 1, 20, 20, 8>}, {transform_indices = @transform_1, window_bounds = array<i64: 1, 1, 20, 20, 8>}, {pipeline_mode = #tpu.pipeline_mode<synchronous>, transform_indices = @transform_2, window_bounds = array<i64: 9, 8, 8>}, {pipeline_mode = #tpu.pipeline_mode<synchronous>, transform_indices = @transform_3, window_bounds = array<i64: 9, 8, 8>}, {transform_indices = @transform_4, window_bounds = array<i64: 1, 16, 16, 8>}, {transform_indices = @transform_5, window_bounds = array<i64: 1, 1, 1, 8>}, {transform_indices = @transform_6, window_bounds = array<i64: 1, 1, 1, 8>}]} {
    %c0 = arith.constant 0 : index
    %c0_0 = arith.constant 0 : index
    %c0_1 = arith.constant 0 : index
    %c0_2 = arith.constant 0 : index
    %c0_3 = arith.constant 0 : index
    %0 = vector.load %arg2[%c0, %c0_0, %c0_1, %c0_2, %c0_3] : memref<1x1x20x20x8xf32, #tpu.memory_space<vmem>>, vector<1x1x16x16x8xf32>
    %1 = vector.shape_cast %0 : vector<1x1x16x16x8xf32> to vector<16x16x8xf32>
    %2 = vector.shape_cast %1 : vector<16x16x8xf32> to vector<256x8xf32>
    %c0_4 = arith.constant 0 : index
    %c0_5 = arith.constant 0 : index
    %c0_6 = arith.constant 0 : index
    %3 = vector.load %arg4[%c0_4, %c0_5, %c0_6] : memref<9x8x8xf32, #tpu.memory_space<vmem>>, vector<1x8x8xf32>
    %4 = vector.shape_cast %3 : vector<1x8x8xf32> to vector<8x8xf32>
    %cst = arith.constant dense<0.000000e+00> : vector<256x8xf32>
    %5 = tpu.matmul %2, %4, %cst {dimension_numbers = #tpu.dot_dimension_numbers<[1], [0], [0], [1], [0, 0, 1, 1], [], []>} : vector<256x8xf32>, vector<8x8xf32>, vector<256x8xf32> -> vector<256x8xf32>
    %c0_7 = arith.constant 0 : index
    %c0_8 = arith.constant 0 : index
    %c0_9 = arith.constant 0 : index
    %c2 = arith.constant 2 : index
    %c0_10 = arith.constant 0 : index
    %6 = vector.load %arg2[%c0_7, %c0_8, %c0_9, %c2, %c0_10] : memref<1x1x20x20x8xf32, #tpu.memory_space<vmem>>, vector<1x1x16x16x8xf32>
    %7 = vector.shape_cast %6 : vector<1x1x16x16x8xf32> to vector<16x16x8xf32>
    %8 = vector.shape_cast %7 : vector<16x16x8xf32> to vector<256x8xf32>
    %c1 = arith.constant 1 : index
    %c0_11 = arith.constant 0 : index
    %c0_12 = arith.constant 0 : index
    %9 = vector.load %arg4[%c1, %c0_11, %c0_12] : memref<9x8x8xf32, #tpu.memory_space<vmem>>, vector<1x8x8xf32>
    %10 = vector.shape_cast %9 : vector<1x8x8xf32> to vector<8x8xf32>
    %cst_13 = arith.constant dense<0.000000e+00> : vector<256x8xf32>
    %11 = tpu.matmul %8, %10, %cst_13 {dimension_numbers = #tpu.dot_dimension_numbers<[1], [0], [0], [1], [0, 0, 1, 1], [], []>} : vector<256x8xf32>, vector<8x8xf32>, vector<256x8xf32> -> vector<256x8xf32>
    %12 = arith.addf %5, %11 : vector<256x8xf32>
    %c0_14 = arith.constant 0 : index
    %c0_15 = arith.constant 0 : index
    %c0_16 = arith.constant 0 : index
    %c4 = arith.constant 4 : index
    %c0_17 = arith.constant 0 : index
    %13 = vector.load %arg2[%c0_14, %c0_15, %c0_16, %c4, %c0_17] : memref<1x1x20x20x8xf32, #tpu.memory_space<vmem>>, vector<1x1x16x16x8xf32>
    %14 = vector.shape_cast %13 : vector<1x1x16x16x8xf32> to vector<16x16x8xf32>
    %15 = vector.shape_cast %14 : vector<16x16x8xf32> to vector<256x8xf32>
    %c2_18 = arith.constant 2 : index
    %c0_19 = arith.constant 0 : index
    %c0_20 = arith.constant 0 : index
    %16 = vector.load %arg4[%c2_18, %c0_19, %c0_20] : memref<9x8x8xf32, #tpu.memory_space<vmem>>, vector<1x8x8xf32>
    %17 = vector.shape_cast %16 : vector<1x8x8xf32> to vector<8x8xf32>
    %cst_21 = arith.constant dense<0.000000e+00> : vector<256x8xf32>
    %18 = tpu.matmul %15, %17, %cst_21 {dimension_numbers = #tpu.dot_dimension_numbers<[1], [0], [0], [1], [0, 0, 1, 1], [], []>} : vector<256x8xf32>, vector<8x8xf32>, vector<256x8xf32> -> vector<256x8xf32>
    %19 = arith.addf %12, %18 : vector<256x8xf32>
    %c0_22 = arith.constant 0 : index
    %c0_23 = arith.constant 0 : index
    %c2_24 = arith.constant 2 : index
    %c0_25 = arith.constant 0 : index
    %c0_26 = arith.constant 0 : index
    %20 = vector.load %arg2[%c0_22, %c0_23, %c2_24, %c0_25, %c0_26] : memref<1x1x20x20x8xf32, #tpu.memory_space<vmem>>, vector<1x1x16x16x8xf32>
    %21 = vector.shape_cast %20 : vector<1x1x16x16x8xf32> to vector<16x16x8xf32>
    %22 = vector.shape_cast %21 : vector<16x16x8xf32> to vector<256x8xf32>
    %c3 = arith.constant 3 : index
    %c0_27 = arith.constant 0 : index
    %c0_28 = arith.constant 0 : index
    %23 = vector.load %arg4[%c3, %c0_27, %c0_28] : memref<9x8x8xf32, #tpu.memory_space<vmem>>, vector<1x8x8xf32>
    %24 = vector.shape_cast %23 : vector<1x8x8xf32> to vector<8x8xf32>
    %cst_29 = arith.constant dense<0.000000e+00> : vector<256x8xf32>
    %25 = tpu.matmul %22, %24, %cst_29 {dimension_numbers = #tpu.dot_dimension_numbers<[1], [0], [0], [1], [0, 0, 1, 1], [], []>} : vector<256x8xf32>, vector<8x8xf32>, vector<256x8xf32> -> vector<256x8xf32>
    %26 = arith.addf %19, %25 : vector<256x8xf32>
    %c0_30 = arith.constant 0 : index
    %c0_31 = arith.constant 0 : index
    %c2_32 = arith.constant 2 : index
    %c2_33 = arith.constant 2 : index
    %c0_34 = arith.constant 0 : index
    %27 = vector.load %arg2[%c0_30, %c0_31, %c2_32, %c2_33, %c0_34] : memref<1x1x20x20x8xf32, #tpu.memory_space<vmem>>, vector<1x1x16x16x8xf32>
    %28 = vector.shape_cast %27 : vector<1x1x16x16x8xf32> to vector<16x16x8xf32>
    %29 = vector.shape_cast %28 : vector<16x16x8xf32> to vector<256x8xf32>
    %c4_35 = arith.constant 4 : index
    %c0_36 = arith.constant 0 : index
    %c0_37 = arith.constant 0 : index
    %30 = vector.load %arg4[%c4_35, %c0_36, %c0_37] : memref<9x8x8xf32, #tpu.memory_space<vmem>>, vector<1x8x8xf32>
    %31 = vector.shape_cast %30 : vector<1x8x8xf32> to vector<8x8xf32>
    %cst_38 = arith.constant dense<0.000000e+00> : vector<256x8xf32>
    %32 = tpu.matmul %29, %31, %cst_38 {dimension_numbers = #tpu.dot_dimension_numbers<[1], [0], [0], [1], [0, 0, 1, 1], [], []>} : vector<256x8xf32>, vector<8x8xf32>, vector<256x8xf32> -> vector<256x8xf32>
    %33 = arith.addf %26, %32 : vector<256x8xf32>
    %c0_39 = arith.constant 0 : index
    %c0_40 = arith.constant 0 : index
    %c2_41 = arith.constant 2 : index
    %c4_42 = arith.constant 4 : index
    %c0_43 = arith.constant 0 : index
    %34 = vector.load %arg2[%c0_39, %c0_40, %c2_41, %c4_42, %c0_43] : memref<1x1x20x20x8xf32, #tpu.memory_space<vmem>>, vector<1x1x16x16x8xf32>
    %35 = vector.shape_cast %34 : vector<1x1x16x16x8xf32> to vector<16x16x8xf32>
    %36 = vector.shape_cast %35 : vector<16x16x8xf32> to vector<256x8xf32>
    %c5 = arith.constant 5 : index
    %c0_44 = arith.constant 0 : index
    %c0_45 = arith.constant 0 : index
    %37 = vector.load %arg4[%c5, %c0_44, %c0_45] : memref<9x8x8xf32, #tpu.memory_space<vmem>>, vector<1x8x8xf32>
    %38 = vector.shape_cast %37 : vector<1x8x8xf32> to vector<8x8xf32>
    %cst_46 = arith.constant dense<0.000000e+00> : vector<256x8xf32>
    %39 = tpu.matmul %36, %38, %cst_46 {dimension_numbers = #tpu.dot_dimension_numbers<[1], [0], [0], [1], [0, 0, 1, 1], [], []>} : vector<256x8xf32>, vector<8x8xf32>, vector<256x8xf32> -> vector<256x8xf32>
    %40 = arith.addf %33, %39 : vector<256x8xf32>
    %c0_47 = arith.constant 0 : index
    %c0_48 = arith.constant 0 : index
    %c4_49 = arith.constant 4 : index
    %c0_50 = arith.constant 0 : index
    %c0_51 = arith.constant 0 : index
    %41 = vector.load %arg2[%c0_47, %c0_48, %c4_49, %c0_50, %c0_51] : memref<1x1x20x20x8xf32, #tpu.memory_space<vmem>>, vector<1x1x16x16x8xf32>
    %42 = vector.shape_cast %41 : vector<1x1x16x16x8xf32> to vector<16x16x8xf32>
    %43 = vector.shape_cast %42 : vector<16x16x8xf32> to vector<256x8xf32>
    %c6 = arith.constant 6 : index
    %c0_52 = arith.constant 0 : index
    %c0_53 = arith.constant 0 : index
    %44 = vector.load %arg4[%c6, %c0_52, %c0_53] : memref<9x8x8xf32, #tpu.memory_space<vmem>>, vector<1x8x8xf32>
    %45 = vector.shape_cast %44 : vector<1x8x8xf32> to vector<8x8xf32>
    %cst_54 = arith.constant dense<0.000000e+00> : vector<256x8xf32>
    %46 = tpu.matmul %43, %45, %cst_54 {dimension_numbers = #tpu.dot_dimension_numbers<[1], [0], [0], [1], [0, 0, 1, 1], [], []>} : vector<256x8xf32>, vector<8x8xf32>, vector<256x8xf32> -> vector<256x8xf32>
    %47 = arith.addf %40, %46 : vector<256x8xf32>
    %c0_55 = arith.constant 0 : index
    %c0_56 = arith.constant 0 : index
    %c4_57 = arith.constant 4 : index
    %c2_58 = arith.constant 2 : index
    %c0_59 = arith.constant 0 : index
    %48 = vector.load %arg2[%c0_55, %c0_56, %c4_57, %c2_58, %c0_59] : memref<1x1x20x20x8xf32, #tpu.memory_space<vmem>>, vector<1x1x16x16x8xf32>
    %49 = vector.shape_cast %48 : vector<1x1x16x16x8xf32> to vector<16x16x8xf32>
    %50 = vector.shape_cast %49 : vector<16x16x8xf32> to vector<256x8xf32>
    %c7 = arith.constant 7 : index
    %c0_60 = arith.constant 0 : index
    %c0_61 = arith.constant 0 : index
    %51 = vector.load %arg4[%c7, %c0_60, %c0_61] : memref<9x8x8xf32, #tpu.memory_space<vmem>>, vector<1x8x8xf32>
    %52 = vector.shape_cast %51 : vector<1x8x8xf32> to vector<8x8xf32>
    %cst_62 = arith.constant dense<0.000000e+00> : vector<256x8xf32>
    %53 = tpu.matmul %50, %52, %cst_62 {dimension_numbers = #tpu.dot_dimension_numbers<[1], [0], [0], [1], [0, 0, 1, 1], [], []>} : vector<256x8xf32>, vector<8x8xf32>, vector<256x8xf32> -> vector<256x8xf32>
    %54 = arith.addf %47, %53 : vector<256x8xf32>
    %c0_63 = arith.constant 0 : index
    %c0_64 = arith.constant 0 : index
    %c4_65 = arith.constant 4 : index
    %c4_66 = arith.constant 4 : index
    %c0_67 = arith.constant 0 : index
    %55 = vector.load %arg2[%c0_63, %c0_64, %c4_65, %c4_66, %c0_67] : memref<1x1x20x20x8xf32, #tpu.memory_space<vmem>>, vector<1x1x16x16x8xf32>
    %56 = vector.shape_cast %55 : vector<1x1x16x16x8xf32> to vector<16x16x8xf32>
    %57 = vector.shape_cast %56 : vector<16x16x8xf32> to vector<256x8xf32>
    %c8 = arith.constant 8 : index
    %c0_68 = arith.constant 0 : index
    %c0_69 = arith.constant 0 : index
    %58 = vector.load %arg4[%c8, %c0_68, %c0_69] : memref<9x8x8xf32, #tpu.memory_space<vmem>>, vector<1x8x8xf32>
    %59 = vector.shape_cast %58 : vector<1x8x8xf32> to vector<8x8xf32>
    %cst_70 = arith.constant dense<0.000000e+00> : vector<256x8xf32>
    %60 = tpu.matmul %57, %59, %cst_70 {dimension_numbers = #tpu.dot_dimension_numbers<[1], [0], [0], [1], [0, 0, 1, 1], [], []>} : vector<256x8xf32>, vector<8x8xf32>, vector<256x8xf32> -> vector<256x8xf32>
    %61 = arith.addf %54, %60 : vector<256x8xf32>
    %c0_71 = arith.constant 0 : index
    %c0_72 = arith.constant 0 : index
    %c0_73 = arith.constant 0 : index
    %c0_74 = arith.constant 0 : index
    %c0_75 = arith.constant 0 : index
    %62 = vector.load %arg3[%c0_71, %c0_72, %c0_73, %c0_74, %c0_75] : memref<1x1x20x20x8xf32, #tpu.memory_space<vmem>>, vector<1x1x16x16x8xf32>
    %63 = vector.shape_cast %62 : vector<1x1x16x16x8xf32> to vector<16x16x8xf32>
    %64 = vector.shape_cast %63 : vector<16x16x8xf32> to vector<256x8xf32>
    %c0_76 = arith.constant 0 : index
    %c0_77 = arith.constant 0 : index
    %c0_78 = arith.constant 0 : index
    %65 = vector.load %arg5[%c0_76, %c0_77, %c0_78] : memref<9x8x8xf32, #tpu.memory_space<vmem>>, vector<1x8x8xf32>
    %66 = vector.shape_cast %65 : vector<1x8x8xf32> to vector<8x8xf32>
    %cst_79 = arith.constant dense<0.000000e+00> : vector<256x8xf32>
    %67 = tpu.matmul %64, %66, %cst_79 {dimension_numbers = #tpu.dot_dimension_numbers<[1], [0], [0], [1], [0, 0, 1, 1], [], []>} : vector<256x8xf32>, vector<8x8xf32>, vector<256x8xf32> -> vector<256x8xf32>
    %68 = arith.addf %61, %67 : vector<256x8xf32>
    %c0_80 = arith.constant 0 : index
    %c0_81 = arith.constant 0 : index
    %c0_82 = arith.constant 0 : index
    %c2_83 = arith.constant 2 : index
    %c0_84 = arith.constant 0 : index
    %69 = vector.load %arg3[%c0_80, %c0_81, %c0_82, %c2_83, %c0_84] : memref<1x1x20x20x8xf32, #tpu.memory_space<vmem>>, vector<1x1x16x16x8xf32>
    %70 = vector.shape_cast %69 : vector<1x1x16x16x8xf32> to vector<16x16x8xf32>
    %71 = vector.shape_cast %70 : vector<16x16x8xf32> to vector<256x8xf32>
    %c1_85 = arith.constant 1 : index
    %c0_86 = arith.constant 0 : index
    %c0_87 = arith.constant 0 : index
    %72 = vector.load %arg5[%c1_85, %c0_86, %c0_87] : memref<9x8x8xf32, #tpu.memory_space<vmem>>, vector<1x8x8xf32>
    %73 = vector.shape_cast %72 : vector<1x8x8xf32> to vector<8x8xf32>
    %cst_88 = arith.constant dense<0.000000e+00> : vector<256x8xf32>
    %74 = tpu.matmul %71, %73, %cst_88 {dimension_numbers = #tpu.dot_dimension_numbers<[1], [0], [0], [1], [0, 0, 1, 1], [], []>} : vector<256x8xf32>, vector<8x8xf32>, vector<256x8xf32> -> vector<256x8xf32>
    %75 = arith.addf %68, %74 : vector<256x8xf32>
    %c0_89 = arith.constant 0 : index
    %c0_90 = arith.constant 0 : index
    %c0_91 = arith.constant 0 : index
    %c4_92 = arith.constant 4 : index
    %c0_93 = arith.constant 0 : index
    %76 = vector.load %arg3[%c0_89, %c0_90, %c0_91, %c4_92, %c0_93] : memref<1x1x20x20x8xf32, #tpu.memory_space<vmem>>, vector<1x1x16x16x8xf32>
    %77 = vector.shape_cast %76 : vector<1x1x16x16x8xf32> to vector<16x16x8xf32>
    %78 = vector.shape_cast %77 : vector<16x16x8xf32> to vector<256x8xf32>
    %c2_94 = arith.constant 2 : index
    %c0_95 = arith.constant 0 : index
    %c0_96 = arith.constant 0 : index
    %79 = vector.load %arg5[%c2_94, %c0_95, %c0_96] : memref<9x8x8xf32, #tpu.memory_space<vmem>>, vector<1x8x8xf32>
    %80 = vector.shape_cast %79 : vector<1x8x8xf32> to vector<8x8xf32>
    %cst_97 = arith.constant dense<0.000000e+00> : vector<256x8xf32>
    %81 = tpu.matmul %78, %80, %cst_97 {dimension_numbers = #tpu.dot_dimension_numbers<[1], [0], [0], [1], [0, 0, 1, 1], [], []>} : vector<256x8xf32>, vector<8x8xf32>, vector<256x8xf32> -> vector<256x8xf32>
    %82 = arith.addf %75, %81 : vector<256x8xf32>
    %c0_98 = arith.constant 0 : index
    %c0_99 = arith.constant 0 : index
    %c2_100 = arith.constant 2 : index
    %c0_101 = arith.constant 0 : index
    %c0_102 = arith.constant 0 : index
    %83 = vector.load %arg3[%c0_98, %c0_99, %c2_100, %c0_101, %c0_102] : memref<1x1x20x20x8xf32, #tpu.memory_space<vmem>>, vector<1x1x16x16x8xf32>
    %84 = vector.shape_cast %83 : vector<1x1x16x16x8xf32> to vector<16x16x8xf32>
    %85 = vector.shape_cast %84 : vector<16x16x8xf32> to vector<256x8xf32>
    %c3_103 = arith.constant 3 : index
    %c0_104 = arith.constant 0 : index
    %c0_105 = arith.constant 0 : index
    %86 = vector.load %arg5[%c3_103, %c0_104, %c0_105] : memref<9x8x8xf32, #tpu.memory_space<vmem>>, vector<1x8x8xf32>
    %87 = vector.shape_cast %86 : vector<1x8x8xf32> to vector<8x8xf32>
    %cst_106 = arith.constant dense<0.000000e+00> : vector<256x8xf32>
    %88 = tpu.matmul %85, %87, %cst_106 {dimension_numbers = #tpu.dot_dimension_numbers<[1], [0], [0], [1], [0, 0, 1, 1], [], []>} : vector<256x8xf32>, vector<8x8xf32>, vector<256x8xf32> -> vector<256x8xf32>
    %89 = arith.addf %82, %88 : vector<256x8xf32>
    %c0_107 = arith.constant 0 : index
    %c0_108 = arith.constant 0 : index
    %c2_109 = arith.constant 2 : index
    %c2_110 = arith.constant 2 : index
    %c0_111 = arith.constant 0 : index
    %90 = vector.load %arg3[%c0_107, %c0_108, %c2_109, %c2_110, %c0_111] : memref<1x1x20x20x8xf32, #tpu.memory_space<vmem>>, vector<1x1x16x16x8xf32>
    %91 = vector.shape_cast %90 : vector<1x1x16x16x8xf32> to vector<16x16x8xf32>
    %92 = vector.shape_cast %91 : vector<16x16x8xf32> to vector<256x8xf32>
    %c4_112 = arith.constant 4 : index
    %c0_113 = arith.constant 0 : index
    %c0_114 = arith.constant 0 : index
    %93 = vector.load %arg5[%c4_112, %c0_113, %c0_114] : memref<9x8x8xf32, #tpu.memory_space<vmem>>, vector<1x8x8xf32>
    %94 = vector.shape_cast %93 : vector<1x8x8xf32> to vector<8x8xf32>
    %cst_115 = arith.constant dense<0.000000e+00> : vector<256x8xf32>
    %95 = tpu.matmul %92, %94, %cst_115 {dimension_numbers = #tpu.dot_dimension_numbers<[1], [0], [0], [1], [0, 0, 1, 1], [], []>} : vector<256x8xf32>, vector<8x8xf32>, vector<256x8xf32> -> vector<256x8xf32>
    %96 = arith.addf %89, %95 : vector<256x8xf32>
    %c0_116 = arith.constant 0 : index
    %c0_117 = arith.constant 0 : index
    %c2_118 = arith.constant 2 : index
    %c4_119 = arith.constant 4 : index
    %c0_120 = arith.constant 0 : index
    %97 = vector.load %arg3[%c0_116, %c0_117, %c2_118, %c4_119, %c0_120] : memref<1x1x20x20x8xf32, #tpu.memory_space<vmem>>, vector<1x1x16x16x8xf32>
    %98 = vector.shape_cast %97 : vector<1x1x16x16x8xf32> to vector<16x16x8xf32>
    %99 = vector.shape_cast %98 : vector<16x16x8xf32> to vector<256x8xf32>
    %c5_121 = arith.constant 5 : index
    %c0_122 = arith.constant 0 : index
    %c0_123 = arith.constant 0 : index
    %100 = vector.load %arg5[%c5_121, %c0_122, %c0_123] : memref<9x8x8xf32, #tpu.memory_space<vmem>>, vector<1x8x8xf32>
    %101 = vector.shape_cast %100 : vector<1x8x8xf32> to vector<8x8xf32>
    %cst_124 = arith.constant dense<0.000000e+00> : vector<256x8xf32>
    %102 = tpu.matmul %99, %101, %cst_124 {dimension_numbers = #tpu.dot_dimension_numbers<[1], [0], [0], [1], [0, 0, 1, 1], [], []>} : vector<256x8xf32>, vector<8x8xf32>, vector<256x8xf32> -> vector<256x8xf32>
    %103 = arith.addf %96, %102 : vector<256x8xf32>
    %c0_125 = arith.constant 0 : index
    %c0_126 = arith.constant 0 : index
    %c4_127 = arith.constant 4 : index
    %c0_128 = arith.constant 0 : index
    %c0_129 = arith.constant 0 : index
    %104 = vector.load %arg3[%c0_125, %c0_126, %c4_127, %c0_128, %c0_129] : memref<1x1x20x20x8xf32, #tpu.memory_space<vmem>>, vector<1x1x16x16x8xf32>
    %105 = vector.shape_cast %104 : vector<1x1x16x16x8xf32> to vector<16x16x8xf32>
    %106 = vector.shape_cast %105 : vector<16x16x8xf32> to vector<256x8xf32>
    %c6_130 = arith.constant 6 : index
    %c0_131 = arith.constant 0 : index
    %c0_132 = arith.constant 0 : index
    %107 = vector.load %arg5[%c6_130, %c0_131, %c0_132] : memref<9x8x8xf32, #tpu.memory_space<vmem>>, vector<1x8x8xf32>
    %108 = vector.shape_cast %107 : vector<1x8x8xf32> to vector<8x8xf32>
    %cst_133 = arith.constant dense<0.000000e+00> : vector<256x8xf32>
    %109 = tpu.matmul %106, %108, %cst_133 {dimension_numbers = #tpu.dot_dimension_numbers<[1], [0], [0], [1], [0, 0, 1, 1], [], []>} : vector<256x8xf32>, vector<8x8xf32>, vector<256x8xf32> -> vector<256x8xf32>
    %110 = arith.addf %103, %109 : vector<256x8xf32>
    %c0_134 = arith.constant 0 : index
    %c0_135 = arith.constant 0 : index
    %c4_136 = arith.constant 4 : index
    %c2_137 = arith.constant 2 : index
    %c0_138 = arith.constant 0 : index
    %111 = vector.load %arg3[%c0_134, %c0_135, %c4_136, %c2_137, %c0_138] : memref<1x1x20x20x8xf32, #tpu.memory_space<vmem>>, vector<1x1x16x16x8xf32>
    %112 = vector.shape_cast %111 : vector<1x1x16x16x8xf32> to vector<16x16x8xf32>
    %113 = vector.shape_cast %112 : vector<16x16x8xf32> to vector<256x8xf32>
    %c7_139 = arith.constant 7 : index
    %c0_140 = arith.constant 0 : index
    %c0_141 = arith.constant 0 : index
    %114 = vector.load %arg5[%c7_139, %c0_140, %c0_141] : memref<9x8x8xf32, #tpu.memory_space<vmem>>, vector<1x8x8xf32>
    %115 = vector.shape_cast %114 : vector<1x8x8xf32> to vector<8x8xf32>
    %cst_142 = arith.constant dense<0.000000e+00> : vector<256x8xf32>
    %116 = tpu.matmul %113, %115, %cst_142 {dimension_numbers = #tpu.dot_dimension_numbers<[1], [0], [0], [1], [0, 0, 1, 1], [], []>} : vector<256x8xf32>, vector<8x8xf32>, vector<256x8xf32> -> vector<256x8xf32>
    %117 = arith.addf %110, %116 : vector<256x8xf32>
    %c0_143 = arith.constant 0 : index
    %c0_144 = arith.constant 0 : index
    %c4_145 = arith.constant 4 : index
    %c4_146 = arith.constant 4 : index
    %c0_147 = arith.constant 0 : index
    %118 = vector.load %arg3[%c0_143, %c0_144, %c4_145, %c4_146, %c0_147] : memref<1x1x20x20x8xf32, #tpu.memory_space<vmem>>, vector<1x1x16x16x8xf32>
    %119 = vector.shape_cast %118 : vector<1x1x16x16x8xf32> to vector<16x16x8xf32>
    %120 = vector.shape_cast %119 : vector<16x16x8xf32> to vector<256x8xf32>
    %c8_148 = arith.constant 8 : index
    %c0_149 = arith.constant 0 : index
    %c0_150 = arith.constant 0 : index
    %121 = vector.load %arg5[%c8_148, %c0_149, %c0_150] : memref<9x8x8xf32, #tpu.memory_space<vmem>>, vector<1x8x8xf32>
    %122 = vector.shape_cast %121 : vector<1x8x8xf32> to vector<8x8xf32>
    %cst_151 = arith.constant dense<0.000000e+00> : vector<256x8xf32>
    %123 = tpu.matmul %120, %122, %cst_151 {dimension_numbers = #tpu.dot_dimension_numbers<[1], [0], [0], [1], [0, 0, 1, 1], [], []>} : vector<256x8xf32>, vector<8x8xf32>, vector<256x8xf32> -> vector<256x8xf32>
    %124 = arith.addf %117, %123 : vector<256x8xf32>
    %125 = vector.shape_cast %124 : vector<256x8xf32> to vector<16x16x8xf32>
    %c0_152 = arith.constant 0 : index
    %c0_153 = arith.constant 0 : index
    %c0_154 = arith.constant 0 : index
    %c0_155 = arith.constant 0 : index
    %126 = vector.load %arg6[%c0_152, %c0_153, %c0_154, %c0_155] : memref<1x16x16x8xf32, #tpu.memory_space<vmem>>, vector<1x16x16x8xf32>
    %127 = vector.shape_cast %126 : vector<1x16x16x8xf32> to vector<16x16x8xf32>
    %128 = vector.shape_cast %125 : vector<16x16x8xf32> to vector<1x16x16x8xf32>
    tpu.vector_store %arg6[%c0_152, %c0_153, %c0_154, %c0_155], %128 {strides = array<i32>} : memref<1x16x16x8xf32, #tpu.memory_space<vmem>>, vector<1x16x16x8xf32>,
    %cst_156 = arith.constant dense<0.000000e+00> : vector<8xf32>
    %129 = vector.multi_reduction <add>, %124, %cst_156 [0] : vector<256x8xf32> to vector<8xf32>
    %130 = vector.shape_cast %129 : vector<8xf32> to vector<1x8xf32>
    %c0_157 = arith.constant 0 : index
    %c0_158 = arith.constant 0 : index
    %c0_159 = arith.constant 0 : index
    %c0_160 = arith.constant 0 : index
    %131 = vector.load %arg7[%c0_157, %c0_158, %c0_159, %c0_160] : memref<1x1x1x8xf32, #tpu.memory_space<vmem>>, vector<1x1x1x8xf32>
    %132 = vector.shape_cast %131 : vector<1x1x1x8xf32> to vector<1x8xf32>
    %133 = vector.shape_cast %130 : vector<1x8xf32> to vector<1x1x1x8xf32>
    tpu.vector_store %arg7[%c0_157, %c0_158, %c0_159, %c0_160], %133 {strides = array<i32>} : memref<1x1x1x8xf32, #tpu.memory_space<vmem>>, vector<1x1x1x8xf32>,
    %134 = arith.mulf %124, %124 : vector<256x8xf32>
    %cst_161 = arith.constant dense<0.000000e+00> : vector<8xf32>
    %135 = vector.multi_reduction <add>, %134, %cst_161 [0] : vector<256x8xf32> to vector<8xf32>
    %136 = vector.shape_cast %135 : vector<8xf32> to vector<1x8xf32>
    %c0_162 = arith.constant 0 : index
    %c0_163 = arith.constant 0 : index
    %c0_164 = arith.constant 0 : index
    %c0_165 = arith.constant 0 : index
    %137 = vector.load %arg8[%c0_162, %c0_163, %c0_164, %c0_165] : memref<1x1x1x8xf32, #tpu.memory_space<vmem>>, vector<1x1x1x8xf32>
    %138 = vector.shape_cast %137 : vector<1x1x1x8xf32> to vector<1x8xf32>
    %139 = vector.shape_cast %136 : vector<1x8xf32> to vector<1x1x1x8xf32>
    tpu.vector_store %arg8[%c0_162, %c0_163, %c0_164, %c0_165], %139 {strides = array<i32>} : memref<1x1x1x8xf32, #tpu.memory_space<vmem>>, vector<1x1x1x8xf32>,
    return
  }
  func.func @transform_0(%arg0: i32, %arg1: i32) -> (i32, i32, i32, i32, i32) {
    %c0_i32 = arith.constant 0 : i32
    %c0_i32_0 = arith.constant 0 : i32
    %c0_i32_1 = arith.constant 0 : i32
    %c0_i32_2 = arith.constant 0 : i32
    return %arg0, %arg1, %c0_i32, %c0_i32_0, %c0_i32_1 : i32, i32, i32, i32, i32
  }
  func.func @transform_1(%arg0: i32, %arg1: i32) -> (i32, i32, i32, i32, i32) {
    %c0_i32 = arith.constant 0 : i32
    %c0_i32_0 = arith.constant 0 : i32
    %c0_i32_1 = arith.constant 0 : i32
    %c0_i32_2 = arith.constant 0 : i32
    return %arg0, %arg1, %c0_i32, %c0_i32_0, %c0_i32_1 : i32, i32, i32, i32, i32
  }
  func.func @transform_2(%arg0: i32, %arg1: i32) -> (i32, i32, i32) {
    %c0_i32 = arith.constant 0 : i32
    %c0_i32_0 = arith.constant 0 : i32
    %c0_i32_1 = arith.constant 0 : i32
    %c0_i32_2 = arith.constant 0 : i32
    return %c0_i32, %c0_i32_0, %c0_i32_1 : i32, i32, i32
  }
  func.func @transform_3(%arg0: i32, %arg1: i32) -> (i32, i32, i32) {
    %c0_i32 = arith.constant 0 : i32
    %c0_i32_0 = arith.constant 0 : i32
    %c0_i32_1 = arith.constant 0 : i32
    %c0_i32_2 = arith.constant 0 : i32
    return %c0_i32, %c0_i32_0, %c0_i32_1 : i32, i32, i32
  }
  func.func @transform_4(%arg0: i32, %arg1: i32) -> (i32, i32, i32, i32) {
    %c0_i32 = arith.constant 0 : i32
    %c0_i32_0 = arith.constant 0 : i32
    %c0_i32_1 = arith.constant 0 : i32
    return %arg0, %arg1, %c0_i32, %c0_i32_0 : i32, i32, i32, i32
  }
  func.func @transform_5(%arg0: i32, %arg1: i32) -> (i32, i32, i32, i32) {
    %c0_i32 = arith.constant 0 : i32
    %c0_i32_0 = arith.constant 0 : i32
    %c0_i32_1 = arith.constant 0 : i32
    return %arg0, %arg1, %c0_i32, %c0_i32_0 : i32, i32, i32, i32
  }
  func.func @transform_6(%arg0: i32, %arg1: i32) -> (i32, i32, i32, i32) {
    %c0_i32 = arith.constant 0 : i32
    %c0_i32_0 = arith.constant 0 : i32
    %c0_i32_1 = arith.constant 0 : i32
    return %arg0, %arg1, %c0_i32, %c0_i32_0 : i32, i32, i32, i32
  }
}

module attributes {stable_mosaic.version = 11 : i64} {
  func.func @_dilated_conv_stats_kernel(%arg0: i32, %arg1: i32, %arg2: memref<1x1x20x20x8xf32, #tpu.memory_space<vmem>>, %arg3: memref<9x8x8xf32, #tpu.memory_space<vmem>>, %arg4: memref<1x16x16x8xf32, #tpu.memory_space<vmem>>, %arg5: memref<1x1x1x8xf32, #tpu.memory_space<vmem>>, %arg6: memref<1x1x1x8xf32, #tpu.memory_space<vmem>>) attributes {dimension_semantics = [#tpu.dimension_semantics<parallel>, #tpu.dimension_semantics<parallel>], iteration_bounds = array<i64: 2, 1>, scalar_prefetch = 0 : i64, scratch_operands = 0 : i64, tpu.core_type = #tpu.core_type<tc>, window_params = [{transform_indices = @transform_0, window_bounds = array<i64: 1, 1, 20, 20, 8>}, {pipeline_mode = #tpu.pipeline_mode<synchronous>, transform_indices = @transform_1, window_bounds = array<i64: 9, 8, 8>}, {transform_indices = @transform_2, window_bounds = array<i64: 1, 16, 16, 8>}, {transform_indices = @transform_3, window_bounds = array<i64: 1, 1, 1, 8>}, {transform_indices = @transform_4, window_bounds = array<i64: 1, 1, 1, 8>}]} {
    %c0 = arith.constant 0 : index
    %c0_0 = arith.constant 0 : index
    %c0_1 = arith.constant 0 : index
    %c0_2 = arith.constant 0 : index
    %c0_3 = arith.constant 0 : index
    %0 = vector.load %arg2[%c0, %c0_0, %c0_1, %c0_2, %c0_3] : memref<1x1x20x20x8xf32, #tpu.memory_space<vmem>>, vector<1x1x16x16x8xf32>
    %1 = vector.shape_cast %0 : vector<1x1x16x16x8xf32> to vector<16x16x8xf32>
    %2 = vector.shape_cast %1 : vector<16x16x8xf32> to vector<256x8xf32>
    %c0_4 = arith.constant 0 : index
    %c0_5 = arith.constant 0 : index
    %c0_6 = arith.constant 0 : index
    %3 = vector.load %arg3[%c0_4, %c0_5, %c0_6] : memref<9x8x8xf32, #tpu.memory_space<vmem>>, vector<1x8x8xf32>
    %4 = vector.shape_cast %3 : vector<1x8x8xf32> to vector<8x8xf32>
    %cst = arith.constant dense<0.000000e+00> : vector<256x8xf32>
    %5 = tpu.matmul %2, %4, %cst {dimension_numbers = #tpu.dot_dimension_numbers<[1], [0], [0], [1], [0, 0, 1, 1], [], []>} : vector<256x8xf32>, vector<8x8xf32>, vector<256x8xf32> -> vector<256x8xf32>
    %c0_7 = arith.constant 0 : index
    %c0_8 = arith.constant 0 : index
    %c0_9 = arith.constant 0 : index
    %c2 = arith.constant 2 : index
    %c0_10 = arith.constant 0 : index
    %6 = vector.load %arg2[%c0_7, %c0_8, %c0_9, %c2, %c0_10] : memref<1x1x20x20x8xf32, #tpu.memory_space<vmem>>, vector<1x1x16x16x8xf32>
    %7 = vector.shape_cast %6 : vector<1x1x16x16x8xf32> to vector<16x16x8xf32>
    %8 = vector.shape_cast %7 : vector<16x16x8xf32> to vector<256x8xf32>
    %c1 = arith.constant 1 : index
    %c0_11 = arith.constant 0 : index
    %c0_12 = arith.constant 0 : index
    %9 = vector.load %arg3[%c1, %c0_11, %c0_12] : memref<9x8x8xf32, #tpu.memory_space<vmem>>, vector<1x8x8xf32>
    %10 = vector.shape_cast %9 : vector<1x8x8xf32> to vector<8x8xf32>
    %cst_13 = arith.constant dense<0.000000e+00> : vector<256x8xf32>
    %11 = tpu.matmul %8, %10, %cst_13 {dimension_numbers = #tpu.dot_dimension_numbers<[1], [0], [0], [1], [0, 0, 1, 1], [], []>} : vector<256x8xf32>, vector<8x8xf32>, vector<256x8xf32> -> vector<256x8xf32>
    %12 = arith.addf %5, %11 : vector<256x8xf32>
    %c0_14 = arith.constant 0 : index
    %c0_15 = arith.constant 0 : index
    %c0_16 = arith.constant 0 : index
    %c4 = arith.constant 4 : index
    %c0_17 = arith.constant 0 : index
    %13 = vector.load %arg2[%c0_14, %c0_15, %c0_16, %c4, %c0_17] : memref<1x1x20x20x8xf32, #tpu.memory_space<vmem>>, vector<1x1x16x16x8xf32>
    %14 = vector.shape_cast %13 : vector<1x1x16x16x8xf32> to vector<16x16x8xf32>
    %15 = vector.shape_cast %14 : vector<16x16x8xf32> to vector<256x8xf32>
    %c2_18 = arith.constant 2 : index
    %c0_19 = arith.constant 0 : index
    %c0_20 = arith.constant 0 : index
    %16 = vector.load %arg3[%c2_18, %c0_19, %c0_20] : memref<9x8x8xf32, #tpu.memory_space<vmem>>, vector<1x8x8xf32>
    %17 = vector.shape_cast %16 : vector<1x8x8xf32> to vector<8x8xf32>
    %cst_21 = arith.constant dense<0.000000e+00> : vector<256x8xf32>
    %18 = tpu.matmul %15, %17, %cst_21 {dimension_numbers = #tpu.dot_dimension_numbers<[1], [0], [0], [1], [0, 0, 1, 1], [], []>} : vector<256x8xf32>, vector<8x8xf32>, vector<256x8xf32> -> vector<256x8xf32>
    %19 = arith.addf %12, %18 : vector<256x8xf32>
    %c0_22 = arith.constant 0 : index
    %c0_23 = arith.constant 0 : index
    %c2_24 = arith.constant 2 : index
    %c0_25 = arith.constant 0 : index
    %c0_26 = arith.constant 0 : index
    %20 = vector.load %arg2[%c0_22, %c0_23, %c2_24, %c0_25, %c0_26] : memref<1x1x20x20x8xf32, #tpu.memory_space<vmem>>, vector<1x1x16x16x8xf32>
    %21 = vector.shape_cast %20 : vector<1x1x16x16x8xf32> to vector<16x16x8xf32>
    %22 = vector.shape_cast %21 : vector<16x16x8xf32> to vector<256x8xf32>
    %c3 = arith.constant 3 : index
    %c0_27 = arith.constant 0 : index
    %c0_28 = arith.constant 0 : index
    %23 = vector.load %arg3[%c3, %c0_27, %c0_28] : memref<9x8x8xf32, #tpu.memory_space<vmem>>, vector<1x8x8xf32>
    %24 = vector.shape_cast %23 : vector<1x8x8xf32> to vector<8x8xf32>
    %cst_29 = arith.constant dense<0.000000e+00> : vector<256x8xf32>
    %25 = tpu.matmul %22, %24, %cst_29 {dimension_numbers = #tpu.dot_dimension_numbers<[1], [0], [0], [1], [0, 0, 1, 1], [], []>} : vector<256x8xf32>, vector<8x8xf32>, vector<256x8xf32> -> vector<256x8xf32>
    %26 = arith.addf %19, %25 : vector<256x8xf32>
    %c0_30 = arith.constant 0 : index
    %c0_31 = arith.constant 0 : index
    %c2_32 = arith.constant 2 : index
    %c2_33 = arith.constant 2 : index
    %c0_34 = arith.constant 0 : index
    %27 = vector.load %arg2[%c0_30, %c0_31, %c2_32, %c2_33, %c0_34] : memref<1x1x20x20x8xf32, #tpu.memory_space<vmem>>, vector<1x1x16x16x8xf32>
    %28 = vector.shape_cast %27 : vector<1x1x16x16x8xf32> to vector<16x16x8xf32>
    %29 = vector.shape_cast %28 : vector<16x16x8xf32> to vector<256x8xf32>
    %c4_35 = arith.constant 4 : index
    %c0_36 = arith.constant 0 : index
    %c0_37 = arith.constant 0 : index
    %30 = vector.load %arg3[%c4_35, %c0_36, %c0_37] : memref<9x8x8xf32, #tpu.memory_space<vmem>>, vector<1x8x8xf32>
    %31 = vector.shape_cast %30 : vector<1x8x8xf32> to vector<8x8xf32>
    %cst_38 = arith.constant dense<0.000000e+00> : vector<256x8xf32>
    %32 = tpu.matmul %29, %31, %cst_38 {dimension_numbers = #tpu.dot_dimension_numbers<[1], [0], [0], [1], [0, 0, 1, 1], [], []>} : vector<256x8xf32>, vector<8x8xf32>, vector<256x8xf32> -> vector<256x8xf32>
    %33 = arith.addf %26, %32 : vector<256x8xf32>
    %c0_39 = arith.constant 0 : index
    %c0_40 = arith.constant 0 : index
    %c2_41 = arith.constant 2 : index
    %c4_42 = arith.constant 4 : index
    %c0_43 = arith.constant 0 : index
    %34 = vector.load %arg2[%c0_39, %c0_40, %c2_41, %c4_42, %c0_43] : memref<1x1x20x20x8xf32, #tpu.memory_space<vmem>>, vector<1x1x16x16x8xf32>
    %35 = vector.shape_cast %34 : vector<1x1x16x16x8xf32> to vector<16x16x8xf32>
    %36 = vector.shape_cast %35 : vector<16x16x8xf32> to vector<256x8xf32>
    %c5 = arith.constant 5 : index
    %c0_44 = arith.constant 0 : index
    %c0_45 = arith.constant 0 : index
    %37 = vector.load %arg3[%c5, %c0_44, %c0_45] : memref<9x8x8xf32, #tpu.memory_space<vmem>>, vector<1x8x8xf32>
    %38 = vector.shape_cast %37 : vector<1x8x8xf32> to vector<8x8xf32>
    %cst_46 = arith.constant dense<0.000000e+00> : vector<256x8xf32>
    %39 = tpu.matmul %36, %38, %cst_46 {dimension_numbers = #tpu.dot_dimension_numbers<[1], [0], [0], [1], [0, 0, 1, 1], [], []>} : vector<256x8xf32>, vector<8x8xf32>, vector<256x8xf32> -> vector<256x8xf32>
    %40 = arith.addf %33, %39 : vector<256x8xf32>
    %c0_47 = arith.constant 0 : index
    %c0_48 = arith.constant 0 : index
    %c4_49 = arith.constant 4 : index
    %c0_50 = arith.constant 0 : index
    %c0_51 = arith.constant 0 : index
    %41 = vector.load %arg2[%c0_47, %c0_48, %c4_49, %c0_50, %c0_51] : memref<1x1x20x20x8xf32, #tpu.memory_space<vmem>>, vector<1x1x16x16x8xf32>
    %42 = vector.shape_cast %41 : vector<1x1x16x16x8xf32> to vector<16x16x8xf32>
    %43 = vector.shape_cast %42 : vector<16x16x8xf32> to vector<256x8xf32>
    %c6 = arith.constant 6 : index
    %c0_52 = arith.constant 0 : index
    %c0_53 = arith.constant 0 : index
    %44 = vector.load %arg3[%c6, %c0_52, %c0_53] : memref<9x8x8xf32, #tpu.memory_space<vmem>>, vector<1x8x8xf32>
    %45 = vector.shape_cast %44 : vector<1x8x8xf32> to vector<8x8xf32>
    %cst_54 = arith.constant dense<0.000000e+00> : vector<256x8xf32>
    %46 = tpu.matmul %43, %45, %cst_54 {dimension_numbers = #tpu.dot_dimension_numbers<[1], [0], [0], [1], [0, 0, 1, 1], [], []>} : vector<256x8xf32>, vector<8x8xf32>, vector<256x8xf32> -> vector<256x8xf32>
    %47 = arith.addf %40, %46 : vector<256x8xf32>
    %c0_55 = arith.constant 0 : index
    %c0_56 = arith.constant 0 : index
    %c4_57 = arith.constant 4 : index
    %c2_58 = arith.constant 2 : index
    %c0_59 = arith.constant 0 : index
    %48 = vector.load %arg2[%c0_55, %c0_56, %c4_57, %c2_58, %c0_59] : memref<1x1x20x20x8xf32, #tpu.memory_space<vmem>>, vector<1x1x16x16x8xf32>
    %49 = vector.shape_cast %48 : vector<1x1x16x16x8xf32> to vector<16x16x8xf32>
    %50 = vector.shape_cast %49 : vector<16x16x8xf32> to vector<256x8xf32>
    %c7 = arith.constant 7 : index
    %c0_60 = arith.constant 0 : index
    %c0_61 = arith.constant 0 : index
    %51 = vector.load %arg3[%c7, %c0_60, %c0_61] : memref<9x8x8xf32, #tpu.memory_space<vmem>>, vector<1x8x8xf32>
    %52 = vector.shape_cast %51 : vector<1x8x8xf32> to vector<8x8xf32>
    %cst_62 = arith.constant dense<0.000000e+00> : vector<256x8xf32>
    %53 = tpu.matmul %50, %52, %cst_62 {dimension_numbers = #tpu.dot_dimension_numbers<[1], [0], [0], [1], [0, 0, 1, 1], [], []>} : vector<256x8xf32>, vector<8x8xf32>, vector<256x8xf32> -> vector<256x8xf32>
    %54 = arith.addf %47, %53 : vector<256x8xf32>
    %c0_63 = arith.constant 0 : index
    %c0_64 = arith.constant 0 : index
    %c4_65 = arith.constant 4 : index
    %c4_66 = arith.constant 4 : index
    %c0_67 = arith.constant 0 : index
    %55 = vector.load %arg2[%c0_63, %c0_64, %c4_65, %c4_66, %c0_67] : memref<1x1x20x20x8xf32, #tpu.memory_space<vmem>>, vector<1x1x16x16x8xf32>
    %56 = vector.shape_cast %55 : vector<1x1x16x16x8xf32> to vector<16x16x8xf32>
    %57 = vector.shape_cast %56 : vector<16x16x8xf32> to vector<256x8xf32>
    %c8 = arith.constant 8 : index
    %c0_68 = arith.constant 0 : index
    %c0_69 = arith.constant 0 : index
    %58 = vector.load %arg3[%c8, %c0_68, %c0_69] : memref<9x8x8xf32, #tpu.memory_space<vmem>>, vector<1x8x8xf32>
    %59 = vector.shape_cast %58 : vector<1x8x8xf32> to vector<8x8xf32>
    %cst_70 = arith.constant dense<0.000000e+00> : vector<256x8xf32>
    %60 = tpu.matmul %57, %59, %cst_70 {dimension_numbers = #tpu.dot_dimension_numbers<[1], [0], [0], [1], [0, 0, 1, 1], [], []>} : vector<256x8xf32>, vector<8x8xf32>, vector<256x8xf32> -> vector<256x8xf32>
    %61 = arith.addf %54, %60 : vector<256x8xf32>
    %62 = vector.shape_cast %61 : vector<256x8xf32> to vector<16x16x8xf32>
    %c0_71 = arith.constant 0 : index
    %c0_72 = arith.constant 0 : index
    %c0_73 = arith.constant 0 : index
    %c0_74 = arith.constant 0 : index
    %63 = vector.load %arg4[%c0_71, %c0_72, %c0_73, %c0_74] : memref<1x16x16x8xf32, #tpu.memory_space<vmem>>, vector<1x16x16x8xf32>
    %64 = vector.shape_cast %63 : vector<1x16x16x8xf32> to vector<16x16x8xf32>
    %65 = vector.shape_cast %62 : vector<16x16x8xf32> to vector<1x16x16x8xf32>
    tpu.vector_store %arg4[%c0_71, %c0_72, %c0_73, %c0_74], %65 {strides = array<i32>} : memref<1x16x16x8xf32, #tpu.memory_space<vmem>>, vector<1x16x16x8xf32>,
    %cst_75 = arith.constant dense<0.000000e+00> : vector<8xf32>
    %66 = vector.multi_reduction <add>, %61, %cst_75 [0] : vector<256x8xf32> to vector<8xf32>
    %67 = vector.shape_cast %66 : vector<8xf32> to vector<1x8xf32>
    %c0_76 = arith.constant 0 : index
    %c0_77 = arith.constant 0 : index
    %c0_78 = arith.constant 0 : index
    %c0_79 = arith.constant 0 : index
    %68 = vector.load %arg5[%c0_76, %c0_77, %c0_78, %c0_79] : memref<1x1x1x8xf32, #tpu.memory_space<vmem>>, vector<1x1x1x8xf32>
    %69 = vector.shape_cast %68 : vector<1x1x1x8xf32> to vector<1x8xf32>
    %70 = vector.shape_cast %67 : vector<1x8xf32> to vector<1x1x1x8xf32>
    tpu.vector_store %arg5[%c0_76, %c0_77, %c0_78, %c0_79], %70 {strides = array<i32>} : memref<1x1x1x8xf32, #tpu.memory_space<vmem>>, vector<1x1x1x8xf32>,
    %71 = arith.mulf %61, %61 : vector<256x8xf32>
    %cst_80 = arith.constant dense<0.000000e+00> : vector<8xf32>
    %72 = vector.multi_reduction <add>, %71, %cst_80 [0] : vector<256x8xf32> to vector<8xf32>
    %73 = vector.shape_cast %72 : vector<8xf32> to vector<1x8xf32>
    %c0_81 = arith.constant 0 : index
    %c0_82 = arith.constant 0 : index
    %c0_83 = arith.constant 0 : index
    %c0_84 = arith.constant 0 : index
    %74 = vector.load %arg6[%c0_81, %c0_82, %c0_83, %c0_84] : memref<1x1x1x8xf32, #tpu.memory_space<vmem>>, vector<1x1x1x8xf32>
    %75 = vector.shape_cast %74 : vector<1x1x1x8xf32> to vector<1x8xf32>
    %76 = vector.shape_cast %73 : vector<1x8xf32> to vector<1x1x1x8xf32>
    tpu.vector_store %arg6[%c0_81, %c0_82, %c0_83, %c0_84], %76 {strides = array<i32>} : memref<1x1x1x8xf32, #tpu.memory_space<vmem>>, vector<1x1x1x8xf32>,
    return
  }
  func.func @transform_0(%arg0: i32, %arg1: i32) -> (i32, i32, i32, i32, i32) {
    %c0_i32 = arith.constant 0 : i32
    %c0_i32_0 = arith.constant 0 : i32
    %c0_i32_1 = arith.constant 0 : i32
    %c0_i32_2 = arith.constant 0 : i32
    return %arg0, %arg1, %c0_i32, %c0_i32_0, %c0_i32_1 : i32, i32, i32, i32, i32
  }
  func.func @transform_1(%arg0: i32, %arg1: i32) -> (i32, i32, i32) {
    %c0_i32 = arith.constant 0 : i32
    %c0_i32_0 = arith.constant 0 : i32
    %c0_i32_1 = arith.constant 0 : i32
    %c0_i32_2 = arith.constant 0 : i32
    return %c0_i32, %c0_i32_0, %c0_i32_1 : i32, i32, i32
  }
  func.func @transform_2(%arg0: i32, %arg1: i32) -> (i32, i32, i32, i32) {
    %c0_i32 = arith.constant 0 : i32
    %c0_i32_0 = arith.constant 0 : i32
    %c0_i32_1 = arith.constant 0 : i32
    return %arg0, %arg1, %c0_i32, %c0_i32_0 : i32, i32, i32, i32
  }
  func.func @transform_3(%arg0: i32, %arg1: i32) -> (i32, i32, i32, i32) {
    %c0_i32 = arith.constant 0 : i32
    %c0_i32_0 = arith.constant 0 : i32
    %c0_i32_1 = arith.constant 0 : i32
    return %arg0, %arg1, %c0_i32, %c0_i32_0 : i32, i32, i32, i32
  }
  func.func @transform_4(%arg0: i32, %arg1: i32) -> (i32, i32, i32, i32) {
    %c0_i32 = arith.constant 0 : i32
    %c0_i32_0 = arith.constant 0 : i32
    %c0_i32_1 = arith.constant 0 : i32
    return %arg0, %arg1, %c0_i32, %c0_i32_0 : i32, i32, i32, i32
  }
}

</mosaic_0001>

<llo_original>
// kernel: up_forward.7
$region0: #{up_forward.7}
  #allocation0 [shape = 'u32[]', space=smem, size = 0x4, offset = 0x4, fixed_abs, tag = 'smem constant byte address 0x4 - core index']
  #allocation1 [shape = 'u32[72,128]{1,0:T(1,128)}', space=vmem, size = 0x9000, scoped, tag = 'internal scratch']
  %s0 = inlined_call_operand.vmem [shape: f32[128,4], index: 0, kind: input, shape index: {}]
  %s1 = inlined_call_operand.vmem [shape: f32[4,8], index: 1, kind: input, shape index: {}]
  %s2 = inlined_call_operand.vmem [shape: f32[128,8], index: 2, kind: output, shape index: {}]
  %s3 = sld [smem:[#allocation0]]
  $region18: #{up_forward.7} parent=0
    _
  %s5 = ssub.s32 1, %s3
  %s6 = scalar_select 0, %s5, %s3
  // Predicated region
  $region2: #{up_forward.7} parent=0 // pred_check
    _
  $region3: #{up_forward.7} parent=0 // pred_check_branch
    %8 = sbr.rel (0) target = $region5
  $region4: #{up_forward.7} parent=0 // pred_region
    _
  $region5: #{up_forward.7} parent=0 // pred_fallthru
    _
  // Predicated region
  $region6: #{up_forward.7} parent=0 // pred_check
    _
  $region7: #{up_forward.7} parent=0 // pred_check_branch
    %10 = sbr.rel (0) target = $region9
  $region8: #{up_forward.7} parent=0 // pred_region
    _
  $region9: #{up_forward.7} parent=0 // pred_fallthru
    _
  %v11 = vld [vmem:[%s0] sm:$0xff]
  %v12 = vld [vmem:[%s0 + $0x8] sm:$0xff]
  %v13 = vld [vmem:[%s0 + $0x10] sm:$0xff]
  %v14 = vld [vmem:[%s0 + $0x18] sm:$0xff]
  %v15 = vld [vmem:[%s0 + $0x20] sm:$0xff]
  %v16 = vld [vmem:[%s0 + $0x28] sm:$0xff]
  %v17 = vld [vmem:[%s0 + $0x30] sm:$0xff]
  %v18 = vld [vmem:[%s0 + $0x38] sm:$0xff]
  %v19 = vld [vmem:[%s0 + $0x40] sm:$0xff]
  %v20 = vld [vmem:[%s0 + $0x48] sm:$0xff]
  %v21 = vld [vmem:[%s0 + $0x50] sm:$0xff]
  %v22 = vld [vmem:[%s0 + $0x58] sm:$0xff]
  %v23 = vld [vmem:[%s0 + $0x60] sm:$0xff]
  %v24 = vld [vmem:[%s0 + $0x68] sm:$0xff]
  %v25 = vld [vmem:[%s0 + $0x70] sm:$0xff]
  %v26 = vld [vmem:[%s0 + $0x78] sm:$0xff]
  %v27 = vld [vmem:[%s1] sm:$0xf]
  %vm28 = vcmask 31744
  %v30 = vsel %vm28, %v11, 0
  %v33 = vsel %vm28, %v12, 0
  %v36 = vsel %vm28, %v13, 0
  %v39 = vsel %vm28, %v14, 0
  %v42 = vsel %vm28, %v15, 0
  %v45 = vsel %vm28, %v16, 0
  %v48 = vsel %vm28, %v17, 0
  %v51 = vsel %vm28, %v18, 0
  %v54 = vsel %vm28, %v19, 0
  %v57 = vsel %vm28, %v20, 0
  %v60 = vsel %vm28, %v21, 0
  %v63 = vsel %vm28, %v22, 0
  %v66 = vsel %vm28, %v23, 0
  %v69 = vsel %vm28, %v24, 0
  %v72 = vsel %vm28, %v25, 0
  %v75 = vsel %vm28, %v26, 0
  %vm77 = vcmask 1043456
  %v79 = vsel %vm77, %v27, 0
  %81 = vmatpush.msra.mxu0 0.0
  %82 = vmatpush.msra.mxu0 0.0
  %83 = vmatpush.msra.mxu0 0.0
  %84 = vmatpush.msra.mxu0 0.0
  %85 = vmatpush.msra.mxu0 0.0
  %86 = vmatpush.msra.mxu0 0.0
  %87 = vmatpush.msra.mxu0 0.0
  %88 = vmatpush.msra.mxu0 0.0
  %89 = vmatpush.msra.mxu0 0.0
  %90 = vmatpush.msra.mxu0 0.0
  %91 = vmatpush.msra.mxu0 0.0
  %92 = vmatpush.msra.mxu0 0.0
  %93 = vmatpush.msra.mxu0 0.0
  %94 = vmatpush.msra.mxu0 0.0
  %95 = vmatpush.msra.mxu0 0.0
  %96 = vmatpush.msra.mxu0 %v79
  %97 = vmatmul.f32.gmra.mxu0 %v30
  %v98 = vpop.f32.mrf.mxu0
  %v99 = vadd.f32 0.0, %v98
  %100 = vmatmul.f32.gmra.mxu0 %v33
  %v101 = vpop.f32.mrf.mxu0
  %v102 = vadd.f32 0.0, %v101
  %103 = vmatmul.f32.gmra.mxu0 %v36
  %v104 = vpop.f32.mrf.mxu0
  %v105 = vadd.f32 0.0, %v104
  %106 = vmatmul.f32.gmra.mxu0 %v39
  %v107 = vpop.f32.mrf.mxu0
  %v108 = vadd.f32 0.0, %v107
  %109 = vmatmul.f32.gmra.mxu0 %v42
  %v110 = vpop.f32.mrf.mxu0
  %v111 = vadd.f32 0.0, %v110
  %112 = vmatmul.f32.gmra.mxu0 %v45
  %v113 = vpop.f32.mrf.mxu0
  %v114 = vadd.f32 0.0, %v113
  %115 = vmatmul.f32.gmra.mxu0 %v48
  %v116 = vpop.f32.mrf.mxu0
  %v117 = vadd.f32 0.0, %v116
  %118 = vmatmul.f32.gmra.mxu0 %v51
  %v119 = vpop.f32.mrf.mxu0
  %v120 = vadd.f32 0.0, %v119
  %121 = vmatmul.f32.gmra.mxu0 %v54
  %v122 = vpop.f32.mrf.mxu0
  %v123 = vadd.f32 0.0, %v122
  %124 = vmatmul.f32.gmra.mxu0 %v57
  %v125 = vpop.f32.mrf.mxu0
  %v126 = vadd.f32 0.0, %v125
  %127 = vmatmul.f32.gmra.mxu0 %v60
  %v128 = vpop.f32.mrf.mxu0
  %v129 = vadd.f32 0.0, %v128
  %130 = vmatmul.f32.gmra.mxu0 %v63
  %v131 = vpop.f32.mrf.mxu0
  %v132 = vadd.f32 0.0, %v131
  %133 = vmatmul.f32.gmra.mxu0 %v66
  %v134 = vpop.f32.mrf.mxu0
  %v135 = vadd.f32 0.0, %v134
  %136 = vmatmul.f32.gmra.mxu0 %v69
  %v137 = vpop.f32.mrf.mxu0
  %v138 = vadd.f32 0.0, %v137
  %139 = vmatmul.f32.gmra.mxu0 %v72
  %v140 = vpop.f32.mrf.mxu0
  %v141 = vadd.f32 0.0, %v140
  %142 = vmatmul.f32.gmra.mxu0 %v75
  %v143 = vpop.f32.mrf.mxu0
  %v144 = vadd.f32 0.0, %v143
  %145 = vdwg.mxu0
  %vm146 = vcmask 64512
  %147 = vst.msk [vmem:[%s2] sm:$0xff] %vm146, %v99
  %148 = vst.msk [vmem:[%s2 + $0x8] sm:$0xff] %vm146, %v102
  %149 = vst.msk [vmem:[%s2 + $0x10] sm:$0xff] %vm146, %v105
  %150 = vst.msk [vmem:[%s2 + $0x18] sm:$0xff] %vm146, %v108
  %151 = vst.msk [vmem:[%s2 + $0x20] sm:$0xff] %vm146, %v111
  %152 = vst.msk [vmem:[%s2 + $0x28] sm:$0xff] %vm146, %v114
  %153 = vst.msk [vmem:[%s2 + $0x30] sm:$0xff] %vm146, %v117
  %154 = vst.msk [vmem:[%s2 + $0x38] sm:$0xff] %vm146, %v120
  %155 = vst.msk [vmem:[%s2 + $0x40] sm:$0xff] %vm146, %v123
  %156 = vst.msk [vmem:[%s2 + $0x48] sm:$0xff] %vm146, %v126
  %157 = vst.msk [vmem:[%s2 + $0x50] sm:$0xff] %vm146, %v129
  %158 = vst.msk [vmem:[%s2 + $0x58] sm:$0xff] %vm146, %v132
  %159 = vst.msk [vmem:[%s2 + $0x60] sm:$0xff] %vm146, %v135
  %160 = vst.msk [vmem:[%s2 + $0x68] sm:$0xff] %vm146, %v138
  %161 = vst.msk [vmem:[%s2 + $0x70] sm:$0xff] %vm146, %v141
  %162 = vst.msk [vmem:[%s2 + $0x78] sm:$0xff] %vm146, %v144
  // Predicated region
  $region10: #{up_forward.7} parent=0 // pred_check
    _
  $region11: #{up_forward.7} parent=0 // pred_check_branch
    %164 = sbr.rel (0) target = $region13
  $region12: #{up_forward.7} parent=0 // pred_region
    _
  $region13: #{up_forward.7} parent=0 // pred_fallthru
    _
  // Predicated region
  $region14: #{up_forward.7} parent=0 // pred_check
    _
  $region15: #{up_forward.7} parent=0 // pred_check_branch
    %166 = sbr.rel (0) target = $region17
  $region16: #{up_forward.7} parent=0 // pred_region
    _
  $region17: #{up_forward.7} parent=0 // pred_fallthru
    _

// kernel: up_forward.8
$region0: #{up_forward.8}
  #allocation0 [shape = 'u32[]', space=smem, size = 0x4, offset = 0x4, fixed_abs, tag = 'smem constant byte address 0x4 - core index']
  #allocation1 [shape = 'u32[72,128]{1,0:T(1,128)}', space=vmem, size = 0x9000, scoped, tag = 'internal scratch']
  %s0 = inlined_call_operand.vmem [shape: f32[512,8], index: 0, kind: input, shape index: {}]
  %s1 = inlined_call_operand.vmem [shape: f32[1,1,8], index: 1, kind: output, shape index: {0}]
  %s2 = inlined_call_operand.vmem [shape: f32[1,1,8], index: 2, kind: output, shape index: {1}]
  %3 = xla_tuple %s1, %s2
  %s4 = sld [smem:[#allocation0]]
  $region22: #{up_forward.8} parent=0
    _
  %s6 = ssub.s32 1, %s4
  %s7 = scalar_select 0, %s6, %s4
  // Predicated region
  $region2: #{up_forward.8} parent=0 // pred_check
    _
  $region3: #{up_forward.8} parent=0 // pred_check_branch
    %9 = sbr.rel (0) target = $region5
  $region4: #{up_forward.8} parent=0 // pred_region
    _
  $region5: #{up_forward.8} parent=0 // pred_fallthru
    _
  %v10 = vld [vmem:[%s0] sm:$0xff]
  %v11 = vld [vmem:[%s0 + $0x8] sm:$0xff]
  %v12 = vld [vmem:[%s0 + $0x10] sm:$0xff]
  %v13 = vld [vmem:[%s0 + $0x18] sm:$0xff]
  %v14 = vld [vmem:[%s0 + $0x20] sm:$0xff]
  %v15 = vld [vmem:[%s0 + $0x28] sm:$0xff]
  %v16 = vld [vmem:[%s0 + $0x30] sm:$0xff]
  %v17 = vld [vmem:[%s0 + $0x38] sm:$0xff]
  %v18 = vld [vmem:[%s0 + $0x40] sm:$0xff]
  %v19 = vld [vmem:[%s0 + $0x48] sm:$0xff]
  %v20 = vld [vmem:[%s0 + $0x50] sm:$0xff]
  %v21 = vld [vmem:[%s0 + $0x58] sm:$0xff]
  %v22 = vld [vmem:[%s0 + $0x60] sm:$0xff]
  %v23 = vld [vmem:[%s0 + $0x68] sm:$0xff]
  %v24 = vld [vmem:[%s0 + $0x70] sm:$0xff]
  %v25 = vld [vmem:[%s0 + $0x78] sm:$0xff]
  %v26 = vld [vmem:[%s0 + $0x80] sm:$0xff]
  %v27 = vld [vmem:[%s0 + $0x88] sm:$0xff]
  %v28 = vld [vmem:[%s0 + $0x90] sm:$0xff]
  %v29 = vld [vmem:[%s0 + $0x98] sm:$0xff]
  %v30 = vld [vmem:[%s0 + $0xa0] sm:$0xff]
  %v31 = vld [vmem:[%s0 + $0xa8] sm:$0xff]
  %v32 = vld [vmem:[%s0 + $0xb0] sm:$0xff]
  %v33 = vld [vmem:[%s0 + $0xb8] sm:$0xff]
  %v34 = vld [vmem:[%s0 + $0xc0] sm:$0xff]
  %v35 = vld [vmem:[%s0 + $0xc8] sm:$0xff]
  %v36 = vld [vmem:[%s0 + $0xd0] sm:$0xff]
  %v37 = vld [vmem:[%s0 + $0xd8] sm:$0xff]
  %v38 = vld [vmem:[%s0 + $0xe0] sm:$0xff]
  %v39 = vld [vmem:[%s0 + $0xe8] sm:$0xff]
  %v40 = vld [vmem:[%s0 + $0xf0] sm:$0xff]
  %v41 = vld [vmem:[%s0 + $0xf8] sm:$0xff]
  %v42 = vld [vmem:[%s0 + $0x100] sm:$0xff]
  %v43 = vld [vmem:[%s0 + $0x108] sm:$0xff]
  %v44 = vld [vmem:[%s0 + $0x110] sm:$0xff]
  %v45 = vld [vmem:[%s0 + $0x118] sm:$0xff]
  %v46 = vld [vmem:[%s0 + $0x120] sm:$0xff]
  %v47 = vld [vmem:[%s0 + $0x128] sm:$0xff]
  %v48 = vld [vmem:[%s0 + $0x130] sm:$0xff]
  %v49 = vld [vmem:[%s0 + $0x138] sm:$0xff]
  %v50 = vld [vmem:[%s0 + $0x140] sm:$0xff]
  %v51 = vld [vmem:[%s0 + $0x148] sm:$0xff]
  %v52 = vld [vmem:[%s0 + $0x150] sm:$0xff]
  %v53 = vld [vmem:[%s0 + $0x158] sm:$0xff]
  %v54 = vld [vmem:[%s0 + $0x160] sm:$0xff]
  %v55 = vld [vmem:[%s0 + $0x168] sm:$0xff]
  %v56 = vld [vmem:[%s0 + $0x170] sm:$0xff]
  %v57 = vld [vmem:[%s0 + $0x178] sm:$0xff]
  %v58 = vld [vmem:[%s0 + $0x180] sm:$0xff]
  %v59 = vld [vmem:[%s0 + $0x188] sm:$0xff]
  %v60 = vld [vmem:[%s0 + $0x190] sm:$0xff]
  %v61 = vld [vmem:[%s0 + $0x198] sm:$0xff]
  %v62 = vld [vmem:[%s0 + $0x1a0] sm:$0xff]
  %v63 = vld [vmem:[%s0 + $0x1a8] sm:$0xff]
  %v64 = vld [vmem:[%s0 + $0x1b0] sm:$0xff]
  %v65 = vld [vmem:[%s0 + $0x1b8] sm:$0xff]
  %v66 = vld [vmem:[%s0 + $0x1c0] sm:$0xff]
  %v67 = vld [vmem:[%s0 + $0x1c8] sm:$0xff]
  %v68 = vld [vmem:[%s0 + $0x1d0] sm:$0xff]
  %v69 = vld [vmem:[%s0 + $0x1d8] sm:$0xff]
  %v70 = vld [vmem:[%s0 + $0x1e0] sm:$0xff]
  %v71 = vld [vmem:[%s0 + $0x1e8] sm:$0xff]
  %v72 = vld [vmem:[%s0 + $0x1f0] sm:$0xff]
  %v73 = vld [vmem:[%s0 + $0x1f8] sm:$0xff]
  %vm74 = vcmask 64512
  %v75 = vsel %vm74, %v10, 0.0
  %v76 = vsel %vm74, %v11, 0.0
  %v77 = vadd.f32 %v75, %v76
  %v78 = vsel %vm74, %v12, 0.0
  %v79 = vadd.f32 %v77, %v78
  %v80 = vsel %vm74, %v13, 0.0
  %v81 = vadd.f32 %v79, %v80
  %v82 = vsel %vm74, %v14, 0.0
  %v83 = vadd.f32 %v81, %v82
  %v84 = vsel %vm74, %v15, 0.0
  %v85 = vadd.f32 %v83, %v84
  %v86 = vsel %vm74, %v16, 0.0
  %v87 = vadd.f32 %v85, %v86
  %v88 = vsel %vm74, %v17, 0.0
  %v89 = vadd.f32 %v87, %v88
  %v90 = vsel %vm74, %v18, 0.0
  %v91 = vadd.f32 %v89, %v90
  %v92 = vsel %vm74, %v19, 0.0
  %v93 = vadd.f32 %v91, %v92
  %v94 = vsel %vm74, %v20, 0.0
  %v95 = vadd.f32 %v93, %v94
  %v96 = vsel %vm74, %v21, 0.0
  %v97 = vadd.f32 %v95, %v96
  %v98 = vsel %vm74, %v22, 0.0
  %v99 = vadd.f32 %v97, %v98
  %v100 = vsel %vm74, %v23, 0.0
  %v101 = vadd.f32 %v99, %v100
  %v102 = vsel %vm74, %v24, 0.0
  %v103 = vadd.f32 %v101, %v102
  %v104 = vsel %vm74, %v25, 0.0
  %v105 = vadd.f32 %v103, %v104
  %v106 = vsel %vm74, %v26, 0.0
  %v107 = vadd.f32 %v105, %v106
  %v108 = vsel %vm74, %v27, 0.0
  %v109 = vadd.f32 %v107, %v108
  %v110 = vsel %vm74, %v28, 0.0
  %v111 = vadd.f32 %v109, %v110
  %v112 = vsel %vm74, %v29, 0.0
  %v113 = vadd.f32 %v111, %v112
  %v114 = vsel %vm74, %v30, 0.0
  %v115 = vadd.f32 %v113, %v114
  %v116 = vsel %vm74, %v31, 0.0
  %v117 = vadd.f32 %v115, %v116
  %v118 = vsel %vm74, %v32, 0.0
  %v119 = vadd.f32 %v117, %v118
  %v120 = vsel %vm74, %v33, 0.0
  %v121 = vadd.f32 %v119, %v120
  %v122 = vsel %vm74, %v34, 0.0
  %v123 = vadd.f32 %v121, %v122
  %v124 = vsel %vm74, %v35, 0.0
  %v125 = vadd.f32 %v123, %v124
  %v126 = vsel %vm74, %v36, 0.0
  %v127 = vadd.f32 %v125, %v126
  %v128 = vsel %vm74, %v37, 0.0
  %v129 = vadd.f32 %v127, %v128
  %v130 = vsel %vm74, %v38, 0.0
  %v131 = vadd.f32 %v129, %v130
  %v132 = vsel %vm74, %v39, 0.0
  %v133 = vadd.f32 %v131, %v132
  %v134 = vsel %vm74, %v40, 0.0
  %v135 = vadd.f32 %v133, %v134
  %v136 = vsel %vm74, %v41, 0.0
  %v137 = vadd.f32 %v135, %v136
  %v138 = vsel %vm74, %v42, 0.0
  %v139 = vadd.f32 %v137, %v138
  %v140 = vsel %vm74, %v43, 0.0
  %v141 = vadd.f32 %v139, %v140
  %v142 = vsel %vm74, %v44, 0.0
  %v143 = vadd.f32 %v141, %v142
  %v144 = vsel %vm74, %v45, 0.0
  %v145 = vadd.f32 %v143, %v144
  %v146 = vsel %vm74, %v46, 0.0
  %v147 = vadd.f32 %v145, %v146
  %v148 = vsel %vm74, %v47, 0.0
  %v149 = vadd.f32 %v147, %v148
  %v150 = vsel %vm74, %v48, 0.0
  %v151 = vadd.f32 %v149, %v150
  %v152 = vsel %vm74, %v49, 0.0
  %v153 = vadd.f32 %v151, %v152
  %v154 = vsel %vm74, %v50, 0.0
  %v155 = vadd.f32 %v153, %v154
  %v156 = vsel %vm74, %v51, 0.0
  %v157 = vadd.f32 %v155, %v156
  %v158 = vsel %vm74, %v52, 0.0
  %v159 = vadd.f32 %v157, %v158
  %v160 = vsel %vm74, %v53, 0.0
  %v161 = vadd.f32 %v159, %v160
  %v162 = vsel %vm74, %v54, 0.0
  %v163 = vadd.f32 %v161, %v162
  %v164 = vsel %vm74, %v55, 0.0
  %v165 = vadd.f32 %v163, %v164
  %v166 = vsel %vm74, %v56, 0.0
  %v167 = vadd.f32 %v165, %v166
  %v168 = vsel %vm74, %v57, 0.0
  %v169 = vadd.f32 %v167, %v168
  %v170 = vsel %vm74, %v58, 0.0
  %v171 = vadd.f32 %v169, %v170
  %v172 = vsel %vm74, %v59, 0.0
  %v173 = vadd.f32 %v171, %v172
  %v174 = vsel %vm74, %v60, 0.0
  %v175 = vadd.f32 %v173, %v174
  %v176 = vsel %vm74, %v61, 0.0
  %v177 = vadd.f32 %v175, %v176
  %v178 = vsel %vm74, %v62, 0.0
  %v179 = vadd.f32 %v177, %v178
  %v180 = vsel %vm74, %v63, 0.0
  %v181 = vadd.f32 %v179, %v180
  %v182 = vsel %vm74, %v64, 0.0
  %v183 = vadd.f32 %v181, %v182
  %v184 = vsel %vm74, %v65, 0.0
  %v185 = vadd.f32 %v183, %v184
  %v186 = vsel %vm74, %v66, 0.0
  %v187 = vadd.f32 %v185, %v186
  %v188 = vsel %vm74, %v67, 0.0
  %v189 = vadd.f32 %v187, %v188
  %v190 = vsel %vm74, %v68, 0.0
  %v191 = vadd.f32 %v189, %v190
  %v192 = vsel %vm74, %v69, 0.0
  %v193 = vadd.f32 %v191, %v192
  %v194 = vsel %vm74, %v70, 0.0
  %v195 = vadd.f32 %v193, %v194
  %v196 = vsel %vm74, %v71, 0.0
  %v197 = vadd.f32 %v195, %v196
  %v198 = vsel %vm74, %v72, 0.0
  %v199 = vadd.f32 %v197, %v198
  %v200 = vsel %vm74, %v73, 0.0
  %v201 = vadd.f32 %v199, %v200
  %v202 = vrot.slane %v201, 4
  %v203 = vadd.f32 %v201, %v202
  %v204 = vrot.slane %v203, 2
  %v205 = vadd.f32 %v203, %v204
  %v206 = vrot.slane %v205, 1
  %v207 = vadd.f32 %v205, %v206
  %vm208 = vcmask 57344
  %209 = vst.msk [vmem:[%s1] sm:$0x1] %vm208, %v207
  %v210 = vmul.f32 %v10, %v10
  %v211 = vmul.f32 %v11, %v11
  %v212 = vmul.f32 %v12, %v12
  %v213 = vmul.f32 %v13, %v13
  %v214 = vmul.f32 %v14, %v14
  %v215 = vmul.f32 %v15, %v15
  %v216 = vmul.f32 %v16, %v16
  %v217 = vmul.f32 %v17, %v17
  %v218 = vmul.f32 %v18, %v18
  %v219 = vmul.f32 %v19, %v19
  %v220 = vmul.f32 %v20, %v20
  %v221 = vmul.f32 %v21, %v21
  %v222 = vmul.f32 %v22, %v22
  %v223 = vmul.f32 %v23, %v23
  %v224 = vmul.f32 %v24, %v24
  %v225 = vmul.f32 %v25, %v25
  %v226 = vmul.f32 %v26, %v26
  %v227 = vmul.f32 %v27, %v27
  %v228 = vmul.f32 %v28, %v28
  %v229 = vmul.f32 %v29, %v29
  %v230 = vmul.f32 %v30, %v30
  %v231 = vmul.f32 %v31, %v31
  %v232 = vmul.f32 %v32, %v32
  %v233 = vmul.f32 %v33, %v33
  %v234 = vmul.f32 %v34, %v34
  %v235 = vmul.f32 %v35, %v35
  %v236 = vmul.f32 %v36, %v36
  %v237 = vmul.f32 %v37, %v37
  %v238 = vmul.f32 %v38, %v38
  %v239 = vmul.f32 %v39, %v39
  %v240 = vmul.f32 %v40, %v40
  %v241 = vmul.f32 %v41, %v41
  %v242 = vmul.f32 %v42, %v42
  %v243 = vmul.f32 %v43, %v43
  %v244 = vmul.f32 %v44, %v44
  %v245 = vmul.f32 %v45, %v45
  %v246 = vmul.f32 %v46, %v46
  %v247 = vmul.f32 %v47, %v47
  %v248 = vmul.f32 %v48, %v48
  %v249 = vmul.f32 %v49, %v49
  %v250 = vmul.f32 %v50, %v50
  %v251 = vmul.f32 %v51, %v51
  %v252 = vmul.f32 %v52, %v52
  %v253 = vmul.f32 %v53, %v53
  %v254 = vmul.f32 %v54, %v54
  %v255 = vmul.f32 %v55, %v55
  %v256 = vmul.f32 %v56, %v56
  %v257 = vmul.f32 %v57, %v57
  %v258 = vmul.f32 %v58, %v58
  %v259 = vmul.f32 %v59, %v59
  %v260 = vmul.f32 %v60, %v60
  %v261 = vmul.f32 %v61, %v61
  %v262 = vmul.f32 %v62, %v62
  %v263 = vmul.f32 %v63, %v63
  %v264 = vmul.f32 %v64, %v64
  %v265 = vmul.f32 %v65, %v65
  %v266 = vmul.f32 %v66, %v66
  %v267 = vmul.f32 %v67, %v67
  %v268 = vmul.f32 %v68, %v68
  %v269 = vmul.f32 %v69, %v69
  %v270 = vmul.f32 %v70, %v70
  %v271 = vmul.f32 %v71, %v71
  %v272 = vmul.f32 %v72, %v72
  %v273 = vmul.f32 %v73, %v73
  %v274 = vsel %vm74, %v210, 0.0
  %v275 = vsel %vm74, %v211, 0.0
  %v276 = vadd.f32 %v274, %v275
  %v277 = vsel %vm74, %v212, 0.0
  %v278 = vadd.f32 %v276, %v277
  %v279 = vsel %vm74, %v213, 0.0
  %v280 = vadd.f32 %v278, %v279
  %v281 = vsel %vm74, %v214, 0.0
  %v282 = vadd.f32 %v280, %v281
  %v283 = vsel %vm74, %v215, 0.0
  %v284 = vadd.f32 %v282, %v283
  %v285 = vsel %vm74, %v216, 0.0
  %v286 = vadd.f32 %v284, %v285
  %v287 = vsel %vm74, %v217, 0.0
  %v288 = vadd.f32 %v286, %v287
  %v289 = vsel %vm74, %v218, 0.0
  %v290 = vadd.f32 %v288, %v289
  %v291 = vsel %vm74, %v219, 0.0
  %v292 = vadd.f32 %v290, %v291
  %v293 = vsel %vm74, %v220, 0.0
  %v294 = vadd.f32 %v292, %v293
  %v295 = vsel %vm74, %v221, 0.0
  %v296 = vadd.f32 %v294, %v295
  %v297 = vsel %vm74, %v222, 0.0
  %v298 = vadd.f32 %v296, %v297
  %v299 = vsel %vm74, %v223, 0.0
  %v300 = vadd.f32 %v298, %v299
  %v301 = vsel %vm74, %v224, 0.0
  %v302 = vadd.f32 %v300, %v301
  %v303 = vsel %vm74, %v225, 0.0
  %v304 = vadd.f32 %v302, %v303
  %v305 = vsel %vm74, %v226, 0.0
  %v306 = vadd.f32 %v304, %v305
  %v307 = vsel %vm74, %v227, 0.0
  %v308 = vadd.f32 %v306, %v307
  %v309 = vsel %vm74, %v228, 0.0
  %v310 = vadd.f32 %v308, %v309
  %v311 = vsel %vm74, %v229, 0.0
  %v312 = vadd.f32 %v310, %v311
  %v313 = vsel %vm74, %v230, 0.0
  %v314 = vadd.f32 %v312, %v313
  %v315 = vsel %vm74, %v231, 0.0
  %v316 = vadd.f32 %v314, %v315
  %v317 = vsel %vm74, %v232, 0.0
  %v318 = vadd.f32 %v316, %v317
  %v319 = vsel %vm74, %v233, 0.0
  %v320 = vadd.f32 %v318, %v319
  %v321 = vsel %vm74, %v234, 0.0
  %v322 = vadd.f32 %v320, %v321
  %v323 = vsel %vm74, %v235, 0.0
  %v324 = vadd.f32 %v322, %v323
  %v325 = vsel %vm74, %v236, 0.0
  %v326 = vadd.f32 %v324, %v325
  %v327 = vsel %vm74, %v237, 0.0
  %v328 = vadd.f32 %v326, %v327
  %v329 = vsel %vm74, %v238, 0.0
  %v330 = vadd.f32 %v328, %v329
  %v331 = vsel %vm74, %v239, 0.0
  %v332 = vadd.f32 %v330, %v331
  %v333 = vsel %vm74, %v240, 0.0
  %v334 = vadd.f32 %v332, %v333
  %v335 = vsel %vm74, %v241, 0.0
  %v336 = vadd.f32 %v334, %v335
  %v337 = vsel %vm74, %v242, 0.0
  %v338 = vadd.f32 %v336, %v337
  %v339 = vsel %vm74, %v243, 0.0
  %v340 = vadd.f32 %v338, %v339
  %v341 = vsel %vm74, %v244, 0.0
  %v342 = vadd.f32 %v340, %v341
  %v343 = vsel %vm74, %v245, 0.0
  %v344 = vadd.f32 %v342, %v343
  %v345 = vsel %vm74, %v246, 0.0
  %v346 = vadd.f32 %v344, %v345
  %v347 = vsel %vm74, %v247, 0.0
  %v348 = vadd.f32 %v346, %v347
  %v349 = vsel %vm74, %v248, 0.0
  %v350 = vadd.f32 %v348, %v349
  %v351 = vsel %vm74, %v249, 0.0
  %v352 = vadd.f32 %v350, %v351
  %v353 = vsel %vm74, %v250, 0.0
  %v354 = vadd.f32 %v352, %v353
  %v355 = vsel %vm74, %v251, 0.0
  %v356 = vadd.f32 %v354, %v355
  %v357 = vsel %vm74, %v252, 0.0
  %v358 = vadd.f32 %v356, %v357
  %v359 = vsel %vm74, %v253, 0.0
  %v360 = vadd.f32 %v358, %v359
  %v361 = vsel %vm74, %v254, 0.0
  %v362 = vadd.f32 %v360, %v361
  %v363 = vsel %vm74, %v255, 0.0
  %v364 = vadd.f32 %v362, %v363
  %v365 = vsel %vm74, %v256, 0.0
  %v366 = vadd.f32 %v364, %v365
  %v367 = vsel %vm74, %v257, 0.0
  %v368 = vadd.f32 %v366, %v367
  %v369 = vsel %vm74, %v258, 0.0
  %v370 = vadd.f32 %v368, %v369
  %v371 = vsel %vm74, %v259, 0.0
  %v372 = vadd.f32 %v370, %v371
  %v373 = vsel %vm74, %v260, 0.0
  %v374 = vadd.f32 %v372, %v373
  %v375 = vsel %vm74, %v261, 0.0
  %v376 = vadd.f32 %v374, %v375
  %v377 = vsel %vm74, %v262, 0.0
  %v378 = vadd.f32 %v376, %v377
  %v379 = vsel %vm74, %v263, 0.0
  %v380 = vadd.f32 %v378, %v379
  %v381 = vsel %vm74, %v264, 0.0
  %v382 = vadd.f32 %v380, %v381
  %v383 = vsel %vm74, %v265, 0.0
  %v384 = vadd.f32 %v382, %v383
  %v385 = vsel %vm74, %v266, 0.0
  %v386 = vadd.f32 %v384, %v385
  %v387 = vsel %vm74, %v267, 0.0
  %v388 = vadd.f32 %v386, %v387
  %v389 = vsel %vm74, %v268, 0.0
  %v390 = vadd.f32 %v388, %v389
  %v391 = vsel %vm74, %v269, 0.0
  %v392 = vadd.f32 %v390, %v391
  %v393 = vsel %vm74, %v270, 0.0
  %v394 = vadd.f32 %v392, %v393
  %v395 = vsel %vm74, %v271, 0.0
  %v396 = vadd.f32 %v394, %v395
  %v397 = vsel %vm74, %v272, 0.0
  %v398 = vadd.f32 %v396, %v397
  %v399 = vsel %vm74, %v273, 0.0
  %v400 = vadd.f32 %v398, %v399
  %v401 = vrot.slane %v400, 4
  %v402 = vadd.f32 %v400, %v401
  %v403 = vrot.slane %v402, 2
  %v404 = vadd.f32 %v402, %v403
  %v405 = vrot.slane %v404, 1
  %v406 = vadd.f32 %v404, %v405
  %407 = vst.msk [vmem:[%s2] sm:$0x1] %vm208, %v406
  // Predicated region
  $region6: #{up_forward.8} parent=0 // pred_check
    _
  $region7: #{up_forward.8} parent=0 // pred_check_branch
    %409 = sbr.rel (0) target = $region9
  $region8: #{up_forward.8} parent=0 // pred_region
    _
  $region9: #{up_forward.8} parent=0 // pred_fallthru
    _
  // Predicated region
  $region10: #{up_forward.8} parent=0 // pred_check
    _
  $region11: #{up_forward.8} parent=0 // pred_check_branch
    %411 = sbr.rel (0) target = $region13
  $region12: #{up_forward.8} parent=0 // pred_region
    _
  $region13: #{up_forward.8} parent=0 // pred_fallthru
    _
  // Predicated region
  $region14: #{up_forward.8} parent=0 // pred_check
    _
  $region15: #{up_forward.8} parent=0 // pred_check_branch
    %413 = sbr.rel (0) target = $region17
  $region16: #{up_forward.8} parent=0 // pred_region
    _
  $region17: #{up_forward.8} parent=0 // pred_fallthru
    _
  // Predicated region
  $region18: #{up_forward.8} parent=0 // pred_check
    _
  $region19: #{up_forward.8} parent=0 // pred_check_branch
    %415 = sbr.rel (0) target = $region21
  $region20: #{up_forward.8} parent=0 // pred_region
    _
  $region21: #{up_forward.8} parent=0 // pred_fallthru
    _

// kernel: up_forward.9
$region0: #{up_forward.9}
  #allocation0 [shape = 'u32[]', space=smem, size = 0x4, offset = 0x4, fixed_abs, tag = 'smem constant byte address 0x4 - core index']
  #allocation1 [shape = 'u32[72,128]{1,0:T(1,128)}', space=vmem, size = 0x9000, scoped, tag = 'internal scratch']
  %s0 = inlined_call_operand.vmem [shape: f32[512,8], index: 0, kind: input, shape index: {}]
  %s1 = inlined_call_operand.vmem [shape: f32[1,8], index: 1, kind: input, shape index: {}]
  %s2 = inlined_call_operand.vmem [shape: f32[1,8], index: 2, kind: input, shape index: {}]
  %s3 = inlined_call_operand.vmem [shape: f32[512,8], index: 3, kind: output, shape index: {}]
  %s4 = sld [smem:[#allocation0]]
  $region22: #{up_forward.9} parent=0
    _
  %s6 = ssub.s32 1, %s4
  %s7 = scalar_select 0, %s6, %s4
  // Predicated region
  $region2: #{up_forward.9} parent=0 // pred_check
    _
  $region3: #{up_forward.9} parent=0 // pred_check_branch
    %9 = sbr.rel (0) target = $region5
  $region4: #{up_forward.9} parent=0 // pred_region
    _
  $region5: #{up_forward.9} parent=0 // pred_fallthru
    _
  // Predicated region
  $region6: #{up_forward.9} parent=0 // pred_check
    _
  $region7: #{up_forward.9} parent=0 // pred_check_branch
    %11 = sbr.rel (0) target = $region9
  $region8: #{up_forward.9} parent=0 // pred_region
    _
  $region9: #{up_forward.9} parent=0 // pred_fallthru
    _
  // Predicated region
  $region10: #{up_forward.9} parent=0 // pred_check
    _
  $region11: #{up_forward.9} parent=0 // pred_check_branch
    %13 = sbr.rel (0) target = $region13
  $region12: #{up_forward.9} parent=0 // pred_region
    _
  $region13: #{up_forward.9} parent=0 // pred_fallthru
    _
  %v14 = vld [vmem:[%s0] sm:$0xff]
  %v15 = vld [vmem:[%s0 + $0x8] sm:$0xff]
  %v16 = vld [vmem:[%s0 + $0x10] sm:$0xff]
  %v17 = vld [vmem:[%s0 + $0x18] sm:$0xff]
  %v18 = vld [vmem:[%s0 + $0x20] sm:$0xff]
  %v19 = vld [vmem:[%s0 + $0x28] sm:$0xff]
  %v20 = vld [vmem:[%s0 + $0x30] sm:$0xff]
  %v21 = vld [vmem:[%s0 + $0x38] sm:$0xff]
  %v22 = vld [vmem:[%s0 + $0x40] sm:$0xff]
  %v23 = vld [vmem:[%s0 + $0x48] sm:$0xff]
  %v24 = vld [vmem:[%s0 + $0x50] sm:$0xff]
  %v25 = vld [vmem:[%s0 + $0x58] sm:$0xff]
  %v26 = vld [vmem:[%s0 + $0x60] sm:$0xff]
  %v27 = vld [vmem:[%s0 + $0x68] sm:$0xff]
  %v28 = vld [vmem:[%s0 + $0x70] sm:$0xff]
  %v29 = vld [vmem:[%s0 + $0x78] sm:$0xff]
  %v30 = vld [vmem:[%s0 + $0x80] sm:$0xff]
  %v31 = vld [vmem:[%s0 + $0x88] sm:$0xff]
  %v32 = vld [vmem:[%s0 + $0x90] sm:$0xff]
  %v33 = vld [vmem:[%s0 + $0x98] sm:$0xff]
  %v34 = vld [vmem:[%s0 + $0xa0] sm:$0xff]
  %v35 = vld [vmem:[%s0 + $0xa8] sm:$0xff]
  %v36 = vld [vmem:[%s0 + $0xb0] sm:$0xff]
  %v37 = vld [vmem:[%s0 + $0xb8] sm:$0xff]
  %v38 = vld [vmem:[%s0 + $0xc0] sm:$0xff]
  %v39 = vld [vmem:[%s0 + $0xc8] sm:$0xff]
  %v40 = vld [vmem:[%s0 + $0xd0] sm:$0xff]
  %v41 = vld [vmem:[%s0 + $0xd8] sm:$0xff]
  %v42 = vld [vmem:[%s0 + $0xe0] sm:$0xff]
  %v43 = vld [vmem:[%s0 + $0xe8] sm:$0xff]
  %v44 = vld [vmem:[%s0 + $0xf0] sm:$0xff]
  %v45 = vld [vmem:[%s0 + $0xf8] sm:$0xff]
  %v46 = vld [vmem:[%s0 + $0x100] sm:$0xff]
  %v47 = vld [vmem:[%s0 + $0x108] sm:$0xff]
  %v48 = vld [vmem:[%s0 + $0x110] sm:$0xff]
  %v49 = vld [vmem:[%s0 + $0x118] sm:$0xff]
  %v50 = vld [vmem:[%s0 + $0x120] sm:$0xff]
  %v51 = vld [vmem:[%s0 + $0x128] sm:$0xff]
  %v52 = vld [vmem:[%s0 + $0x130] sm:$0xff]
  %v53 = vld [vmem:[%s0 + $0x138] sm:$0xff]
  %v54 = vld [vmem:[%s0 + $0x140] sm:$0xff]
  %v55 = vld [vmem:[%s0 + $0x148] sm:$0xff]
  %v56 = vld [vmem:[%s0 + $0x150] sm:$0xff]
  %v57 = vld [vmem:[%s0 + $0x158] sm:$0xff]
  %v58 = vld [vmem:[%s0 + $0x160] sm:$0xff]
  %v59 = vld [vmem:[%s0 + $0x168] sm:$0xff]
  %v60 = vld [vmem:[%s0 + $0x170] sm:$0xff]
  %v61 = vld [vmem:[%s0 + $0x178] sm:$0xff]
  %v62 = vld [vmem:[%s0 + $0x180] sm:$0xff]
  %v63 = vld [vmem:[%s0 + $0x188] sm:$0xff]
  %v64 = vld [vmem:[%s0 + $0x190] sm:$0xff]
  %v65 = vld [vmem:[%s0 + $0x198] sm:$0xff]
  %v66 = vld [vmem:[%s0 + $0x1a0] sm:$0xff]
  %v67 = vld [vmem:[%s0 + $0x1a8] sm:$0xff]
  %v68 = vld [vmem:[%s0 + $0x1b0] sm:$0xff]
  %v69 = vld [vmem:[%s0 + $0x1b8] sm:$0xff]
  %v70 = vld [vmem:[%s0 + $0x1c0] sm:$0xff]
  %v71 = vld [vmem:[%s0 + $0x1c8] sm:$0xff]
  %v72 = vld [vmem:[%s0 + $0x1d0] sm:$0xff]
  %v73 = vld [vmem:[%s0 + $0x1d8] sm:$0xff]
  %v74 = vld [vmem:[%s0 + $0x1e0] sm:$0xff]
  %v75 = vld [vmem:[%s0 + $0x1e8] sm:$0xff]
  %v76 = vld [vmem:[%s0 + $0x1f0] sm:$0xff]
  %v77 = vld [vmem:[%s0 + $0x1f8] sm:$0xff]
  %v78 = vld [vmem:[%s1] sm:$0x1]
  %v80 = vperm.slane %v78, 0
  %v82 = vmul.f32 %v14, %v80
  %v83 = vmul.f32 %v15, %v80
  %v84 = vmul.f32 %v16, %v80
  %v85 = vmul.f32 %v17, %v80
  %v86 = vmul.f32 %v18, %v80
  %v87 = vmul.f32 %v19, %v80
  %v88 = vmul.f32 %v20, %v80
  %v89 = vmul.f32 %v21, %v80
  %v90 = vmul.f32 %v22, %v80
  %v91 = vmul.f32 %v23, %v80
  %v92 = vmul.f32 %v24, %v80
  %v93 = vmul.f32 %v25, %v80
  %v94 = vmul.f32 %v26, %v80
  %v95 = vmul.f32 %v27, %v80
  %v96 = vmul.f32 %v28, %v80
  %v97 = vmul.f32 %v29, %v80
  %v98 = vmul.f32 %v30, %v80
  %v99 = vmul.f32 %v31, %v80
  %v100 = vmul.f32 %v32, %v80
  %v101 = vmul.f32 %v33, %v80
  %v102 = vmul.f32 %v34, %v80
  %v103 = vmul.f32 %v35, %v80
  %v104 = vmul.f32 %v36, %v80
  %v105 = vmul.f32 %v37, %v80
  %v106 = vmul.f32 %v38, %v80
  %v107 = vmul.f32 %v39, %v80
  %v108 = vmul.f32 %v40, %v80
  %v109 = vmul.f32 %v41, %v80
  %v110 = vmul.f32 %v42, %v80
  %v111 = vmul.f32 %v43, %v80
  %v112 = vmul.f32 %v44, %v80
  %v113 = vmul.f32 %v45, %v80
  %v114 = vmul.f32 %v46, %v80
  %v115 = vmul.f32 %v47, %v80
  %v116 = vmul.f32 %v48, %v80
  %v117 = vmul.f32 %v49, %v80
  %v118 = vmul.f32 %v50, %v80
  %v119 = vmul.f32 %v51, %v80
  %v120 = vmul.f32 %v52, %v80
  %v121 = vmul.f32 %v53, %v80
  %v122 = vmul.f32 %v54, %v80
  %v123 = vmul.f32 %v55, %v80
  %v124 = vmul.f32 %v56, %v80
  %v125 = vmul.f32 %v57, %v80
  %v126 = vmul.f32 %v58, %v80
  %v127 = vmul.f32 %v59, %v80
  %v128 = vmul.f32 %v60, %v80
  %v129 = vmul.f32 %v61, %v80
  %v130 = vmul.f32 %v62, %v80
  %v131 = vmul.f32 %v63, %v80
  %v132 = vmul.f32 %v64, %v80
  %v133 = vmul.f32 %v65, %v80
  %v134 = vmul.f32 %v66, %v80
  %v135 = vmul.f32 %v67, %v80
  %v136 = vmul.f32 %v68, %v80
  %v137 = vmul.f32 %v69, %v80
  %v138 = vmul.f32 %v70, %v80
  %v139 = vmul.f32 %v71, %v80
  %v140 = vmul.f32 %v72, %v80
  %v141 = vmul.f32 %v73, %v80
  %v142 = vmul.f32 %v74, %v80
  %v143 = vmul.f32 %v75, %v80
  %v144 = vmul.f32 %v76, %v80
  %v145 = vmul.f32 %v77, %v80
  %v146 = vld [vmem:[%s2] sm:$0x1]
  %v148 = vperm.slane %v146, 0
  %v150 = vadd.f32 %v82, %v148
  %v151 = vadd.f32 %v83, %v148
  %v152 = vadd.f32 %v84, %v148
  %v153 = vadd.f32 %v85, %v148
  %v154 = vadd.f32 %v86, %v148
  %v155 = vadd.f32 %v87, %v148
  %v156 = vadd.f32 %v88, %v148
  %v157 = vadd.f32 %v89, %v148
  %v158 = vadd.f32 %v90, %v148
  %v159 = vadd.f32 %v91, %v148
  %v160 = vadd.f32 %v92, %v148
  %v161 = vadd.f32 %v93, %v148
  %v162 = vadd.f32 %v94, %v148
  %v163 = vadd.f32 %v95, %v148
  %v164 = vadd.f32 %v96, %v148
  %v165 = vadd.f32 %v97, %v148
  %v166 = vadd.f32 %v98, %v148
  %v167 = vadd.f32 %v99, %v148
  %v168 = vadd.f32 %v100, %v148
  %v169 = vadd.f32 %v101, %v148
  %v170 = vadd.f32 %v102, %v148
  %v171 = vadd.f32 %v103, %v148
  %v172 = vadd.f32 %v104, %v148
  %v173 = vadd.f32 %v105, %v148
  %v174 = vadd.f32 %v106, %v148
  %v175 = vadd.f32 %v107, %v148
  %v176 = vadd.f32 %v108, %v148
  %v177 = vadd.f32 %v109, %v148
  %v178 = vadd.f32 %v110, %v148
  %v179 = vadd.f32 %v111, %v148
  %v180 = vadd.f32 %v112, %v148
  %v181 = vadd.f32 %v113, %v148
  %v182 = vadd.f32 %v114, %v148
  %v183 = vadd.f32 %v115, %v148
  %v184 = vadd.f32 %v116, %v148
  %v185 = vadd.f32 %v117, %v148
  %v186 = vadd.f32 %v118, %v148
  %v187 = vadd.f32 %v119, %v148
  %v188 = vadd.f32 %v120, %v148
  %v189 = vadd.f32 %v121, %v148
  %v190 = vadd.f32 %v122, %v148
  %v191 = vadd.f32 %v123, %v148
  %v192 = vadd.f32 %v124, %v148
  %v193 = vadd.f32 %v125, %v148
  %v194 = vadd.f32 %v126, %v148
  %v195 = vadd.f32 %v127, %v148
  %v196 = vadd.f32 %v128, %v148
  %v197 = vadd.f32 %v129, %v148
  %v198 = vadd.f32 %v130, %v148
  %v199 = vadd.f32 %v131, %v148
  %v200 = vadd.f32 %v132, %v148
  %v201 = vadd.f32 %v133, %v148
  %v202 = vadd.f32 %v134, %v148
  %v203 = vadd.f32 %v135, %v148
  %v204 = vadd.f32 %v136, %v148
  %v205 = vadd.f32 %v137, %v148
  %v206 = vadd.f32 %v138, %v148
  %v207 = vadd.f32 %v139, %v148
  %v208 = vadd.f32 %v140, %v148
  %v209 = vadd.f32 %v141, %v148
  %v210 = vadd.f32 %v142, %v148
  %v211 = vadd.f32 %v143, %v148
  %v212 = vadd.f32 %v144, %v148
  %v213 = vadd.f32 %v145, %v148
  %v214 = vmax.f32 %v150, 0.0
  %v215 = vmax.f32 %v151, 0.0
  %v216 = vmax.f32 %v152, 0.0
  %v217 = vmax.f32 %v153, 0.0
  %v218 = vmax.f32 %v154, 0.0
  %v219 = vmax.f32 %v155, 0.0
  %v220 = vmax.f32 %v156, 0.0
  %v221 = vmax.f32 %v157, 0.0
  %v222 = vmax.f32 %v158, 0.0
  %v223 = vmax.f32 %v159, 0.0
  %v224 = vmax.f32 %v160, 0.0
  %v225 = vmax.f32 %v161, 0.0
  %v226 = vmax.f32 %v162, 0.0
  %v227 = vmax.f32 %v163, 0.0
  %v228 = vmax.f32 %v164, 0.0
  %v229 = vmax.f32 %v165, 0.0
  %v230 = vmax.f32 %v166, 0.0
  %v231 = vmax.f32 %v167, 0.0
  %v232 = vmax.f32 %v168, 0.0
  %v233 = vmax.f32 %v169, 0.0
  %v234 = vmax.f32 %v170, 0.0
  %v235 = vmax.f32 %v171, 0.0
  %v236 = vmax.f32 %v172, 0.0
  %v237 = vmax.f32 %v173, 0.0
  %v238 = vmax.f32 %v174, 0.0
  %v239 = vmax.f32 %v175, 0.0
  %v240 = vmax.f32 %v176, 0.0
  %v241 = vmax.f32 %v177, 0.0
  %v242 = vmax.f32 %v178, 0.0
  %v243 = vmax.f32 %v179, 0.0
  %v244 = vmax.f32 %v180, 0.0
  %v245 = vmax.f32 %v181, 0.0
  %v246 = vmax.f32 %v182, 0.0
  %v247 = vmax.f32 %v183, 0.0
  %v248 = vmax.f32 %v184, 0.0
  %v249 = vmax.f32 %v185, 0.0
  %v250 = vmax.f32 %v186, 0.0
  %v251 = vmax.f32 %v187, 0.0
  %v252 = vmax.f32 %v188, 0.0
  %v253 = vmax.f32 %v189, 0.0
  %v254 = vmax.f32 %v190, 0.0
  %v255 = vmax.f32 %v191, 0.0
  %v256 = vmax.f32 %v192, 0.0
  %v257 = vmax.f32 %v193, 0.0
  %v258 = vmax.f32 %v194, 0.0
  %v259 = vmax.f32 %v195, 0.0
  %v260 = vmax.f32 %v196, 0.0
  %v261 = vmax.f32 %v197, 0.0
  %v262 = vmax.f32 %v198, 0.0
  %v263 = vmax.f32 %v199, 0.0
  %v264 = vmax.f32 %v200, 0.0
  %v265 = vmax.f32 %v201, 0.0
  %v266 = vmax.f32 %v202, 0.0
  %v267 = vmax.f32 %v203, 0.0
  %v268 = vmax.f32 %v204, 0.0
  %v269 = vmax.f32 %v205, 0.0
  %v270 = vmax.f32 %v206, 0.0
  %v271 = vmax.f32 %v207, 0.0
  %v272 = vmax.f32 %v208, 0.0
  %v273 = vmax.f32 %v209, 0.0
  %v274 = vmax.f32 %v210, 0.0
  %v275 = vmax.f32 %v211, 0.0
  %v276 = vmax.f32 %v212, 0.0
  %v277 = vmax.f32 %v213, 0.0
  %vm278 = vcmask 64512
  %279 = vst.msk [vmem:[%s3] sm:$0xff] %vm278, %v214
  %280 = vst.msk [vmem:[%s3 + $0x8] sm:$0xff] %vm278, %v215
  %281 = vst.msk [vmem:[%s3 + $0x10] sm:$0xff] %vm278, %v216
  %282 = vst.msk [vmem:[%s3 + $0x18] sm:$0xff] %vm278, %v217
  %283 = vst.msk [vmem:[%s3 + $0x20] sm:$0xff] %vm278, %v218
  %284 = vst.msk [vmem:[%s3 + $0x28] sm:$0xff] %vm278, %v219
  %285 = vst.msk [vmem:[%s3 + $0x30] sm:$0xff] %vm278, %v220
  %286 = vst.msk [vmem:[%s3 + $0x38] sm:$0xff] %vm278, %v221
  %287 = vst.msk [vmem:[%s3 + $0x40] sm:$0xff] %vm278, %v222
  %288 = vst.msk [vmem:[%s3 + $0x48] sm:$0xff] %vm278, %v223
  %289 = vst.msk [vmem:[%s3 + $0x50] sm:$0xff] %vm278, %v224
  %290 = vst.msk [vmem:[%s3 + $0x58] sm:$0xff] %vm278, %v225
  %291 = vst.msk [vmem:[%s3 + $0x60] sm:$0xff] %vm278, %v226
  %292 = vst.msk [vmem:[%s3 + $0x68] sm:$0xff] %vm278, %v227
  %293 = vst.msk [vmem:[%s3 + $0x70] sm:$0xff] %vm278, %v228
  %294 = vst.msk [vmem:[%s3 + $0x78] sm:$0xff] %vm278, %v229
  %295 = vst.msk [vmem:[%s3 + $0x80] sm:$0xff] %vm278, %v230
  %296 = vst.msk [vmem:[%s3 + $0x88] sm:$0xff] %vm278, %v231
  %297 = vst.msk [vmem:[%s3 + $0x90] sm:$0xff] %vm278, %v232
  %298 = vst.msk [vmem:[%s3 + $0x98] sm:$0xff] %vm278, %v233
  %299 = vst.msk [vmem:[%s3 + $0xa0] sm:$0xff] %vm278, %v234
  %300 = vst.msk [vmem:[%s3 + $0xa8] sm:$0xff] %vm278, %v235
  %301 = vst.msk [vmem:[%s3 + $0xb0] sm:$0xff] %vm278, %v236
  %302 = vst.msk [vmem:[%s3 + $0xb8] sm:$0xff] %vm278, %v237
  %303 = vst.msk [vmem:[%s3 + $0xc0] sm:$0xff] %vm278, %v238
  %304 = vst.msk [vmem:[%s3 + $0xc8] sm:$0xff] %vm278, %v239
  %305 = vst.msk [vmem:[%s3 + $0xd0] sm:$0xff] %vm278, %v240
  %306 = vst.msk [vmem:[%s3 + $0xd8] sm:$0xff] %vm278, %v241
  %307 = vst.msk [vmem:[%s3 + $0xe0] sm:$0xff] %vm278, %v242
  %308 = vst.msk [vmem:[%s3 + $0xe8] sm:$0xff] %vm278, %v243
  %309 = vst.msk [vmem:[%s3 + $0xf0] sm:$0xff] %vm278, %v244
  %310 = vst.msk [vmem:[%s3 + $0xf8] sm:$0xff] %vm278, %v245
  %311 = vst.msk [vmem:[%s3 + $0x100] sm:$0xff] %vm278, %v246
  %312 = vst.msk [vmem:[%s3 + $0x108] sm:$0xff] %vm278, %v247
  %313 = vst.msk [vmem:[%s3 + $0x110] sm:$0xff] %vm278, %v248
  %314 = vst.msk [vmem:[%s3 + $0x118] sm:$0xff] %vm278, %v249
  %315 = vst.msk [vmem:[%s3 + $0x120] sm:$0xff] %vm278, %v250
  %316 = vst.msk [vmem:[%s3 + $0x128] sm:$0xff] %vm278, %v251
  %317 = vst.msk [vmem:[%s3 + $0x130] sm:$0xff] %vm278, %v252
  %318 = vst.msk [vmem:[%s3 + $0x138] sm:$0xff] %vm278, %v253
  %319 = vst.msk [vmem:[%s3 + $0x140] sm:$0xff] %vm278, %v254
  %320 = vst.msk [vmem:[%s3 + $0x148] sm:$0xff] %vm278, %v255
  %321 = vst.msk [vmem:[%s3 + $0x150] sm:$0xff] %vm278, %v256
  %322 = vst.msk [vmem:[%s3 + $0x158] sm:$0xff] %vm278, %v257
  %323 = vst.msk [vmem:[%s3 + $0x160] sm:$0xff] %vm278, %v258
  %324 = vst.msk [vmem:[%s3 + $0x168] sm:$0xff] %vm278, %v259
  %325 = vst.msk [vmem:[%s3 + $0x170] sm:$0xff] %vm278, %v260
  %326 = vst.msk [vmem:[%s3 + $0x178] sm:$0xff] %vm278, %v261
  %327 = vst.msk [vmem:[%s3 + $0x180] sm:$0xff] %vm278, %v262
  %328 = vst.msk [vmem:[%s3 + $0x188] sm:$0xff] %vm278, %v263
  %329 = vst.msk [vmem:[%s3 + $0x190] sm:$0xff] %vm278, %v264
  %330 = vst.msk [vmem:[%s3 + $0x198] sm:$0xff] %vm278, %v265
  %331 = vst.msk [vmem:[%s3 + $0x1a0] sm:$0xff] %vm278, %v266
  %332 = vst.msk [vmem:[%s3 + $0x1a8] sm:$0xff] %vm278, %v267
  %333 = vst.msk [vmem:[%s3 + $0x1b0] sm:$0xff] %vm278, %v268
  %334 = vst.msk [vmem:[%s3 + $0x1b8] sm:$0xff] %vm278, %v269
  %335 = vst.msk [vmem:[%s3 + $0x1c0] sm:$0xff] %vm278, %v270
  %336 = vst.msk [vmem:[%s3 + $0x1c8] sm:$0xff] %vm278, %v271
  %337 = vst.msk [vmem:[%s3 + $0x1d0] sm:$0xff] %vm278, %v272
  %338 = vst.msk [vmem:[%s3 + $0x1d8] sm:$0xff] %vm278, %v273
  %339 = vst.msk [vmem:[%s3 + $0x1e0] sm:$0xff] %vm278, %v274
  %340 = vst.msk [vmem:[%s3 + $0x1e8] sm:$0xff] %vm278, %v275
  %341 = vst.msk [vmem:[%s3 + $0x1f0] sm:$0xff] %vm278, %v276
  %342 = vst.msk [vmem:[%s3 + $0x1f8] sm:$0xff] %vm278, %v277
  // Predicated region
  $region14: #{up_forward.9} parent=0 // pred_check
    _
  $region15: #{up_forward.9} parent=0 // pred_check_branch
    %344 = sbr.rel (0) target = $region17
  $region16: #{up_forward.9} parent=0 // pred_region
    _
  $region17: #{up_forward.9} parent=0 // pred_fallthru
    _
  // Predicated region
  $region18: #{up_forward.9} parent=0 // pred_check
    _
  $region19: #{up_forward.9} parent=0 // pred_check_branch
    %346 = sbr.rel (0) target = $region21
  $region20: #{up_forward.9} parent=0 // pred_region
    _
  $region21: #{up_forward.9} parent=0 // pred_fallthru
    _

// kernel: up_forward.12
$region0: #{up_forward.12}
  #allocation0 [shape = 'u32[]', space=smem, size = 0x4, offset = 0x4, fixed_abs, tag = 'smem constant byte address 0x4 - core index']
  #allocation1 [shape = 'u32[72,128]{1,0:T(1,128)}', space=vmem, size = 0x9000, scoped, tag = 'internal scratch']
  %s0 = inlined_call_operand.vmem [shape: f32[2,1,20,20,8], index: 0, kind: input, shape index: {}]
  %s1 = inlined_call_operand.vmem [shape: f32[9,8,8], index: 1, kind: input, shape index: {}]
  %s2 = inlined_call_operand.vmem [shape: f32[2,16,16,8], index: 2, kind: output, shape index: {0}]
  %s3 = inlined_call_operand.vmem [shape: f32[2,1,1,8], index: 3, kind: output, shape index: {1}]
  %s4 = inlined_call_operand.vmem [shape: f32[2,1,1,8], index: 4, kind: output, shape index: {2}]
  %5 = xla_tuple %s2, %s3, %s4
  %s6 = sld [smem:[#allocation0]]
  $region57: #{up_forward.12} parent=0
    _
  %s8 = ssub.s32 1, %s6
  %s9 = scalar_select 0, %s8, %s6
  loop: start=0, step=1, limit=4
  $region2: #{up_forward.12} parent=0 // loop_pre_header
    _
  $region3: #{up_forward.12} parent=0 // loop_header
    %s11 = sphi 0, %s15
    %p12 = scmp.ge.s32.totalorder %s11, 4
    %s18 = sphi 0, %s30
    %s19 = sphi 0, %s26
    %s20 = sphi 0, %s18
    %s21 = sphi 0, %s19
    %s22 = sphi 0, %s20
    %s23 = sphi 0, %s21
    %s35 = sphi 0, %s37
    %s38 = sphi 0, %s35
    %s39 = sphi 0, %s38
    %s55 = sphi 0, %s39
    %s59 = sphi 0, %s59
    %s61 = sphi 0, %s59
    %s62 = sphi 0, %s61
    %s76 = sphi 0, %s62
    %s84 = sphi 0, %s86
    %s87 = sphi 0, %s84
    %s88 = sphi 0, %s87
    %s104 = sphi 0, %s88
    %s112 = sphi 0, %s114
    %s115 = sphi 0, %s112
    %s116 = sphi 0, %s115
    %s132 = sphi 0, %s116
    %s140 = sphi 0, %s142
    %s143 = sphi 0, %s140
    %s144 = sphi 0, %s143
    %s160 = sphi 0, %s144
  $region4: #{up_forward.12} parent=0 // loop_header_branch
    %14 = sbr.rel (%p12) target = $region8
  $region5: #{up_forward.12} parent=0 // loop_body
    %s16 = ssub.s32 %s11, 1
    %s17 = ssub.s32 %s11, 2
    %s24 = sadd.s32 1, %s19
    %p25 = scmp.ge.s32.totalorder %s24, 1
    %s26 = scalar_select %p25, 0, %s24
    %s27 = sadd.s32 1, %s18
    %s28 = scalar_select %p25, %s27, %s18
    %p29 = scmp.ge.s32.totalorder %s28, 2
    %s30 = scalar_select %p29, 0, %s28
    %s31 = ssub.s32 %s18, %s30
    %s32 = ssub.s32 %s19, %s26
    %s33 = sor.u32 %s31, %s32
    %p34 = scmp.eq.s32.totalorder %s33, 0
    %s36 = sadd.s32 %s35, 1
    %s37 = scalar_select %p34, %s35, %s36
    %p40 = pneg %p34
    %p41 = scmp.eq.s32.totalorder %s11, 1
    %p42 = por %p40, %p41
    %p43 = scmp.ne.s32.totalorder %s35, %s38
    %p44 = scmp.eq.s32.totalorder %s11, 0
    %p45 = por %p43, %p44
    %p46 = scmp.ne.s32.totalorder %s35, %s38
    %p47 = scmp.eq.s32.totalorder %s16, 1
    %p48 = por %p46, %p47
    %p49 = scmp.ne.s32.totalorder %s38, %s39
    %p50 = scmp.eq.s32.totalorder %s16, 0
    %p51 = por %p49, %p50
    %p52 = scmp.ne.s32.totalorder %s38, %s39
    %p53 = scmp.eq.s32.totalorder %s17, 1
    %p54 = por %p52, %p53
    %p56 = scmp.ne.s32.totalorder %s39, %s55
    %p57 = scmp.eq.s32.totalorder %s17, 0
    %p58 = por %p56, %p57
    %s60 = sadd.s32 %s59, 1
    %p63 = scmp.eq.s32.totalorder %s11, 1
    %p64 = scmp.ne.s32.totalorder %s59, %s61
    %p65 = scmp.eq.s32.totalorder %s11, 0
    %p66 = por %p64, %p65
    %p67 = scmp.ne.s32.totalorder %s59, %s61
    %p68 = scmp.eq.s32.totalorder %s16, 1
    %p69 = por %p67, %p68
    %p70 = scmp.ne.s32.totalorder %s61, %s62
    %p71 = scmp.eq.s32.totalorder %s16, 0
    %p72 = por %p70, %p71
    %p73 = scmp.ne.s32.totalorder %s61, %s62
    %p74 = scmp.eq.s32.totalorder %s17, 1
    %p75 = por %p73, %p74
    %p77 = scmp.ne.s32.totalorder %s62, %s76
    %p78 = scmp.eq.s32.totalorder %s17, 0
    %p79 = por %p77, %p78
    %s80 = ssub.s32 %s18, %s30
    %s81 = ssub.s32 %s19, %s26
    %s82 = sor.u32 %s80, %s81
    %p83 = scmp.eq.s32.totalorder %s82, 0
    %s85 = sadd.s32 %s84, 1
    %s86 = scalar_select %p83, %s84, %s85
    %p89 = pneg %p83
    %p90 = scmp.eq.s32.totalorder %s11, 1
    %p91 = por %p89, %p90
    %p92 = scmp.ne.s32.totalorder %s84, %s87
    %p93 = scmp.eq.s32.totalorder %s11, 0
    %p94 = por %p92, %p93
    %p95 = scmp.ne.s32.totalorder %s84, %s87
    %p96 = scmp.eq.s32.totalorder %s16, 1
    %p97 = por %p95, %p96
    %p98 = scmp.ne.s32.totalorder %s87, %s88
    %p99 = scmp.eq.s32.totalorder %s16, 0
    %p100 = por %p98, %p99
    %p101 = scmp.ne.s32.totalorder %s87, %s88
    %p102 = scmp.eq.s32.totalorder %s17, 1
    %p103 = por %p101, %p102
    %p105 = scmp.ne.s32.totalorder %s88, %s104
    %p106 = scmp.eq.s32.totalorder %s17, 0
    %p107 = por %p105, %p106
    %s108 = ssub.s32 %s18, %s30
    %s109 = ssub.s32 %s19, %s26
    %s110 = sor.u32 %s108, %s109
    %p111 = scmp.eq.s32.totalorder %s110, 0
    %s113 = sadd.s32 %s112, 1
    %s114 = scalar_select %p111, %s112, %s113
    %p117 = pneg %p111
    %p118 = scmp.eq.s32.totalorder %s11, 1
    %p119 = por %p117, %p118
    %p120 = scmp.ne.s32.totalorder %s112, %s115
    %p121 = scmp.eq.s32.totalorder %s11, 0
    %p122 = por %p120, %p121
    %p123 = scmp.ne.s32.totalorder %s112, %s115
    %p124 = scmp.eq.s32.totalorder %s16, 1
    %p125 = por %p123, %p124
    %p126 = scmp.ne.s32.totalorder %s115, %s116
    %p127 = scmp.eq.s32.totalorder %s16, 0
    %p128 = por %p126, %p127
    %p129 = scmp.ne.s32.totalorder %s115, %s116
    %p130 = scmp.eq.s32.totalorder %s17, 1
    %p131 = por %p129, %p130
    %p133 = scmp.ne.s32.totalorder %s116, %s132
    %p134 = scmp.eq.s32.totalorder %s17, 0
    %p135 = por %p133, %p134
    %s136 = ssub.s32 %s18, %s30
    %s137 = ssub.s32 %s19, %s26
    %s138 = sor.u32 %s136, %s137
    %p139 = scmp.eq.s32.totalorder %s138, 0
    %s141 = sadd.s32 %s140, 1
    %s142 = scalar_select %p139, %s140, %s141
    %p145 = pneg %p139
    %p146 = scmp.eq.s32.totalorder %s11, 1
    %p147 = por %p145, %p146
    %p148 = scmp.ne.s32.totalorder %s140, %s143
    %p149 = scmp.eq.s32.totalorder %s11, 0
    %p150 = por %p148, %p149
    %p151 = scmp.ne.s32.totalorder %s140, %s143
    %p152 = scmp.eq.s32.totalorder %s16, 1
    %p153 = por %p151, %p152
    %p154 = scmp.ne.s32.totalorder %s143, %s144
    %p155 = scmp.eq.s32.totalorder %s16, 0
    %p156 = por %p154, %p155
    %p157 = scmp.ne.s32.totalorder %s143, %s144
    %p158 = scmp.eq.s32.totalorder %s17, 1
    %p159 = por %p157, %p158
    %p161 = scmp.ne.s32.totalorder %s144, %s160
    %p162 = scmp.eq.s32.totalorder %s17, 0
    %p163 = por %p161, %p162
    %p164 = scmp.le.s32.totalorder 1, %s11
    %p165 = scmp.lt.s32.totalorder %s11, 3
    %p166 = pnand %p164, %p165
    %p167 = pneg %p166
    // Predicated region
    $region9: #{up_forward.12} parent=5 // pred_check
      _
    $region10: #{up_forward.12} parent=5 // pred_check_branch
      %169 = sbr.rel (%p166) target = $region12
    $region11: #{up_forward.12} parent=5 // pred_region
      %s170 = ssub.s32 %s11, 1
      // Predicated region
      $region13: #{up_forward.12} parent=11 // pred_check
        %p171 = pneg %p72
      $region14: #{up_forward.12} parent=11 // pred_check_branch
        %173 = sbr.rel (%p171) target = $region16
      $region15: #{up_forward.12} parent=11 // pred_region
        _
      $region16: #{up_forward.12} parent=11 // pred_fallthru
        _
    $region12: #{up_forward.12} parent=5 // pred_fallthru
      _
    %p174 = scmp.lt.s32.totalorder %s11, 2
    // Predicated region
    $region17: #{up_forward.12} parent=5 // pred_check
      %p175 = pneg %p174
    $region18: #{up_forward.12} parent=5 // pred_check_branch
      %177 = sbr.rel (%p175) target = $region20
    $region19: #{up_forward.12} parent=5 // pred_region
      // Predicated region
      $region21: #{up_forward.12} parent=19 // pred_check
        %p178 = pneg %p45
      $region22: #{up_forward.12} parent=19 // pred_check_branch
        %180 = sbr.rel (%p178) target = $region24
      $region23: #{up_forward.12} parent=19 // pred_region
        %p181 = scmp.lt.s32.totalorder %s18, 1
        %s182 = scalar_select %p181, %s18, 1
        %p183 = scmp.lt.s32.totalorder %s19, 0
        %s184 = scalar_select %p183, %s19, 0
        %s185 = smul.addr %s184, 60
        %s186 = smul.addr %s182, 60
        %s187 = sadd.s32 %s185, %s186
        %s188 = smul.addr %s187, 8
        %s189 = scalar_lea.vmem %s0, %s188
      $region24: #{up_forward.12} parent=19 // pred_fallthru
        _
    $region20: #{up_forward.12} parent=5 // pred_fallthru
      _
    %p190 = scmp.le.s32.totalorder 1, %s11
    %p191 = scmp.lt.s32.totalorder %s11, 3
    %p192 = pnand %p190, %p191
    %p193 = pneg %p192
    // Predicated region
    $region25: #{up_forward.12} parent=5 // pred_check
      _
    $region26: #{up_forward.12} parent=5 // pred_check_branch
      %195 = sbr.rel (%p192) target = $region28
    $region27: #{up_forward.12} parent=5 // pred_region
      %s196 = ssub.s32 %s11, 1
      %p197 = scmp.lt.s32.totalorder %s20, 1
      %s198 = scalar_select %p197, %s20, 1
      %p199 = scmp.lt.s32.totalorder %s21, 0
      %s200 = scalar_select %p199, %s21, 0
      %s201 = smul.addr %s200, 60
      %s202 = smul.addr %s198, 60
      %s203 = sadd.s32 %s201, %s202
      %s204 = smul.addr %s203, 8
      %s205 = scalar_lea.vmem %s0, %s204
      %p206 = pneg %p51
      %p207 = pneg %p48
      %p208 = pneg %p72
      %p209 = pneg %p69
      %p210 = pneg %p100
      %p211 = pneg %p97
      %s212 = smul.u32 16, %s21
      %p213 = scmp.lt.s32.totalorder %s20, 1
      %s214 = scalar_select %p213, %s20, 1
      %p215 = scmp.lt.s32.totalorder %s212, 15
      %s216 = scalar_select %p215, %s212, 15
      %s217 = smul.addr %s216, 2
      %s218 = smul.addr %s214, 32
      %s219 = sadd.s32 %s217, %s218
      %s220 = smul.addr %s219, 8
      %s221 = scalar_lea.vmem %s2, %s220
      %p222 = pneg %p128
      %p223 = pneg %p125
      %p224 = scmp.lt.s32.totalorder %s20, 1
      %s225 = scalar_select %p224, %s20, 1
      %p226 = scmp.lt.s32.totalorder %s21, 0
      %s227 = scalar_select %p226, %s21, 0
      %s228 = sadd.s32 %s227, %s225
      %s229 = scalar_lea.vmem %s3, %s228
      %p230 = pneg %p156
      %p231 = pneg %p153
      %p232 = scmp.lt.s32.totalorder %s20, 1
      %s233 = scalar_select %p232, %s20, 1
      %p234 = scmp.lt.s32.totalorder %s21, 0
      %s235 = scalar_select %p234, %s21, 0
      %s236 = sadd.s32 %s235, %s233
      %s237 = scalar_lea.vmem %s4, %s236
      %p238 = scmp.lt.s32.totalorder %s20, 1
      %s239 = scalar_select %p238, %s20, 1
      %p240 = scmp.lt.s32.totalorder %s21, 0
      %s241 = scalar_select %p240, %s21, 0
      %s242 = smul.addr %s241, 60
      %s243 = smul.addr %s239, 60
      %s244 = sadd.s32 %s242, %s243
      %s245 = smul.addr %s244, 8
      %s246 = scalar_lea.vmem %s0, %s245
      %s247 = smul.u32 16, %s21
      %p248 = scmp.lt.s32.totalorder %s20, 1
      %s249 = scalar_select %p248, %s20, 1
      %p250 = scmp.lt.s32.totalorder %s247, 15
      %s251 = scalar_select %p250, %s247, 15
      %s252 = smul.addr %s251, 2
      %s253 = smul.addr %s249, 32
      %s254 = sadd.s32 %s252, %s253
      %s255 = smul.addr %s254, 8
      %s256 = scalar_lea.vmem %s2, %s255
      %s257 = smul.u32 16, %s21
      %p258 = scmp.lt.s32.totalorder %s20, 1
      %s259 = scalar_select %p258, %s20, 1
      %p260 = scmp.lt.s32.totalorder %s21, 0
      %s261 = scalar_select %p260, %s21, 0
      %s262 = sadd.s32 %s261, %s259
      %s263 = scalar_lea.vmem %s3, %s262
      %p264 = scmp.lt.s32.totalorder %s20, 1
      %s265 = scalar_select %p264, %s20, 1
      %p266 = scmp.lt.s32.totalorder %s21, 0
      %s267 = scalar_select %p266, %s21, 0
      %s268 = sadd.s32 %s267, %s265
      %s269 = scalar_lea.vmem %s4, %s268
      %v270 = vld [vmem:[%s246] sm:$0xff]
      %v271 = vld [vmem:[%s246 + $0x8] sm:$0xff]
      %v272 = vld [vmem:[%s246 + $0x18] sm:$0xff]
      %v273 = vld [vmem:[%s246 + $0x20] sm:$0xff]
      %v274 = vld [vmem:[%s246 + $0x30] sm:$0xff]
      %v275 = vld [vmem:[%s246 + $0x38] sm:$0xff]
      %v276 = vld [vmem:[%s246 + $0x48] sm:$0xff]
      %v277 = vld [vmem:[%s246 + $0x50] sm:$0xff]
      %v278 = vld [vmem:[%s246 + $0x60] sm:$0xff]
      %v279 = vld [vmem:[%s246 + $0x68] sm:$0xff]
      %v280 = vld [vmem:[%s246 + $0x78] sm:$0xff]
      %v281 = vld [vmem:[%s246 + $0x80] sm:$0xff]
      %v282 = vld [vmem:[%s246 + $0x90] sm:$0xff]
      %v283 = vld [vmem:[%s246 + $0x98] sm:$0xff]
      %v284 = vld [vmem:[%s246 + $0xa8] sm:$0xff]
      %v285 = vld [vmem:[%s246 + $0xb0] sm:$0xff]
      %v286 = vld [vmem:[%s246 + $0xc0] sm:$0xff]
      %v287 = vld [vmem:[%s246 + $0xc8] sm:$0xff]
      %v288 = vld [vmem:[%s246 + $0xd8] sm:$0xff]
      %v289 = vld [vmem:[%s246 + $0xe0] sm:$0xff]
      %v290 = vld [vmem:[%s246 + $0xf0] sm:$0xff]
      %v291 = vld [vmem:[%s246 + $0xf8] sm:$0xff]
      %v292 = vld [vmem:[%s246 + $0x108] sm:$0xff]
      %v293 = vld [vmem:[%s246 + $0x110] sm:$0xff]
      %v294 = vld [vmem:[%s246 + $0x120] sm:$0xff]
      %v295 = vld [vmem:[%s246 + $0x128] sm:$0xff]
      %v296 = vld [vmem:[%s246 + $0x138] sm:$0xff]
      %v297 = vld [vmem:[%s246 + $0x140] sm:$0xff]
      %v298 = vld [vmem:[%s246 + $0x150] sm:$0xff]
      %v299 = vld [vmem:[%s246 + $0x158] sm:$0xff]
      %v300 = vld [vmem:[%s246 + $0x168] sm:$0xff]
      %v301 = vld [vmem:[%s246 + $0x170] sm:$0xff]
      %v302 = vld [vmem:[%s1] sm:$0xff]
      %v303 = vld [vmem:[%s246 + $0x2] sm:$0xff]
      %v304 = vld [vmem:[%s246 + $0xa] sm:$0xff]
      %v305 = vld [vmem:[%s246 + $0x1a] sm:$0xff]
      %v306 = vld [vmem:[%s246 + $0x22] sm:$0xff]
      %v307 = vld [vmem:[%s246 + $0x32] sm:$0xff]
      %v308 = vld [vmem:[%s246 + $0x3a] sm:$0xff]
      %v309 = vld [vmem:[%s246 + $0x4a] sm:$0xff]
      %v310 = vld [vmem:[%s246 + $0x52] sm:$0xff]
      %v311 = vld [vmem:[%s246 + $0x62] sm:$0xff]
      %v312 = vld [vmem:[%s246 + $0x6a] sm:$0xff]
      %v313 = vld [vmem:[%s246 + $0x7a] sm:$0xff]
      %v314 = vld [vmem:[%s246 + $0x82] sm:$0xff]
      %v315 = vld [vmem:[%s246 + $0x92] sm:$0xff]
      %v316 = vld [vmem:[%s246 + $0x9a] sm:$0xff]
      %v317 = vld [vmem:[%s246 + $0xaa] sm:$0xff]
      %v318 = vld [vmem:[%s246 + $0xb2] sm:$0xff]
      %v319 = vld [vmem:[%s246 + $0xc2] sm:$0xff]
      %v320 = vld [vmem:[%s246 + $0xca] sm:$0xff]
      %v321 = vld [vmem:[%s246 + $0xda] sm:$0xff]
      %v322 = vld [vmem:[%s246 + $0xe2] sm:$0xff]
      %v323 = vld [vmem:[%s246 + $0xf2] sm:$0xff]
      %v324 = vld [vmem:[%s246 + $0xfa] sm:$0xff]
      %v325 = vld [vmem:[%s246 + $0x10a] sm:$0xff]
      %v326 = vld [vmem:[%s246 + $0x112] sm:$0xff]
      %v327 = vld [vmem:[%s246 + $0x122] sm:$0xff]
      %v328 = vld [vmem:[%s246 + $0x12a] sm:$0xff]
      %v329 = vld [vmem:[%s246 + $0x13a] sm:$0xff]
      %v330 = vld [vmem:[%s246 + $0x142] sm:$0xff]
      %v331 = vld [vmem:[%s246 + $0x152] sm:$0xff]
      %v332 = vld [vmem:[%s246 + $0x15a] sm:$0xff]
      %v333 = vld [vmem:[%s246 + $0x16a] sm:$0xff]
      %v334 = vld [vmem:[%s246 + $0x172] sm:$0xff]
      %s335 = scalar_lea.vmem %s1, 8
      %v336 = vld [vmem:[%s335] sm:$0xff]
      %vm337 = vcmask 64512
      %v339 = vsel %vm337, %v303, 0
      %v342 = vsel %vm337, %v304, 0
      %v345 = vsel %vm337, %v305, 0
      %v348 = vsel %vm337, %v306, 0
      %v351 = vsel %vm337, %v307, 0
      %v354 = vsel %vm337, %v308, 0
      %v357 = vsel %vm337, %v309, 0
      %v360 = vsel %vm337, %v310, 0
      %v363 = vsel %vm337, %v311, 0
      %v366 = vsel %vm337, %v312, 0
      %v369 = vsel %vm337, %v313, 0
      %v372 = vsel %vm337, %v314, 0
      %v375 = vsel %vm337, %v315, 0
      %v378 = vsel %vm337, %v316, 0
      %v381 = vsel %vm337, %v317, 0
      %v384 = vsel %vm337, %v318, 0
      %v387 = vsel %vm337, %v319, 0
      %v390 = vsel %vm337, %v320, 0
      %v393 = vsel %vm337, %v321, 0
      %v396 = vsel %vm337, %v322, 0
      %v399 = vsel %vm337, %v323, 0
      %v402 = vsel %vm337, %v324, 0
      %v405 = vsel %vm337, %v325, 0
      %v408 = vsel %vm337, %v326, 0
      %v411 = vsel %vm337, %v327, 0
      %v414 = vsel %vm337, %v328, 0
      %v417 = vsel %vm337, %v329, 0
      %v420 = vsel %vm337, %v330, 0
      %v423 = vsel %vm337, %v331, 0
      %v426 = vsel %vm337, %v332, 0
      %v429 = vsel %vm337, %v333, 0
      %v432 = vsel %vm337, %v334, 0
      %434 = vmatpush.msra.mxu0 0.0
      %435 = vmatpush.msra.mxu0 0.0
      %436 = vmatpush.msra.mxu0 0.0
      %437 = vmatpush.msra.mxu0 0.0
      %438 = vmatpush.msra.mxu0 0.0
      %439 = vmatpush.msra.mxu0 0.0
      %440 = vmatpush.msra.mxu0 0.0
      %441 = vmatpush.msra.mxu0 0.0
      %442 = vmatpush.msra.mxu0 0.0
      %443 = vmatpush.msra.mxu0 0.0
      %444 = vmatpush.msra.mxu0 0.0
      %445 = vmatpush.msra.mxu0 0.0
      %446 = vmatpush.msra.mxu0 0.0
      %447 = vmatpush.msra.mxu0 0.0
      %448 = vmatpush.msra.mxu0 0.0
      %449 = vmatpush.msra.mxu0 %v336
      %450 = vmatmul.f32.gmra.mxu0 %v339
      %v451 = vpop.f32.mrf.mxu0
      %v452 = vadd.f32 0.0, %v451
      %453 = vmatmul.f32.gmra.mxu0 %v342
      %v454 = vpop.f32.mrf.mxu0
      %v455 = vadd.f32 0.0, %v454
      %456 = vmatmul.f32.gmra.mxu0 %v345
      %v457 = vpop.f32.mrf.mxu0
      %v458 = vadd.f32 0.0, %v457
      %459 = vmatmul.f32.gmra.mxu0 %v348
      %v460 = vpop.f32.mrf.mxu0
      %v461 = vadd.f32 0.0, %v460
      %462 = vmatmul.f32.gmra.mxu0 %v351
      %v463 = vpop.f32.mrf.mxu0
      %v464 = vadd.f32 0.0, %v463
      %465 = vmatmul.f32.gmra.mxu0 %v354
      %v466 = vpop.f32.mrf.mxu0
      %v467 = vadd.f32 0.0, %v466
      %468 = vmatmul.f32.gmra.mxu0 %v357
      %v469 = vpop.f32.mrf.mxu0
      %v470 = vadd.f32 0.0, %v469
      %471 = vmatmul.f32.gmra.mxu0 %v360
      %v472 = vpop.f32.mrf.mxu0
      %v473 = vadd.f32 0.0, %v472
      %474 = vmatmul.f32.gmra.mxu0 %v363
      %v475 = vpop.f32.mrf.mxu0
      %v476 = vadd.f32 0.0, %v475
      %477 = vmatmul.f32.gmra.mxu0 %v366
      %v478 = vpop.f32.mrf.mxu0
      %v479 = vadd.f32 0.0, %v478
      %480 = vmatmul.f32.gmra.mxu0 %v369
      %v481 = vpop.f32.mrf.mxu0
      %v482 = vadd.f32 0.0, %v481
      %483 = vmatmul.f32.gmra.mxu0 %v372
      %v484 = vpop.f32.mrf.mxu0
      %v485 = vadd.f32 0.0, %v484
      %486 = vmatmul.f32.gmra.mxu0 %v375
      %v487 = vpop.f32.mrf.mxu0
      %v488 = vadd.f32 0.0, %v487
      %489 = vmatmul.f32.gmra.mxu0 %v378
      %v490 = vpop.f32.mrf.mxu0
      %v491 = vadd.f32 0.0, %v490
      %492 = vmatmul.f32.gmra.mxu0 %v381
      %v493 = vpop.f32.mrf.mxu0
      %v494 = vadd.f32 0.0, %v493
      %495 = vmatmul.f32.gmra.mxu0 %v384
      %v496 = vpop.f32.mrf.mxu0
      %v497 = vadd.f32 0.0, %v496
      %498 = vmatmul.f32.gmra.mxu0 %v387
      %v499 = vpop.f32.mrf.mxu0
      %v500 = vadd.f32 0.0, %v499
      %501 = vmatmul.f32.gmra.mxu0 %v390
      %v502 = vpop.f32.mrf.mxu0
      %v503 = vadd.f32 0.0, %v502
      %504 = vmatmul.f32.gmra.mxu0 %v393
      %v505 = vpop.f32.mrf.mxu0
      %v506 = vadd.f32 0.0, %v505
      %507 = vmatmul.f32.gmra.mxu0 %v396
      %v508 = vpop.f32.mrf.mxu0
      %v509 = vadd.f32 0.0, %v508
      %510 = vmatmul.f32.gmra.mxu0 %v399
      %v511 = vpop.f32.mrf.mxu0
      %v512 = vadd.f32 0.0, %v511
      %513 = vmatmul.f32.gmra.mxu0 %v402
      %v514 = vpop.f32.mrf.mxu0
      %v515 = vadd.f32 0.0, %v514
      %516 = vmatmul.f32.gmra.mxu0 %v405
      %v517 = vpop.f32.mrf.mxu0
      %v518 = vadd.f32 0.0, %v517
      %519 = vmatmul.f32.gmra.mxu0 %v408
      %v520 = vpop.f32.mrf.mxu0
      %v521 = vadd.f32 0.0, %v520
      %522 = vmatmul.f32.gmra.mxu0 %v411
      %v523 = vpop.f32.mrf.mxu0
      %v524 = vadd.f32 0.0, %v523
      %525 = vmatmul.f32.gmra.mxu0 %v414
      %v526 = vpop.f32.mrf.mxu0
      %v527 = vadd.f32 0.0, %v526
      %528 = vmatmul.f32.gmra.mxu0 %v417
      %v529 = vpop.f32.mrf.mxu0
      %v530 = vadd.f32 0.0, %v529
      %531 = vmatmul.f32.gmra.mxu0 %v420
      %v532 = vpop.f32.mrf.mxu0
      %v533 = vadd.f32 0.0, %v532
      %534 = vmatmul.f32.gmra.mxu0 %v423
      %v535 = vpop.f32.mrf.mxu0
      %v536 = vadd.f32 0.0, %v535
      %537 = vmatmul.f32.gmra.mxu0 %v426
      %v538 = vpop.f32.mrf.mxu0
      %v539 = vadd.f32 0.0, %v538
      %540 = vmatmul.f32.gmra.mxu0 %v429
      %v541 = vpop.f32.mrf.mxu0
      %v542 = vadd.f32 0.0, %v541
      %543 = vmatmul.f32.gmra.mxu0 %v432
      %v544 = vpop.f32.mrf.mxu0
      %v545 = vadd.f32 0.0, %v544
      %546 = vdwg.mxu0
      %v548 = vsel %vm337, %v270, 0
      %v551 = vsel %vm337, %v271, 0
      %v554 = vsel %vm337, %v272, 0
      %v557 = vsel %vm337, %v273, 0
      %v560 = vsel %vm337, %v274, 0
      %v563 = vsel %vm337, %v275, 0
      %v566 = vsel %vm337, %v276, 0
      %v569 = vsel %vm337, %v277, 0
      %v572 = vsel %vm337, %v278, 0
      %v575 = vsel %vm337, %v279, 0
      %v578 = vsel %vm337, %v280, 0
      %v581 = vsel %vm337, %v281, 0
      %v584 = vsel %vm337, %v282, 0
      %v587 = vsel %vm337, %v283, 0
      %v590 = vsel %vm337, %v284, 0
      %v593 = vsel %vm337, %v285, 0
      %v596 = vsel %vm337, %v286, 0
      %v599 = vsel %vm337, %v287, 0
      %v602 = vsel %vm337, %v288, 0
      %v605 = vsel %vm337, %v289, 0
      %v608 = vsel %vm337, %v290, 0
      %v611 = vsel %vm337, %v291, 0
      %v614 = vsel %vm337, %v292, 0
      %v617 = vsel %vm337, %v293, 0
      %v620 = vsel %vm337, %v294, 0
      %v623 = vsel %vm337, %v295, 0
      %v626 = vsel %vm337, %v296, 0
      %v629 = vsel %vm337, %v297, 0
      %v632 = vsel %vm337, %v298, 0
      %v635 = vsel %vm337, %v299, 0
      %v638 = vsel %vm337, %v300, 0
      %v641 = vsel %vm337, %v301, 0
      %643 = vmatpush.msra.mxu0 0.0
      %644 = vmatpush.msra.mxu0 0.0
      %645 = vmatpush.msra.mxu0 0.0
      %646 = vmatpush.msra.mxu0 0.0
      %647 = vmatpush.msra.mxu0 0.0
      %648 = vmatpush.msra.mxu0 0.0
      %649 = vmatpush.msra.mxu0 0.0
      %650 = vmatpush.msra.mxu0 0.0
      %651 = vmatpush.msra.mxu0 0.0
      %652 = vmatpush.msra.mxu0 0.0
      %653 = vmatpush.msra.mxu0 0.0
      %654 = vmatpush.msra.mxu0 0.0
      %655 = vmatpush.msra.mxu0 0.0
      %656 = vmatpush.msra.mxu0 0.0
      %657 = vmatpush.msra.mxu0 0.0
      %658 = vmatpush.msra.mxu0 %v302
      %659 = vmatmul.f32.gmra.mxu0 %v548
      %v660 = vpop.f32.mrf.mxu0
      %v661 = vadd.f32 %v452, %v660
      %662 = vmatmul.f32.gmra.mxu0 %v551
      %v663 = vpop.f32.mrf.mxu0
      %v664 = vadd.f32 %v455, %v663
      %665 = vmatmul.f32.gmra.mxu0 %v554
      %v666 = vpop.f32.mrf.mxu0
      %v667 = vadd.f32 %v458, %v666
      %668 = vmatmul.f32.gmra.mxu0 %v557
      %v669 = vpop.f32.mrf.mxu0
      %v670 = vadd.f32 %v461, %v669
      %671 = vmatmul.f32.gmra.mxu0 %v560
      %v672 = vpop.f32.mrf.mxu0
      %v673 = vadd.f32 %v464, %v672
      %674 = vmatmul.f32.gmra.mxu0 %v563
      %v675 = vpop.f32.mrf.mxu0
      %v676 = vadd.f32 %v467, %v675
      %677 = vmatmul.f32.gmra.mxu0 %v566
      %v678 = vpop.f32.mrf.mxu0
      %v679 = vadd.f32 %v470, %v678
      %680 = vmatmul.f32.gmra.mxu0 %v569
      %v681 = vpop.f32.mrf.mxu0
      %v682 = vadd.f32 %v473, %v681
      %683 = vmatmul.f32.gmra.mxu0 %v572
      %v684 = vpop.f32.mrf.mxu0
      %v685 = vadd.f32 %v476, %v684
      %686 = vmatmul.f32.gmra.mxu0 %v575
      %v687 = vpop.f32.mrf.mxu0
      %v688 = vadd.f32 %v479, %v687
      %689 = vmatmul.f32.gmra.mxu0 %v578
      %v690 = vpop.f32.mrf.mxu0
      %v691 = vadd.f32 %v482, %v690
      %692 = vmatmul.f32.gmra.mxu0 %v581
      %v693 = vpop.f32.mrf.mxu0
      %v694 = vadd.f32 %v485, %v693
      %695 = vmatmul.f32.gmra.mxu0 %v584
      %v696 = vpop.f32.mrf.mxu0
      %v697 = vadd.f32 %v488, %v696
      %698 = vmatmul.f32.gmra.mxu0 %v587
      %v699 = vpop.f32.mrf.mxu0
      %v700 = vadd.f32 %v491, %v699
      %701 = vmatmul.f32.gmra.mxu0 %v590
      %v702 = vpop.f32.mrf.mxu0
      %v703 = vadd.f32 %v494, %v702
      %704 = vmatmul.f32.gmra.mxu0 %v593
      %v705 = vpop.f32.mrf.mxu0
      %v706 = vadd.f32 %v497, %v705
      %707 = vmatmul.f32.gmra.mxu0 %v596
      %v708 = vpop.f32.mrf.mxu0
      %v709 = vadd.f32 %v500, %v708
      %710 = vmatmul.f32.gmra.mxu0 %v599
      %v711 = vpop.f32.mrf.mxu0
      %v712 = vadd.f32 %v503, %v711
      %713 = vmatmul.f32.gmra.mxu0 %v602
      %v714 = vpop.f32.mrf.mxu0
      %v715 = vadd.f32 %v506, %v714
      %716 = vmatmul.f32.gmra.mxu0 %v605
      %v717 = vpop.f32.mrf.mxu0
      %v718 = vadd.f32 %v509, %v717
      %719 = vmatmul.f32.gmra.mxu0 %v608
      %v720 = vpop.f32.mrf.mxu0
      %v721 = vadd.f32 %v512, %v720
      %722 = vmatmul.f32.gmra.mxu0 %v611
      %v723 = vpop.f32.mrf.mxu0
      %v724 = vadd.f32 %v515, %v723
      %725 = vmatmul.f32.gmra.mxu0 %v614
      %v726 = vpop.f32.mrf.mxu0
      %v727 = vadd.f32 %v518, %v726
      %728 = vmatmul.f32.gmra.mxu0 %v617
      %v729 = vpop.f32.mrf.mxu0
      %v730 = vadd.f32 %v521, %v729
      %731 = vmatmul.f32.gmra.mxu0 %v620
      %v732 = vpop.f32.mrf.mxu0
      %v733 = vadd.f32 %v524, %v732
      %734 = vmatmul.f32.gmra.mxu0 %v623
      %v735 = vpop.f32.mrf.mxu0
      %v736 = vadd.f32 %v527, %v735
      %737 = vmatmul.f32.gmra.mxu0 %v626
      %v738 = vpop.f32.mrf.mxu0
      %v739 = vadd.f32 %v530, %v738
      %740 = vmatmul.f32.gmra.mxu0 %v629
      %v741 = vpop.f32.mrf.mxu0
      %v742 = vadd.f32 %v533, %v741
      %743 = vmatmul.f32.gmra.mxu0 %v632
      %v744 = vpop.f32.mrf.mxu0
      %v745 = vadd.f32 %v536, %v744
      %746 = vmatmul.f32.gmra.mxu0 %v635
      %v747 = vpop.f32.mrf.mxu0
      %v748 = vadd.f32 %v539, %v747
      %749 = vmatmul.f32.gmra.mxu0 %v638
      %v750 = vpop.f32.mrf.mxu0
      %v751 = vadd.f32 %v542, %v750
      %752 = vmatmul.f32.gmra.mxu0 %v641
      %v753 = vpop.f32.mrf.mxu0
      %v754 = vadd.f32 %v545, %v753
      %755 = vdwg.mxu0
      %v756 = vld [vmem:[%s246 + $0x4] sm:$0xff]
      %v757 = vld [vmem:[%s246 + $0xc] sm:$0xff]
      %v758 = vld [vmem:[%s246 + $0x1c] sm:$0xff]
      %v759 = vld [vmem:[%s246 + $0x24] sm:$0xff]
      %v760 = vld [vmem:[%s246 + $0x34] sm:$0xff]
      %v761 = vld [vmem:[%s246 + $0x3c] sm:$0xff]
      %v762 = vld [vmem:[%s246 + $0x4c] sm:$0xff]
      %v763 = vld [vmem:[%s246 + $0x54] sm:$0xff]
      %v764 = vld [vmem:[%s246 + $0x64] sm:$0xff]
      %v765 = vld [vmem:[%s246 + $0x6c] sm:$0xff]
      %v766 = vld [vmem:[%s246 + $0x7c] sm:$0xff]
      %v767 = vld [vmem:[%s246 + $0x84] sm:$0xff]
      %v768 = vld [vmem:[%s246 + $0x94] sm:$0xff]
      %v769 = vld [vmem:[%s246 + $0x9c] sm:$0xff]
      %v770 = vld [vmem:[%s246 + $0xac] sm:$0xff]
      %v771 = vld [vmem:[%s246 + $0xb4] sm:$0xff]
      %v772 = vld [vmem:[%s246 + $0xc4] sm:$0xff]
      %v773 = vld [vmem:[%s246 + $0xcc] sm:$0xff]
      %v774 = vld [vmem:[%s246 + $0xdc] sm:$0xff]
      %v775 = vld [vmem:[%s246 + $0xe4] sm:$0xff]
      %v776 = vld [vmem:[%s246 + $0xf4] sm:$0xff]
      %v777 = vld [vmem:[%s246 + $0xfc] sm:$0xff]
      %v778 = vld [vmem:[%s246 + $0x10c] sm:$0xff]
      %v779 = vld [vmem:[%s246 + $0x114] sm:$0xff]
      %v780 = vld [vmem:[%s246 + $0x124] sm:$0xff]
      %v781 = vld [vmem:[%s246 + $0x12c] sm:$0xff]
      %v782 = vld [vmem:[%s246 + $0x13c] sm:$0xff]
      %v783 = vld [vmem:[%s246 + $0x144] sm:$0xff]
      %v784 = vld [vmem:[%s246 + $0x154] sm:$0xff]
      %v785 = vld [vmem:[%s246 + $0x15c] sm:$0xff]
      %v786 = vld [vmem:[%s246 + $0x16c] sm:$0xff]
      %v787 = vld [vmem:[%s246 + $0x174] sm:$0xff]
      %s788 = scalar_lea.vmem %s1, 16
      %v789 = vld [vmem:[%s788] sm:$0xff]
      %v791 = vsel %vm337, %v756, 0
      %v794 = vsel %vm337, %v757, 0
      %v797 = vsel %vm337, %v758, 0
      %v800 = vsel %vm337, %v759, 0
      %v803 = vsel %vm337, %v760, 0
      %v806 = vsel %vm337, %v761, 0
      %v809 = vsel %vm337, %v762, 0
      %v812 = vsel %vm337, %v763, 0
      %v815 = vsel %vm337, %v764, 0
      %v818 = vsel %vm337, %v765, 0
      %v821 = vsel %vm337, %v766, 0
      %v824 = vsel %vm337, %v767, 0
      %v827 = vsel %vm337, %v768, 0
      %v830 = vsel %vm337, %v769, 0
      %v833 = vsel %vm337, %v770, 0
      %v836 = vsel %vm337, %v771, 0
      %v839 = vsel %vm337, %v772, 0
      %v842 = vsel %vm337, %v773, 0
      %v845 = vsel %vm337, %v774, 0
      %v848 = vsel %vm337, %v775, 0
      %v851 = vsel %vm337, %v776, 0
      %v854 = vsel %vm337, %v777, 0
      %v857 = vsel %vm337, %v778, 0
      %v860 = vsel %vm337, %v779, 0
      %v863 = vsel %vm337, %v780, 0
      %v866 = vsel %vm337, %v781, 0
      %v869 = vsel %vm337, %v782, 0
      %v872 = vsel %vm337, %v783, 0
      %v875 = vsel %vm337, %v784, 0
      %v878 = vsel %vm337, %v785, 0
      %v881 = vsel %vm337, %v786, 0
      %v884 = vsel %vm337, %v787, 0
      %886 = vmatpush.msra.mxu0 0.0
      %887 = vmatpush.msra.mxu0 0.0
      %888 = vmatpush.msra.mxu0 0.0
      %889 = vmatpush.msra.mxu0 0.0
      %890 = vmatpush.msra.mxu0 0.0
      %891 = vmatpush.msra.mxu0 0.0
      %892 = vmatpush.msra.mxu0 0.0
      %893 = vmatpush.msra.mxu0 0.0
      %894 = vmatpush.msra.mxu0 0.0
      %895 = vmatpush.msra.mxu0 0.0
      %896 = vmatpush.msra.mxu0 0.0
      %897 = vmatpush.msra.mxu0 0.0
      %898 = vmatpush.msra.mxu0 0.0
      %899 = vmatpush.msra.mxu0 0.0
      %900 = vmatpush.msra.mxu0 0.0
      %901 = vmatpush.msra.mxu0 %v789
      %902 = vmatmul.f32.gmra.mxu0 %v791
      %v903 = vpop.f32.mrf.mxu0
      %v904 = vadd.f32 0.0, %v903
      %905 = vmatmul.f32.gmra.mxu0 %v794
      %v906 = vpop.f32.mrf.mxu0
      %v907 = vadd.f32 0.0, %v906
      %908 = vmatmul.f32.gmra.mxu0 %v797
      %v909 = vpop.f32.mrf.mxu0
      %v910 = vadd.f32 0.0, %v909
      %911 = vmatmul.f32.gmra.mxu0 %v800
      %v912 = vpop.f32.mrf.mxu0
      %v913 = vadd.f32 0.0, %v912
      %914 = vmatmul.f32.gmra.mxu0 %v803
      %v915 = vpop.f32.mrf.mxu0
      %v916 = vadd.f32 0.0, %v915
      %917 = vmatmul.f32.gmra.mxu0 %v806
      %v918 = vpop.f32.mrf.mxu0
      %v919 = vadd.f32 0.0, %v918
      %920 = vmatmul.f32.gmra.mxu0 %v809
      %v921 = vpop.f32.mrf.mxu0
      %v922 = vadd.f32 0.0, %v921
      %923 = vmatmul.f32.gmra.mxu0 %v812
      %v924 = vpop.f32.mrf.mxu0
      %v925 = vadd.f32 0.0, %v924
      %926 = vmatmul.f32.gmra.mxu0 %v815
      %v927 = vpop.f32.mrf.mxu0
      %v928 = vadd.f32 0.0, %v927
      %929 = vmatmul.f32.gmra.mxu0 %v818
      %v930 = vpop.f32.mrf.mxu0
      %v931 = vadd.f32 0.0, %v930
      %932 = vmatmul.f32.gmra.mxu0 %v821
      %v933 = vpop.f32.mrf.mxu0
      %v934 = vadd.f32 0.0, %v933
      %935 = vmatmul.f32.gmra.mxu0 %v824
      %v936 = vpop.f32.mrf.mxu0
      %v937 = vadd.f32 0.0, %v936
      %938 = vmatmul.f32.gmra.mxu0 %v827
      %v939 = vpop.f32.mrf.mxu0
      %v940 = vadd.f32 0.0, %v939
      %941 = vmatmul.f32.gmra.mxu0 %v830
      %v942 = vpop.f32.mrf.mxu0
      %v943 = vadd.f32 0.0, %v942
      %944 = vmatmul.f32.gmra.mxu0 %v833
      %v945 = vpop.f32.mrf.mxu0
      %v946 = vadd.f32 0.0, %v945
      %947 = vmatmul.f32.gmra.mxu0 %v836
      %v948 = vpop.f32.mrf.mxu0
      %v949 = vadd.f32 0.0, %v948
      %950 = vmatmul.f32.gmra.mxu0 %v839
      %v951 = vpop.f32.mrf.mxu0
      %v952 = vadd.f32 0.0, %v951
      %953 = vmatmul.f32.gmra.mxu0 %v842
      %v954 = vpop.f32.mrf.mxu0
      %v955 = vadd.f32 0.0, %v954
      %956 = vmatmul.f32.gmra.mxu0 %v845
      %v957 = vpop.f32.mrf.mxu0
      %v958 = vadd.f32 0.0, %v957
      %959 = vmatmul.f32.gmra.mxu0 %v848
      %v960 = vpop.f32.mrf.mxu0
      %v961 = vadd.f32 0.0, %v960
      %962 = vmatmul.f32.gmra.mxu0 %v851
      %v963 = vpop.f32.mrf.mxu0
      %v964 = vadd.f32 0.0, %v963
      %965 = vmatmul.f32.gmra.mxu0 %v854
      %v966 = vpop.f32.mrf.mxu0
      %v967 = vadd.f32 0.0, %v966
      %968 = vmatmul.f32.gmra.mxu0 %v857
      %v969 = vpop.f32.mrf.mxu0
      %v970 = vadd.f32 0.0, %v969
      %971 = vmatmul.f32.gmra.mxu0 %v860
      %v972 = vpop.f32.mrf.mxu0
      %v973 = vadd.f32 0.0, %v972
      %974 = vmatmul.f32.gmra.mxu0 %v863
      %v975 = vpop.f32.mrf.mxu0
      %v976 = vadd.f32 0.0, %v975
      %977 = vmatmul.f32.gmra.mxu0 %v866
      %v978 = vpop.f32.mrf.mxu0
      %v979 = vadd.f32 0.0, %v978
      %980 = vmatmul.f32.gmra.mxu0 %v869
      %v981 = vpop.f32.mrf.mxu0
      %v982 = vadd.f32 0.0, %v981
      %983 = vmatmul.f32.gmra.mxu0 %v872
      %v984 = vpop.f32.mrf.mxu0
      %v985 = vadd.f32 0.0, %v984
      %986 = vmatmul.f32.gmra.mxu0 %v875
      %v987 = vpop.f32.mrf.mxu0
      %v988 = vadd.f32 0.0, %v987
      %989 = vmatmul.f32.gmra.mxu0 %v878
      %v990 = vpop.f32.mrf.mxu0
      %v991 = vadd.f32 0.0, %v990
      %992 = vmatmul.f32.gmra.mxu0 %v881
      %v993 = vpop.f32.mrf.mxu0
      %v994 = vadd.f32 0.0, %v993
      %995 = vmatmul.f32.gmra.mxu0 %v884
      %v996 = vpop.f32.mrf.mxu0
      %v997 = vadd.f32 0.0, %v996
      %998 = vdwg.mxu0
      %v999 = vadd.f32 %v661, %v904
      %v1000 = vadd.f32 %v664, %v907
      %v1001 = vadd.f32 %v667, %v910
      %v1002 = vadd.f32 %v670, %v913
      %v1003 = vadd.f32 %v673, %v916
      %v1004 = vadd.f32 %v676, %v919
      %v1005 = vadd.f32 %v679, %v922
      %v1006 = vadd.f32 %v682, %v925
      %v1007 = vadd.f32 %v685, %v928
      %v1008 = vadd.f32 %v688, %v931
      %v1009 = vadd.f32 %v691, %v934
      %v1010 = vadd.f32 %v694, %v937
      %v1011 = vadd.f32 %v697, %v940
      %v1012 = vadd.f32 %v700, %v943
      %v1013 = vadd.f32 %v703, %v946
      %v1014 = vadd.f32 %v706, %v949
      %v1015 = vadd.f32 %v709, %v952
      %v1016 = vadd.f32 %v712, %v955
      %v1017 = vadd.f32 %v715, %v958
      %v1018 = vadd.f32 %v718, %v961
      %v1019 = vadd.f32 %v721, %v964
      %v1020 = vadd.f32 %v724, %v967
      %v1021 = vadd.f32 %v727, %v970
      %v1022 = vadd.f32 %v730, %v973
      %v1023 = vadd.f32 %v733, %v976
      %v1024 = vadd.f32 %v736, %v979
      %v1025 = vadd.f32 %v739, %v982
      %v1026 = vadd.f32 %v742, %v985
      %v1027 = vadd.f32 %v745, %v988
      %v1028 = vadd.f32 %v748, %v991
      %v1029 = vadd.f32 %v751, %v994
      %v1030 = vadd.f32 %v754, %v997
      %s1031 = scalar_lea.vmem %s246, 48
      %v1032 = vld [vmem:[%s1031] sm:$0xff]
      %v1033 = vld [vmem:[%s1031 + $0x8] sm:$0xff]
      %v1034 = vld [vmem:[%s1031 + $0x18] sm:$0xff]
      %v1035 = vld [vmem:[%s1031 + $0x20] sm:$0xff]
      %v1036 = vld [vmem:[%s1031 + $0x30] sm:$0xff]
      %v1037 = vld [vmem:[%s1031 + $0x38] sm:$0xff]
      %v1038 = vld [vmem:[%s1031 + $0x48] sm:$0xff]
      %v1039 = vld [vmem:[%s1031 + $0x50] sm:$0xff]
      %v1040 = vld [vmem:[%s1031 + $0x60] sm:$0xff]
      %v1041 = vld [vmem:[%s1031 + $0x68] sm:$0xff]
      %v1042 = vld [vmem:[%s1031 + $0x78] sm:$0xff]
      %v1043 = vld [vmem:[%s1031 + $0x80] sm:$0xff]
      %v1044 = vld [vmem:[%s1031 + $0x90] sm:$0xff]
      %v1045 = vld [vmem:[%s1031 + $0x98] sm:$0xff]
      %v1046 = vld [vmem:[%s1031 + $0xa8] sm:$0xff]
      %v1047 = vld [vmem:[%s1031 + $0xb0] sm:$0xff]
      %v1048 = vld [vmem:[%s1031 + $0xc0] sm:$0xff]
      %v1049 = vld [vmem:[%s1031 + $0xc8] sm:$0xff]
      %v1050 = vld [vmem:[%s1031 + $0xd8] sm:$0xff]
      %v1051 = vld [vmem:[%s1031 + $0xe0] sm:$0xff]
      %v1052 = vld [vmem:[%s1031 + $0xf0] sm:$0xff]
      %v1053 = vld [vmem:[%s1031 + $0xf8] sm:$0xff]
      %v1054 = vld [vmem:[%s1031 + $0x108] sm:$0xff]
      %v1055 = vld [vmem:[%s1031 + $0x110] sm:$0xff]
      %v1056 = vld [vmem:[%s1031 + $0x120] sm:$0xff]
      %v1057 = vld [vmem:[%s1031 + $0x128] sm:$0xff]
      %v1058 = vld [vmem:[%s1031 + $0x138] sm:$0xff]
      %v1059 = vld [vmem:[%s1031 + $0x140] sm:$0xff]
      %v1060 = vld [vmem:[%s1031 + $0x150] sm:$0xff]
      %v1061 = vld [vmem:[%s1031 + $0x158] sm:$0xff]
      %v1062 = vld [vmem:[%s1031 + $0x168] sm:$0xff]
      %v1063 = vld [vmem:[%s1031 + $0x170] sm:$0xff]
      %s1064 = scalar_lea.vmem %s1, 24
      %v1065 = vld [vmem:[%s1064] sm:$0xff]
      %v1067 = vsel %vm337, %v1032, 0
      %v1070 = vsel %vm337, %v1033, 0
      %v1073 = vsel %vm337, %v1034, 0
      %v1076 = vsel %vm337, %v1035, 0
      %v1079 = vsel %vm337, %v1036, 0
      %v1082 = vsel %vm337, %v1037, 0
      %v1085 = vsel %vm337, %v1038, 0
      %v1088 = vsel %vm337, %v1039, 0
      %v1091 = vsel %vm337, %v1040, 0
      %v1094 = vsel %vm337, %v1041, 0
      %v1097 = vsel %vm337, %v1042, 0
      %v1100 = vsel %vm337, %v1043, 0
      %v1103 = vsel %vm337, %v1044, 0
      %v1106 = vsel %vm337, %v1045, 0
      %v1109 = vsel %vm337, %v1046, 0
      %v1112 = vsel %vm337, %v1047, 0
      %v1115 = vsel %vm337, %v1048, 0
      %v1118 = vsel %vm337, %v1049, 0
      %v1121 = vsel %vm337, %v1050, 0
      %v1124 = vsel %vm337, %v1051, 0
      %v1127 = vsel %vm337, %v1052, 0
      %v1130 = vsel %vm337, %v1053, 0
      %v1133 = vsel %vm337, %v1054, 0
      %v1136 = vsel %vm337, %v1055, 0
      %v1139 = vsel %vm337, %v1056, 0
      %v1142 = vsel %vm337, %v1057, 0
      %v1145 = vsel %vm337, %v1058, 0
      %v1148 = vsel %vm337, %v1059, 0
      %v1151 = vsel %vm337, %v1060, 0
      %v1154 = vsel %vm337, %v1061, 0
      %v1157 = vsel %vm337, %v1062, 0
      %v1160 = vsel %vm337, %v1063, 0
      %1162 = vmatpush.msra.mxu0 0.0
      %1163 = vmatpush.msra.mxu0 0.0
      %1164 = vmatpush.msra.mxu0 0.0
      %1165 = vmatpush.msra.mxu0 0.0
      %1166 = vmatpush.msra.mxu0 0.0
      %1167 = vmatpush.msra.mxu0 0.0
      %1168 = vmatpush.msra.mxu0 0.0
      %1169 = vmatpush.msra.mxu0 0.0
      %1170 = vmatpush.msra.mxu0 0.0
      %1171 = vmatpush.msra.mxu0 0.0
      %1172 = vmatpush.msra.mxu0 0.0
      %1173 = vmatpush.msra.mxu0 0.0
      %1174 = vmatpush.msra.mxu0 0.0
      %1175 = vmatpush.msra.mxu0 0.0
      %1176 = vmatpush.msra.mxu0 0.0
      %1177 = vmatpush.msra.mxu0 %v1065
      %1178 = vmatmul.f32.gmra.mxu0 %v1067
      %v1179 = vpop.f32.mrf.mxu0
      %v1180 = vadd.f32 0.0, %v1179
      %1181 = vmatmul.f32.gmra.mxu0 %v1070
      %v1182 = vpop.f32.mrf.mxu0
      %v1183 = vadd.f32 0.0, %v1182
      %1184 = vmatmul.f32.gmra.mxu0 %v1073
      %v1185 = vpop.f32.mrf.mxu0
      %v1186 = vadd.f32 0.0, %v1185
      %1187 = vmatmul.f32.gmra.mxu0 %v1076
      %v1188 = vpop.f32.mrf.mxu0
      %v1189 = vadd.f32 0.0, %v1188
      %1190 = vmatmul.f32.gmra.mxu0 %v1079
      %v1191 = vpop.f32.mrf.mxu0
      %v1192 = vadd.f32 0.0, %v1191
      %1193 = vmatmul.f32.gmra.mxu0 %v1082
      %v1194 = vpop.f32.mrf.mxu0
      %v1195 = vadd.f32 0.0, %v1194
      %1196 = vmatmul.f32.gmra.mxu0 %v1085
      %v1197 = vpop.f32.mrf.mxu0
      %v1198 = vadd.f32 0.0, %v1197
      %1199 = vmatmul.f32.gmra.mxu0 %v1088
      %v1200 = vpop.f32.mrf.mxu0
      %v1201 = vadd.f32 0.0, %v1200
      %1202 = vmatmul.f32.gmra.mxu0 %v1091
      %v1203 = vpop.f32.mrf.mxu0
      %v1204 = vadd.f32 0.0, %v1203
      %1205 = vmatmul.f32.gmra.mxu0 %v1094
      %v1206 = vpop.f32.mrf.mxu0
      %v1207 = vadd.f32 0.0, %v1206
      %1208 = vmatmul.f32.gmra.mxu0 %v1097
      %v1209 = vpop.f32.mrf.mxu0
      %v1210 = vadd.f32 0.0, %v1209
      %1211 = vmatmul.f32.gmra.mxu0 %v1100
      %v1212 = vpop.f32.mrf.mxu0
      %v1213 = vadd.f32 0.0, %v1212
      %1214 = vmatmul.f32.gmra.mxu0 %v1103
      %v1215 = vpop.f32.mrf.mxu0
      %v1216 = vadd.f32 0.0, %v1215
      %1217 = vmatmul.f32.gmra.mxu0 %v1106
      %v1218 = vpop.f32.mrf.mxu0
      %v1219 = vadd.f32 0.0, %v1218
      %1220 = vmatmul.f32.gmra.mxu0 %v1109
      %v1221 = vpop.f32.mrf.mxu0
      %v1222 = vadd.f32 0.0, %v1221
      %1223 = vmatmul.f32.gmra.mxu0 %v1112
      %v1224 = vpop.f32.mrf.mxu0
      %v1225 = vadd.f32 0.0, %v1224
      %1226 = vmatmul.f32.gmra.mxu0 %v1115
      %v1227 = vpop.f32.mrf.mxu0
      %v1228 = vadd.f32 0.0, %v1227
      %1229 = vmatmul.f32.gmra.mxu0 %v1118
      %v1230 = vpop.f32.mrf.mxu0
      %v1231 = vadd.f32 0.0, %v1230
      %1232 = vmatmul.f32.gmra.mxu0 %v1121
      %v1233 = vpop.f32.mrf.mxu0
      %v1234 = vadd.f32 0.0, %v1233
      %1235 = vmatmul.f32.gmra.mxu0 %v1124
      %v1236 = vpop.f32.mrf.mxu0
      %v1237 = vadd.f32 0.0, %v1236
      %1238 = vmatmul.f32.gmra.mxu0 %v1127
      %v1239 = vpop.f32.mrf.mxu0
      %v1240 = vadd.f32 0.0, %v1239
      %1241 = vmatmul.f32.gmra.mxu0 %v1130
      %v1242 = vpop.f32.mrf.mxu0
      %v1243 = vadd.f32 0.0, %v1242
      %1244 = vmatmul.f32.gmra.mxu0 %v1133
      %v1245 = vpop.f32.mrf.mxu0
      %v1246 = vadd.f32 0.0, %v1245
      %1247 = vmatmul.f32.gmra.mxu0 %v1136
      %v1248 = vpop.f32.mrf.mxu0
      %v1249 = vadd.f32 0.0, %v1248
      %1250 = vmatmul.f32.gmra.mxu0 %v1139
      %v1251 = vpop.f32.mrf.mxu0
      %v1252 = vadd.f32 0.0, %v1251
      %1253 = vmatmul.f32.gmra.mxu0 %v1142
      %v1254 = vpop.f32.mrf.mxu0
      %v1255 = vadd.f32 0.0, %v1254
      %1256 = vmatmul.f32.gmra.mxu0 %v1145
      %v1257 = vpop.f32.mrf.mxu0
      %v1258 = vadd.f32 0.0, %v1257
      %1259 = vmatmul.f32.gmra.mxu0 %v1148
      %v1260 = vpop.f32.mrf.mxu0
      %v1261 = vadd.f32 0.0, %v1260
      %1262 = vmatmul.f32.gmra.mxu0 %v1151
      %v1263 = vpop.f32.mrf.mxu0
      %v1264 = vadd.f32 0.0, %v1263
      %1265 = vmatmul.f32.gmra.mxu0 %v1154
      %v1266 = vpop.f32.mrf.mxu0
      %v1267 = vadd.f32 0.0, %v1266
      %1268 = vmatmul.f32.gmra.mxu0 %v1157
      %v1269 = vpop.f32.mrf.mxu0
      %v1270 = vadd.f32 0.0, %v1269
      %1271 = vmatmul.f32.gmra.mxu0 %v1160
      %v1272 = vpop.f32.mrf.mxu0
      %v1273 = vadd.f32 0.0, %v1272
      %1274 = vdwg.mxu0
      %v1275 = vadd.f32 %v999, %v1180
      %v1276 = vadd.f32 %v1000, %v1183
      %v1277 = vadd.f32 %v1001, %v1186
      %v1278 = vadd.f32 %v1002, %v1189
      %v1279 = vadd.f32 %v1003, %v1192
      %v1280 = vadd.f32 %v1004, %v1195
      %v1281 = vadd.f32 %v1005, %v1198
      %v1282 = vadd.f32 %v1006, %v1201
      %v1283 = vadd.f32 %v1007, %v1204
      %v1284 = vadd.f32 %v1008, %v1207
      %v1285 = vadd.f32 %v1009, %v1210
      %v1286 = vadd.f32 %v1010, %v1213
      %v1287 = vadd.f32 %v1011, %v1216
      %v1288 = vadd.f32 %v1012, %v1219
      %v1289 = vadd.f32 %v1013, %v1222
      %v1290 = vadd.f32 %v1014, %v1225
      %v1291 = vadd.f32 %v1015, %v1228
      %v1292 = vadd.f32 %v1016, %v1231
      %v1293 = vadd.f32 %v1017, %v1234
      %v1294 = vadd.f32 %v1018, %v1237
      %v1295 = vadd.f32 %v1019, %v1240
      %v1296 = vadd.f32 %v1020, %v1243
      %v1297 = vadd.f32 %v1021, %v1246
      %v1298 = vadd.f32 %v1022, %v1249
      %v1299 = vadd.f32 %v1023, %v1252
      %v1300 = vadd.f32 %v1024, %v1255
      %v1301 = vadd.f32 %v1025, %v1258
      %v1302 = vadd.f32 %v1026, %v1261
      %v1303 = vadd.f32 %v1027, %v1264
      %v1304 = vadd.f32 %v1028, %v1267
      %v1305 = vadd.f32 %v1029, %v1270
      %v1306 = vadd.f32 %v1030, %v1273
      %v1307 = vld [vmem:[%s1031 + $0x2] sm:$0xff]
      %v1308 = vld [vmem:[%s1031 + $0xa] sm:$0xff]
      %v1309 = vld [vmem:[%s1031 + $0x1a] sm:$0xff]
      %v1310 = vld [vmem:[%s1031 + $0x22] sm:$0xff]
      %v1311 = vld [vmem:[%s1031 + $0x32] sm:$0xff]
      %v1312 = vld [vmem:[%s1031 + $0x3a] sm:$0xff]
      %v1313 = vld [vmem:[%s1031 + $0x4a] sm:$0xff]
      %v1314 = vld [vmem:[%s1031 + $0x52] sm:$0xff]
      %v1315 = vld [vmem:[%s1031 + $0x62] sm:$0xff]
      %v1316 = vld [vmem:[%s1031 + $0x6a] sm:$0xff]
      %v1317 = vld [vmem:[%s1031 + $0x7a] sm:$0xff]
      %v1318 = vld [vmem:[%s1031 + $0x82] sm:$0xff]
      %v1319 = vld [vmem:[%s1031 + $0x92] sm:$0xff]
      %v1320 = vld [vmem:[%s1031 + $0x9a] sm:$0xff]
      %v1321 = vld [vmem:[%s1031 + $0xaa] sm:$0xff]
      %v1322 = vld [vmem:[%s1031 + $0xb2] sm:$0xff]
      %v1323 = vld [vmem:[%s1031 + $0xc2] sm:$0xff]
      %v1324 = vld [vmem:[%s1031 + $0xca] sm:$0xff]
      %v1325 = vld [vmem:[%s1031 + $0xda] sm:$0xff]
      %v1326 = vld [vmem:[%s1031 + $0xe2] sm:$0xff]
      %v1327 = vld [vmem:[%s1031 + $0xf2] sm:$0xff]
      %v1328 = vld [vmem:[%s1031 + $0xfa] sm:$0xff]
      %v1329 = vld [vmem:[%s1031 + $0x10a] sm:$0xff]
      %v1330 = vld [vmem:[%s1031 + $0x112] sm:$0xff]
      %v1331 = vld [vmem:[%s1031 + $0x122] sm:$0xff]
      %v1332 = vld [vmem:[%s1031 + $0x12a] sm:$0xff]
      %v1333 = vld [vmem:[%s1031 + $0x13a] sm:$0xff]
      %v1334 = vld [vmem:[%s1031 + $0x142] sm:$0xff]
      %v1335 = vld [vmem:[%s1031 + $0x152] sm:$0xff]
      %v1336 = vld [vmem:[%s1031 + $0x15a] sm:$0xff]
      %v1337 = vld [vmem:[%s1031 + $0x16a] sm:$0xff]
      %v1338 = vld [vmem:[%s1031 + $0x172] sm:$0xff]
      %s1339 = scalar_lea.vmem %s1, 32
      %v1340 = vld [vmem:[%s1339] sm:$0xff]
      %v1342 = vsel %vm337, %v1307, 0
      %v1345 = vsel %vm337, %v1308, 0
      %v1348 = vsel %vm337, %v1309, 0
      %v1351 = vsel %vm337, %v1310, 0
      %v1354 = vsel %vm337, %v1311, 0
      %v1357 = vsel %vm337, %v1312, 0
      %v1360 = vsel %vm337, %v1313, 0
      %v1363 = vsel %vm337, %v1314, 0
      %v1366 = vsel %vm337, %v1315, 0
      %v1369 = vsel %vm337, %v1316, 0
      %v1372 = vsel %vm337, %v1317, 0
      %v1375 = vsel %vm337, %v1318, 0
      %v1378 = vsel %vm337, %v1319, 0
      %v1381 = vsel %vm337, %v1320, 0
      %v1384 = vsel %vm337, %v1321, 0
      %v1387 = vsel %vm337, %v1322, 0
      %v1390 = vsel %vm337, %v1323, 0
      %v1393 = vsel %vm337, %v1324, 0
      %v1396 = vsel %vm337, %v1325, 0
      %v1399 = vsel %vm337, %v1326, 0
      %v1402 = vsel %vm337, %v1327, 0
      %v1405 = vsel %vm337, %v1328, 0
      %v1408 = vsel %vm337, %v1329, 0
      %v1411 = vsel %vm337, %v1330, 0
      %v1414 = vsel %vm337, %v1331, 0
      %v1417 = vsel %vm337, %v1332, 0
      %v1420 = vsel %vm337, %v1333, 0
      %v1423 = vsel %vm337, %v1334, 0
      %v1426 = vsel %vm337, %v1335, 0
      %v1429 = vsel %vm337, %v1336, 0
      %v1432 = vsel %vm337, %v1337, 0
      %v1435 = vsel %vm337, %v1338, 0
      %1437 = vmatpush.msra.mxu0 0.0
      %1438 = vmatpush.msra.mxu0 0.0
      %1439 = vmatpush.msra.mxu0 0.0
      %1440 = vmatpush.msra.mxu0 0.0
      %1441 = vmatpush.msra.mxu0 0.0
      %1442 = vmatpush.msra.mxu0 0.0
      %1443 = vmatpush.msra.mxu0 0.0
      %1444 = vmatpush.msra.mxu0 0.0
      %1445 = vmatpush.msra.mxu0 0.0
      %1446 = vmatpush.msra.mxu0 0.0
      %1447 = vmatpush.msra.mxu0 0.0
      %1448 = vmatpush.msra.mxu0 0.0
      %1449 = vmatpush.msra.mxu0 0.0
      %1450 = vmatpush.msra.mxu0 0.0
      %1451 = vmatpush.msra.mxu0 0.0
      %1452 = vmatpush.msra.mxu0 %v1340
      %1453 = vmatmul.f32.gmra.mxu0 %v1342
      %v1454 = vpop.f32.mrf.mxu0
      %v1455 = vadd.f32 0.0, %v1454
      %1456 = vmatmul.f32.gmra.mxu0 %v1345
      %v1457 = vpop.f32.mrf.mxu0
      %v1458 = vadd.f32 0.0, %v1457
      %1459 = vmatmul.f32.gmra.mxu0 %v1348
      %v1460 = vpop.f32.mrf.mxu0
      %v1461 = vadd.f32 0.0, %v1460
      %1462 = vmatmul.f32.gmra.mxu0 %v1351
      %v1463 = vpop.f32.mrf.mxu0
      %v1464 = vadd.f32 0.0, %v1463
      %1465 = vmatmul.f32.gmra.mxu0 %v1354
      %v1466 = vpop.f32.mrf.mxu0
      %v1467 = vadd.f32 0.0, %v1466
      %1468 = vmatmul.f32.gmra.mxu0 %v1357
      %v1469 = vpop.f32.mrf.mxu0
      %v1470 = vadd.f32 0.0, %v1469
      %1471 = vmatmul.f32.gmra.mxu0 %v1360
      %v1472 = vpop.f32.mrf.mxu0
      %v1473 = vadd.f32 0.0, %v1472
      %1474 = vmatmul.f32.gmra.mxu0 %v1363
      %v1475 = vpop.f32.mrf.mxu0
      %v1476 = vadd.f32 0.0, %v1475
      %1477 = vmatmul.f32.gmra.mxu0 %v1366
      %v1478 = vpop.f32.mrf.mxu0
      %v1479 = vadd.f32 0.0, %v1478
      %1480 = vmatmul.f32.gmra.mxu0 %v1369
      %v1481 = vpop.f32.mrf.mxu0
      %v1482 = vadd.f32 0.0, %v1481
      %1483 = vmatmul.f32.gmra.mxu0 %v1372
      %v1484 = vpop.f32.mrf.mxu0
      %v1485 = vadd.f32 0.0, %v1484
      %1486 = vmatmul.f32.gmra.mxu0 %v1375
      %v1487 = vpop.f32.mrf.mxu0
      %v1488 = vadd.f32 0.0, %v1487
      %1489 = vmatmul.f32.gmra.mxu0 %v1378
      %v1490 = vpop.f32.mrf.mxu0
      %v1491 = vadd.f32 0.0, %v1490
      %1492 = vmatmul.f32.gmra.mxu0 %v1381
      %v1493 = vpop.f32.mrf.mxu0
      %v1494 = vadd.f32 0.0, %v1493
      %1495 = vmatmul.f32.gmra.mxu0 %v1384
      %v1496 = vpop.f32.mrf.mxu0
      %v1497 = vadd.f32 0.0, %v1496
      %1498 = vmatmul.f32.gmra.mxu0 %v1387
      %v1499 = vpop.f32.mrf.mxu0
      %v1500 = vadd.f32 0.0, %v1499
      %1501 = vmatmul.f32.gmra.mxu0 %v1390
      %v1502 = vpop.f32.mrf.mxu0
      %v1503 = vadd.f32 0.0, %v1502
      %1504 = vmatmul.f32.gmra.mxu0 %v1393
      %v1505 = vpop.f32.mrf.mxu0
      %v1506 = vadd.f32 0.0, %v1505
      %1507 = vmatmul.f32.gmra.mxu0 %v1396
      %v1508 = vpop.f32.mrf.mxu0
      %v1509 = vadd.f32 0.0, %v1508
      %1510 = vmatmul.f32.gmra.mxu0 %v1399
      %v1511 = vpop.f32.mrf.mxu0
      %v1512 = vadd.f32 0.0, %v1511
      %1513 = vmatmul.f32.gmra.mxu0 %v1402
      %v1514 = vpop.f32.mrf.mxu0
      %v1515 = vadd.f32 0.0, %v1514
      %1516 = vmatmul.f32.gmra.mxu0 %v1405
      %v1517 = vpop.f32.mrf.mxu0
      %v1518 = vadd.f32 0.0, %v1517
      %1519 = vmatmul.f32.gmra.mxu0 %v1408
      %v1520 = vpop.f32.mrf.mxu0
      %v1521 = vadd.f32 0.0, %v1520
      %1522 = vmatmul.f32.gmra.mxu0 %v1411
      %v1523 = vpop.f32.mrf.mxu0
      %v1524 = vadd.f32 0.0, %v1523
      %1525 = vmatmul.f32.gmra.mxu0 %v1414
      %v1526 = vpop.f32.mrf.mxu0
      %v1527 = vadd.f32 0.0, %v1526
      %1528 = vmatmul.f32.gmra.mxu0 %v1417
      %v1529 = vpop.f32.mrf.mxu0
      %v1530 = vadd.f32 0.0, %v1529
      %1531 = vmatmul.f32.gmra.mxu0 %v1420
      %v1532 = vpop.f32.mrf.mxu0
      %v1533 = vadd.f32 0.0, %v1532
      %1534 = vmatmul.f32.gmra.mxu0 %v1423
      %v1535 = vpop.f32.mrf.mxu0
      %v1536 = vadd.f32 0.0, %v1535
      %1537 = vmatmul.f32.gmra.mxu0 %v1426
      %v1538 = vpop.f32.mrf.mxu0
      %v1539 = vadd.f32 0.0, %v1538
      %1540 = vmatmul.f32.gmra.mxu0 %v1429
      %v1541 = vpop.f32.mrf.mxu0
      %v1542 = vadd.f32 0.0, %v1541
      %1543 = vmatmul.f32.gmra.mxu0 %v1432
      %v1544 = vpop.f32.mrf.mxu0
      %v1545 = vadd.f32 0.0, %v1544
      %1546 = vmatmul.f32.gmra.mxu0 %v1435
      %v1547 = vpop.f32.mrf.mxu0
      %v1548 = vadd.f32 0.0, %v1547
      %1549 = vdwg.mxu0
      %v1550 = vadd.f32 %v1275, %v1455
      %v1551 = vadd.f32 %v1276, %v1458
      %v1552 = vadd.f32 %v1277, %v1461
      %v1553 = vadd.f32 %v1278, %v1464
      %v1554 = vadd.f32 %v1279, %v1467
      %v1555 = vadd.f32 %v1280, %v1470
      %v1556 = vadd.f32 %v1281, %v1473
      %v1557 = vadd.f32 %v1282, %v1476
      %v1558 = vadd.f32 %v1283, %v1479
      %v1559 = vadd.f32 %v1284, %v1482
      %v1560 = vadd.f32 %v1285, %v1485
      %v1561 = vadd.f32 %v1286, %v1488
      %v1562 = vadd.f32 %v1287, %v1491
      %v1563 = vadd.f32 %v1288, %v1494
      %v1564 = vadd.f32 %v1289, %v1497
      %v1565 = vadd.f32 %v1290, %v1500
      %v1566 = vadd.f32 %v1291, %v1503
      %v1567 = vadd.f32 %v1292, %v1506
      %v1568 = vadd.f32 %v1293, %v1509
      %v1569 = vadd.f32 %v1294, %v1512
      %v1570 = vadd.f32 %v1295, %v1515
      %v1571 = vadd.f32 %v1296, %v1518
      %v1572 = vadd.f32 %v1297, %v1521
      %v1573 = vadd.f32 %v1298, %v1524
      %v1574 = vadd.f32 %v1299, %v1527
      %v1575 = vadd.f32 %v1300, %v1530
      %v1576 = vadd.f32 %v1301, %v1533
      %v1577 = vadd.f32 %v1302, %v1536
      %v1578 = vadd.f32 %v1303, %v1539
      %v1579 = vadd.f32 %v1304, %v1542
      %v1580 = vadd.f32 %v1305, %v1545
      %v1581 = vadd.f32 %v1306, %v1548
      %v1582 = vld [vmem:[%s1031 + $0x4] sm:$0xff]
      %v1583 = vld [vmem:[%s1031 + $0xc] sm:$0xff]
      %v1584 = vld [vmem:[%s1031 + $0x1c] sm:$0xff]
      %v1585 = vld [vmem:[%s1031 + $0x24] sm:$0xff]
      %v1586 = vld [vmem:[%s1031 + $0x34] sm:$0xff]
      %v1587 = vld [vmem:[%s1031 + $0x3c] sm:$0xff]
      %v1588 = vld [vmem:[%s1031 + $0x4c] sm:$0xff]
      %v1589 = vld [vmem:[%s1031 + $0x54] sm:$0xff]
      %v1590 = vld [vmem:[%s1031 + $0x64] sm:$0xff]
      %v1591 = vld [vmem:[%s1031 + $0x6c] sm:$0xff]
      %v1592 = vld [vmem:[%s1031 + $0x7c] sm:$0xff]
      %v1593 = vld [vmem:[%s1031 + $0x84] sm:$0xff]
      %v1594 = vld [vmem:[%s1031 + $0x94] sm:$0xff]
      %v1595 = vld [vmem:[%s1031 + $0x9c] sm:$0xff]
      %v1596 = vld [vmem:[%s1031 + $0xac] sm:$0xff]
      %v1597 = vld [vmem:[%s1031 + $0xb4] sm:$0xff]
      %v1598 = vld [vmem:[%s1031 + $0xc4] sm:$0xff]
      %v1599 = vld [vmem:[%s1031 + $0xcc] sm:$0xff]
      %v1600 = vld [vmem:[%s1031 + $0xdc] sm:$0xff]
      %v1601 = vld [vmem:[%s1031 + $0xe4] sm:$0xff]
      %v1602 = vld [vmem:[%s1031 + $0xf4] sm:$0xff]
      %v1603 = vld [vmem:[%s1031 + $0xfc] sm:$0xff]
      %v1604 = vld [vmem:[%s1031 + $0x10c] sm:$0xff]
      %v1605 = vld [vmem:[%s1031 + $0x114] sm:$0xff]
      %v1606 = vld [vmem:[%s1031 + $0x124] sm:$0xff]
      %v1607 = vld [vmem:[%s1031 + $0x12c] sm:$0xff]
      %v1608 = vld [vmem:[%s1031 + $0x13c] sm:$0xff]
      %v1609 = vld [vmem:[%s1031 + $0x144] sm:$0xff]
      %v1610 = vld [vmem:[%s1031 + $0x154] sm:$0xff]
      %v1611 = vld [vmem:[%s1031 + $0x15c] sm:$0xff]
      %v1612 = vld [vmem:[%s1031 + $0x16c] sm:$0xff]
      %v1613 = vld [vmem:[%s1031 + $0x174] sm:$0xff]
      %s1614 = scalar_lea.vmem %s1, 40
      %v1615 = vld [vmem:[%s1614] sm:$0xff]
      %v1617 = vsel %vm337, %v1582, 0
      %v1620 = vsel %vm337, %v1583, 0
      %v1623 = vsel %vm337, %v1584, 0
      %v1626 = vsel %vm337, %v1585, 0
      %v1629 = vsel %vm337, %v1586, 0
      %v1632 = vsel %vm337, %v1587, 0
      %v1635 = vsel %vm337, %v1588, 0
      %v1638 = vsel %vm337, %v1589, 0
      %v1641 = vsel %vm337, %v1590, 0
      %v1644 = vsel %vm337, %v1591, 0
      %v1647 = vsel %vm337, %v1592, 0
      %v1650 = vsel %vm337, %v1593, 0
      %v1653 = vsel %vm337, %v1594, 0
      %v1656 = vsel %vm337, %v1595, 0
      %v1659 = vsel %vm337, %v1596, 0
      %v1662 = vsel %vm337, %v1597, 0
      %v1665 = vsel %vm337, %v1598, 0
      %v1668 = vsel %vm337, %v1599, 0
      %v1671 = vsel %vm337, %v1600, 0
      %v1674 = vsel %vm337, %v1601, 0
      %v1677 = vsel %vm337, %v1602, 0
      %v1680 = vsel %vm337, %v1603, 0
      %v1683 = vsel %vm337, %v1604, 0
      %v1686 = vsel %vm337, %v1605, 0
      %v1689 = vsel %vm337, %v1606, 0
      %v1692 = vsel %vm337, %v1607, 0
      %v1695 = vsel %vm337, %v1608, 0
      %v1698 = vsel %vm337, %v1609, 0
      %v1701 = vsel %vm337, %v1610, 0
      %v1704 = vsel %vm337, %v1611, 0
      %v1707 = vsel %vm337, %v1612, 0
      %v1710 = vsel %vm337, %v1613, 0
      %1712 = vmatpush.msra.mxu0 0.0
      %1713 = vmatpush.msra.mxu0 0.0
      %1714 = vmatpush.msra.mxu0 0.0
      %1715 = vmatpush.msra.mxu0 0.0
      %1716 = vmatpush.msra.mxu0 0.0
      %1717 = vmatpush.msra.mxu0 0.0
      %1718 = vmatpush.msra.mxu0 0.0
      %1719 = vmatpush.msra.mxu0 0.0
      %1720 = vmatpush.msra.mxu0 0.0
      %1721 = vmatpush.msra.mxu0 0.0
      %1722 = vmatpush.msra.mxu0 0.0
      %1723 = vmatpush.msra.mxu0 0.0
      %1724 = vmatpush.msra.mxu0 0.0
      %1725 = vmatpush.msra.mxu0 0.0
      %1726 = vmatpush.msra.mxu0 0.0
      %1727 = vmatpush.msra.mxu0 %v1615
      %1728 = vmatmul.f32.gmra.mxu0 %v1617
      %v1729 = vpop.f32.mrf.mxu0
      %v1730 = vadd.f32 0.0, %v1729
      %1731 = vmatmul.f32.gmra.mxu0 %v1620
      %v1732 = vpop.f32.mrf.mxu0
      %v1733 = vadd.f32 0.0, %v1732
      %1734 = vmatmul.f32.gmra.mxu0 %v1623
      %v1735 = vpop.f32.mrf.mxu0
      %v1736 = vadd.f32 0.0, %v1735
      %1737 = vmatmul.f32.gmra.mxu0 %v1626
      %v1738 = vpop.f32.mrf.mxu0
      %v1739 = vadd.f32 0.0, %v1738
      %1740 = vmatmul.f32.gmra.mxu0 %v1629
      %v1741 = vpop.f32.mrf.mxu0
      %v1742 = vadd.f32 0.0, %v1741
      %1743 = vmatmul.f32.gmra.mxu0 %v1632
      %v1744 = vpop.f32.mrf.mxu0
      %v1745 = vadd.f32 0.0, %v1744
      %1746 = vmatmul.f32.gmra.mxu0 %v1635
      %v1747 = vpop.f32.mrf.mxu0
      %v1748 = vadd.f32 0.0, %v1747
      %1749 = vmatmul.f32.gmra.mxu0 %v1638
      %v1750 = vpop.f32.mrf.mxu0
      %v1751 = vadd.f32 0.0, %v1750
      %1752 = vmatmul.f32.gmra.mxu0 %v1641
      %v1753 = vpop.f32.mrf.mxu0
      %v1754 = vadd.f32 0.0, %v1753
      %1755 = vmatmul.f32.gmra.mxu0 %v1644
      %v1756 = vpop.f32.mrf.mxu0
      %v1757 = vadd.f32 0.0, %v1756
      %1758 = vmatmul.f32.gmra.mxu0 %v1647
      %v1759 = vpop.f32.mrf.mxu0
      %v1760 = vadd.f32 0.0, %v1759
      %1761 = vmatmul.f32.gmra.mxu0 %v1650
      %v1762 = vpop.f32.mrf.mxu0
      %v1763 = vadd.f32 0.0, %v1762
      %1764 = vmatmul.f32.gmra.mxu0 %v1653
      %v1765 = vpop.f32.mrf.mxu0
      %v1766 = vadd.f32 0.0, %v1765
      %1767 = vmatmul.f32.gmra.mxu0 %v1656
      %v1768 = vpop.f32.mrf.mxu0
      %v1769 = vadd.f32 0.0, %v1768
      %1770 = vmatmul.f32.gmra.mxu0 %v1659
      %v1771 = vpop.f32.mrf.mxu0
      %v1772 = vadd.f32 0.0, %v1771
      %1773 = vmatmul.f32.gmra.mxu0 %v1662
      %v1774 = vpop.f32.mrf.mxu0
      %v1775 = vadd.f32 0.0, %v1774
      %1776 = vmatmul.f32.gmra.mxu0 %v1665
      %v1777 = vpop.f32.mrf.mxu0
      %v1778 = vadd.f32 0.0, %v1777
      %1779 = vmatmul.f32.gmra.mxu0 %v1668
      %v1780 = vpop.f32.mrf.mxu0
      %v1781 = vadd.f32 0.0, %v1780
      %1782 = vmatmul.f32.gmra.mxu0 %v1671
      %v1783 = vpop.f32.mrf.mxu0
      %v1784 = vadd.f32 0.0, %v1783
      %1785 = vmatmul.f32.gmra.mxu0 %v1674
      %v1786 = vpop.f32.mrf.mxu0
      %v1787 = vadd.f32 0.0, %v1786
      %1788 = vmatmul.f32.gmra.mxu0 %v1677
      %v1789 = vpop.f32.mrf.mxu0
      %v1790 = vadd.f32 0.0, %v1789
      %1791 = vmatmul.f32.gmra.mxu0 %v1680
      %v1792 = vpop.f32.mrf.mxu0
      %v1793 = vadd.f32 0.0, %v1792
      %1794 = vmatmul.f32.gmra.mxu0 %v1683
      %v1795 = vpop.f32.mrf.mxu0
      %v1796 = vadd.f32 0.0, %v1795
      %1797 = vmatmul.f32.gmra.mxu0 %v1686
      %v1798 = vpop.f32.mrf.mxu0
      %v1799 = vadd.f32 0.0, %v1798
      %1800 = vmatmul.f32.gmra.mxu0 %v1689
      %v1801 = vpop.f32.mrf.mxu0
      %v1802 = vadd.f32 0.0, %v1801
      %1803 = vmatmul.f32.gmra.mxu0 %v1692
      %v1804 = vpop.f32.mrf.mxu0
      %v1805 = vadd.f32 0.0, %v1804
      %1806 = vmatmul.f32.gmra.mxu0 %v1695
      %v1807 = vpop.f32.mrf.mxu0
      %v1808 = vadd.f32 0.0, %v1807
      %1809 = vmatmul.f32.gmra.mxu0 %v1698
      %v1810 = vpop.f32.mrf.mxu0
      %v1811 = vadd.f32 0.0, %v1810
      %1812 = vmatmul.f32.gmra.mxu0 %v1701
      %v1813 = vpop.f32.mrf.mxu0
      %v1814 = vadd.f32 0.0, %v1813
      %1815 = vmatmul.f32.gmra.mxu0 %v1704
      %v1816 = vpop.f32.mrf.mxu0
      %v1817 = vadd.f32 0.0, %v1816
      %1818 = vmatmul.f32.gmra.mxu0 %v1707
      %v1819 = vpop.f32.mrf.mxu0
      %v1820 = vadd.f32 0.0, %v1819
      %1821 = vmatmul.f32.gmra.mxu0 %v1710
      %v1822 = vpop.f32.mrf.mxu0
      %v1823 = vadd.f32 0.0, %v1822
      %1824 = vdwg.mxu0
      %v1825 = vadd.f32 %v1550, %v1730
      %v1826 = vadd.f32 %v1551, %v1733
      %v1827 = vadd.f32 %v1552, %v1736
      %v1828 = vadd.f32 %v1553, %v1739
      %v1829 = vadd.f32 %v1554, %v1742
      %v1830 = vadd.f32 %v1555, %v1745
      %v1831 = vadd.f32 %v1556, %v1748
      %v1832 = vadd.f32 %v1557, %v1751
      %v1833 = vadd.f32 %v1558, %v1754
      %v1834 = vadd.f32 %v1559, %v1757
      %v1835 = vadd.f32 %v1560, %v1760
      %v1836 = vadd.f32 %v1561, %v1763
      %v1837 = vadd.f32 %v1562, %v1766
      %v1838 = vadd.f32 %v1563, %v1769
      %v1839 = vadd.f32 %v1564, %v1772
      %v1840 = vadd.f32 %v1565, %v1775
      %v1841 = vadd.f32 %v1566, %v1778
      %v1842 = vadd.f32 %v1567, %v1781
      %v1843 = vadd.f32 %v1568, %v1784
      %v1844 = vadd.f32 %v1569, %v1787
      %v1845 = vadd.f32 %v1570, %v1790
      %v1846 = vadd.f32 %v1571, %v1793
      %v1847 = vadd.f32 %v1572, %v1796
      %v1848 = vadd.f32 %v1573, %v1799
      %v1849 = vadd.f32 %v1574, %v1802
      %v1850 = vadd.f32 %v1575, %v1805
      %v1851 = vadd.f32 %v1576, %v1808
      %v1852 = vadd.f32 %v1577, %v1811
      %v1853 = vadd.f32 %v1578, %v1814
      %v1854 = vadd.f32 %v1579, %v1817
      %v1855 = vadd.f32 %v1580, %v1820
      %v1856 = vadd.f32 %v1581, %v1823
      %s1857 = scalar_lea.vmem %s246, 96
      %v1858 = vld [vmem:[%s1857] sm:$0xff]
      %v1859 = vld [vmem:[%s1857 + $0x8] sm:$0xff]
      %v1860 = vld [vmem:[%s1857 + $0x18] sm:$0xff]
      %v1861 = vld [vmem:[%s1857 + $0x20] sm:$0xff]
      %v1862 = vld [vmem:[%s1857 + $0x30] sm:$0xff]
      %v1863 = vld [vmem:[%s1857 + $0x38] sm:$0xff]
      %v1864 = vld [vmem:[%s1857 + $0x48] sm:$0xff]
      %v1865 = vld [vmem:[%s1857 + $0x50] sm:$0xff]
      %v1866 = vld [vmem:[%s1857 + $0x60] sm:$0xff]
      %v1867 = vld [vmem:[%s1857 + $0x68] sm:$0xff]
      %v1868 = vld [vmem:[%s1857 + $0x78] sm:$0xff]
      %v1869 = vld [vmem:[%s1857 + $0x80] sm:$0xff]
      %v1870 = vld [vmem:[%s1857 + $0x90] sm:$0xff]
      %v1871 = vld [vmem:[%s1857 + $0x98] sm:$0xff]
      %v1872 = vld [vmem:[%s1857 + $0xa8] sm:$0xff]
      %v1873 = vld [vmem:[%s1857 + $0xb0] sm:$0xff]
      %v1874 = vld [vmem:[%s1857 + $0xc0] sm:$0xff]
      %v1875 = vld [vmem:[%s1857 + $0xc8] sm:$0xff]
      %v1876 = vld [vmem:[%s1857 + $0xd8] sm:$0xff]
      %v1877 = vld [vmem:[%s1857 + $0xe0] sm:$0xff]
      %v1878 = vld [vmem:[%s1857 + $0xf0] sm:$0xff]
      %v1879 = vld [vmem:[%s1857 + $0xf8] sm:$0xff]
      %v1880 = vld [vmem:[%s1857 + $0x108] sm:$0xff]
      %v1881 = vld [vmem:[%s1857 + $0x110] sm:$0xff]
      %v1882 = vld [vmem:[%s1857 + $0x120] sm:$0xff]
      %v1883 = vld [vmem:[%s1857 + $0x128] sm:$0xff]
      %v1884 = vld [vmem:[%s1857 + $0x138] sm:$0xff]
      %v1885 = vld [vmem:[%s1857 + $0x140] sm:$0xff]
      %v1886 = vld [vmem:[%s1857 + $0x150] sm:$0xff]
      %v1887 = vld [vmem:[%s1857 + $0x158] sm:$0xff]
      %v1888 = vld [vmem:[%s1857 + $0x168] sm:$0xff]
      %v1889 = vld [vmem:[%s1857 + $0x170] sm:$0xff]
      %s1890 = scalar_lea.vmem %s1, 48
      %v1891 = vld [vmem:[%s1890] sm:$0xff]
      %v1893 = vsel %vm337, %v1858, 0
      %v1896 = vsel %vm337, %v1859, 0
      %v1899 = vsel %vm337, %v1860, 0
      %v1902 = vsel %vm337, %v1861, 0
      %v1905 = vsel %vm337, %v1862, 0
      %v1908 = vsel %vm337, %v1863, 0
      %v1911 = vsel %vm337, %v1864, 0
      %v1914 = vsel %vm337, %v1865, 0
      %v1917 = vsel %vm337, %v1866, 0
      %v1920 = vsel %vm337, %v1867, 0
      %v1923 = vsel %vm337, %v1868, 0
      %v1926 = vsel %vm337, %v1869, 0
      %v1929 = vsel %vm337, %v1870, 0
      %v1932 = vsel %vm337, %v1871, 0
      %v1935 = vsel %vm337, %v1872, 0
      %v1938 = vsel %vm337, %v1873, 0
      %v1941 = vsel %vm337, %v1874, 0
      %v1944 = vsel %vm337, %v1875, 0
      %v1947 = vsel %vm337, %v1876, 0
      %v1950 = vsel %vm337, %v1877, 0
      %v1953 = vsel %vm337, %v1878, 0
      %v1956 = vsel %vm337, %v1879, 0
      %v1959 = vsel %vm337, %v1880, 0
      %v1962 = vsel %vm337, %v1881, 0
      %v1965 = vsel %vm337, %v1882, 0
      %v1968 = vsel %vm337, %v1883, 0
      %v1971 = vsel %vm337, %v1884, 0
      %v1974 = vsel %vm337, %v1885, 0
      %v1977 = vsel %vm337, %v1886, 0
      %v1980 = vsel %vm337, %v1887, 0
      %v1983 = vsel %vm337, %v1888, 0
      %v1986 = vsel %vm337, %v1889, 0
      %1988 = vmatpush.msra.mxu0 0.0
      %1989 = vmatpush.msra.mxu0 0.0
      %1990 = vmatpush.msra.mxu0 0.0
      %1991 = vmatpush.msra.mxu0 0.0
      %1992 = vmatpush.msra.mxu0 0.0
      %1993 = vmatpush.msra.mxu0 0.0
      %1994 = vmatpush.msra.mxu0 0.0
      %1995 = vmatpush.msra.mxu0 0.0
      %1996 = vmatpush.msra.mxu0 0.0
      %1997 = vmatpush.msra.mxu0 0.0
      %1998 = vmatpush.msra.mxu0 0.0
      %1999 = vmatpush.msra.mxu0 0.0
      %2000 = vmatpush.msra.mxu0 0.0
      %2001 = vmatpush.msra.mxu0 0.0
      %2002 = vmatpush.msra.mxu0 0.0
      %2003 = vmatpush.msra.mxu0 %v1891
      %2004 = vmatmul.f32.gmra.mxu0 %v1893
      %v2005 = vpop.f32.mrf.mxu0
      %v2006 = vadd.f32 0.0, %v2005
      %2007 = vmatmul.f32.gmra.mxu0 %v1896
      %v2008 = vpop.f32.mrf.mxu0
      %v2009 = vadd.f32 0.0, %v2008
      %2010 = vmatmul.f32.gmra.mxu0 %v1899
      %v2011 = vpop.f32.mrf.mxu0
      %v2012 = vadd.f32 0.0, %v2011
      %2013 = vmatmul.f32.gmra.mxu0 %v1902
      %v2014 = vpop.f32.mrf.mxu0
      %v2015 = vadd.f32 0.0, %v2014
      %2016 = vmatmul.f32.gmra.mxu0 %v1905
      %v2017 = vpop.f32.mrf.mxu0
      %v2018 = vadd.f32 0.0, %v2017
      %2019 = vmatmul.f32.gmra.mxu0 %v1908
      %v2020 = vpop.f32.mrf.mxu0
      %v2021 = vadd.f32 0.0, %v2020
      %2022 = vmatmul.f32.gmra.mxu0 %v1911
      %v2023 = vpop.f32.mrf.mxu0
      %v2024 = vadd.f32 0.0, %v2023
      %2025 = vmatmul.f32.gmra.mxu0 %v1914
      %v2026 = vpop.f32.mrf.mxu0
      %v2027 = vadd.f32 0.0, %v2026
      %2028 = vmatmul.f32.gmra.mxu0 %v1917
      %v2029 = vpop.f32.mrf.mxu0
      %v2030 = vadd.f32 0.0, %v2029
      %2031 = vmatmul.f32.gmra.mxu0 %v1920
      %v2032 = vpop.f32.mrf.mxu0
      %v2033 = vadd.f32 0.0, %v2032
      %2034 = vmatmul.f32.gmra.mxu0 %v1923
      %v2035 = vpop.f32.mrf.mxu0
      %v2036 = vadd.f32 0.0, %v2035
      %2037 = vmatmul.f32.gmra.mxu0 %v1926
      %v2038 = vpop.f32.mrf.mxu0
      %v2039 = vadd.f32 0.0, %v2038
      %2040 = vmatmul.f32.gmra.mxu0 %v1929
      %v2041 = vpop.f32.mrf.mxu0
      %v2042 = vadd.f32 0.0, %v2041
      %2043 = vmatmul.f32.gmra.mxu0 %v1932
      %v2044 = vpop.f32.mrf.mxu0
      %v2045 = vadd.f32 0.0, %v2044
      %2046 = vmatmul.f32.gmra.mxu0 %v1935
      %v2047 = vpop.f32.mrf.mxu0
      %v2048 = vadd.f32 0.0, %v2047
      %2049 = vmatmul.f32.gmra.mxu0 %v1938
      %v2050 = vpop.f32.mrf.mxu0
      %v2051 = vadd.f32 0.0, %v2050
      %2052 = vmatmul.f32.gmra.mxu0 %v1941
      %v2053 = vpop.f32.mrf.mxu0
      %v2054 = vadd.f32 0.0, %v2053
      %2055 = vmatmul.f32.gmra.mxu0 %v1944
      %v2056 = vpop.f32.mrf.mxu0
      %v2057 = vadd.f32 0.0, %v2056
      %2058 = vmatmul.f32.gmra.mxu0 %v1947
      %v2059 = vpop.f32.mrf.mxu0
      %v2060 = vadd.f32 0.0, %v2059
      %2061 = vmatmul.f32.gmra.mxu0 %v1950
      %v2062 = vpop.f32.mrf.mxu0
      %v2063 = vadd.f32 0.0, %v2062
      %2064 = vmatmul.f32.gmra.mxu0 %v1953
      %v2065 = vpop.f32.mrf.mxu0
      %v2066 = vadd.f32 0.0, %v2065
      %2067 = vmatmul.f32.gmra.mxu0 %v1956
      %v2068 = vpop.f32.mrf.mxu0
      %v2069 = vadd.f32 0.0, %v2068
      %2070 = vmatmul.f32.gmra.mxu0 %v1959
      %v2071 = vpop.f32.mrf.mxu0
      %v2072 = vadd.f32 0.0, %v2071
      %2073 = vmatmul.f32.gmra.mxu0 %v1962
      %v2074 = vpop.f32.mrf.mxu0
      %v2075 = vadd.f32 0.0, %v2074
      %2076 = vmatmul.f32.gmra.mxu0 %v1965
      %v2077 = vpop.f32.mrf.mxu0
      %v2078 = vadd.f32 0.0, %v2077
      %2079 = vmatmul.f32.gmra.mxu0 %v1968
      %v2080 = vpop.f32.mrf.mxu0
      %v2081 = vadd.f32 0.0, %v2080
      %2082 = vmatmul.f32.gmra.mxu0 %v1971
      %v2083 = vpop.f32.mrf.mxu0
      %v2084 = vadd.f32 0.0, %v2083
      %2085 = vmatmul.f32.gmra.mxu0 %v1974
      %v2086 = vpop.f32.mrf.mxu0
      %v2087 = vadd.f32 0.0, %v2086
      %2088 = vmatmul.f32.gmra.mxu0 %v1977
      %v2089 = vpop.f32.mrf.mxu0
      %v2090 = vadd.f32 0.0, %v2089
      %2091 = vmatmul.f32.gmra.mxu0 %v1980
      %v2092 = vpop.f32.mrf.mxu0
      %v2093 = vadd.f32 0.0, %v2092
      %2094 = vmatmul.f32.gmra.mxu0 %v1983
      %v2095 = vpop.f32.mrf.mxu0
      %v2096 = vadd.f32 0.0, %v2095
      %2097 = vmatmul.f32.gmra.mxu0 %v1986
      %v2098 = vpop.f32.mrf.mxu0
      %v2099 = vadd.f32 0.0, %v2098
      %2100 = vdwg.mxu0
      %v2101 = vadd.f32 %v1825, %v2006
      %v2102 = vadd.f32 %v1826, %v2009
      %v2103 = vadd.f32 %v1827, %v2012
      %v2104 = vadd.f32 %v1828, %v2015
      %v2105 = vadd.f32 %v1829, %v2018
      %v2106 = vadd.f32 %v1830, %v2021
      %v2107 = vadd.f32 %v1831, %v2024
      %v2108 = vadd.f32 %v1832, %v2027
      %v2109 = vadd.f32 %v1833, %v2030
      %v2110 = vadd.f32 %v1834, %v2033
      %v2111 = vadd.f32 %v1835, %v2036
      %v2112 = vadd.f32 %v1836, %v2039
      %v2113 = vadd.f32 %v1837, %v2042
      %v2114 = vadd.f32 %v1838, %v2045
      %v2115 = vadd.f32 %v1839, %v2048
      %v2116 = vadd.f32 %v1840, %v2051
      %v2117 = vadd.f32 %v1841, %v2054
      %v2118 = vadd.f32 %v1842, %v2057
      %v2119 = vadd.f32 %v1843, %v2060
      %v2120 = vadd.f32 %v1844, %v2063
      %v2121 = vadd.f32 %v1845, %v2066
      %v2122 = vadd.f32 %v1846, %v2069
      %v2123 = vadd.f32 %v1847, %v2072
      %v2124 = vadd.f32 %v1848, %v2075
      %v2125 = vadd.f32 %v1849, %v2078
      %v2126 = vadd.f32 %v1850, %v2081
      %v2127 = vadd.f32 %v1851, %v2084
      %v2128 = vadd.f32 %v1852, %v2087
      %v2129 = vadd.f32 %v1853, %v2090
      %v2130 = vadd.f32 %v1854, %v2093
      %v2131 = vadd.f32 %v1855, %v2096
      %v2132 = vadd.f32 %v1856, %v2099
      %v2133 = vld [vmem:[%s1857 + $0x2] sm:$0xff]
      %v2134 = vld [vmem:[%s1857 + $0xa] sm:$0xff]
      %v2135 = vld [vmem:[%s1857 + $0x1a] sm:$0xff]
      %v2136 = vld [vmem:[%s1857 + $0x22] sm:$0xff]
      %v2137 = vld [vmem:[%s1857 + $0x32] sm:$0xff]
      %v2138 = vld [vmem:[%s1857 + $0x3a] sm:$0xff]
      %v2139 = vld [vmem:[%s1857 + $0x4a] sm:$0xff]
      %v2140 = vld [vmem:[%s1857 + $0x52] sm:$0xff]
      %v2141 = vld [vmem:[%s1857 + $0x62] sm:$0xff]
      %v2142 = vld [vmem:[%s1857 + $0x6a] sm:$0xff]
      %v2143 = vld [vmem:[%s1857 + $0x7a] sm:$0xff]
      %v2144 = vld [vmem:[%s1857 + $0x82] sm:$0xff]
      %v2145 = vld [vmem:[%s1857 + $0x92] sm:$0xff]
      %v2146 = vld [vmem:[%s1857 + $0x9a] sm:$0xff]
      %v2147 = vld [vmem:[%s1857 + $0xaa] sm:$0xff]
      %v2148 = vld [vmem:[%s1857 + $0xb2] sm:$0xff]
      %v2149 = vld [vmem:[%s1857 + $0xc2] sm:$0xff]
      %v2150 = vld [vmem:[%s1857 + $0xca] sm:$0xff]
      %v2151 = vld [vmem:[%s1857 + $0xda] sm:$0xff]
      %v2152 = vld [vmem:[%s1857 + $0xe2] sm:$0xff]
      %v2153 = vld [vmem:[%s1857 + $0xf2] sm:$0xff]
      %v2154 = vld [vmem:[%s1857 + $0xfa] sm:$0xff]
      %v2155 = vld [vmem:[%s1857 + $0x10a] sm:$0xff]
      %v2156 = vld [vmem:[%s1857 + $0x112] sm:$0xff]
      %v2157 = vld [vmem:[%s1857 + $0x122] sm:$0xff]
      %v2158 = vld [vmem:[%s1857 + $0x12a] sm:$0xff]
      %v2159 = vld [vmem:[%s1857 + $0x13a] sm:$0xff]
      %v2160 = vld [vmem:[%s1857 + $0x142] sm:$0xff]
      %v2161 = vld [vmem:[%s1857 + $0x152] sm:$0xff]
      %v2162 = vld [vmem:[%s1857 + $0x15a] sm:$0xff]
      %v2163 = vld [vmem:[%s1857 + $0x16a] sm:$0xff]
      %v2164 = vld [vmem:[%s1857 + $0x172] sm:$0xff]
      %s2165 = scalar_lea.vmem %s1, 56
      %v2166 = vld [vmem:[%s2165] sm:$0xff]
      %v2168 = vsel %vm337, %v2133, 0
      %v2171 = vsel %vm337, %v2134, 0
      %v2174 = vsel %vm337, %v2135, 0
      %v2177 = vsel %vm337, %v2136, 0
      %v2180 = vsel %vm337, %v2137, 0
      %v2183 = vsel %vm337, %v2138, 0
      %v2186 = vsel %vm337, %v2139, 0
      %v2189 = vsel %vm337, %v2140, 0
      %v2192 = vsel %vm337, %v2141, 0
      %v2195 = vsel %vm337, %v2142, 0
      %v2198 = vsel %vm337, %v2143, 0
      %v2201 = vsel %vm337, %v2144, 0
      %v2204 = vsel %vm337, %v2145, 0
      %v2207 = vsel %vm337, %v2146, 0
      %v2210 = vsel %vm337, %v2147, 0
      %v2213 = vsel %vm337, %v2148, 0
      %v2216 = vsel %vm337, %v2149, 0
      %v2219 = vsel %vm337, %v2150, 0
      %v2222 = vsel %vm337, %v2151, 0
      %v2225 = vsel %vm337, %v2152, 0
      %v2228 = vsel %vm337, %v2153, 0
      %v2231 = vsel %vm337, %v2154, 0
      %v2234 = vsel %vm337, %v2155, 0
      %v2237 = vsel %vm337, %v2156, 0
      %v2240 = vsel %vm337, %v2157, 0
      %v2243 = vsel %vm337, %v2158, 0
      %v2246 = vsel %vm337, %v2159, 0
      %v2249 = vsel %vm337, %v2160, 0
      %v2252 = vsel %vm337, %v2161, 0
      %v2255 = vsel %vm337, %v2162, 0
      %v2258 = vsel %vm337, %v2163, 0
      %v2261 = vsel %vm337, %v2164, 0
      %2263 = vmatpush.msra.mxu0 0.0
      %2264 = vmatpush.msra.mxu0 0.0
      %2265 = vmatpush.msra.mxu0 0.0
      %2266 = vmatpush.msra.mxu0 0.0
      %2267 = vmatpush.msra.mxu0 0.0
      %2268 = vmatpush.msra.mxu0 0.0
      %2269 = vmatpush.msra.mxu0 0.0
      %2270 = vmatpush.msra.mxu0 0.0
      %2271 = vmatpush.msra.mxu0 0.0
      %2272 = vmatpush.msra.mxu0 0.0
      %2273 = vmatpush.msra.mxu0 0.0
      %2274 = vmatpush.msra.mxu0 0.0
      %2275 = vmatpush.msra.mxu0 0.0
      %2276 = vmatpush.msra.mxu0 0.0
      %2277 = vmatpush.msra.mxu0 0.0
      %2278 = vmatpush.msra.mxu0 %v2166
      %2279 = vmatmul.f32.gmra.mxu0 %v2168
      %v2280 = vpop.f32.mrf.mxu0
      %v2281 = vadd.f32 0.0, %v2280
      %2282 = vmatmul.f32.gmra.mxu0 %v2171
      %v2283 = vpop.f32.mrf.mxu0
      %v2284 = vadd.f32 0.0, %v2283
      %2285 = vmatmul.f32.gmra.mxu0 %v2174
      %v2286 = vpop.f32.mrf.mxu0
      %v2287 = vadd.f32 0.0, %v2286
      %2288 = vmatmul.f32.gmra.mxu0 %v2177
      %v2289 = vpop.f32.mrf.mxu0
      %v2290 = vadd.f32 0.0, %v2289
      %2291 = vmatmul.f32.gmra.mxu0 %v2180
      %v2292 = vpop.f32.mrf.mxu0
      %v2293 = vadd.f32 0.0, %v2292
      %2294 = vmatmul.f32.gmra.mxu0 %v2183
      %v2295 = vpop.f32.mrf.mxu0
      %v2296 = vadd.f32 0.0, %v2295
      %2297 = vmatmul.f32.gmra.mxu0 %v2186
      %v2298 = vpop.f32.mrf.mxu0
      %v2299 = vadd.f32 0.0, %v2298
      %2300 = vmatmul.f32.gmra.mxu0 %v2189
      %v2301 = vpop.f32.mrf.mxu0
      %v2302 = vadd.f32 0.0, %v2301
      %2303 = vmatmul.f32.gmra.mxu0 %v2192
      %v2304 = vpop.f32.mrf.mxu0
      %v2305 = vadd.f32 0.0, %v2304
      %2306 = vmatmul.f32.gmra.mxu0 %v2195
      %v2307 = vpop.f32.mrf.mxu0
      %v2308 = vadd.f32 0.0, %v2307
      %2309 = vmatmul.f32.gmra.mxu0 %v2198
      %v2310 = vpop.f32.mrf.mxu0
      %v2311 = vadd.f32 0.0, %v2310
      %2312 = vmatmul.f32.gmra.mxu0 %v2201
      %v2313 = vpop.f32.mrf.mxu0
      %v2314 = vadd.f32 0.0, %v2313
      %2315 = vmatmul.f32.gmra.mxu0 %v2204
      %v2316 = vpop.f32.mrf.mxu0
      %v2317 = vadd.f32 0.0, %v2316
      %2318 = vmatmul.f32.gmra.mxu0 %v2207
      %v2319 = vpop.f32.mrf.mxu0
      %v2320 = vadd.f32 0.0, %v2319
      %2321 = vmatmul.f32.gmra.mxu0 %v2210
      %v2322 = vpop.f32.mrf.mxu0
      %v2323 = vadd.f32 0.0, %v2322
      %2324 = vmatmul.f32.gmra.mxu0 %v2213
      %v2325 = vpop.f32.mrf.mxu0
      %v2326 = vadd.f32 0.0, %v2325
      %2327 = vmatmul.f32.gmra.mxu0 %v2216
      %v2328 = vpop.f32.mrf.mxu0
      %v2329 = vadd.f32 0.0, %v2328
      %2330 = vmatmul.f32.gmra.mxu0 %v2219
      %v2331 = vpop.f32.mrf.mxu0
      %v2332 = vadd.f32 0.0, %v2331
      %2333 = vmatmul.f32.gmra.mxu0 %v2222
      %v2334 = vpop.f32.mrf.mxu0
      %v2335 = vadd.f32 0.0, %v2334
      %2336 = vmatmul.f32.gmra.mxu0 %v2225
      %v2337 = vpop.f32.mrf.mxu0
      %v2338 = vadd.f32 0.0, %v2337
      %2339 = vmatmul.f32.gmra.mxu0 %v2228
      %v2340 = vpop.f32.mrf.mxu0
      %v2341 = vadd.f32 0.0, %v2340
      %2342 = vmatmul.f32.gmra.mxu0 %v2231
      %v2343 = vpop.f32.mrf.mxu0
      %v2344 = vadd.f32 0.0, %v2343
      %2345 = vmatmul.f32.gmra.mxu0 %v2234
      %v2346 = vpop.f32.mrf.mxu0
      %v2347 = vadd.f32 0.0, %v2346
      %2348 = vmatmul.f32.gmra.mxu0 %v2237
      %v2349 = vpop.f32.mrf.mxu0
      %v2350 = vadd.f32 0.0, %v2349
      %2351 = vmatmul.f32.gmra.mxu0 %v2240
      %v2352 = vpop.f32.mrf.mxu0
      %v2353 = vadd.f32 0.0, %v2352
      %2354 = vmatmul.f32.gmra.mxu0 %v2243
      %v2355 = vpop.f32.mrf.mxu0
      %v2356 = vadd.f32 0.0, %v2355
      %2357 = vmatmul.f32.gmra.mxu0 %v2246
      %v2358 = vpop.f32.mrf.mxu0
      %v2359 = vadd.f32 0.0, %v2358
      %2360 = vmatmul.f32.gmra.mxu0 %v2249
      %v2361 = vpop.f32.mrf.mxu0
      %v2362 = vadd.f32 0.0, %v2361
      %2363 = vmatmul.f32.gmra.mxu0 %v2252
      %v2364 = vpop.f32.mrf.mxu0
      %v2365 = vadd.f32 0.0, %v2364
      %2366 = vmatmul.f32.gmra.mxu0 %v2255
      %v2367 = vpop.f32.mrf.mxu0
      %v2368 = vadd.f32 0.0, %v2367
      %2369 = vmatmul.f32.gmra.mxu0 %v2258
      %v2370 = vpop.f32.mrf.mxu0
      %v2371 = vadd.f32 0.0, %v2370
      %2372 = vmatmul.f32.gmra.mxu0 %v2261
      %v2373 = vpop.f32.mrf.mxu0
      %v2374 = vadd.f32 0.0, %v2373
      %2375 = vdwg.mxu0
      %v2376 = vadd.f32 %v2101, %v2281
      %v2377 = vadd.f32 %v2102, %v2284
      %v2378 = vadd.f32 %v2103, %v2287
      %v2379 = vadd.f32 %v2104, %v2290
      %v2380 = vadd.f32 %v2105, %v2293
      %v2381 = vadd.f32 %v2106, %v2296
      %v2382 = vadd.f32 %v2107, %v2299
      %v2383 = vadd.f32 %v2108, %v2302
      %v2384 = vadd.f32 %v2109, %v2305
      %v2385 = vadd.f32 %v2110, %v2308
      %v2386 = vadd.f32 %v2111, %v2311
      %v2387 = vadd.f32 %v2112, %v2314
      %v2388 = vadd.f32 %v2113, %v2317
      %v2389 = vadd.f32 %v2114, %v2320
      %v2390 = vadd.f32 %v2115, %v2323
      %v2391 = vadd.f32 %v2116, %v2326
      %v2392 = vadd.f32 %v2117, %v2329
      %v2393 = vadd.f32 %v2118, %v2332
      %v2394 = vadd.f32 %v2119, %v2335
      %v2395 = vadd.f32 %v2120, %v2338
      %v2396 = vadd.f32 %v2121, %v2341
      %v2397 = vadd.f32 %v2122, %v2344
      %v2398 = vadd.f32 %v2123, %v2347
      %v2399 = vadd.f32 %v2124, %v2350
      %v2400 = vadd.f32 %v2125, %v2353
      %v2401 = vadd.f32 %v2126, %v2356
      %v2402 = vadd.f32 %v2127, %v2359
      %v2403 = vadd.f32 %v2128, %v2362
      %v2404 = vadd.f32 %v2129, %v2365
      %v2405 = vadd.f32 %v2130, %v2368
      %v2406 = vadd.f32 %v2131, %v2371
      %v2407 = vadd.f32 %v2132, %v2374
      %v2408 = vld [vmem:[%s1857 + $0x4] sm:$0xff]
      %v2409 = vld [vmem:[%s1857 + $0xc] sm:$0xff]
      %v2410 = vld [vmem:[%s1857 + $0x1c] sm:$0xff]
      %v2411 = vld [vmem:[%s1857 + $0x24] sm:$0xff]
      %v2412 = vld [vmem:[%s1857 + $0x34] sm:$0xff]
      %v2413 = vld [vmem:[%s1857 + $0x3c] sm:$0xff]
      %v2414 = vld [vmem:[%s1857 + $0x4c] sm:$0xff]
      %v2415 = vld [vmem:[%s1857 + $0x54] sm:$0xff]
      %v2416 = vld [vmem:[%s1857 + $0x64] sm:$0xff]
      %v2417 = vld [vmem:[%s1857 + $0x6c] sm:$0xff]
      %v2418 = vld [vmem:[%s1857 + $0x7c] sm:$0xff]
      %v2419 = vld [vmem:[%s1857 + $0x84] sm:$0xff]
      %v2420 = vld [vmem:[%s1857 + $0x94] sm:$0xff]
      %v2421 = vld [vmem:[%s1857 + $0x9c] sm:$0xff]
      %v2422 = vld [vmem:[%s1857 + $0xac] sm:$0xff]
      %v2423 = vld [vmem:[%s1857 + $0xb4] sm:$0xff]
      %v2424 = vld [vmem:[%s1857 + $0xc4] sm:$0xff]
      %v2425 = vld [vmem:[%s1857 + $0xcc] sm:$0xff]
      %v2426 = vld [vmem:[%s1857 + $0xdc] sm:$0xff]
      %v2427 = vld [vmem:[%s1857 + $0xe4] sm:$0xff]
      %v2428 = vld [vmem:[%s1857 + $0xf4] sm:$0xff]
      %v2429 = vld [vmem:[%s1857 + $0xfc] sm:$0xff]
      %v2430 = vld [vmem:[%s1857 + $0x10c] sm:$0xff]
      %v2431 = vld [vmem:[%s1857 + $0x114] sm:$0xff]
      %v2432 = vld [vmem:[%s1857 + $0x124] sm:$0xff]
      %v2433 = vld [vmem:[%s1857 + $0x12c] sm:$0xff]
      %v2434 = vld [vmem:[%s1857 + $0x13c] sm:$0xff]
      %v2435 = vld [vmem:[%s1857 + $0x144] sm:$0xff]
      %v2436 = vld [vmem:[%s1857 + $0x154] sm:$0xff]
      %v2437 = vld [vmem:[%s1857 + $0x15c] sm:$0xff]
      %v2438 = vld [vmem:[%s1857 + $0x16c] sm:$0xff]
      %v2439 = vld [vmem:[%s1857 + $0x174] sm:$0xff]
      %s2440 = scalar_lea.vmem %s1, 64
      %v2441 = vld [vmem:[%s2440] sm:$0xff]
      %v2443 = vsel %vm337, %v2408, 0
      %v2446 = vsel %vm337, %v2409, 0
      %v2449 = vsel %vm337, %v2410, 0
      %v2452 = vsel %vm337, %v2411, 0
      %v2455 = vsel %vm337, %v2412, 0
      %v2458 = vsel %vm337, %v2413, 0
      %v2461 = vsel %vm337, %v2414, 0
      %v2464 = vsel %vm337, %v2415, 0
      %v2467 = vsel %vm337, %v2416, 0
      %v2470 = vsel %vm337, %v2417, 0
      %v2473 = vsel %vm337, %v2418, 0
      %v2476 = vsel %vm337, %v2419, 0
      %v2479 = vsel %vm337, %v2420, 0
      %v2482 = vsel %vm337, %v2421, 0
      %v2485 = vsel %vm337, %v2422, 0
      %v2488 = vsel %vm337, %v2423, 0
      %v2491 = vsel %vm337, %v2424, 0
      %v2494 = vsel %vm337, %v2425, 0
      %v2497 = vsel %vm337, %v2426, 0
      %v2500 = vsel %vm337, %v2427, 0
      %v2503 = vsel %vm337, %v2428, 0
      %v2506 = vsel %vm337, %v2429, 0
      %v2509 = vsel %vm337, %v2430, 0
      %v2512 = vsel %vm337, %v2431, 0
      %v2515 = vsel %vm337, %v2432, 0
      %v2518 = vsel %vm337, %v2433, 0
      %v2521 = vsel %vm337, %v2434, 0
      %v2524 = vsel %vm337, %v2435, 0
      %v2527 = vsel %vm337, %v2436, 0
      %v2530 = vsel %vm337, %v2437, 0
      %v2533 = vsel %vm337, %v2438, 0
      %v2536 = vsel %vm337, %v2439, 0
      %2538 = vmatpush.msra.mxu0 0.0
      %2539 = vmatpush.msra.mxu0 0.0
      %2540 = vmatpush.msra.mxu0 0.0
      %2541 = vmatpush.msra.mxu0 0.0
      %2542 = vmatpush.msra.mxu0 0.0
      %2543 = vmatpush.msra.mxu0 0.0
      %2544 = vmatpush.msra.mxu0 0.0
      %2545 = vmatpush.msra.mxu0 0.0
      %2546 = vmatpush.msra.mxu0 0.0
      %2547 = vmatpush.msra.mxu0 0.0
      %2548 = vmatpush.msra.mxu0 0.0
      %2549 = vmatpush.msra.mxu0 0.0
      %2550 = vmatpush.msra.mxu0 0.0
      %2551 = vmatpush.msra.mxu0 0.0
      %2552 = vmatpush.msra.mxu0 0.0
      %2553 = vmatpush.msra.mxu0 %v2441
      %2554 = vmatmul.f32.gmra.mxu0 %v2443
      %v2555 = vpop.f32.mrf.mxu0
      %v2556 = vadd.f32 0.0, %v2555
      %2557 = vmatmul.f32.gmra.mxu0 %v2446
      %v2558 = vpop.f32.mrf.mxu0
      %v2559 = vadd.f32 0.0, %v2558
      %2560 = vmatmul.f32.gmra.mxu0 %v2449
      %v2561 = vpop.f32.mrf.mxu0
      %v2562 = vadd.f32 0.0, %v2561
      %2563 = vmatmul.f32.gmra.mxu0 %v2452
      %v2564 = vpop.f32.mrf.mxu0
      %v2565 = vadd.f32 0.0, %v2564
      %2566 = vmatmul.f32.gmra.mxu0 %v2455
      %v2567 = vpop.f32.mrf.mxu0
      %v2568 = vadd.f32 0.0, %v2567
      %2569 = vmatmul.f32.gmra.mxu0 %v2458
      %v2570 = vpop.f32.mrf.mxu0
      %v2571 = vadd.f32 0.0, %v2570
      %2572 = vmatmul.f32.gmra.mxu0 %v2461
      %v2573 = vpop.f32.mrf.mxu0
      %v2574 = vadd.f32 0.0, %v2573
      %2575 = vmatmul.f32.gmra.mxu0 %v2464
      %v2576 = vpop.f32.mrf.mxu0
      %v2577 = vadd.f32 0.0, %v2576
      %2578 = vmatmul.f32.gmra.mxu0 %v2467
      %v2579 = vpop.f32.mrf.mxu0
      %v2580 = vadd.f32 0.0, %v2579
      %2581 = vmatmul.f32.gmra.mxu0 %v2470
      %v2582 = vpop.f32.mrf.mxu0
      %v2583 = vadd.f32 0.0, %v2582
      %2584 = vmatmul.f32.gmra.mxu0 %v2473
      %v2585 = vpop.f32.mrf.mxu0
      %v2586 = vadd.f32 0.0, %v2585
      %2587 = vmatmul.f32.gmra.mxu0 %v2476
      %v2588 = vpop.f32.mrf.mxu0
      %v2589 = vadd.f32 0.0, %v2588
      %2590 = vmatmul.f32.gmra.mxu0 %v2479
      %v2591 = vpop.f32.mrf.mxu0
      %v2592 = vadd.f32 0.0, %v2591
      %2593 = vmatmul.f32.gmra.mxu0 %v2482
      %v2594 = vpop.f32.mrf.mxu0
      %v2595 = vadd.f32 0.0, %v2594
      %2596 = vmatmul.f32.gmra.mxu0 %v2485
      %v2597 = vpop.f32.mrf.mxu0
      %v2598 = vadd.f32 0.0, %v2597
      %2599 = vmatmul.f32.gmra.mxu0 %v2488
      %v2600 = vpop.f32.mrf.mxu0
      %v2601 = vadd.f32 0.0, %v2600
      %2602 = vmatmul.f32.gmra.mxu0 %v2491
      %v2603 = vpop.f32.mrf.mxu0
      %v2604 = vadd.f32 0.0, %v2603
      %2605 = vmatmul.f32.gmra.mxu0 %v2494
      %v2606 = vpop.f32.mrf.mxu0
      %v2607 = vadd.f32 0.0, %v2606
      %2608 = vmatmul.f32.gmra.mxu0 %v2497
      %v2609 = vpop.f32.mrf.mxu0
      %v2610 = vadd.f32 0.0, %v2609
      %2611 = vmatmul.f32.gmra.mxu0 %v2500
      %v2612 = vpop.f32.mrf.mxu0
      %v2613 = vadd.f32 0.0, %v2612
      %2614 = vmatmul.f32.gmra.mxu0 %v2503
      %v2615 = vpop.f32.mrf.mxu0
      %v2616 = vadd.f32 0.0, %v2615
      %2617 = vmatmul.f32.gmra.mxu0 %v2506
      %v2618 = vpop.f32.mrf.mxu0
      %v2619 = vadd.f32 0.0, %v2618
      %2620 = vmatmul.f32.gmra.mxu0 %v2509
      %v2621 = vpop.f32.mrf.mxu0
      %v2622 = vadd.f32 0.0, %v2621
      %2623 = vmatmul.f32.gmra.mxu0 %v2512
      %v2624 = vpop.f32.mrf.mxu0
      %v2625 = vadd.f32 0.0, %v2624
      %2626 = vmatmul.f32.gmra.mxu0 %v2515
      %v2627 = vpop.f32.mrf.mxu0
      %v2628 = vadd.f32 0.0, %v2627
      %2629 = vmatmul.f32.gmra.mxu0 %v2518
      %v2630 = vpop.f32.mrf.mxu0
      %v2631 = vadd.f32 0.0, %v2630
      %2632 = vmatmul.f32.gmra.mxu0 %v2521
      %v2633 = vpop.f32.mrf.mxu0
      %v2634 = vadd.f32 0.0, %v2633
      %2635 = vmatmul.f32.gmra.mxu0 %v2524
      %v2636 = vpop.f32.mrf.mxu0
      %v2637 = vadd.f32 0.0, %v2636
      %2638 = vmatmul.f32.gmra.mxu0 %v2527
      %v2639 = vpop.f32.mrf.mxu0
      %v2640 = vadd.f32 0.0, %v2639
      %2641 = vmatmul.f32.gmra.mxu0 %v2530
      %v2642 = vpop.f32.mrf.mxu0
      %v2643 = vadd.f32 0.0, %v2642
      %2644 = vmatmul.f32.gmra.mxu0 %v2533
      %v2645 = vpop.f32.mrf.mxu0
      %v2646 = vadd.f32 0.0, %v2645
      %2647 = vmatmul.f32.gmra.mxu0 %v2536
      %v2648 = vpop.f32.mrf.mxu0
      %v2649 = vadd.f32 0.0, %v2648
      %2650 = vdwg.mxu0
      %v2651 = vadd.f32 %v2376, %v2556
      %v2652 = vadd.f32 %v2377, %v2559
      %v2653 = vadd.f32 %v2378, %v2562
      %v2654 = vadd.f32 %v2379, %v2565
      %v2655 = vadd.f32 %v2380, %v2568
      %v2656 = vadd.f32 %v2381, %v2571
      %v2657 = vadd.f32 %v2382, %v2574
      %v2658 = vadd.f32 %v2383, %v2577
      %v2659 = vadd.f32 %v2384, %v2580
      %v2660 = vadd.f32 %v2385, %v2583
      %v2661 = vadd.f32 %v2386, %v2586
      %v2662 = vadd.f32 %v2387, %v2589
      %v2663 = vadd.f32 %v2388, %v2592
      %v2664 = vadd.f32 %v2389, %v2595
      %v2665 = vadd.f32 %v2390, %v2598
      %v2666 = vadd.f32 %v2391, %v2601
      %v2667 = vadd.f32 %v2392, %v2604
      %v2668 = vadd.f32 %v2393, %v2607
      %v2669 = vadd.f32 %v2394, %v2610
      %v2670 = vadd.f32 %v2395, %v2613
      %v2671 = vadd.f32 %v2396, %v2616
      %v2672 = vadd.f32 %v2397, %v2619
      %v2673 = vadd.f32 %v2398, %v2622
      %v2674 = vadd.f32 %v2399, %v2625
      %v2675 = vadd.f32 %v2400, %v2628
      %v2676 = vadd.f32 %v2401, %v2631
      %v2677 = vadd.f32 %v2402, %v2634
      %v2678 = vadd.f32 %v2403, %v2637
      %v2679 = vadd.f32 %v2404, %v2640
      %v2680 = vadd.f32 %v2405, %v2643
      %v2681 = vadd.f32 %v2406, %v2646
      %v2682 = vadd.f32 %v2407, %v2649
      %2683 = vst.msk [vmem:[%s256] sm:$0xff] %vm337, %v2651
      %2684 = vst.msk [vmem:[%s256 + $0x8] sm:$0xff] %vm337, %v2652
      %2685 = vst.msk [vmem:[%s256 + $0x10] sm:$0xff] %vm337, %v2653
      %2686 = vst.msk [vmem:[%s256 + $0x18] sm:$0xff] %vm337, %v2654
      %2687 = vst.msk [vmem:[%s256 + $0x20] sm:$0xff] %vm337, %v2655
      %2688 = vst.msk [vmem:[%s256 + $0x28] sm:$0xff] %vm337, %v2656
      %2689 = vst.msk [vmem:[%s256 + $0x30] sm:$0xff] %vm337, %v2657
      %2690 = vst.msk [vmem:[%s256 + $0x38] sm:$0xff] %vm337, %v2658
      %2691 = vst.msk [vmem:[%s256 + $0x40] sm:$0xff] %vm337, %v2659
      %2692 = vst.msk [vmem:[%s256 + $0x48] sm:$0xff] %vm337, %v2660
      %2693 = vst.msk [vmem:[%s256 + $0x50] sm:$0xff] %vm337, %v2661
      %2694 = vst.msk [vmem:[%s256 + $0x58] sm:$0xff] %vm337, %v2662
      %2695 = vst.msk [vmem:[%s256 + $0x60] sm:$0xff] %vm337, %v2663
      %2696 = vst.msk [vmem:[%s256 + $0x68] sm:$0xff] %vm337, %v2664
      %2697 = vst.msk [vmem:[%s256 + $0x70] sm:$0xff] %vm337, %v2665
      %2698 = vst.msk [vmem:[%s256 + $0x78] sm:$0xff] %vm337, %v2666
      %2699 = vst.msk [vmem:[%s256 + $0x80] sm:$0xff] %vm337, %v2667
      %2700 = vst.msk [vmem:[%s256 + $0x88] sm:$0xff] %vm337, %v2668
      %2701 = vst.msk [vmem:[%s256 + $0x90] sm:$0xff] %vm337, %v2669
      %2702 = vst.msk [vmem:[%s256 + $0x98] sm:$0xff] %vm337, %v2670
      %2703 = vst.msk [vmem:[%s256 + $0xa0] sm:$0xff] %vm337, %v2671
      %2704 = vst.msk [vmem:[%s256 + $0xa8] sm:$0xff] %vm337, %v2672
      %2705 = vst.msk [vmem:[%s256 + $0xb0] sm:$0xff] %vm337, %v2673
      %2706 = vst.msk [vmem:[%s256 + $0xb8] sm:$0xff] %vm337, %v2674
      %2707 = vst.msk [vmem:[%s256 + $0xc0] sm:$0xff] %vm337, %v2675
      %2708 = vst.msk [vmem:[%s256 + $0xc8] sm:$0xff] %vm337, %v2676
      %2709 = vst.msk [vmem:[%s256 + $0xd0] sm:$0xff] %vm337, %v2677
      %2710 = vst.msk [vmem:[%s256 + $0xd8] sm:$0xff] %vm337, %v2678
      %2711 = vst.msk [vmem:[%s256 + $0xe0] sm:$0xff] %vm337, %v2679
      %2712 = vst.msk [vmem:[%s256 + $0xe8] sm:$0xff] %vm337, %v2680
      %2713 = vst.msk [vmem:[%s256 + $0xf0] sm:$0xff] %vm337, %v2681
      %2714 = vst.msk [vmem:[%s256 + $0xf8] sm:$0xff] %vm337, %v2682
      %v2715 = vsel %vm337, %v2651, 0.0
      %v2716 = vsel %vm337, %v2652, 0.0
      %v2717 = vadd.f32 %v2715, %v2716
      %v2718 = vsel %vm337, %v2653, 0.0
      %v2719 = vadd.f32 %v2717, %v2718
      %v2720 = vsel %vm337, %v2654, 0.0
      %v2721 = vadd.f32 %v2719, %v2720
      %v2722 = vsel %vm337, %v2655, 0.0
      %v2723 = vadd.f32 %v2721, %v2722
      %v2724 = vsel %vm337, %v2656, 0.0
      %v2725 = vadd.f32 %v2723, %v2724
      %v2726 = vsel %vm337, %v2657, 0.0
      %v2727 = vadd.f32 %v2725, %v2726
      %v2728 = vsel %vm337, %v2658, 0.0
      %v2729 = vadd.f32 %v2727, %v2728
      %v2730 = vsel %vm337, %v2659, 0.0
      %v2731 = vadd.f32 %v2729, %v2730
      %v2732 = vsel %vm337, %v2660, 0.0
      %v2733 = vadd.f32 %v2731, %v2732
      %v2734 = vsel %vm337, %v2661, 0.0
      %v2735 = vadd.f32 %v2733, %v2734
      %v2736 = vsel %vm337, %v2662, 0.0
      %v2737 = vadd.f32 %v2735, %v2736
      %v2738 = vsel %vm337, %v2663, 0.0
      %v2739 = vadd.f32 %v2737, %v2738
      %v2740 = vsel %vm337, %v2664, 0.0
      %v2741 = vadd.f32 %v2739, %v2740
      %v2742 = vsel %vm337, %v2665, 0.0
      %v2743 = vadd.f32 %v2741, %v2742
      %v2744 = vsel %vm337, %v2666, 0.0
      %v2745 = vadd.f32 %v2743, %v2744
      %v2746 = vsel %vm337, %v2667, 0.0
      %v2747 = vadd.f32 %v2745, %v2746
      %v2748 = vsel %vm337, %v2668, 0.0
      %v2749 = vadd.f32 %v2747, %v2748
      %v2750 = vsel %vm337, %v2669, 0.0
      %v2751 = vadd.f32 %v2749, %v2750
      %v2752 = vsel %vm337, %v2670, 0.0
      %v2753 = vadd.f32 %v2751, %v2752
      %v2754 = vsel %vm337, %v2671, 0.0
      %v2755 = vadd.f32 %v2753, %v2754
      %v2756 = vsel %vm337, %v2672, 0.0
      %v2757 = vadd.f32 %v2755, %v2756
      %v2758 = vsel %vm337, %v2673, 0.0
      %v2759 = vadd.f32 %v2757, %v2758
      %v2760 = vsel %vm337, %v2674, 0.0
      %v2761 = vadd.f32 %v2759, %v2760
      %v2762 = vsel %vm337, %v2675, 0.0
      %v2763 = vadd.f32 %v2761, %v2762
      %v2764 = vsel %vm337, %v2676, 0.0
      %v2765 = vadd.f32 %v2763, %v2764
      %v2766 = vsel %vm337, %v2677, 0.0
      %v2767 = vadd.f32 %v2765, %v2766
      %v2768 = vsel %vm337, %v2678, 0.0
      %v2769 = vadd.f32 %v2767, %v2768
      %v2770 = vsel %vm337, %v2679, 0.0
      %v2771 = vadd.f32 %v2769, %v2770
      %v2772 = vsel %vm337, %v2680, 0.0
      %v2773 = vadd.f32 %v2771, %v2772
      %v2774 = vsel %vm337, %v2681, 0.0
      %v2775 = vadd.f32 %v2773, %v2774
      %v2776 = vsel %vm337, %v2682, 0.0
      %v2777 = vadd.f32 %v2775, %v2776
      %v2778 = vrot.slane %v2777, 4
      %v2779 = vadd.f32 %v2777, %v2778
      %v2780 = vrot.slane %v2779, 2
      %v2781 = vadd.f32 %v2779, %v2780
      %v2782 = vrot.slane %v2781, 1
      %v2783 = vadd.f32 %v2781, %v2782
      %vm2784 = vcmask 57344
      %2785 = vst.msk [vmem:[%s263] sm:$0x1] %vm2784, %v2783
      %v2786 = vmul.f32 %v2651, %v2651
      %v2787 = vmul.f32 %v2652, %v2652
      %v2788 = vmul.f32 %v2653, %v2653
      %v2789 = vmul.f32 %v2654, %v2654
      %v2790 = vmul.f32 %v2655, %v2655
      %v2791 = vmul.f32 %v2656, %v2656
      %v2792 = vmul.f32 %v2657, %v2657
      %v2793 = vmul.f32 %v2658, %v2658
      %v2794 = vmul.f32 %v2659, %v2659
      %v2795 = vmul.f32 %v2660, %v2660
      %v2796 = vmul.f32 %v2661, %v2661
      %v2797 = vmul.f32 %v2662, %v2662
      %v2798 = vmul.f32 %v2663, %v2663
      %v2799 = vmul.f32 %v2664, %v2664
      %v2800 = vmul.f32 %v2665, %v2665
      %v2801 = vmul.f32 %v2666, %v2666
      %v2802 = vmul.f32 %v2667, %v2667
      %v2803 = vmul.f32 %v2668, %v2668
      %v2804 = vmul.f32 %v2669, %v2669
      %v2805 = vmul.f32 %v2670, %v2670
      %v2806 = vmul.f32 %v2671, %v2671
      %v2807 = vmul.f32 %v2672, %v2672
      %v2808 = vmul.f32 %v2673, %v2673
      %v2809 = vmul.f32 %v2674, %v2674
      %v2810 = vmul.f32 %v2675, %v2675
      %v2811 = vmul.f32 %v2676, %v2676
      %v2812 = vmul.f32 %v2677, %v2677
      %v2813 = vmul.f32 %v2678, %v2678
      %v2814 = vmul.f32 %v2679, %v2679
      %v2815 = vmul.f32 %v2680, %v2680
      %v2816 = vmul.f32 %v2681, %v2681
      %v2817 = vmul.f32 %v2682, %v2682
      %v2818 = vsel %vm337, %v2786, 0.0
      %v2819 = vsel %vm337, %v2787, 0.0
      %v2820 = vadd.f32 %v2818, %v2819
      %v2821 = vsel %vm337, %v2788, 0.0
      %v2822 = vadd.f32 %v2820, %v2821
      %v2823 = vsel %vm337, %v2789, 0.0
      %v2824 = vadd.f32 %v2822, %v2823
      %v2825 = vsel %vm337, %v2790, 0.0
      %v2826 = vadd.f32 %v2824, %v2825
      %v2827 = vsel %vm337, %v2791, 0.0
      %v2828 = vadd.f32 %v2826, %v2827
      %v2829 = vsel %vm337, %v2792, 0.0
      %v2830 = vadd.f32 %v2828, %v2829
      %v2831 = vsel %vm337, %v2793, 0.0
      %v2832 = vadd.f32 %v2830, %v2831
      %v2833 = vsel %vm337, %v2794, 0.0
      %v2834 = vadd.f32 %v2832, %v2833
      %v2835 = vsel %vm337, %v2795, 0.0
      %v2836 = vadd.f32 %v2834, %v2835
      %v2837 = vsel %vm337, %v2796, 0.0
      %v2838 = vadd.f32 %v2836, %v2837
      %v2839 = vsel %vm337, %v2797, 0.0
      %v2840 = vadd.f32 %v2838, %v2839
      %v2841 = vsel %vm337, %v2798, 0.0
      %v2842 = vadd.f32 %v2840, %v2841
      %v2843 = vsel %vm337, %v2799, 0.0
      %v2844 = vadd.f32 %v2842, %v2843
      %v2845 = vsel %vm337, %v2800, 0.0
      %v2846 = vadd.f32 %v2844, %v2845
      %v2847 = vsel %vm337, %v2801, 0.0
      %v2848 = vadd.f32 %v2846, %v2847
      %v2849 = vsel %vm337, %v2802, 0.0
      %v2850 = vadd.f32 %v2848, %v2849
      %v2851 = vsel %vm337, %v2803, 0.0
      %v2852 = vadd.f32 %v2850, %v2851
      %v2853 = vsel %vm337, %v2804, 0.0
      %v2854 = vadd.f32 %v2852, %v2853
      %v2855 = vsel %vm337, %v2805, 0.0
      %v2856 = vadd.f32 %v2854, %v2855
      %v2857 = vsel %vm337, %v2806, 0.0
      %v2858 = vadd.f32 %v2856, %v2857
      %v2859 = vsel %vm337, %v2807, 0.0
      %v2860 = vadd.f32 %v2858, %v2859
      %v2861 = vsel %vm337, %v2808, 0.0
      %v2862 = vadd.f32 %v2860, %v2861
      %v2863 = vsel %vm337, %v2809, 0.0
      %v2864 = vadd.f32 %v2862, %v2863
      %v2865 = vsel %vm337, %v2810, 0.0
      %v2866 = vadd.f32 %v2864, %v2865
      %v2867 = vsel %vm337, %v2811, 0.0
      %v2868 = vadd.f32 %v2866, %v2867
      %v2869 = vsel %vm337, %v2812, 0.0
      %v2870 = vadd.f32 %v2868, %v2869
      %v2871 = vsel %vm337, %v2813, 0.0
      %v2872 = vadd.f32 %v2870, %v2871
      %v2873 = vsel %vm337, %v2814, 0.0
      %v2874 = vadd.f32 %v2872, %v2873
      %v2875 = vsel %vm337, %v2815, 0.0
      %v2876 = vadd.f32 %v2874, %v2875
      %v2877 = vsel %vm337, %v2816, 0.0
      %v2878 = vadd.f32 %v2876, %v2877
      %v2879 = vsel %vm337, %v2817, 0.0
      %v2880 = vadd.f32 %v2878, %v2879
      %v2881 = vrot.slane %v2880, 4
      %v2882 = vadd.f32 %v2880, %v2881
      %v2883 = vrot.slane %v2882, 2
      %v2884 = vadd.f32 %v2882, %v2883
      %v2885 = vrot.slane %v2884, 1
      %v2886 = vadd.f32 %v2884, %v2885
      %2887 = vst.msk [vmem:[%s269] sm:$0x1] %vm2784, %v2886
      %s2888 = smul.u32 16, %s21
      %p2889 = scmp.lt.s32.totalorder %s20, 1
      %s2890 = scalar_select %p2889, %s20, 1
      %p2891 = scmp.lt.s32.totalorder %s2888, 15
      %s2892 = scalar_select %p2891, %s2888, 15
      %s2893 = smul.addr %s2892, 2
      %s2894 = smul.addr %s2890, 32
      %s2895 = sadd.s32 %s2893, %s2894
      %s2896 = smul.addr %s2895, 8
      %s2897 = scalar_lea.vmem %s2, %s2896
      %p2898 = scmp.lt.s32.totalorder %s20, 1
      %s2899 = scalar_select %p2898, %s20, 1
      %p2900 = scmp.lt.s32.totalorder %s21, 0
      %s2901 = scalar_select %p2900, %s21, 0
      %s2902 = sadd.s32 %s2901, %s2899
      %s2903 = scalar_lea.vmem %s3, %s2902
      %p2904 = scmp.lt.s32.totalorder %s20, 1
      %s2905 = scalar_select %p2904, %s20, 1
      %p2906 = scmp.lt.s32.totalorder %s21, 0
      %s2907 = scalar_select %p2906, %s21, 0
      %s2908 = sadd.s32 %s2907, %s2905
      %s2909 = scalar_lea.vmem %s4, %s2908
      // Predicated region
      $region29: #{up_forward.12} parent=27 // pred_check
        %p2910 = pneg %p97
      $region30: #{up_forward.12} parent=27 // pred_check_branch
        %2912 = sbr.rel (%p2910) target = $region32
      $region31: #{up_forward.12} parent=27 // pred_region
        %s2913 = smul.u32 16, %s21
      $region32: #{up_forward.12} parent=27 // pred_fallthru
        _
      // Predicated region
      $region33: #{up_forward.12} parent=27 // pred_check
        %p2914 = pneg %p125
      $region34: #{up_forward.12} parent=27 // pred_check_branch
        %2916 = sbr.rel (%p2914) target = $region36
      $region35: #{up_forward.12} parent=27 // pred_region
        _
      $region36: #{up_forward.12} parent=27 // pred_fallthru
        _
      // Predicated region
      $region37: #{up_forward.12} parent=27 // pred_check
        %p2917 = pneg %p153
      $region38: #{up_forward.12} parent=27 // pred_check_branch
        %2919 = sbr.rel (%p2917) target = $region40
      $region39: #{up_forward.12} parent=27 // pred_region
        _
      $region40: #{up_forward.12} parent=27 // pred_fallthru
        _
    $region28: #{up_forward.12} parent=5 // pred_fallthru
      _
    %p2920 = scmp.le.s32.totalorder 2, %s11
    // Predicated region
    $region41: #{up_forward.12} parent=5 // pred_check
      %p2921 = pneg %p2920
    $region42: #{up_forward.12} parent=5 // pred_check_branch
      %2923 = sbr.rel (%p2921) target = $region44
    $region43: #{up_forward.12} parent=5 // pred_region
      %s2924 = ssub.s32 %s11, 2
      // Predicated region
      $region45: #{up_forward.12} parent=43 // pred_check
        %p2925 = pneg %p103
      $region46: #{up_forward.12} parent=43 // pred_check_branch
        %2927 = sbr.rel (%p2925) target = $region48
      $region47: #{up_forward.12} parent=43 // pred_region
        %s2928 = smul.u32 16, %s23
        %p2929 = scmp.lt.s32.totalorder %s22, 1
        %s2930 = scalar_select %p2929, %s22, 1
        %p2931 = scmp.lt.s32.totalorder %s2928, 15
        %s2932 = scalar_select %p2931, %s2928, 15
        %s2933 = smul.addr %s2932, 2
        %s2934 = smul.addr %s2930, 32
        %s2935 = sadd.s32 %s2933, %s2934
        %s2936 = smul.addr %s2935, 8
        %s2937 = scalar_lea.vmem %s2, %s2936
      $region48: #{up_forward.12} parent=43 // pred_fallthru
        _
      // Predicated region
      $region49: #{up_forward.12} parent=43 // pred_check
        %p2938 = pneg %p131
      $region50: #{up_forward.12} parent=43 // pred_check_branch
        %2940 = sbr.rel (%p2938) target = $region52
      $region51: #{up_forward.12} parent=43 // pred_region
        %p2941 = scmp.lt.s32.totalorder %s22, 1
        %s2942 = scalar_select %p2941, %s22, 1
        %p2943 = scmp.lt.s32.totalorder %s23, 0
        %s2944 = scalar_select %p2943, %s23, 0
        %s2945 = sadd.s32 %s2944, %s2942
        %s2946 = scalar_lea.vmem %s3, %s2945
      $region52: #{up_forward.12} parent=43 // pred_fallthru
        _
      // Predicated region
      $region53: #{up_forward.12} parent=43 // pred_check
        %p2947 = pneg %p159
      $region54: #{up_forward.12} parent=43 // pred_check_branch
        %2949 = sbr.rel (%p2947) target = $region56
      $region55: #{up_forward.12} parent=43 // pred_region
        %p2950 = scmp.lt.s32.totalorder %s22, 1
        %s2951 = scalar_select %p2950, %s22, 1
        %p2952 = scmp.lt.s32.totalorder %s23, 0
        %s2953 = scalar_select %p2952, %s23, 0
        %s2954 = sadd.s32 %s2953, %s2951
        %s2955 = scalar_lea.vmem %s4, %s2954
      $region56: #{up_forward.12} parent=43 // pred_fallthru
        _
    $region44: #{up_forward.12} parent=5 // pred_fallthru
      _
  $region6: #{up_forward.12} parent=0 // loop_footer
    %s15 = sadd.s32 1, %s11
  $region7: #{up_forward.12} parent=0 // loop_footer_branch
    %10 = sbr.rel target = $region3
  $region8: #{up_forward.12} parent=0 // loop_exit
    _

// kernel: up_forward.10
$region0: #{up_forward.10}
  #allocation0 [shape = 'u32[]', space=smem, size = 0x4, offset = 0x4, fixed_abs, tag = 'smem constant byte address 0x4 - core index']
  #allocation1 [shape = 'u32[72,128]{1,0:T(1,128)}', space=vmem, size = 0x9000, scoped, tag = 'internal scratch']
  %s0 = inlined_call_operand.vmem [shape: f32[2,1,20,20,8], index: 0, kind: input, shape index: {}]
  %s1 = inlined_call_operand.vmem [shape: f32[2,1,20,20,8], index: 1, kind: input, shape index: {}]
  %s2 = inlined_call_operand.vmem [shape: f32[9,8,8], index: 2, kind: input, shape index: {}]
  %s3 = inlined_call_operand.vmem [shape: f32[9,8,8], index: 3, kind: input, shape index: {}]
  %s4 = inlined_call_operand.vmem [shape: f32[2,16,16,8], index: 4, kind: output, shape index: {0}]
  %s5 = inlined_call_operand.vmem [shape: f32[2,1,1,8], index: 5, kind: output, shape index: {1}]
  %s6 = inlined_call_operand.vmem [shape: f32[2,1,1,8], index: 6, kind: output, shape index: {2}]
  %7 = xla_tuple %s4, %s5, %s6
  %s8 = sld [smem:[#allocation0]]
  $region65: #{up_forward.10} parent=0
    _
  %s10 = ssub.s32 1, %s8
  %s11 = scalar_select 0, %s10, %s8
  loop: start=0, step=1, limit=4
  $region2: #{up_forward.10} parent=0 // loop_pre_header
    _
  $region3: #{up_forward.10} parent=0 // loop_header
    %s13 = sphi 0, %s17
    %p14 = scmp.ge.s32.totalorder %s13, 4
    %s20 = sphi 0, %s32
    %s21 = sphi 0, %s28
    %s22 = sphi 0, %s20
    %s23 = sphi 0, %s21
    %s24 = sphi 0, %s22
    %s25 = sphi 0, %s23
    %s37 = sphi 0, %s39
    %s40 = sphi 0, %s37
    %s41 = sphi 0, %s40
    %s57 = sphi 0, %s41
    %s65 = sphi 0, %s67
    %s68 = sphi 0, %s65
    %s69 = sphi 0, %s68
    %s85 = sphi 0, %s69
    %s89 = sphi 0, %s89
    %s91 = sphi 0, %s89
    %s92 = sphi 0, %s91
    %s106 = sphi 0, %s92
    %s110 = sphi 0, %s110
    %s112 = sphi 0, %s110
    %s113 = sphi 0, %s112
    %s127 = sphi 0, %s113
    %s135 = sphi 0, %s137
    %s138 = sphi 0, %s135
    %s139 = sphi 0, %s138
    %s155 = sphi 0, %s139
    %s163 = sphi 0, %s165
    %s166 = sphi 0, %s163
    %s167 = sphi 0, %s166
    %s183 = sphi 0, %s167
    %s191 = sphi 0, %s193
    %s194 = sphi 0, %s191
    %s195 = sphi 0, %s194
    %s211 = sphi 0, %s195
  $region4: #{up_forward.10} parent=0 // loop_header_branch
    %16 = sbr.rel (%p14) target = $region8
  $region5: #{up_forward.10} parent=0 // loop_body
    %s18 = ssub.s32 %s13, 1
    %s19 = ssub.s32 %s13, 2
    %s26 = sadd.s32 1, %s21
    %p27 = scmp.ge.s32.totalorder %s26, 1
    %s28 = scalar_select %p27, 0, %s26
    %s29 = sadd.s32 1, %s20
    %s30 = scalar_select %p27, %s29, %s20
    %p31 = scmp.ge.s32.totalorder %s30, 2
    %s32 = scalar_select %p31, 0, %s30
    %s33 = ssub.s32 %s20, %s32
    %s34 = ssub.s32 %s21, %s28
    %s35 = sor.u32 %s33, %s34
    %p36 = scmp.eq.s32.totalorder %s35, 0
    %s38 = sadd.s32 %s37, 1
    %s39 = scalar_select %p36, %s37, %s38
    %p42 = pneg %p36
    %p43 = scmp.eq.s32.totalorder %s13, 1
    %p44 = por %p42, %p43
    %p45 = scmp.ne.s32.totalorder %s37, %s40
    %p46 = scmp.eq.s32.totalorder %s13, 0
    %p47 = por %p45, %p46
    %p48 = scmp.ne.s32.totalorder %s37, %s40
    %p49 = scmp.eq.s32.totalorder %s18, 1
    %p50 = por %p48, %p49
    %p51 = scmp.ne.s32.totalorder %s40, %s41
    %p52 = scmp.eq.s32.totalorder %s18, 0
    %p53 = por %p51, %p52
    %p54 = scmp.ne.s32.totalorder %s40, %s41
    %p55 = scmp.eq.s32.totalorder %s19, 1
    %p56 = por %p54, %p55
    %p58 = scmp.ne.s32.totalorder %s41, %s57
    %p59 = scmp.eq.s32.totalorder %s19, 0
    %p60 = por %p58, %p59
    %s61 = ssub.s32 %s20, %s32
    %s62 = ssub.s32 %s21, %s28
    %s63 = sor.u32 %s61, %s62
    %p64 = scmp.eq.s32.totalorder %s63, 0
    %s66 = sadd.s32 %s65, 1
    %s67 = scalar_select %p64, %s65, %s66
    %p70 = pneg %p64
    %p71 = scmp.eq.s32.totalorder %s13, 1
    %p72 = por %p70, %p71
    %p73 = scmp.ne.s32.totalorder %s65, %s68
    %p74 = scmp.eq.s32.totalorder %s13, 0
    %p75 = por %p73, %p74
    %p76 = scmp.ne.s32.totalorder %s65, %s68
    %p77 = scmp.eq.s32.totalorder %s18, 1
    %p78 = por %p76, %p77
    %p79 = scmp.ne.s32.totalorder %s68, %s69
    %p80 = scmp.eq.s32.totalorder %s18, 0
    %p81 = por %p79, %p80
    %p82 = scmp.ne.s32.totalorder %s68, %s69
    %p83 = scmp.eq.s32.totalorder %s19, 1
    %p84 = por %p82, %p83
    %p86 = scmp.ne.s32.totalorder %s69, %s85
    %p87 = scmp.eq.s32.totalorder %s19, 0
    %p88 = por %p86, %p87
    %s90 = sadd.s32 %s89, 1
    %p93 = scmp.eq.s32.totalorder %s13, 1
    %p94 = scmp.ne.s32.totalorder %s89, %s91
    %p95 = scmp.eq.s32.totalorder %s13, 0
    %p96 = por %p94, %p95
    %p97 = scmp.ne.s32.totalorder %s89, %s91
    %p98 = scmp.eq.s32.totalorder %s18, 1
    %p99 = por %p97, %p98
    %p100 = scmp.ne.s32.totalorder %s91, %s92
    %p101 = scmp.eq.s32.totalorder %s18, 0
    %p102 = por %p100, %p101
    %p103 = scmp.ne.s32.totalorder %s91, %s92
    %p104 = scmp.eq.s32.totalorder %s19, 1
    %p105 = por %p103, %p104
    %p107 = scmp.ne.s32.totalorder %s92, %s106
    %p108 = scmp.eq.s32.totalorder %s19, 0
    %p109 = por %p107, %p108
    %s111 = sadd.s32 %s110, 1
    %p114 = scmp.eq.s32.totalorder %s13, 1
    %p115 = scmp.ne.s32.totalorder %s110, %s112
    %p116 = scmp.eq.s32.totalorder %s13, 0
    %p117 = por %p115, %p116
    %p118 = scmp.ne.s32.totalorder %s110, %s112
    %p119 = scmp.eq.s32.totalorder %s18, 1
    %p120 = por %p118, %p119
    %p121 = scmp.ne.s32.totalorder %s112, %s113
    %p122 = scmp.eq.s32.totalorder %s18, 0
    %p123 = por %p121, %p122
    %p124 = scmp.ne.s32.totalorder %s112, %s113
    %p125 = scmp.eq.s32.totalorder %s19, 1
    %p126 = por %p124, %p125
    %p128 = scmp.ne.s32.totalorder %s113, %s127
    %p129 = scmp.eq.s32.totalorder %s19, 0
    %p130 = por %p128, %p129
    %s131 = ssub.s32 %s20, %s32
    %s132 = ssub.s32 %s21, %s28
    %s133 = sor.u32 %s131, %s132
    %p134 = scmp.eq.s32.totalorder %s133, 0
    %s136 = sadd.s32 %s135, 1
    %s137 = scalar_select %p134, %s135, %s136
    %p140 = pneg %p134
    %p141 = scmp.eq.s32.totalorder %s13, 1
    %p142 = por %p140, %p141
    %p143 = scmp.ne.s32.totalorder %s135, %s138
    %p144 = scmp.eq.s32.totalorder %s13, 0
    %p145 = por %p143, %p144
    %p146 = scmp.ne.s32.totalorder %s135, %s138
    %p147 = scmp.eq.s32.totalorder %s18, 1
    %p148 = por %p146, %p147
    %p149 = scmp.ne.s32.totalorder %s138, %s139
    %p150 = scmp.eq.s32.totalorder %s18, 0
    %p151 = por %p149, %p150
    %p152 = scmp.ne.s32.totalorder %s138, %s139
    %p153 = scmp.eq.s32.totalorder %s19, 1
    %p154 = por %p152, %p153
    %p156 = scmp.ne.s32.totalorder %s139, %s155
    %p157 = scmp.eq.s32.totalorder %s19, 0
    %p158 = por %p156, %p157
    %s159 = ssub.s32 %s20, %s32
    %s160 = ssub.s32 %s21, %s28
    %s161 = sor.u32 %s159, %s160
    %p162 = scmp.eq.s32.totalorder %s161, 0
    %s164 = sadd.s32 %s163, 1
    %s165 = scalar_select %p162, %s163, %s164
    %p168 = pneg %p162
    %p169 = scmp.eq.s32.totalorder %s13, 1
    %p170 = por %p168, %p169
    %p171 = scmp.ne.s32.totalorder %s163, %s166
    %p172 = scmp.eq.s32.totalorder %s13, 0
    %p173 = por %p171, %p172
    %p174 = scmp.ne.s32.totalorder %s163, %s166
    %p175 = scmp.eq.s32.totalorder %s18, 1
    %p176 = por %p174, %p175
    %p177 = scmp.ne.s32.totalorder %s166, %s167
    %p178 = scmp.eq.s32.totalorder %s18, 0
    %p179 = por %p177, %p178
    %p180 = scmp.ne.s32.totalorder %s166, %s167
    %p181 = scmp.eq.s32.totalorder %s19, 1
    %p182 = por %p180, %p181
    %p184 = scmp.ne.s32.totalorder %s167, %s183
    %p185 = scmp.eq.s32.totalorder %s19, 0
    %p186 = por %p184, %p185
    %s187 = ssub.s32 %s20, %s32
    %s188 = ssub.s32 %s21, %s28
    %s189 = sor.u32 %s187, %s188
    %p190 = scmp.eq.s32.totalorder %s189, 0
    %s192 = sadd.s32 %s191, 1
    %s193 = scalar_select %p190, %s191, %s192
    %p196 = pneg %p190
    %p197 = scmp.eq.s32.totalorder %s13, 1
    %p198 = por %p196, %p197
    %p199 = scmp.ne.s32.totalorder %s191, %s194
    %p200 = scmp.eq.s32.totalorder %s13, 0
    %p201 = por %p199, %p200
    %p202 = scmp.ne.s32.totalorder %s191, %s194
    %p203 = scmp.eq.s32.totalorder %s18, 1
    %p204 = por %p202, %p203
    %p205 = scmp.ne.s32.totalorder %s194, %s195
    %p206 = scmp.eq.s32.totalorder %s18, 0
    %p207 = por %p205, %p206
    %p208 = scmp.ne.s32.totalorder %s194, %s195
    %p209 = scmp.eq.s32.totalorder %s19, 1
    %p210 = por %p208, %p209
    %p212 = scmp.ne.s32.totalorder %s195, %s211
    %p213 = scmp.eq.s32.totalorder %s19, 0
    %p214 = por %p212, %p213
    %p215 = scmp.le.s32.totalorder 1, %s13
    %p216 = scmp.lt.s32.totalorder %s13, 3
    %p217 = pnand %p215, %p216
    %p218 = pneg %p217
    // Predicated region
    $region9: #{up_forward.10} parent=5 // pred_check
      _
    $region10: #{up_forward.10} parent=5 // pred_check_branch
      %220 = sbr.rel (%p217) target = $region12
    $region11: #{up_forward.10} parent=5 // pred_region
      %s221 = ssub.s32 %s13, 1
      // Predicated region
      $region13: #{up_forward.10} parent=11 // pred_check
        %p222 = pneg %p102
      $region14: #{up_forward.10} parent=11 // pred_check_branch
        %224 = sbr.rel (%p222) target = $region16
      $region15: #{up_forward.10} parent=11 // pred_region
        _
      $region16: #{up_forward.10} parent=11 // pred_fallthru
        _
      // Predicated region
      $region17: #{up_forward.10} parent=11 // pred_check
        %p225 = pneg %p123
      $region18: #{up_forward.10} parent=11 // pred_check_branch
        %227 = sbr.rel (%p225) target = $region20
      $region19: #{up_forward.10} parent=11 // pred_region
        _
      $region20: #{up_forward.10} parent=11 // pred_fallthru
        _
    $region12: #{up_forward.10} parent=5 // pred_fallthru
      _
    %p228 = scmp.lt.s32.totalorder %s13, 2
    // Predicated region
    $region21: #{up_forward.10} parent=5 // pred_check
      %p229 = pneg %p228
    $region22: #{up_forward.10} parent=5 // pred_check_branch
      %231 = sbr.rel (%p229) target = $region24
    $region23: #{up_forward.10} parent=5 // pred_region
      // Predicated region
      $region25: #{up_forward.10} parent=23 // pred_check
        %p232 = pneg %p47
      $region26: #{up_forward.10} parent=23 // pred_check_branch
        %234 = sbr.rel (%p232) target = $region28
      $region27: #{up_forward.10} parent=23 // pred_region
        %p235 = scmp.lt.s32.totalorder %s20, 1
        %s236 = scalar_select %p235, %s20, 1
        %p237 = scmp.lt.s32.totalorder %s21, 0
        %s238 = scalar_select %p237, %s21, 0
        %s239 = smul.addr %s238, 60
        %s240 = smul.addr %s236, 60
        %s241 = sadd.s32 %s239, %s240
        %s242 = smul.addr %s241, 8
        %s243 = scalar_lea.vmem %s0, %s242
      $region28: #{up_forward.10} parent=23 // pred_fallthru
        _
      // Predicated region
      $region29: #{up_forward.10} parent=23 // pred_check
        %p244 = pneg %p75
      $region30: #{up_forward.10} parent=23 // pred_check_branch
        %246 = sbr.rel (%p244) target = $region32
      $region31: #{up_forward.10} parent=23 // pred_region
        %p247 = scmp.lt.s32.totalorder %s20, 1
        %s248 = scalar_select %p247, %s20, 1
        %p249 = scmp.lt.s32.totalorder %s21, 0
        %s250 = scalar_select %p249, %s21, 0
        %s251 = smul.addr %s250, 60
        %s252 = smul.addr %s248, 60
        %s253 = sadd.s32 %s251, %s252
        %s254 = smul.addr %s253, 8
        %s255 = scalar_lea.vmem %s1, %s254
      $region32: #{up_forward.10} parent=23 // pred_fallthru
        _
    $region24: #{up_forward.10} parent=5 // pred_fallthru
      _
    %p256 = scmp.le.s32.totalorder 1, %s13
    %p257 = scmp.lt.s32.totalorder %s13, 3
    %p258 = pnand %p256, %p257
    %p259 = pneg %p258
    // Predicated region
    $region33: #{up_forward.10} parent=5 // pred_check
      _
    $region34: #{up_forward.10} parent=5 // pred_check_branch
      %261 = sbr.rel (%p258) target = $region36
    $region35: #{up_forward.10} parent=5 // pred_region
      %s262 = ssub.s32 %s13, 1
      %p263 = scmp.lt.s32.totalorder %s22, 1
      %s264 = scalar_select %p263, %s22, 1
      %p265 = scmp.lt.s32.totalorder %s23, 0
      %s266 = scalar_select %p265, %s23, 0
      %s267 = smul.addr %s266, 60
      %s268 = smul.addr %s264, 60
      %s269 = sadd.s32 %s267, %s268
      %s270 = smul.addr %s269, 8
      %s271 = scalar_lea.vmem %s0, %s270
      %p272 = pneg %p53
      %p273 = pneg %p50
      %p274 = scmp.lt.s32.totalorder %s22, 1
      %s275 = scalar_select %p274, %s22, 1
      %p276 = scmp.lt.s32.totalorder %s23, 0
      %s277 = scalar_select %p276, %s23, 0
      %s278 = smul.addr %s277, 60
      %s279 = smul.addr %s275, 60
      %s280 = sadd.s32 %s278, %s279
      %s281 = smul.addr %s280, 8
      %s282 = scalar_lea.vmem %s1, %s281
      %p283 = pneg %p81
      %p284 = pneg %p78
      %p285 = pneg %p102
      %p286 = pneg %p99
      %p287 = pneg %p123
      %p288 = pneg %p120
      %p289 = pneg %p151
      %p290 = pneg %p148
      %s291 = smul.u32 16, %s23
      %p292 = scmp.lt.s32.totalorder %s22, 1
      %s293 = scalar_select %p292, %s22, 1
      %p294 = scmp.lt.s32.totalorder %s291, 15
      %s295 = scalar_select %p294, %s291, 15
      %s296 = smul.addr %s295, 2
      %s297 = smul.addr %s293, 32
      %s298 = sadd.s32 %s296, %s297
      %s299 = smul.addr %s298, 8
      %s300 = scalar_lea.vmem %s4, %s299
      %p301 = pneg %p179
      %p302 = pneg %p176
      %p303 = scmp.lt.s32.totalorder %s22, 1
      %s304 = scalar_select %p303, %s22, 1
      %p305 = scmp.lt.s32.totalorder %s23, 0
      %s306 = scalar_select %p305, %s23, 0
      %s307 = sadd.s32 %s306, %s304
      %s308 = scalar_lea.vmem %s5, %s307
      %p309 = pneg %p207
      %p310 = pneg %p204
      %p311 = scmp.lt.s32.totalorder %s22, 1
      %s312 = scalar_select %p311, %s22, 1
      %p313 = scmp.lt.s32.totalorder %s23, 0
      %s314 = scalar_select %p313, %s23, 0
      %s315 = sadd.s32 %s314, %s312
      %s316 = scalar_lea.vmem %s6, %s315
      %p317 = scmp.lt.s32.totalorder %s22, 1
      %s318 = scalar_select %p317, %s22, 1
      %p319 = scmp.lt.s32.totalorder %s23, 0
      %s320 = scalar_select %p319, %s23, 0
      %s321 = smul.addr %s320, 60
      %s322 = smul.addr %s318, 60
      %s323 = sadd.s32 %s321, %s322
      %s324 = smul.addr %s323, 8
      %s325 = scalar_lea.vmem %s0, %s324
      %p326 = scmp.lt.s32.totalorder %s22, 1
      %s327 = scalar_select %p326, %s22, 1
      %p328 = scmp.lt.s32.totalorder %s23, 0
      %s329 = scalar_select %p328, %s23, 0
      %s330 = smul.addr %s329, 60
      %s331 = smul.addr %s327, 60
      %s332 = sadd.s32 %s330, %s331
      %s333 = smul.addr %s332, 8
      %s334 = scalar_lea.vmem %s1, %s333
      %s335 = smul.u32 16, %s23
      %p336 = scmp.lt.s32.totalorder %s22, 1
      %s337 = scalar_select %p336, %s22, 1
      %p338 = scmp.lt.s32.totalorder %s335, 15
      %s339 = scalar_select %p338, %s335, 15
      %s340 = smul.addr %s339, 2
      %s341 = smul.addr %s337, 32
      %s342 = sadd.s32 %s340, %s341
      %s343 = smul.addr %s342, 8
      %s344 = scalar_lea.vmem %s4, %s343
      %s345 = smul.u32 16, %s23
      %p346 = scmp.lt.s32.totalorder %s22, 1
      %s347 = scalar_select %p346, %s22, 1
      %p348 = scmp.lt.s32.totalorder %s23, 0
      %s349 = scalar_select %p348, %s23, 0
      %s350 = sadd.s32 %s349, %s347
      %s351 = scalar_lea.vmem %s5, %s350
      %p352 = scmp.lt.s32.totalorder %s22, 1
      %s353 = scalar_select %p352, %s22, 1
      %p354 = scmp.lt.s32.totalorder %s23, 0
      %s355 = scalar_select %p354, %s23, 0
      %s356 = sadd.s32 %s355, %s353
      %s357 = scalar_lea.vmem %s6, %s356
      %v358 = vld [vmem:[%s325] sm:$0xff]
      %v359 = vld [vmem:[%s325 + $0x8] sm:$0xff]
      %v360 = vld [vmem:[%s325 + $0x18] sm:$0xff]
      %v361 = vld [vmem:[%s325 + $0x20] sm:$0xff]
      %v362 = vld [vmem:[%s325 + $0x30] sm:$0xff]
      %v363 = vld [vmem:[%s325 + $0x38] sm:$0xff]
      %v364 = vld [vmem:[%s325 + $0x48] sm:$0xff]
      %v365 = vld [vmem:[%s325 + $0x50] sm:$0xff]
      %v366 = vld [vmem:[%s325 + $0x60] sm:$0xff]
      %v367 = vld [vmem:[%s325 + $0x68] sm:$0xff]
      %v368 = vld [vmem:[%s325 + $0x78] sm:$0xff]
      %v369 = vld [vmem:[%s325 + $0x80] sm:$0xff]
      %v370 = vld [vmem:[%s325 + $0x90] sm:$0xff]
      %v371 = vld [vmem:[%s325 + $0x98] sm:$0xff]
      %v372 = vld [vmem:[%s325 + $0xa8] sm:$0xff]
      %v373 = vld [vmem:[%s325 + $0xb0] sm:$0xff]
      %v374 = vld [vmem:[%s325 + $0xc0] sm:$0xff]
      %v375 = vld [vmem:[%s325 + $0xc8] sm:$0xff]
      %v376 = vld [vmem:[%s325 + $0xd8] sm:$0xff]
      %v377 = vld [vmem:[%s325 + $0xe0] sm:$0xff]
      %v378 = vld [vmem:[%s325 + $0xf0] sm:$0xff]
      %v379 = vld [vmem:[%s325 + $0xf8] sm:$0xff]
      %v380 = vld [vmem:[%s325 + $0x108] sm:$0xff]
      %v381 = vld [vmem:[%s325 + $0x110] sm:$0xff]
      %v382 = vld [vmem:[%s325 + $0x120] sm:$0xff]
      %v383 = vld [vmem:[%s325 + $0x128] sm:$0xff]
      %v384 = vld [vmem:[%s325 + $0x138] sm:$0xff]
      %v385 = vld [vmem:[%s325 + $0x140] sm:$0xff]
      %v386 = vld [vmem:[%s325 + $0x150] sm:$0xff]
      %v387 = vld [vmem:[%s325 + $0x158] sm:$0xff]
      %v388 = vld [vmem:[%s325 + $0x168] sm:$0xff]
      %v389 = vld [vmem:[%s325 + $0x170] sm:$0xff]
      %v390 = vld [vmem:[%s2] sm:$0xff]
      %v391 = vld [vmem:[%s325 + $0x2] sm:$0xff]
      %v392 = vld [vmem:[%s325 + $0xa] sm:$0xff]
      %v393 = vld [vmem:[%s325 + $0x1a] sm:$0xff]
      %v394 = vld [vmem:[%s325 + $0x22] sm:$0xff]
      %v395 = vld [vmem:[%s325 + $0x32] sm:$0xff]
      %v396 = vld [vmem:[%s325 + $0x3a] sm:$0xff]
      %v397 = vld [vmem:[%s325 + $0x4a] sm:$0xff]
      %v398 = vld [vmem:[%s325 + $0x52] sm:$0xff]
      %v399 = vld [vmem:[%s325 + $0x62] sm:$0xff]
      %v400 = vld [vmem:[%s325 + $0x6a] sm:$0xff]
      %v401 = vld [vmem:[%s325 + $0x7a] sm:$0xff]
      %v402 = vld [vmem:[%s325 + $0x82] sm:$0xff]
      %v403 = vld [vmem:[%s325 + $0x92] sm:$0xff]
      %v404 = vld [vmem:[%s325 + $0x9a] sm:$0xff]
      %v405 = vld [vmem:[%s325 + $0xaa] sm:$0xff]
      %v406 = vld [vmem:[%s325 + $0xb2] sm:$0xff]
      %v407 = vld [vmem:[%s325 + $0xc2] sm:$0xff]
      %v408 = vld [vmem:[%s325 + $0xca] sm:$0xff]
      %v409 = vld [vmem:[%s325 + $0xda] sm:$0xff]
      %v410 = vld [vmem:[%s325 + $0xe2] sm:$0xff]
      %v411 = vld [vmem:[%s325 + $0xf2] sm:$0xff]
      %v412 = vld [vmem:[%s325 + $0xfa] sm:$0xff]
      %v413 = vld [vmem:[%s325 + $0x10a] sm:$0xff]
      %v414 = vld [vmem:[%s325 + $0x112] sm:$0xff]
      %v415 = vld [vmem:[%s325 + $0x122] sm:$0xff]
      %v416 = vld [vmem:[%s325 + $0x12a] sm:$0xff]
      %v417 = vld [vmem:[%s325 + $0x13a] sm:$0xff]
      %v418 = vld [vmem:[%s325 + $0x142] sm:$0xff]
      %v419 = vld [vmem:[%s325 + $0x152] sm:$0xff]
      %v420 = vld [vmem:[%s325 + $0x15a] sm:$0xff]
      %v421 = vld [vmem:[%s325 + $0x16a] sm:$0xff]
      %v422 = vld [vmem:[%s325 + $0x172] sm:$0xff]
      %s423 = scalar_lea.vmem %s2, 8
      %v424 = vld [vmem:[%s423] sm:$0xff]
      %vm425 = vcmask 64512
      %v427 = vsel %vm425, %v391, 0
      %v430 = vsel %vm425, %v392, 0
      %v433 = vsel %vm425, %v393, 0
      %v436 = vsel %vm425, %v394, 0
      %v439 = vsel %vm425, %v395, 0
      %v442 = vsel %vm425, %v396, 0
      %v445 = vsel %vm425, %v397, 0
      %v448 = vsel %vm425, %v398, 0
      %v451 = vsel %vm425, %v399, 0
      %v454 = vsel %vm425, %v400, 0
      %v457 = vsel %vm425, %v401, 0
      %v460 = vsel %vm425, %v402, 0
      %v463 = vsel %vm425, %v403, 0
      %v466 = vsel %vm425, %v404, 0
      %v469 = vsel %vm425, %v405, 0
      %v472 = vsel %vm425, %v406, 0
      %v475 = vsel %vm425, %v407, 0
      %v478 = vsel %vm425, %v408, 0
      %v481 = vsel %vm425, %v409, 0
      %v484 = vsel %vm425, %v410, 0
      %v487 = vsel %vm425, %v411, 0
      %v490 = vsel %vm425, %v412, 0
      %v493 = vsel %vm425, %v413, 0
      %v496 = vsel %vm425, %v414, 0
      %v499 = vsel %vm425, %v415, 0
      %v502 = vsel %vm425, %v416, 0
      %v505 = vsel %vm425, %v417, 0
      %v508 = vsel %vm425, %v418, 0
      %v511 = vsel %vm425, %v419, 0
      %v514 = vsel %vm425, %v420, 0
      %v517 = vsel %vm425, %v421, 0
      %v520 = vsel %vm425, %v422, 0
      %522 = vmatpush.msra.mxu0 0.0
      %523 = vmatpush.msra.mxu0 0.0
      %524 = vmatpush.msra.mxu0 0.0
      %525 = vmatpush.msra.mxu0 0.0
      %526 = vmatpush.msra.mxu0 0.0
      %527 = vmatpush.msra.mxu0 0.0
      %528 = vmatpush.msra.mxu0 0.0
      %529 = vmatpush.msra.mxu0 0.0
      %530 = vmatpush.msra.mxu0 0.0
      %531 = vmatpush.msra.mxu0 0.0
      %532 = vmatpush.msra.mxu0 0.0
      %533 = vmatpush.msra.mxu0 0.0
      %534 = vmatpush.msra.mxu0 0.0
      %535 = vmatpush.msra.mxu0 0.0
      %536 = vmatpush.msra.mxu0 0.0
      %537 = vmatpush.msra.mxu0 %v424
      %538 = vmatmul.f32.gmra.mxu0 %v427
      %v539 = vpop.f32.mrf.mxu0
      %v540 = vadd.f32 0.0, %v539
      %541 = vmatmul.f32.gmra.mxu0 %v430
      %v542 = vpop.f32.mrf.mxu0
      %v543 = vadd.f32 0.0, %v542
      %544 = vmatmul.f32.gmra.mxu0 %v433
      %v545 = vpop.f32.mrf.mxu0
      %v546 = vadd.f32 0.0, %v545
      %547 = vmatmul.f32.gmra.mxu0 %v436
      %v548 = vpop.f32.mrf.mxu0
      %v549 = vadd.f32 0.0, %v548
      %550 = vmatmul.f32.gmra.mxu0 %v439
      %v551 = vpop.f32.mrf.mxu0
      %v552 = vadd.f32 0.0, %v551
      %553 = vmatmul.f32.gmra.mxu0 %v442
      %v554 = vpop.f32.mrf.mxu0
      %v555 = vadd.f32 0.0, %v554
      %556 = vmatmul.f32.gmra.mxu0 %v445
      %v557 = vpop.f32.mrf.mxu0
      %v558 = vadd.f32 0.0, %v557
      %559 = vmatmul.f32.gmra.mxu0 %v448
      %v560 = vpop.f32.mrf.mxu0
      %v561 = vadd.f32 0.0, %v560
      %562 = vmatmul.f32.gmra.mxu0 %v451
      %v563 = vpop.f32.mrf.mxu0
      %v564 = vadd.f32 0.0, %v563
      %565 = vmatmul.f32.gmra.mxu0 %v454
      %v566 = vpop.f32.mrf.mxu0
      %v567 = vadd.f32 0.0, %v566
      %568 = vmatmul.f32.gmra.mxu0 %v457
      %v569 = vpop.f32.mrf.mxu0
      %v570 = vadd.f32 0.0, %v569
      %571 = vmatmul.f32.gmra.mxu0 %v460
      %v572 = vpop.f32.mrf.mxu0
      %v573 = vadd.f32 0.0, %v572
      %574 = vmatmul.f32.gmra.mxu0 %v463
      %v575 = vpop.f32.mrf.mxu0
      %v576 = vadd.f32 0.0, %v575
      %577 = vmatmul.f32.gmra.mxu0 %v466
      %v578 = vpop.f32.mrf.mxu0
      %v579 = vadd.f32 0.0, %v578
      %580 = vmatmul.f32.gmra.mxu0 %v469
      %v581 = vpop.f32.mrf.mxu0
      %v582 = vadd.f32 0.0, %v581
      %583 = vmatmul.f32.gmra.mxu0 %v472
      %v584 = vpop.f32.mrf.mxu0
      %v585 = vadd.f32 0.0, %v584
      %586 = vmatmul.f32.gmra.mxu0 %v475
      %v587 = vpop.f32.mrf.mxu0
      %v588 = vadd.f32 0.0, %v587
      %589 = vmatmul.f32.gmra.mxu0 %v478
      %v590 = vpop.f32.mrf.mxu0
      %v591 = vadd.f32 0.0, %v590
      %592 = vmatmul.f32.gmra.mxu0 %v481
      %v593 = vpop.f32.mrf.mxu0
      %v594 = vadd.f32 0.0, %v593
      %595 = vmatmul.f32.gmra.mxu0 %v484
      %v596 = vpop.f32.mrf.mxu0
      %v597 = vadd.f32 0.0, %v596
      %598 = vmatmul.f32.gmra.mxu0 %v487
      %v599 = vpop.f32.mrf.mxu0
      %v600 = vadd.f32 0.0, %v599
      %601 = vmatmul.f32.gmra.mxu0 %v490
      %v602 = vpop.f32.mrf.mxu0
      %v603 = vadd.f32 0.0, %v602
      %604 = vmatmul.f32.gmra.mxu0 %v493
      %v605 = vpop.f32.mrf.mxu0
      %v606 = vadd.f32 0.0, %v605
      %607 = vmatmul.f32.gmra.mxu0 %v496
      %v608 = vpop.f32.mrf.mxu0
      %v609 = vadd.f32 0.0, %v608
      %610 = vmatmul.f32.gmra.mxu0 %v499
      %v611 = vpop.f32.mrf.mxu0
      %v612 = vadd.f32 0.0, %v611
      %613 = vmatmul.f32.gmra.mxu0 %v502
      %v614 = vpop.f32.mrf.mxu0
      %v615 = vadd.f32 0.0, %v614
      %616 = vmatmul.f32.gmra.mxu0 %v505
      %v617 = vpop.f32.mrf.mxu0
      %v618 = vadd.f32 0.0, %v617
      %619 = vmatmul.f32.gmra.mxu0 %v508
      %v620 = vpop.f32.mrf.mxu0
      %v621 = vadd.f32 0.0, %v620
      %622 = vmatmul.f32.gmra.mxu0 %v511
      %v623 = vpop.f32.mrf.mxu0
      %v624 = vadd.f32 0.0, %v623
      %625 = vmatmul.f32.gmra.mxu0 %v514
      %v626 = vpop.f32.mrf.mxu0
      %v627 = vadd.f32 0.0, %v626
      %628 = vmatmul.f32.gmra.mxu0 %v517
      %v629 = vpop.f32.mrf.mxu0
      %v630 = vadd.f32 0.0, %v629
      %631 = vmatmul.f32.gmra.mxu0 %v520
      %v632 = vpop.f32.mrf.mxu0
      %v633 = vadd.f32 0.0, %v632
      %634 = vdwg.mxu0
      %v636 = vsel %vm425, %v358, 0
      %v639 = vsel %vm425, %v359, 0
      %v642 = vsel %vm425, %v360, 0
      %v645 = vsel %vm425, %v361, 0
      %v648 = vsel %vm425, %v362, 0
      %v651 = vsel %vm425, %v363, 0
      %v654 = vsel %vm425, %v364, 0
      %v657 = vsel %vm425, %v365, 0
      %v660 = vsel %vm425, %v366, 0
      %v663 = vsel %vm425, %v367, 0
      %v666 = vsel %vm425, %v368, 0
      %v669 = vsel %vm425, %v369, 0
      %v672 = vsel %vm425, %v370, 0
      %v675 = vsel %vm425, %v371, 0
      %v678 = vsel %vm425, %v372, 0
      %v681 = vsel %vm425, %v373, 0
      %v684 = vsel %vm425, %v374, 0
      %v687 = vsel %vm425, %v375, 0
      %v690 = vsel %vm425, %v376, 0
      %v693 = vsel %vm425, %v377, 0
      %v696 = vsel %vm425, %v378, 0
      %v699 = vsel %vm425, %v379, 0
      %v702 = vsel %vm425, %v380, 0
      %v705 = vsel %vm425, %v381, 0
      %v708 = vsel %vm425, %v382, 0
      %v711 = vsel %vm425, %v383, 0
      %v714 = vsel %vm425, %v384, 0
      %v717 = vsel %vm425, %v385, 0
      %v720 = vsel %vm425, %v386, 0
      %v723 = vsel %vm425, %v387, 0
      %v726 = vsel %vm425, %v388, 0
      %v729 = vsel %vm425, %v389, 0
      %731 = vmatpush.msra.mxu0 0.0
      %732 = vmatpush.msra.mxu0 0.0
      %733 = vmatpush.msra.mxu0 0.0
      %734 = vmatpush.msra.mxu0 0.0
      %735 = vmatpush.msra.mxu0 0.0
      %736 = vmatpush.msra.mxu0 0.0
      %737 = vmatpush.msra.mxu0 0.0
      %738 = vmatpush.msra.mxu0 0.0
      %739 = vmatpush.msra.mxu0 0.0
      %740 = vmatpush.msra.mxu0 0.0
      %741 = vmatpush.msra.mxu0 0.0
      %742 = vmatpush.msra.mxu0 0.0
      %743 = vmatpush.msra.mxu0 0.0
      %744 = vmatpush.msra.mxu0 0.0
      %745 = vmatpush.msra.mxu0 0.0
      %746 = vmatpush.msra.mxu0 %v390
      %747 = vmatmul.f32.gmra.mxu0 %v636
      %v748 = vpop.f32.mrf.mxu0
      %v749 = vadd.f32 %v540, %v748
      %750 = vmatmul.f32.gmra.mxu0 %v639
      %v751 = vpop.f32.mrf.mxu0
      %v752 = vadd.f32 %v543, %v751
      %753 = vmatmul.f32.gmra.mxu0 %v642
      %v754 = vpop.f32.mrf.mxu0
      %v755 = vadd.f32 %v546, %v754
      %756 = vmatmul.f32.gmra.mxu0 %v645
      %v757 = vpop.f32.mrf.mxu0
      %v758 = vadd.f32 %v549, %v757
      %759 = vmatmul.f32.gmra.mxu0 %v648
      %v760 = vpop.f32.mrf.mxu0
      %v761 = vadd.f32 %v552, %v760
      %762 = vmatmul.f32.gmra.mxu0 %v651
      %v763 = vpop.f32.mrf.mxu0
      %v764 = vadd.f32 %v555, %v763
      %765 = vmatmul.f32.gmra.mxu0 %v654
      %v766 = vpop.f32.mrf.mxu0
      %v767 = vadd.f32 %v558, %v766
      %768 = vmatmul.f32.gmra.mxu0 %v657
      %v769 = vpop.f32.mrf.mxu0
      %v770 = vadd.f32 %v561, %v769
      %771 = vmatmul.f32.gmra.mxu0 %v660
      %v772 = vpop.f32.mrf.mxu0
      %v773 = vadd.f32 %v564, %v772
      %774 = vmatmul.f32.gmra.mxu0 %v663
      %v775 = vpop.f32.mrf.mxu0
      %v776 = vadd.f32 %v567, %v775
      %777 = vmatmul.f32.gmra.mxu0 %v666
      %v778 = vpop.f32.mrf.mxu0
      %v779 = vadd.f32 %v570, %v778
      %780 = vmatmul.f32.gmra.mxu0 %v669
      %v781 = vpop.f32.mrf.mxu0
      %v782 = vadd.f32 %v573, %v781
      %783 = vmatmul.f32.gmra.mxu0 %v672
      %v784 = vpop.f32.mrf.mxu0
      %v785 = vadd.f32 %v576, %v784
      %786 = vmatmul.f32.gmra.mxu0 %v675
      %v787 = vpop.f32.mrf.mxu0
      %v788 = vadd.f32 %v579, %v787
      %789 = vmatmul.f32.gmra.mxu0 %v678
      %v790 = vpop.f32.mrf.mxu0
      %v791 = vadd.f32 %v582, %v790
      %792 = vmatmul.f32.gmra.mxu0 %v681
      %v793 = vpop.f32.mrf.mxu0
      %v794 = vadd.f32 %v585, %v793
      %795 = vmatmul.f32.gmra.mxu0 %v684
      %v796 = vpop.f32.mrf.mxu0
      %v797 = vadd.f32 %v588, %v796
      %798 = vmatmul.f32.gmra.mxu0 %v687
      %v799 = vpop.f32.mrf.mxu0
      %v800 = vadd.f32 %v591, %v799
      %801 = vmatmul.f32.gmra.mxu0 %v690
      %v802 = vpop.f32.mrf.mxu0
      %v803 = vadd.f32 %v594, %v802
      %804 = vmatmul.f32.gmra.mxu0 %v693
      %v805 = vpop.f32.mrf.mxu0
      %v806 = vadd.f32 %v597, %v805
      %807 = vmatmul.f32.gmra.mxu0 %v696
      %v808 = vpop.f32.mrf.mxu0
      %v809 = vadd.f32 %v600, %v808
      %810 = vmatmul.f32.gmra.mxu0 %v699
      %v811 = vpop.f32.mrf.mxu0
      %v812 = vadd.f32 %v603, %v811
      %813 = vmatmul.f32.gmra.mxu0 %v702
      %v814 = vpop.f32.mrf.mxu0
      %v815 = vadd.f32 %v606, %v814
      %816 = vmatmul.f32.gmra.mxu0 %v705
      %v817 = vpop.f32.mrf.mxu0
      %v818 = vadd.f32 %v609, %v817
      %819 = vmatmul.f32.gmra.mxu0 %v708
      %v820 = vpop.f32.mrf.mxu0
      %v821 = vadd.f32 %v612, %v820
      %822 = vmatmul.f32.gmra.mxu0 %v711
      %v823 = vpop.f32.mrf.mxu0
      %v824 = vadd.f32 %v615, %v823
      %825 = vmatmul.f32.gmra.mxu0 %v714
      %v826 = vpop.f32.mrf.mxu0
      %v827 = vadd.f32 %v618, %v826
      %828 = vmatmul.f32.gmra.mxu0 %v717
      %v829 = vpop.f32.mrf.mxu0
      %v830 = vadd.f32 %v621, %v829
      %831 = vmatmul.f32.gmra.mxu0 %v720
      %v832 = vpop.f32.mrf.mxu0
      %v833 = vadd.f32 %v624, %v832
      %834 = vmatmul.f32.gmra.mxu0 %v723
      %v835 = vpop.f32.mrf.mxu0
      %v836 = vadd.f32 %v627, %v835
      %837 = vmatmul.f32.gmra.mxu0 %v726
      %v838 = vpop.f32.mrf.mxu0
      %v839 = vadd.f32 %v630, %v838
      %840 = vmatmul.f32.gmra.mxu0 %v729
      %v841 = vpop.f32.mrf.mxu0
      %v842 = vadd.f32 %v633, %v841
      %843 = vdwg.mxu0
      %v844 = vld [vmem:[%s325 + $0x4] sm:$0xff]
      %v845 = vld [vmem:[%s325 + $0xc] sm:$0xff]
      %v846 = vld [vmem:[%s325 + $0x1c] sm:$0xff]
      %v847 = vld [vmem:[%s325 + $0x24] sm:$0xff]
      %v848 = vld [vmem:[%s325 + $0x34] sm:$0xff]
      %v849 = vld [vmem:[%s325 + $0x3c] sm:$0xff]
      %v850 = vld [vmem:[%s325 + $0x4c] sm:$0xff]
      %v851 = vld [vmem:[%s325 + $0x54] sm:$0xff]
      %v852 = vld [vmem:[%s325 + $0x64] sm:$0xff]
      %v853 = vld [vmem:[%s325 + $0x6c] sm:$0xff]
      %v854 = vld [vmem:[%s325 + $0x7c] sm:$0xff]
      %v855 = vld [vmem:[%s325 + $0x84] sm:$0xff]
      %v856 = vld [vmem:[%s325 + $0x94] sm:$0xff]
      %v857 = vld [vmem:[%s325 + $0x9c] sm:$0xff]
      %v858 = vld [vmem:[%s325 + $0xac] sm:$0xff]
      %v859 = vld [vmem:[%s325 + $0xb4] sm:$0xff]
      %v860 = vld [vmem:[%s325 + $0xc4] sm:$0xff]
      %v861 = vld [vmem:[%s325 + $0xcc] sm:$0xff]
      %v862 = vld [vmem:[%s325 + $0xdc] sm:$0xff]
      %v863 = vld [vmem:[%s325 + $0xe4] sm:$0xff]
      %v864 = vld [vmem:[%s325 + $0xf4] sm:$0xff]
      %v865 = vld [vmem:[%s325 + $0xfc] sm:$0xff]
      %v866 = vld [vmem:[%s325 + $0x10c] sm:$0xff]
      %v867 = vld [vmem:[%s325 + $0x114] sm:$0xff]
      %v868 = vld [vmem:[%s325 + $0x124] sm:$0xff]
      %v869 = vld [vmem:[%s325 + $0x12c] sm:$0xff]
      %v870 = vld [vmem:[%s325 + $0x13c] sm:$0xff]
      %v871 = vld [vmem:[%s325 + $0x144] sm:$0xff]
      %v872 = vld [vmem:[%s325 + $0x154] sm:$0xff]
      %v873 = vld [vmem:[%s325 + $0x15c] sm:$0xff]
      %v874 = vld [vmem:[%s325 + $0x16c] sm:$0xff]
      %v875 = vld [vmem:[%s325 + $0x174] sm:$0xff]
      %s876 = scalar_lea.vmem %s2, 16
      %v877 = vld [vmem:[%s876] sm:$0xff]
      %v879 = vsel %vm425, %v844, 0
      %v882 = vsel %vm425, %v845, 0
      %v885 = vsel %vm425, %v846, 0
      %v888 = vsel %vm425, %v847, 0
      %v891 = vsel %vm425, %v848, 0
      %v894 = vsel %vm425, %v849, 0
      %v897 = vsel %vm425, %v850, 0
      %v900 = vsel %vm425, %v851, 0
      %v903 = vsel %vm425, %v852, 0
      %v906 = vsel %vm425, %v853, 0
      %v909 = vsel %vm425, %v854, 0
      %v912 = vsel %vm425, %v855, 0
      %v915 = vsel %vm425, %v856, 0
      %v918 = vsel %vm425, %v857, 0
      %v921 = vsel %vm425, %v858, 0
      %v924 = vsel %vm425, %v859, 0
      %v927 = vsel %vm425, %v860, 0
      %v930 = vsel %vm425, %v861, 0
      %v933 = vsel %vm425, %v862, 0
      %v936 = vsel %vm425, %v863, 0
      %v939 = vsel %vm425, %v864, 0
      %v942 = vsel %vm425, %v865, 0
      %v945 = vsel %vm425, %v866, 0
      %v948 = vsel %vm425, %v867, 0
      %v951 = vsel %vm425, %v868, 0
      %v954 = vsel %vm425, %v869, 0
      %v957 = vsel %vm425, %v870, 0
      %v960 = vsel %vm425, %v871, 0
      %v963 = vsel %vm425, %v872, 0
      %v966 = vsel %vm425, %v873, 0
      %v969 = vsel %vm425, %v874, 0
      %v972 = vsel %vm425, %v875, 0
      %974 = vmatpush.msra.mxu0 0.0
      %975 = vmatpush.msra.mxu0 0.0
      %976 = vmatpush.msra.mxu0 0.0
      %977 = vmatpush.msra.mxu0 0.0
      %978 = vmatpush.msra.mxu0 0.0
      %979 = vmatpush.msra.mxu0 0.0
      %980 = vmatpush.msra.mxu0 0.0
      %981 = vmatpush.msra.mxu0 0.0
      %982 = vmatpush.msra.mxu0 0.0
      %983 = vmatpush.msra.mxu0 0.0
      %984 = vmatpush.msra.mxu0 0.0
      %985 = vmatpush.msra.mxu0 0.0
      %986 = vmatpush.msra.mxu0 0.0
      %987 = vmatpush.msra.mxu0 0.0
      %988 = vmatpush.msra.mxu0 0.0
      %989 = vmatpush.msra.mxu0 %v877
      %990 = vmatmul.f32.gmra.mxu0 %v879
      %v991 = vpop.f32.mrf.mxu0
      %v992 = vadd.f32 0.0, %v991
      %993 = vmatmul.f32.gmra.mxu0 %v882
      %v994 = vpop.f32.mrf.mxu0
      %v995 = vadd.f32 0.0, %v994
      %996 = vmatmul.f32.gmra.mxu0 %v885
      %v997 = vpop.f32.mrf.mxu0
      %v998 = vadd.f32 0.0, %v997
      %999 = vmatmul.f32.gmra.mxu0 %v888
      %v1000 = vpop.f32.mrf.mxu0
      %v1001 = vadd.f32 0.0, %v1000
      %1002 = vmatmul.f32.gmra.mxu0 %v891
      %v1003 = vpop.f32.mrf.mxu0
      %v1004 = vadd.f32 0.0, %v1003
      %1005 = vmatmul.f32.gmra.mxu0 %v894
      %v1006 = vpop.f32.mrf.mxu0
      %v1007 = vadd.f32 0.0, %v1006
      %1008 = vmatmul.f32.gmra.mxu0 %v897
      %v1009 = vpop.f32.mrf.mxu0
      %v1010 = vadd.f32 0.0, %v1009
      %1011 = vmatmul.f32.gmra.mxu0 %v900
      %v1012 = vpop.f32.mrf.mxu0
      %v1013 = vadd.f32 0.0, %v1012
      %1014 = vmatmul.f32.gmra.mxu0 %v903
      %v1015 = vpop.f32.mrf.mxu0
      %v1016 = vadd.f32 0.0, %v1015
      %1017 = vmatmul.f32.gmra.mxu0 %v906
      %v1018 = vpop.f32.mrf.mxu0
      %v1019 = vadd.f32 0.0, %v1018
      %1020 = vmatmul.f32.gmra.mxu0 %v909
      %v1021 = vpop.f32.mrf.mxu0
      %v1022 = vadd.f32 0.0, %v1021
      %1023 = vmatmul.f32.gmra.mxu0 %v912
      %v1024 = vpop.f32.mrf.mxu0
      %v1025 = vadd.f32 0.0, %v1024
      %1026 = vmatmul.f32.gmra.mxu0 %v915
      %v1027 = vpop.f32.mrf.mxu0
      %v1028 = vadd.f32 0.0, %v1027
      %1029 = vmatmul.f32.gmra.mxu0 %v918
      %v1030 = vpop.f32.mrf.mxu0
      %v1031 = vadd.f32 0.0, %v1030
      %1032 = vmatmul.f32.gmra.mxu0 %v921
      %v1033 = vpop.f32.mrf.mxu0
      %v1034 = vadd.f32 0.0, %v1033
      %1035 = vmatmul.f32.gmra.mxu0 %v924
      %v1036 = vpop.f32.mrf.mxu0
      %v1037 = vadd.f32 0.0, %v1036
      %1038 = vmatmul.f32.gmra.mxu0 %v927
      %v1039 = vpop.f32.mrf.mxu0
      %v1040 = vadd.f32 0.0, %v1039
      %1041 = vmatmul.f32.gmra.mxu0 %v930
      %v1042 = vpop.f32.mrf.mxu0
      %v1043 = vadd.f32 0.0, %v1042
      %1044 = vmatmul.f32.gmra.mxu0 %v933
      %v1045 = vpop.f32.mrf.mxu0
      %v1046 = vadd.f32 0.0, %v1045
      %1047 = vmatmul.f32.gmra.mxu0 %v936
      %v1048 = vpop.f32.mrf.mxu0
      %v1049 = vadd.f32 0.0, %v1048
      %1050 = vmatmul.f32.gmra.mxu0 %v939
      %v1051 = vpop.f32.mrf.mxu0
      %v1052 = vadd.f32 0.0, %v1051
      %1053 = vmatmul.f32.gmra.mxu0 %v942
      %v1054 = vpop.f32.mrf.mxu0
      %v1055 = vadd.f32 0.0, %v1054
      %1056 = vmatmul.f32.gmra.mxu0 %v945
      %v1057 = vpop.f32.mrf.mxu0
      %v1058 = vadd.f32 0.0, %v1057
      %1059 = vmatmul.f32.gmra.mxu0 %v948
      %v1060 = vpop.f32.mrf.mxu0
      %v1061 = vadd.f32 0.0, %v1060
      %1062 = vmatmul.f32.gmra.mxu0 %v951
      %v1063 = vpop.f32.mrf.mxu0
      %v1064 = vadd.f32 0.0, %v1063
      %1065 = vmatmul.f32.gmra.mxu0 %v954
      %v1066 = vpop.f32.mrf.mxu0
      %v1067 = vadd.f32 0.0, %v1066
      %1068 = vmatmul.f32.gmra.mxu0 %v957
      %v1069 = vpop.f32.mrf.mxu0
      %v1070 = vadd.f32 0.0, %v1069
      %1071 = vmatmul.f32.gmra.mxu0 %v960
      %v1072 = vpop.f32.mrf.mxu0
      %v1073 = vadd.f32 0.0, %v1072
      %1074 = vmatmul.f32.gmra.mxu0 %v963
      %v1075 = vpop.f32.mrf.mxu0
      %v1076 = vadd.f32 0.0, %v1075
      %1077 = vmatmul.f32.gmra.mxu0 %v966
      %v1078 = vpop.f32.mrf.mxu0
      %v1079 = vadd.f32 0.0, %v1078
      %1080 = vmatmul.f32.gmra.mxu0 %v969
      %v1081 = vpop.f32.mrf.mxu0
      %v1082 = vadd.f32 0.0, %v1081
      %1083 = vmatmul.f32.gmra.mxu0 %v972
      %v1084 = vpop.f32.mrf.mxu0
      %v1085 = vadd.f32 0.0, %v1084
      %1086 = vdwg.mxu0
      %v1087 = vadd.f32 %v749, %v992
      %v1088 = vadd.f32 %v752, %v995
      %v1089 = vadd.f32 %v755, %v998
      %v1090 = vadd.f32 %v758, %v1001
      %v1091 = vadd.f32 %v761, %v1004
      %v1092 = vadd.f32 %v764, %v1007
      %v1093 = vadd.f32 %v767, %v1010
      %v1094 = vadd.f32 %v770, %v1013
      %v1095 = vadd.f32 %v773, %v1016
      %v1096 = vadd.f32 %v776, %v1019
      %v1097 = vadd.f32 %v779, %v1022
      %v1098 = vadd.f32 %v782, %v1025
      %v1099 = vadd.f32 %v785, %v1028
      %v1100 = vadd.f32 %v788, %v1031
      %v1101 = vadd.f32 %v791, %v1034
      %v1102 = vadd.f32 %v794, %v1037
      %v1103 = vadd.f32 %v797, %v1040
      %v1104 = vadd.f32 %v800, %v1043
      %v1105 = vadd.f32 %v803, %v1046
      %v1106 = vadd.f32 %v806, %v1049
      %v1107 = vadd.f32 %v809, %v1052
      %v1108 = vadd.f32 %v812, %v1055
      %v1109 = vadd.f32 %v815, %v1058
      %v1110 = vadd.f32 %v818, %v1061
      %v1111 = vadd.f32 %v821, %v1064
      %v1112 = vadd.f32 %v824, %v1067
      %v1113 = vadd.f32 %v827, %v1070
      %v1114 = vadd.f32 %v830, %v1073
      %v1115 = vadd.f32 %v833, %v1076
      %v1116 = vadd.f32 %v836, %v1079
      %v1117 = vadd.f32 %v839, %v1082
      %v1118 = vadd.f32 %v842, %v1085
      %s1119 = scalar_lea.vmem %s325, 48
      %v1120 = vld [vmem:[%s1119] sm:$0xff]
      %v1121 = vld [vmem:[%s1119 + $0x8] sm:$0xff]
      %v1122 = vld [vmem:[%s1119 + $0x18] sm:$0xff]
      %v1123 = vld [vmem:[%s1119 + $0x20] sm:$0xff]
      %v1124 = vld [vmem:[%s1119 + $0x30] sm:$0xff]
      %v1125 = vld [vmem:[%s1119 + $0x38] sm:$0xff]
      %v1126 = vld [vmem:[%s1119 + $0x48] sm:$0xff]
      %v1127 = vld [vmem:[%s1119 + $0x50] sm:$0xff]
      %v1128 = vld [vmem:[%s1119 + $0x60] sm:$0xff]
      %v1129 = vld [vmem:[%s1119 + $0x68] sm:$0xff]
      %v1130 = vld [vmem:[%s1119 + $0x78] sm:$0xff]
      %v1131 = vld [vmem:[%s1119 + $0x80] sm:$0xff]
      %v1132 = vld [vmem:[%s1119 + $0x90] sm:$0xff]
      %v1133 = vld [vmem:[%s1119 + $0x98] sm:$0xff]
      %v1134 = vld [vmem:[%s1119 + $0xa8] sm:$0xff]
      %v1135 = vld [vmem:[%s1119 + $0xb0] sm:$0xff]
      %v1136 = vld [vmem:[%s1119 + $0xc0] sm:$0xff]
      %v1137 = vld [vmem:[%s1119 + $0xc8] sm:$0xff]
      %v1138 = vld [vmem:[%s1119 + $0xd8] sm:$0xff]
      %v1139 = vld [vmem:[%s1119 + $0xe0] sm:$0xff]
      %v1140 = vld [vmem:[%s1119 + $0xf0] sm:$0xff]
      %v1141 = vld [vmem:[%s1119 + $0xf8] sm:$0xff]
      %v1142 = vld [vmem:[%s1119 + $0x108] sm:$0xff]
      %v1143 = vld [vmem:[%s1119 + $0x110] sm:$0xff]
      %v1144 = vld [vmem:[%s1119 + $0x120] sm:$0xff]
      %v1145 = vld [vmem:[%s1119 + $0x128] sm:$0xff]
      %v1146 = vld [vmem:[%s1119 + $0x138] sm:$0xff]
      %v1147 = vld [vmem:[%s1119 + $0x140] sm:$0xff]
      %v1148 = vld [vmem:[%s1119 + $0x150] sm:$0xff]
      %v1149 = vld [vmem:[%s1119 + $0x158] sm:$0xff]
      %v1150 = vld [vmem:[%s1119 + $0x168] sm:$0xff]
      %v1151 = vld [vmem:[%s1119 + $0x170] sm:$0xff]
      %s1152 = scalar_lea.vmem %s2, 24
      %v1153 = vld [vmem:[%s1152] sm:$0xff]
      %v1155 = vsel %vm425, %v1120, 0
      %v1158 = vsel %vm425, %v1121, 0
      %v1161 = vsel %vm425, %v1122, 0
      %v1164 = vsel %vm425, %v1123, 0
      %v1167 = vsel %vm425, %v1124, 0
      %v1170 = vsel %vm425, %v1125, 0
      %v1173 = vsel %vm425, %v1126, 0
      %v1176 = vsel %vm425, %v1127, 0
      %v1179 = vsel %vm425, %v1128, 0
      %v1182 = vsel %vm425, %v1129, 0
      %v1185 = vsel %vm425, %v1130, 0
      %v1188 = vsel %vm425, %v1131, 0
      %v1191 = vsel %vm425, %v1132, 0
      %v1194 = vsel %vm425, %v1133, 0
      %v1197 = vsel %vm425, %v1134, 0
      %v1200 = vsel %vm425, %v1135, 0
      %v1203 = vsel %vm425, %v1136, 0
      %v1206 = vsel %vm425, %v1137, 0
      %v1209 = vsel %vm425, %v1138, 0
      %v1212 = vsel %vm425, %v1139, 0
      %v1215 = vsel %vm425, %v1140, 0
      %v1218 = vsel %vm425, %v1141, 0
      %v1221 = vsel %vm425, %v1142, 0
      %v1224 = vsel %vm425, %v1143, 0
      %v1227 = vsel %vm425, %v1144, 0
      %v1230 = vsel %vm425, %v1145, 0
      %v1233 = vsel %vm425, %v1146, 0
      %v1236 = vsel %vm425, %v1147, 0
      %v1239 = vsel %vm425, %v1148, 0
      %v1242 = vsel %vm425, %v1149, 0
      %v1245 = vsel %vm425, %v1150, 0
      %v1248 = vsel %vm425, %v1151, 0
      %1250 = vmatpush.msra.mxu0 0.0
      %1251 = vmatpush.msra.mxu0 0.0
      %1252 = vmatpush.msra.mxu0 0.0
      %1253 = vmatpush.msra.mxu0 0.0
      %1254 = vmatpush.msra.mxu0 0.0
      %1255 = vmatpush.msra.mxu0 0.0
      %1256 = vmatpush.msra.mxu0 0.0
      %1257 = vmatpush.msra.mxu0 0.0
      %1258 = vmatpush.msra.mxu0 0.0
      %1259 = vmatpush.msra.mxu0 0.0
      %1260 = vmatpush.msra.mxu0 0.0
      %1261 = vmatpush.msra.mxu0 0.0
      %1262 = vmatpush.msra.mxu0 0.0
      %1263 = vmatpush.msra.mxu0 0.0
      %1264 = vmatpush.msra.mxu0 0.0
      %1265 = vmatpush.msra.mxu0 %v1153
      %1266 = vmatmul.f32.gmra.mxu0 %v1155
      %v1267 = vpop.f32.mrf.mxu0
      %v1268 = vadd.f32 0.0, %v1267
      %1269 = vmatmul.f32.gmra.mxu0 %v1158
      %v1270 = vpop.f32.mrf.mxu0
      %v1271 = vadd.f32 0.0, %v1270
      %1272 = vmatmul.f32.gmra.mxu0 %v1161
      %v1273 = vpop.f32.mrf.mxu0
      %v1274 = vadd.f32 0.0, %v1273
      %1275 = vmatmul.f32.gmra.mxu0 %v1164
      %v1276 = vpop.f32.mrf.mxu0
      %v1277 = vadd.f32 0.0, %v1276
      %1278 = vmatmul.f32.gmra.mxu0 %v1167
      %v1279 = vpop.f32.mrf.mxu0
      %v1280 = vadd.f32 0.0, %v1279
      %1281 = vmatmul.f32.gmra.mxu0 %v1170
      %v1282 = vpop.f32.mrf.mxu0
      %v1283 = vadd.f32 0.0, %v1282
      %1284 = vmatmul.f32.gmra.mxu0 %v1173
      %v1285 = vpop.f32.mrf.mxu0
      %v1286 = vadd.f32 0.0, %v1285
      %1287 = vmatmul.f32.gmra.mxu0 %v1176
      %v1288 = vpop.f32.mrf.mxu0
      %v1289 = vadd.f32 0.0, %v1288
      %1290 = vmatmul.f32.gmra.mxu0 %v1179
      %v1291 = vpop.f32.mrf.mxu0
      %v1292 = vadd.f32 0.0, %v1291
      %1293 = vmatmul.f32.gmra.mxu0 %v1182
      %v1294 = vpop.f32.mrf.mxu0
      %v1295 = vadd.f32 0.0, %v1294
      %1296 = vmatmul.f32.gmra.mxu0 %v1185
      %v1297 = vpop.f32.mrf.mxu0
      %v1298 = vadd.f32 0.0, %v1297
      %1299 = vmatmul.f32.gmra.mxu0 %v1188
      %v1300 = vpop.f32.mrf.mxu0
      %v1301 = vadd.f32 0.0, %v1300
      %1302 = vmatmul.f32.gmra.mxu0 %v1191
      %v1303 = vpop.f32.mrf.mxu0
      %v1304 = vadd.f32 0.0, %v1303
      %1305 = vmatmul.f32.gmra.mxu0 %v1194
      %v1306 = vpop.f32.mrf.mxu0
      %v1307 = vadd.f32 0.0, %v1306
      %1308 = vmatmul.f32.gmra.mxu0 %v1197
      %v1309 = vpop.f32.mrf.mxu0
      %v1310 = vadd.f32 0.0, %v1309
      %1311 = vmatmul.f32.gmra.mxu0 %v1200
      %v1312 = vpop.f32.mrf.mxu0
      %v1313 = vadd.f32 0.0, %v1312
      %1314 = vmatmul.f32.gmra.mxu0 %v1203
      %v1315 = vpop.f32.mrf.mxu0
      %v1316 = vadd.f32 0.0, %v1315
      %1317 = vmatmul.f32.gmra.mxu0 %v1206
      %v1318 = vpop.f32.mrf.mxu0
      %v1319 = vadd.f32 0.0, %v1318
      %1320 = vmatmul.f32.gmra.mxu0 %v1209
      %v1321 = vpop.f32.mrf.mxu0
      %v1322 = vadd.f32 0.0, %v1321
      %1323 = vmatmul.f32.gmra.mxu0 %v1212
      %v1324 = vpop.f32.mrf.mxu0
      %v1325 = vadd.f32 0.0, %v1324
      %1326 = vmatmul.f32.gmra.mxu0 %v1215
      %v1327 = vpop.f32.mrf.mxu0
      %v1328 = vadd.f32 0.0, %v1327
      %1329 = vmatmul.f32.gmra.mxu0 %v1218
      %v1330 = vpop.f32.mrf.mxu0
      %v1331 = vadd.f32 0.0, %v1330
      %1332 = vmatmul.f32.gmra.mxu0 %v1221
      %v1333 = vpop.f32.mrf.mxu0
      %v1334 = vadd.f32 0.0, %v1333
      %1335 = vmatmul.f32.gmra.mxu0 %v1224
      %v1336 = vpop.f32.mrf.mxu0
      %v1337 = vadd.f32 0.0, %v1336
      %1338 = vmatmul.f32.gmra.mxu0 %v1227
      %v1339 = vpop.f32.mrf.mxu0
      %v1340 = vadd.f32 0.0, %v1339
      %1341 = vmatmul.f32.gmra.mxu0 %v1230
      %v1342 = vpop.f32.mrf.mxu0
      %v1343 = vadd.f32 0.0, %v1342
      %1344 = vmatmul.f32.gmra.mxu0 %v1233
      %v1345 = vpop.f32.mrf.mxu0
      %v1346 = vadd.f32 0.0, %v1345
      %1347 = vmatmul.f32.gmra.mxu0 %v1236
      %v1348 = vpop.f32.mrf.mxu0
      %v1349 = vadd.f32 0.0, %v1348
      %1350 = vmatmul.f32.gmra.mxu0 %v1239
      %v1351 = vpop.f32.mrf.mxu0
      %v1352 = vadd.f32 0.0, %v1351
      %1353 = vmatmul.f32.gmra.mxu0 %v1242
      %v1354 = vpop.f32.mrf.mxu0
      %v1355 = vadd.f32 0.0, %v1354
      %1356 = vmatmul.f32.gmra.mxu0 %v1245
      %v1357 = vpop.f32.mrf.mxu0
      %v1358 = vadd.f32 0.0, %v1357
      %1359 = vmatmul.f32.gmra.mxu0 %v1248
      %v1360 = vpop.f32.mrf.mxu0
      %v1361 = vadd.f32 0.0, %v1360
      %1362 = vdwg.mxu0
      %v1363 = vadd.f32 %v1087, %v1268
      %v1364 = vadd.f32 %v1088, %v1271
      %v1365 = vadd.f32 %v1089, %v1274
      %v1366 = vadd.f32 %v1090, %v1277
      %v1367 = vadd.f32 %v1091, %v1280
      %v1368 = vadd.f32 %v1092, %v1283
      %v1369 = vadd.f32 %v1093, %v1286
      %v1370 = vadd.f32 %v1094, %v1289
      %v1371 = vadd.f32 %v1095, %v1292
      %v1372 = vadd.f32 %v1096, %v1295
      %v1373 = vadd.f32 %v1097, %v1298
      %v1374 = vadd.f32 %v1098, %v1301
      %v1375 = vadd.f32 %v1099, %v1304
      %v1376 = vadd.f32 %v1100, %v1307
      %v1377 = vadd.f32 %v1101, %v1310
      %v1378 = vadd.f32 %v1102, %v1313
      %v1379 = vadd.f32 %v1103, %v1316
      %v1380 = vadd.f32 %v1104, %v1319
      %v1381 = vadd.f32 %v1105, %v1322
      %v1382 = vadd.f32 %v1106, %v1325
      %v1383 = vadd.f32 %v1107, %v1328
      %v1384 = vadd.f32 %v1108, %v1331
      %v1385 = vadd.f32 %v1109, %v1334
      %v1386 = vadd.f32 %v1110, %v1337
      %v1387 = vadd.f32 %v1111, %v1340
      %v1388 = vadd.f32 %v1112, %v1343
      %v1389 = vadd.f32 %v1113, %v1346
      %v1390 = vadd.f32 %v1114, %v1349
      %v1391 = vadd.f32 %v1115, %v1352
      %v1392 = vadd.f32 %v1116, %v1355
      %v1393 = vadd.f32 %v1117, %v1358
      %v1394 = vadd.f32 %v1118, %v1361
      %v1395 = vld [vmem:[%s1119 + $0x2] sm:$0xff]
      %v1396 = vld [vmem:[%s1119 + $0xa] sm:$0xff]
      %v1397 = vld [vmem:[%s1119 + $0x1a] sm:$0xff]
      %v1398 = vld [vmem:[%s1119 + $0x22] sm:$0xff]
      %v1399 = vld [vmem:[%s1119 + $0x32] sm:$0xff]
      %v1400 = vld [vmem:[%s1119 + $0x3a] sm:$0xff]
      %v1401 = vld [vmem:[%s1119 + $0x4a] sm:$0xff]
      %v1402 = vld [vmem:[%s1119 + $0x52] sm:$0xff]
      %v1403 = vld [vmem:[%s1119 + $0x62] sm:$0xff]
      %v1404 = vld [vmem:[%s1119 + $0x6a] sm:$0xff]
      %v1405 = vld [vmem:[%s1119 + $0x7a] sm:$0xff]
      %v1406 = vld [vmem:[%s1119 + $0x82] sm:$0xff]
      %v1407 = vld [vmem:[%s1119 + $0x92] sm:$0xff]
      %v1408 = vld [vmem:[%s1119 + $0x9a] sm:$0xff]
      %v1409 = vld [vmem:[%s1119 + $0xaa] sm:$0xff]
      %v1410 = vld [vmem:[%s1119 + $0xb2] sm:$0xff]
      %v1411 = vld [vmem:[%s1119 + $0xc2] sm:$0xff]
      %v1412 = vld [vmem:[%s1119 + $0xca] sm:$0xff]
      %v1413 = vld [vmem:[%s1119 + $0xda] sm:$0xff]
      %v1414 = vld [vmem:[%s1119 + $0xe2] sm:$0xff]
      %v1415 = vld [vmem:[%s1119 + $0xf2] sm:$0xff]
      %v1416 = vld [vmem:[%s1119 + $0xfa] sm:$0xff]
      %v1417 = vld [vmem:[%s1119 + $0x10a] sm:$0xff]
      %v1418 = vld [vmem:[%s1119 + $0x112] sm:$0xff]
      %v1419 = vld [vmem:[%s1119 + $0x122] sm:$0xff]
      %v1420 = vld [vmem:[%s1119 + $0x12a] sm:$0xff]
      %v1421 = vld [vmem:[%s1119 + $0x13a] sm:$0xff]
      %v1422 = vld [vmem:[%s1119 + $0x142] sm:$0xff]
      %v1423 = vld [vmem:[%s1119 + $0x152] sm:$0xff]
      %v1424 = vld [vmem:[%s1119 + $0x15a] sm:$0xff]
      %v1425 = vld [vmem:[%s1119 + $0x16a] sm:$0xff]
      %v1426 = vld [vmem:[%s1119 + $0x172] sm:$0xff]
      %s1427 = scalar_lea.vmem %s2, 32
      %v1428 = vld [vmem:[%s1427] sm:$0xff]
      %v1430 = vsel %vm425, %v1395, 0
      %v1433 = vsel %vm425, %v1396, 0
      %v1436 = vsel %vm425, %v1397, 0
      %v1439 = vsel %vm425, %v1398, 0
      %v1442 = vsel %vm425, %v1399, 0
      %v1445 = vsel %vm425, %v1400, 0
      %v1448 = vsel %vm425, %v1401, 0
      %v1451 = vsel %vm425, %v1402, 0
      %v1454 = vsel %vm425, %v1403, 0
      %v1457 = vsel %vm425, %v1404, 0
      %v1460 = vsel %vm425, %v1405, 0
      %v1463 = vsel %vm425, %v1406, 0
      %v1466 = vsel %vm425, %v1407, 0
      %v1469 = vsel %vm425, %v1408, 0
      %v1472 = vsel %vm425, %v1409, 0
      %v1475 = vsel %vm425, %v1410, 0
      %v1478 = vsel %vm425, %v1411, 0
      %v1481 = vsel %vm425, %v1412, 0
      %v1484 = vsel %vm425, %v1413, 0
      %v1487 = vsel %vm425, %v1414, 0
      %v1490 = vsel %vm425, %v1415, 0
      %v1493 = vsel %vm425, %v1416, 0
      %v1496 = vsel %vm425, %v1417, 0
      %v1499 = vsel %vm425, %v1418, 0
      %v1502 = vsel %vm425, %v1419, 0
      %v1505 = vsel %vm425, %v1420, 0
      %v1508 = vsel %vm425, %v1421, 0
      %v1511 = vsel %vm425, %v1422, 0
      %v1514 = vsel %vm425, %v1423, 0
      %v1517 = vsel %vm425, %v1424, 0
      %v1520 = vsel %vm425, %v1425, 0
      %v1523 = vsel %vm425, %v1426, 0
      %1525 = vmatpush.msra.mxu0 0.0
      %1526 = vmatpush.msra.mxu0 0.0
      %1527 = vmatpush.msra.mxu0 0.0
      %1528 = vmatpush.msra.mxu0 0.0
      %1529 = vmatpush.msra.mxu0 0.0
      %1530 = vmatpush.msra.mxu0 0.0
      %1531 = vmatpush.msra.mxu0 0.0
      %1532 = vmatpush.msra.mxu0 0.0
      %1533 = vmatpush.msra.mxu0 0.0
      %1534 = vmatpush.msra.mxu0 0.0
      %1535 = vmatpush.msra.mxu0 0.0
      %1536 = vmatpush.msra.mxu0 0.0
      %1537 = vmatpush.msra.mxu0 0.0
      %1538 = vmatpush.msra.mxu0 0.0
      %1539 = vmatpush.msra.mxu0 0.0
      %1540 = vmatpush.msra.mxu0 %v1428
      %1541 = vmatmul.f32.gmra.mxu0 %v1430
      %v1542 = vpop.f32.mrf.mxu0
      %v1543 = vadd.f32 0.0, %v1542
      %1544 = vmatmul.f32.gmra.mxu0 %v1433
      %v1545 = vpop.f32.mrf.mxu0
      %v1546 = vadd.f32 0.0, %v1545
      %1547 = vmatmul.f32.gmra.mxu0 %v1436
      %v1548 = vpop.f32.mrf.mxu0
      %v1549 = vadd.f32 0.0, %v1548
      %1550 = vmatmul.f32.gmra.mxu0 %v1439
      %v1551 = vpop.f32.mrf.mxu0
      %v1552 = vadd.f32 0.0, %v1551
      %1553 = vmatmul.f32.gmra.mxu0 %v1442
      %v1554 = vpop.f32.mrf.mxu0
      %v1555 = vadd.f32 0.0, %v1554
      %1556 = vmatmul.f32.gmra.mxu0 %v1445
      %v1557 = vpop.f32.mrf.mxu0
      %v1558 = vadd.f32 0.0, %v1557
      %1559 = vmatmul.f32.gmra.mxu0 %v1448
      %v1560 = vpop.f32.mrf.mxu0
      %v1561 = vadd.f32 0.0, %v1560
      %1562 = vmatmul.f32.gmra.mxu0 %v1451
      %v1563 = vpop.f32.mrf.mxu0
      %v1564 = vadd.f32 0.0, %v1563
      %1565 = vmatmul.f32.gmra.mxu0 %v1454
      %v1566 = vpop.f32.mrf.mxu0
      %v1567 = vadd.f32 0.0, %v1566
      %1568 = vmatmul.f32.gmra.mxu0 %v1457
      %v1569 = vpop.f32.mrf.mxu0
      %v1570 = vadd.f32 0.0, %v1569
      %1571 = vmatmul.f32.gmra.mxu0 %v1460
      %v1572 = vpop.f32.mrf.mxu0
      %v1573 = vadd.f32 0.0, %v1572
      %1574 = vmatmul.f32.gmra.mxu0 %v1463
      %v1575 = vpop.f32.mrf.mxu0
      %v1576 = vadd.f32 0.0, %v1575
      %1577 = vmatmul.f32.gmra.mxu0 %v1466
      %v1578 = vpop.f32.mrf.mxu0
      %v1579 = vadd.f32 0.0, %v1578
      %1580 = vmatmul.f32.gmra.mxu0 %v1469
      %v1581 = vpop.f32.mrf.mxu0
      %v1582 = vadd.f32 0.0, %v1581
      %1583 = vmatmul.f32.gmra.mxu0 %v1472
      %v1584 = vpop.f32.mrf.mxu0
      %v1585 = vadd.f32 0.0, %v1584
      %1586 = vmatmul.f32.gmra.mxu0 %v1475
      %v1587 = vpop.f32.mrf.mxu0
      %v1588 = vadd.f32 0.0, %v1587
      %1589 = vmatmul.f32.gmra.mxu0 %v1478
      %v1590 = vpop.f32.mrf.mxu0
      %v1591 = vadd.f32 0.0, %v1590
      %1592 = vmatmul.f32.gmra.mxu0 %v1481
      %v1593 = vpop.f32.mrf.mxu0
      %v1594 = vadd.f32 0.0, %v1593
      %1595 = vmatmul.f32.gmra.mxu0 %v1484
      %v1596 = vpop.f32.mrf.mxu0
      %v1597 = vadd.f32 0.0, %v1596
      %1598 = vmatmul.f32.gmra.mxu0 %v1487
      %v1599 = vpop.f32.mrf.mxu0
      %v1600 = vadd.f32 0.0, %v1599
      %1601 = vmatmul.f32.gmra.mxu0 %v1490
      %v1602 = vpop.f32.mrf.mxu0
      %v1603 = vadd.f32 0.0, %v1602
      %1604 = vmatmul.f32.gmra.mxu0 %v1493
      %v1605 = vpop.f32.mrf.mxu0
      %v1606 = vadd.f32 0.0, %v1605
      %1607 = vmatmul.f32.gmra.mxu0 %v1496
      %v1608 = vpop.f32.mrf.mxu0
      %v1609 = vadd.f32 0.0, %v1608
      %1610 = vmatmul.f32.gmra.mxu0 %v1499
      %v1611 = vpop.f32.mrf.mxu0
      %v1612 = vadd.f32 0.0, %v1611
      %1613 = vmatmul.f32.gmra.mxu0 %v1502
      %v1614 = vpop.f32.mrf.mxu0
      %v1615 = vadd.f32 0.0, %v1614
      %1616 = vmatmul.f32.gmra.mxu0 %v1505
      %v1617 = vpop.f32.mrf.mxu0
      %v1618 = vadd.f32 0.0, %v1617
      %1619 = vmatmul.f32.gmra.mxu0 %v1508
      %v1620 = vpop.f32.mrf.mxu0
      %v1621 = vadd.f32 0.0, %v1620
      %1622 = vmatmul.f32.gmra.mxu0 %v1511
      %v1623 = vpop.f32.mrf.mxu0
      %v1624 = vadd.f32 0.0, %v1623
      %1625 = vmatmul.f32.gmra.mxu0 %v1514
      %v1626 = vpop.f32.mrf.mxu0
      %v1627 = vadd.f32 0.0, %v1626
      %1628 = vmatmul.f32.gmra.mxu0 %v1517
      %v1629 = vpop.f32.mrf.mxu0
      %v1630 = vadd.f32 0.0, %v1629
      %1631 = vmatmul.f32.gmra.mxu0 %v1520
      %v1632 = vpop.f32.mrf.mxu0
      %v1633 = vadd.f32 0.0, %v1632
      %1634 = vmatmul.f32.gmra.mxu0 %v1523
      %v1635 = vpop.f32.mrf.mxu0
      %v1636 = vadd.f32 0.0, %v1635
      %1637 = vdwg.mxu0
      %v1638 = vadd.f32 %v1363, %v1543
      %v1639 = vadd.f32 %v1364, %v1546
      %v1640 = vadd.f32 %v1365, %v1549
      %v1641 = vadd.f32 %v1366, %v1552
      %v1642 = vadd.f32 %v1367, %v1555
      %v1643 = vadd.f32 %v1368, %v1558
      %v1644 = vadd.f32 %v1369, %v1561
      %v1645 = vadd.f32 %v1370, %v1564
      %v1646 = vadd.f32 %v1371, %v1567
      %v1647 = vadd.f32 %v1372, %v1570
      %v1648 = vadd.f32 %v1373, %v1573
      %v1649 = vadd.f32 %v1374, %v1576
      %v1650 = vadd.f32 %v1375, %v1579
      %v1651 = vadd.f32 %v1376, %v1582
      %v1652 = vadd.f32 %v1377, %v1585
      %v1653 = vadd.f32 %v1378, %v1588
      %v1654 = vadd.f32 %v1379, %v1591
      %v1655 = vadd.f32 %v1380, %v1594
      %v1656 = vadd.f32 %v1381, %v1597
      %v1657 = vadd.f32 %v1382, %v1600
      %v1658 = vadd.f32 %v1383, %v1603
      %v1659 = vadd.f32 %v1384, %v1606
      %v1660 = vadd.f32 %v1385, %v1609
      %v1661 = vadd.f32 %v1386, %v1612
      %v1662 = vadd.f32 %v1387, %v1615
      %v1663 = vadd.f32 %v1388, %v1618
      %v1664 = vadd.f32 %v1389, %v1621
      %v1665 = vadd.f32 %v1390, %v1624
      %v1666 = vadd.f32 %v1391, %v1627
      %v1667 = vadd.f32 %v1392, %v1630
      %v1668 = vadd.f32 %v1393, %v1633
      %v1669 = vadd.f32 %v1394, %v1636
      %v1670 = vld [vmem:[%s1119 + $0x4] sm:$0xff]
      %v1671 = vld [vmem:[%s1119 + $0xc] sm:$0xff]
      %v1672 = vld [vmem:[%s1119 + $0x1c] sm:$0xff]
      %v1673 = vld [vmem:[%s1119 + $0x24] sm:$0xff]
      %v1674 = vld [vmem:[%s1119 + $0x34] sm:$0xff]
      %v1675 = vld [vmem:[%s1119 + $0x3c] sm:$0xff]
      %v1676 = vld [vmem:[%s1119 + $0x4c] sm:$0xff]
      %v1677 = vld [vmem:[%s1119 + $0x54] sm:$0xff]
      %v1678 = vld [vmem:[%s1119 + $0x64] sm:$0xff]
      %v1679 = vld [vmem:[%s1119 + $0x6c] sm:$0xff]
      %v1680 = vld [vmem:[%s1119 + $0x7c] sm:$0xff]
      %v1681 = vld [vmem:[%s1119 + $0x84] sm:$0xff]
      %v1682 = vld [vmem:[%s1119 + $0x94] sm:$0xff]
      %v1683 = vld [vmem:[%s1119 + $0x9c] sm:$0xff]
      %v1684 = vld [vmem:[%s1119 + $0xac] sm:$0xff]
      %v1685 = vld [vmem:[%s1119 + $0xb4] sm:$0xff]
      %v1686 = vld [vmem:[%s1119 + $0xc4] sm:$0xff]
      %v1687 = vld [vmem:[%s1119 + $0xcc] sm:$0xff]
      %v1688 = vld [vmem:[%s1119 + $0xdc] sm:$0xff]
      %v1689 = vld [vmem:[%s1119 + $0xe4] sm:$0xff]
      %v1690 = vld [vmem:[%s1119 + $0xf4] sm:$0xff]
      %v1691 = vld [vmem:[%s1119 + $0xfc] sm:$0xff]
      %v1692 = vld [vmem:[%s1119 + $0x10c] sm:$0xff]
      %v1693 = vld [vmem:[%s1119 + $0x114] sm:$0xff]
      %v1694 = vld [vmem:[%s1119 + $0x124] sm:$0xff]
      %v1695 = vld [vmem:[%s1119 + $0x12c] sm:$0xff]
      %v1696 = vld [vmem:[%s1119 + $0x13c] sm:$0xff]
      %v1697 = vld [vmem:[%s1119 + $0x144] sm:$0xff]
      %v1698 = vld [vmem:[%s1119 + $0x154] sm:$0xff]
      %v1699 = vld [vmem:[%s1119 + $0x15c] sm:$0xff]
      %v1700 = vld [vmem:[%s1119 + $0x16c] sm:$0xff]
      %v1701 = vld [vmem:[%s1119 + $0x174] sm:$0xff]
      %s1702 = scalar_lea.vmem %s2, 40
      %v1703 = vld [vmem:[%s1702] sm:$0xff]
      %v1705 = vsel %vm425, %v1670, 0
      %v1708 = vsel %vm425, %v1671, 0
      %v1711 = vsel %vm425, %v1672, 0
      %v1714 = vsel %vm425, %v1673, 0
      %v1717 = vsel %vm425, %v1674, 0
      %v1720 = vsel %vm425, %v1675, 0
      %v1723 = vsel %vm425, %v1676, 0
      %v1726 = vsel %vm425, %v1677, 0
      %v1729 = vsel %vm425, %v1678, 0
      %v1732 = vsel %vm425, %v1679, 0
      %v1735 = vsel %vm425, %v1680, 0
      %v1738 = vsel %vm425, %v1681, 0
      %v1741 = vsel %vm425, %v1682, 0
      %v1744 = vsel %vm425, %v1683, 0
      %v1747 = vsel %vm425, %v1684, 0
      %v1750 = vsel %vm425, %v1685, 0
      %v1753 = vsel %vm425, %v1686, 0
      %v1756 = vsel %vm425, %v1687, 0
      %v1759 = vsel %vm425, %v1688, 0
      %v1762 = vsel %vm425, %v1689, 0
      %v1765 = vsel %vm425, %v1690, 0
      %v1768 = vsel %vm425, %v1691, 0
      %v1771 = vsel %vm425, %v1692, 0
      %v1774 = vsel %vm425, %v1693, 0
      %v1777 = vsel %vm425, %v1694, 0
      %v1780 = vsel %vm425, %v1695, 0
      %v1783 = vsel %vm425, %v1696, 0
      %v1786 = vsel %vm425, %v1697, 0
      %v1789 = vsel %vm425, %v1698, 0
      %v1792 = vsel %vm425, %v1699, 0
      %v1795 = vsel %vm425, %v1700, 0
      %v1798 = vsel %vm425, %v1701, 0
      %1800 = vmatpush.msra.mxu0 0.0
      %1801 = vmatpush.msra.mxu0 0.0
      %1802 = vmatpush.msra.mxu0 0.0
      %1803 = vmatpush.msra.mxu0 0.0
      %1804 = vmatpush.msra.mxu0 0.0
      %1805 = vmatpush.msra.mxu0 0.0
      %1806 = vmatpush.msra.mxu0 0.0
      %1807 = vmatpush.msra.mxu0 0.0
      %1808 = vmatpush.msra.mxu0 0.0
      %1809 = vmatpush.msra.mxu0 0.0
      %1810 = vmatpush.msra.mxu0 0.0
      %1811 = vmatpush.msra.mxu0 0.0
      %1812 = vmatpush.msra.mxu0 0.0
      %1813 = vmatpush.msra.mxu0 0.0
      %1814 = vmatpush.msra.mxu0 0.0
      %1815 = vmatpush.msra.mxu0 %v1703
      %1816 = vmatmul.f32.gmra.mxu0 %v1705
      %v1817 = vpop.f32.mrf.mxu0
      %v1818 = vadd.f32 0.0, %v1817
      %1819 = vmatmul.f32.gmra.mxu0 %v1708
      %v1820 = vpop.f32.mrf.mxu0
      %v1821 = vadd.f32 0.0, %v1820
      %1822 = vmatmul.f32.gmra.mxu0 %v1711
      %v1823 = vpop.f32.mrf.mxu0
      %v1824 = vadd.f32 0.0, %v1823
      %1825 = vmatmul.f32.gmra.mxu0 %v1714
      %v1826 = vpop.f32.mrf.mxu0
      %v1827 = vadd.f32 0.0, %v1826
      %1828 = vmatmul.f32.gmra.mxu0 %v1717
      %v1829 = vpop.f32.mrf.mxu0
      %v1830 = vadd.f32 0.0, %v1829
      %1831 = vmatmul.f32.gmra.mxu0 %v1720
      %v1832 = vpop.f32.mrf.mxu0
      %v1833 = vadd.f32 0.0, %v1832
      %1834 = vmatmul.f32.gmra.mxu0 %v1723
      %v1835 = vpop.f32.mrf.mxu0
      %v1836 = vadd.f32 0.0, %v1835
      %1837 = vmatmul.f32.gmra.mxu0 %v1726
      %v1838 = vpop.f32.mrf.mxu0
      %v1839 = vadd.f32 0.0, %v1838
      %1840 = vmatmul.f32.gmra.mxu0 %v1729
      %v1841 = vpop.f32.mrf.mxu0
      %v1842 = vadd.f32 0.0, %v1841
      %1843 = vmatmul.f32.gmra.mxu0 %v1732
      %v1844 = vpop.f32.mrf.mxu0
      %v1845 = vadd.f32 0.0, %v1844
      %1846 = vmatmul.f32.gmra.mxu0 %v1735
      %v1847 = vpop.f32.mrf.mxu0
      %v1848 = vadd.f32 0.0, %v1847
      %1849 = vmatmul.f32.gmra.mxu0 %v1738
      %v1850 = vpop.f32.mrf.mxu0
      %v1851 = vadd.f32 0.0, %v1850
      %1852 = vmatmul.f32.gmra.mxu0 %v1741
      %v1853 = vpop.f32.mrf.mxu0
      %v1854 = vadd.f32 0.0, %v1853
      %1855 = vmatmul.f32.gmra.mxu0 %v1744
      %v1856 = vpop.f32.mrf.mxu0
      %v1857 = vadd.f32 0.0, %v1856
      %1858 = vmatmul.f32.gmra.mxu0 %v1747
      %v1859 = vpop.f32.mrf.mxu0
      %v1860 = vadd.f32 0.0, %v1859
      %1861 = vmatmul.f32.gmra.mxu0 %v1750
      %v1862 = vpop.f32.mrf.mxu0
      %v1863 = vadd.f32 0.0, %v1862
      %1864 = vmatmul.f32.gmra.mxu0 %v1753
      %v1865 = vpop.f32.mrf.mxu0
      %v1866 = vadd.f32 0.0, %v1865
      %1867 = vmatmul.f32.gmra.mxu0 %v1756
      %v1868 = vpop.f32.mrf.mxu0
      %v1869 = vadd.f32 0.0, %v1868
      %1870 = vmatmul.f32.gmra.mxu0 %v1759
      %v1871 = vpop.f32.mrf.mxu0
      %v1872 = vadd.f32 0.0, %v1871
      %1873 = vmatmul.f32.gmra.mxu0 %v1762
      %v1874 = vpop.f32.mrf.mxu0
      %v1875 = vadd.f32 0.0, %v1874
      %1876 = vmatmul.f32.gmra.mxu0 %v1765
      %v1877 = vpop.f32.mrf.mxu0
      %v1878 = vadd.f32 0.0, %v1877
      %1879 = vmatmul.f32.gmra.mxu0 %v1768
      %v1880 = vpop.f32.mrf.mxu0
      %v1881 = vadd.f32 0.0, %v1880
      %1882 = vmatmul.f32.gmra.mxu0 %v1771
      %v1883 = vpop.f32.mrf.mxu0
      %v1884 = vadd.f32 0.0, %v1883
      %1885 = vmatmul.f32.gmra.mxu0 %v1774
      %v1886 = vpop.f32.mrf.mxu0
      %v1887 = vadd.f32 0.0, %v1886
      %1888 = vmatmul.f32.gmra.mxu0 %v1777
      %v1889 = vpop.f32.mrf.mxu0
      %v1890 = vadd.f32 0.0, %v1889
      %1891 = vmatmul.f32.gmra.mxu0 %v1780
      %v1892 = vpop.f32.mrf.mxu0
      %v1893 = vadd.f32 0.0, %v1892
      %1894 = vmatmul.f32.gmra.mxu0 %v1783
      %v1895 = vpop.f32.mrf.mxu0
      %v1896 = vadd.f32 0.0, %v1895
      %1897 = vmatmul.f32.gmra.mxu0 %v1786
      %v1898 = vpop.f32.mrf.mxu0
      %v1899 = vadd.f32 0.0, %v1898
      %1900 = vmatmul.f32.gmra.mxu0 %v1789
      %v1901 = vpop.f32.mrf.mxu0
      %v1902 = vadd.f32 0.0, %v1901
      %1903 = vmatmul.f32.gmra.mxu0 %v1792
      %v1904 = vpop.f32.mrf.mxu0
      %v1905 = vadd.f32 0.0, %v1904
      %1906 = vmatmul.f32.gmra.mxu0 %v1795
      %v1907 = vpop.f32.mrf.mxu0
      %v1908 = vadd.f32 0.0, %v1907
      %1909 = vmatmul.f32.gmra.mxu0 %v1798
      %v1910 = vpop.f32.mrf.mxu0
      %v1911 = vadd.f32 0.0, %v1910
      %1912 = vdwg.mxu0
      %v1913 = vadd.f32 %v1638, %v1818
      %v1914 = vadd.f32 %v1639, %v1821
      %v1915 = vadd.f32 %v1640, %v1824
      %v1916 = vadd.f32 %v1641, %v1827
      %v1917 = vadd.f32 %v1642, %v1830
      %v1918 = vadd.f32 %v1643, %v1833
      %v1919 = vadd.f32 %v1644, %v1836
      %v1920 = vadd.f32 %v1645, %v1839
      %v1921 = vadd.f32 %v1646, %v1842
      %v1922 = vadd.f32 %v1647, %v1845
      %v1923 = vadd.f32 %v1648, %v1848
      %v1924 = vadd.f32 %v1649, %v1851
      %v1925 = vadd.f32 %v1650, %v1854
      %v1926 = vadd.f32 %v1651, %v1857
      %v1927 = vadd.f32 %v1652, %v1860
      %v1928 = vadd.f32 %v1653, %v1863
      %v1929 = vadd.f32 %v1654, %v1866
      %v1930 = vadd.f32 %v1655, %v1869
      %v1931 = vadd.f32 %v1656, %v1872
      %v1932 = vadd.f32 %v1657, %v1875
      %v1933 = vadd.f32 %v1658, %v1878
      %v1934 = vadd.f32 %v1659, %v1881
      %v1935 = vadd.f32 %v1660, %v1884
      %v1936 = vadd.f32 %v1661, %v1887
      %v1937 = vadd.f32 %v1662, %v1890
      %v1938 = vadd.f32 %v1663, %v1893
      %v1939 = vadd.f32 %v1664, %v1896
      %v1940 = vadd.f32 %v1665, %v1899
      %v1941 = vadd.f32 %v1666, %v1902
      %v1942 = vadd.f32 %v1667, %v1905
      %v1943 = vadd.f32 %v1668, %v1908
      %v1944 = vadd.f32 %v1669, %v1911
      %s1945 = scalar_lea.vmem %s325, 96
      %v1946 = vld [vmem:[%s1945] sm:$0xff]
      %v1947 = vld [vmem:[%s1945 + $0x8] sm:$0xff]
      %v1948 = vld [vmem:[%s1945 + $0x18] sm:$0xff]
      %v1949 = vld [vmem:[%s1945 + $0x20] sm:$0xff]
      %v1950 = vld [vmem:[%s1945 + $0x30] sm:$0xff]
      %v1951 = vld [vmem:[%s1945 + $0x38] sm:$0xff]
      %v1952 = vld [vmem:[%s1945 + $0x48] sm:$0xff]
      %v1953 = vld [vmem:[%s1945 + $0x50] sm:$0xff]
      %v1954 = vld [vmem:[%s1945 + $0x60] sm:$0xff]
      %v1955 = vld [vmem:[%s1945 + $0x68] sm:$0xff]
      %v1956 = vld [vmem:[%s1945 + $0x78] sm:$0xff]
      %v1957 = vld [vmem:[%s1945 + $0x80] sm:$0xff]
      %v1958 = vld [vmem:[%s1945 + $0x90] sm:$0xff]
      %v1959 = vld [vmem:[%s1945 + $0x98] sm:$0xff]
      %v1960 = vld [vmem:[%s1945 + $0xa8] sm:$0xff]
      %v1961 = vld [vmem:[%s1945 + $0xb0] sm:$0xff]
      %v1962 = vld [vmem:[%s1945 + $0xc0] sm:$0xff]
      %v1963 = vld [vmem:[%s1945 + $0xc8] sm:$0xff]
      %v1964 = vld [vmem:[%s1945 + $0xd8] sm:$0xff]
      %v1965 = vld [vmem:[%s1945 + $0xe0] sm:$0xff]
      %v1966 = vld [vmem:[%s1945 + $0xf0] sm:$0xff]
      %v1967 = vld [vmem:[%s1945 + $0xf8] sm:$0xff]
      %v1968 = vld [vmem:[%s1945 + $0x108] sm:$0xff]
      %v1969 = vld [vmem:[%s1945 + $0x110] sm:$0xff]
      %v1970 = vld [vmem:[%s1945 + $0x120] sm:$0xff]
      %v1971 = vld [vmem:[%s1945 + $0x128] sm:$0xff]
      %v1972 = vld [vmem:[%s1945 + $0x138] sm:$0xff]
      %v1973 = vld [vmem:[%s1945 + $0x140] sm:$0xff]
      %v1974 = vld [vmem:[%s1945 + $0x150] sm:$0xff]
      %v1975 = vld [vmem:[%s1945 + $0x158] sm:$0xff]
      %v1976 = vld [vmem:[%s1945 + $0x168] sm:$0xff]
      %v1977 = vld [vmem:[%s1945 + $0x170] sm:$0xff]
      %s1978 = scalar_lea.vmem %s2, 48
      %v1979 = vld [vmem:[%s1978] sm:$0xff]
      %v1981 = vsel %vm425, %v1946, 0
      %v1984 = vsel %vm425, %v1947, 0
      %v1987 = vsel %vm425, %v1948, 0
      %v1990 = vsel %vm425, %v1949, 0
      %v1993 = vsel %vm425, %v1950, 0
      %v1996 = vsel %vm425, %v1951, 0
      %v1999 = vsel %vm425, %v1952, 0
      %v2002 = vsel %vm425, %v1953, 0
      %v2005 = vsel %vm425, %v1954, 0
      %v2008 = vsel %vm425, %v1955, 0
      %v2011 = vsel %vm425, %v1956, 0
      %v2014 = vsel %vm425, %v1957, 0
      %v2017 = vsel %vm425, %v1958, 0
      %v2020 = vsel %vm425, %v1959, 0
      %v2023 = vsel %vm425, %v1960, 0
      %v2026 = vsel %vm425, %v1961, 0
      %v2029 = vsel %vm425, %v1962, 0
      %v2032 = vsel %vm425, %v1963, 0
      %v2035 = vsel %vm425, %v1964, 0
      %v2038 = vsel %vm425, %v1965, 0
      %v2041 = vsel %vm425, %v1966, 0
      %v2044 = vsel %vm425, %v1967, 0
      %v2047 = vsel %vm425, %v1968, 0
      %v2050 = vsel %vm425, %v1969, 0
      %v2053 = vsel %vm425, %v1970, 0
      %v2056 = vsel %vm425, %v1971, 0
      %v2059 = vsel %vm425, %v1972, 0
      %v2062 = vsel %vm425, %v1973, 0
      %v2065 = vsel %vm425, %v1974, 0
      %v2068 = vsel %vm425, %v1975, 0
      %v2071 = vsel %vm425, %v1976, 0
      %v2074 = vsel %vm425, %v1977, 0
      %2076 = vmatpush.msra.mxu0 0.0
      %2077 = vmatpush.msra.mxu0 0.0
      %2078 = vmatpush.msra.mxu0 0.0
      %2079 = vmatpush.msra.mxu0 0.0
      %2080 = vmatpush.msra.mxu0 0.0
      %2081 = vmatpush.msra.mxu0 0.0
      %2082 = vmatpush.msra.mxu0 0.0
      %2083 = vmatpush.msra.mxu0 0.0
      %2084 = vmatpush.msra.mxu0 0.0
      %2085 = vmatpush.msra.mxu0 0.0
      %2086 = vmatpush.msra.mxu0 0.0
      %2087 = vmatpush.msra.mxu0 0.0
      %2088 = vmatpush.msra.mxu0 0.0
      %2089 = vmatpush.msra.mxu0 0.0
      %2090 = vmatpush.msra.mxu0 0.0
      %2091 = vmatpush.msra.mxu0 %v1979
      %2092 = vmatmul.f32.gmra.mxu0 %v1981
      %v2093 = vpop.f32.mrf.mxu0
      %v2094 = vadd.f32 0.0, %v2093
      %2095 = vmatmul.f32.gmra.mxu0 %v1984
      %v2096 = vpop.f32.mrf.mxu0
      %v2097 = vadd.f32 0.0, %v2096
      %2098 = vmatmul.f32.gmra.mxu0 %v1987
      %v2099 = vpop.f32.mrf.mxu0
      %v2100 = vadd.f32 0.0, %v2099
      %2101 = vmatmul.f32.gmra.mxu0 %v1990
      %v2102 = vpop.f32.mrf.mxu0
      %v2103 = vadd.f32 0.0, %v2102
      %2104 = vmatmul.f32.gmra.mxu0 %v1993
      %v2105 = vpop.f32.mrf.mxu0
      %v2106 = vadd.f32 0.0, %v2105
      %2107 = vmatmul.f32.gmra.mxu0 %v1996
      %v2108 = vpop.f32.mrf.mxu0
      %v2109 = vadd.f32 0.0, %v2108
      %2110 = vmatmul.f32.gmra.mxu0 %v1999
      %v2111 = vpop.f32.mrf.mxu0
      %v2112 = vadd.f32 0.0, %v2111
      %2113 = vmatmul.f32.gmra.mxu0 %v2002
      %v2114 = vpop.f32.mrf.mxu0
      %v2115 = vadd.f32 0.0, %v2114
      %2116 = vmatmul.f32.gmra.mxu0 %v2005
      %v2117 = vpop.f32.mrf.mxu0
      %v2118 = vadd.f32 0.0, %v2117
      %2119 = vmatmul.f32.gmra.mxu0 %v2008
      %v2120 = vpop.f32.mrf.mxu0
      %v2121 = vadd.f32 0.0, %v2120
      %2122 = vmatmul.f32.gmra.mxu0 %v2011
      %v2123 = vpop.f32.mrf.mxu0
      %v2124 = vadd.f32 0.0, %v2123
      %2125 = vmatmul.f32.gmra.mxu0 %v2014
      %v2126 = vpop.f32.mrf.mxu0
      %v2127 = vadd.f32 0.0, %v2126
      %2128 = vmatmul.f32.gmra.mxu0 %v2017
      %v2129 = vpop.f32.mrf.mxu0
      %v2130 = vadd.f32 0.0, %v2129
      %2131 = vmatmul.f32.gmra.mxu0 %v2020
      %v2132 = vpop.f32.mrf.mxu0
      %v2133 = vadd.f32 0.0, %v2132
      %2134 = vmatmul.f32.gmra.mxu0 %v2023
      %v2135 = vpop.f32.mrf.mxu0
      %v2136 = vadd.f32 0.0, %v2135
      %2137 = vmatmul.f32.gmra.mxu0 %v2026
      %v2138 = vpop.f32.mrf.mxu0
      %v2139 = vadd.f32 0.0, %v2138
      %2140 = vmatmul.f32.gmra.mxu0 %v2029
      %v2141 = vpop.f32.mrf.mxu0
      %v2142 = vadd.f32 0.0, %v2141
      %2143 = vmatmul.f32.gmra.mxu0 %v2032
      %v2144 = vpop.f32.mrf.mxu0
      %v2145 = vadd.f32 0.0, %v2144
      %2146 = vmatmul.f32.gmra.mxu0 %v2035
      %v2147 = vpop.f32.mrf.mxu0
      %v2148 = vadd.f32 0.0, %v2147
      %2149 = vmatmul.f32.gmra.mxu0 %v2038
      %v2150 = vpop.f32.mrf.mxu0
      %v2151 = vadd.f32 0.0, %v2150
      %2152 = vmatmul.f32.gmra.mxu0 %v2041
      %v2153 = vpop.f32.mrf.mxu0
      %v2154 = vadd.f32 0.0, %v2153
      %2155 = vmatmul.f32.gmra.mxu0 %v2044
      %v2156 = vpop.f32.mrf.mxu0
      %v2157 = vadd.f32 0.0, %v2156
      %2158 = vmatmul.f32.gmra.mxu0 %v2047
      %v2159 = vpop.f32.mrf.mxu0
      %v2160 = vadd.f32 0.0, %v2159
      %2161 = vmatmul.f32.gmra.mxu0 %v2050
      %v2162 = vpop.f32.mrf.mxu0
      %v2163 = vadd.f32 0.0, %v2162
      %2164 = vmatmul.f32.gmra.mxu0 %v2053
      %v2165 = vpop.f32.mrf.mxu0
      %v2166 = vadd.f32 0.0, %v2165
      %2167 = vmatmul.f32.gmra.mxu0 %v2056
      %v2168 = vpop.f32.mrf.mxu0
      %v2169 = vadd.f32 0.0, %v2168
      %2170 = vmatmul.f32.gmra.mxu0 %v2059
      %v2171 = vpop.f32.mrf.mxu0
      %v2172 = vadd.f32 0.0, %v2171
      %2173 = vmatmul.f32.gmra.mxu0 %v2062
      %v2174 = vpop.f32.mrf.mxu0
      %v2175 = vadd.f32 0.0, %v2174
      %2176 = vmatmul.f32.gmra.mxu0 %v2065
      %v2177 = vpop.f32.mrf.mxu0
      %v2178 = vadd.f32 0.0, %v2177
      %2179 = vmatmul.f32.gmra.mxu0 %v2068
      %v2180 = vpop.f32.mrf.mxu0
      %v2181 = vadd.f32 0.0, %v2180
      %2182 = vmatmul.f32.gmra.mxu0 %v2071
      %v2183 = vpop.f32.mrf.mxu0
      %v2184 = vadd.f32 0.0, %v2183
      %2185 = vmatmul.f32.gmra.mxu0 %v2074
      %v2186 = vpop.f32.mrf.mxu0
      %v2187 = vadd.f32 0.0, %v2186
      %2188 = vdwg.mxu0
      %v2189 = vadd.f32 %v1913, %v2094
      %v2190 = vadd.f32 %v1914, %v2097
      %v2191 = vadd.f32 %v1915, %v2100
      %v2192 = vadd.f32 %v1916, %v2103
      %v2193 = vadd.f32 %v1917, %v2106
      %v2194 = vadd.f32 %v1918, %v2109
      %v2195 = vadd.f32 %v1919, %v2112
      %v2196 = vadd.f32 %v1920, %v2115
      %v2197 = vadd.f32 %v1921, %v2118
      %v2198 = vadd.f32 %v1922, %v2121
      %v2199 = vadd.f32 %v1923, %v2124
      %v2200 = vadd.f32 %v1924, %v2127
      %v2201 = vadd.f32 %v1925, %v2130
      %v2202 = vadd.f32 %v1926, %v2133
      %v2203 = vadd.f32 %v1927, %v2136
      %v2204 = vadd.f32 %v1928, %v2139
      %v2205 = vadd.f32 %v1929, %v2142
      %v2206 = vadd.f32 %v1930, %v2145
      %v2207 = vadd.f32 %v1931, %v2148
      %v2208 = vadd.f32 %v1932, %v2151
      %v2209 = vadd.f32 %v1933, %v2154
      %v2210 = vadd.f32 %v1934, %v2157
      %v2211 = vadd.f32 %v1935, %v2160
      %v2212 = vadd.f32 %v1936, %v2163
      %v2213 = vadd.f32 %v1937, %v2166
      %v2214 = vadd.f32 %v1938, %v2169
      %v2215 = vadd.f32 %v1939, %v2172
      %v2216 = vadd.f32 %v1940, %v2175
      %v2217 = vadd.f32 %v1941, %v2178
      %v2218 = vadd.f32 %v1942, %v2181
      %v2219 = vadd.f32 %v1943, %v2184
      %v2220 = vadd.f32 %v1944, %v2187
      %v2221 = vld [vmem:[%s1945 + $0x2] sm:$0xff]
      %v2222 = vld [vmem:[%s1945 + $0xa] sm:$0xff]
      %v2223 = vld [vmem:[%s1945 + $0x1a] sm:$0xff]
      %v2224 = vld [vmem:[%s1945 + $0x22] sm:$0xff]
      %v2225 = vld [vmem:[%s1945 + $0x32] sm:$0xff]
      %v2226 = vld [vmem:[%s1945 + $0x3a] sm:$0xff]
      %v2227 = vld [vmem:[%s1945 + $0x4a] sm:$0xff]
      %v2228 = vld [vmem:[%s1945 + $0x52] sm:$0xff]
      %v2229 = vld [vmem:[%s1945 + $0x62] sm:$0xff]
      %v2230 = vld [vmem:[%s1945 + $0x6a] sm:$0xff]
      %v2231 = vld [vmem:[%s1945 + $0x7a] sm:$0xff]
      %v2232 = vld [vmem:[%s1945 + $0x82] sm:$0xff]
      %v2233 = vld [vmem:[%s1945 + $0x92] sm:$0xff]
      %v2234 = vld [vmem:[%s1945 + $0x9a] sm:$0xff]
      %v2235 = vld [vmem:[%s1945 + $0xaa] sm:$0xff]
      %v2236 = vld [vmem:[%s1945 + $0xb2] sm:$0xff]
      %v2237 = vld [vmem:[%s1945 + $0xc2] sm:$0xff]
      %v2238 = vld [vmem:[%s1945 + $0xca] sm:$0xff]
      %v2239 = vld [vmem:[%s1945 + $0xda] sm:$0xff]
      %v2240 = vld [vmem:[%s1945 + $0xe2] sm:$0xff]
      %v2241 = vld [vmem:[%s1945 + $0xf2] sm:$0xff]
      %v2242 = vld [vmem:[%s1945 + $0xfa] sm:$0xff]
      %v2243 = vld [vmem:[%s1945 + $0x10a] sm:$0xff]
      %v2244 = vld [vmem:[%s1945 + $0x112] sm:$0xff]
      %v2245 = vld [vmem:[%s1945 + $0x122] sm:$0xff]
      %v2246 = vld [vmem:[%s1945 + $0x12a] sm:$0xff]
      %v2247 = vld [vmem:[%s1945 + $0x13a] sm:$0xff]
      %v2248 = vld [vmem:[%s1945 + $0x142] sm:$0xff]
      %v2249 = vld [vmem:[%s1945 + $0x152] sm:$0xff]
      %v2250 = vld [vmem:[%s1945 + $0x15a] sm:$0xff]
      %v2251 = vld [vmem:[%s1945 + $0x16a] sm:$0xff]
      %v2252 = vld [vmem:[%s1945 + $0x172] sm:$0xff]
      %s2253 = scalar_lea.vmem %s2, 56
      %v2254 = vld [vmem:[%s2253] sm:$0xff]
      %v2256 = vsel %vm425, %v2221, 0
      %v2259 = vsel %vm425, %v2222, 0
      %v2262 = vsel %vm425, %v2223, 0
      %v2265 = vsel %vm425, %v2224, 0
      %v2268 = vsel %vm425, %v2225, 0
      %v2271 = vsel %vm425, %v2226, 0
      %v2274 = vsel %vm425, %v2227, 0
      %v2277 = vsel %vm425, %v2228, 0
      %v2280 = vsel %vm425, %v2229, 0
      %v2283 = vsel %vm425, %v2230, 0
      %v2286 = vsel %vm425, %v2231, 0
      %v2289 = vsel %vm425, %v2232, 0
      %v2292 = vsel %vm425, %v2233, 0
      %v2295 = vsel %vm425, %v2234, 0
      %v2298 = vsel %vm425, %v2235, 0
      %v2301 = vsel %vm425, %v2236, 0
      %v2304 = vsel %vm425, %v2237, 0
      %v2307 = vsel %vm425, %v2238, 0
      %v2310 = vsel %vm425, %v2239, 0
      %v2313 = vsel %vm425, %v2240, 0
      %v2316 = vsel %vm425, %v2241, 0
      %v2319 = vsel %vm425, %v2242, 0
      %v2322 = vsel %vm425, %v2243, 0
      %v2325 = vsel %vm425, %v2244, 0
      %v2328 = vsel %vm425, %v2245, 0
      %v2331 = vsel %vm425, %v2246, 0
      %v2334 = vsel %vm425, %v2247, 0
      %v2337 = vsel %vm425, %v2248, 0
      %v2340 = vsel %vm425, %v2249, 0
      %v2343 = vsel %vm425, %v2250, 0
      %v2346 = vsel %vm425, %v2251, 0
      %v2349 = vsel %vm425, %v2252, 0
      %2351 = vmatpush.msra.mxu0 0.0
      %2352 = vmatpush.msra.mxu0 0.0
      %2353 = vmatpush.msra.mxu0 0.0
      %2354 = vmatpush.msra.mxu0 0.0
      %2355 = vmatpush.msra.mxu0 0.0
      %2356 = vmatpush.msra.mxu0 0.0
      %2357 = vmatpush.msra.mxu0 0.0
      %2358 = vmatpush.msra.mxu0 0.0
      %2359 = vmatpush.msra.mxu0 0.0
      %2360 = vmatpush.msra.mxu0 0.0
      %2361 = vmatpush.msra.mxu0 0.0
      %2362 = vmatpush.msra.mxu0 0.0
      %2363 = vmatpush.msra.mxu0 0.0
      %2364 = vmatpush.msra.mxu0 0.0
      %2365 = vmatpush.msra.mxu0 0.0
      %2366 = vmatpush.msra.mxu0 %v2254
      %2367 = vmatmul.f32.gmra.mxu0 %v2256
      %v2368 = vpop.f32.mrf.mxu0
      %v2369 = vadd.f32 0.0, %v2368
      %2370 = vmatmul.f32.gmra.mxu0 %v2259
      %v2371 = vpop.f32.mrf.mxu0
      %v2372 = vadd.f32 0.0, %v2371
      %2373 = vmatmul.f32.gmra.mxu0 %v2262
      %v2374 = vpop.f32.mrf.mxu0
      %v2375 = vadd.f32 0.0, %v2374
      %2376 = vmatmul.f32.gmra.mxu0 %v2265
      %v2377 = vpop.f32.mrf.mxu0
      %v2378 = vadd.f32 0.0, %v2377
      %2379 = vmatmul.f32.gmra.mxu0 %v2268
      %v2380 = vpop.f32.mrf.mxu0
      %v2381 = vadd.f32 0.0, %v2380
      %2382 = vmatmul.f32.gmra.mxu0 %v2271
      %v2383 = vpop.f32.mrf.mxu0
      %v2384 = vadd.f32 0.0, %v2383
      %2385 = vmatmul.f32.gmra.mxu0 %v2274
      %v2386 = vpop.f32.mrf.mxu0
      %v2387 = vadd.f32 0.0, %v2386
      %2388 = vmatmul.f32.gmra.mxu0 %v2277
      %v2389 = vpop.f32.mrf.mxu0
      %v2390 = vadd.f32 0.0, %v2389
      %2391 = vmatmul.f32.gmra.mxu0 %v2280
      %v2392 = vpop.f32.mrf.mxu0
      %v2393 = vadd.f32 0.0, %v2392
      %2394 = vmatmul.f32.gmra.mxu0 %v2283
      %v2395 = vpop.f32.mrf.mxu0
      %v2396 = vadd.f32 0.0, %v2395
      %2397 = vmatmul.f32.gmra.mxu0 %v2286
      %v2398 = vpop.f32.mrf.mxu0
      %v2399 = vadd.f32 0.0, %v2398
      %2400 = vmatmul.f32.gmra.mxu0 %v2289
      %v2401 = vpop.f32.mrf.mxu0
      %v2402 = vadd.f32 0.0, %v2401
      %2403 = vmatmul.f32.gmra.mxu0 %v2292
      %v2404 = vpop.f32.mrf.mxu0
      %v2405 = vadd.f32 0.0, %v2404
      %2406 = vmatmul.f32.gmra.mxu0 %v2295
      %v2407 = vpop.f32.mrf.mxu0
      %v2408 = vadd.f32 0.0, %v2407
      %2409 = vmatmul.f32.gmra.mxu0 %v2298
      %v2410 = vpop.f32.mrf.mxu0
      %v2411 = vadd.f32 0.0, %v2410
      %2412 = vmatmul.f32.gmra.mxu0 %v2301
      %v2413 = vpop.f32.mrf.mxu0
      %v2414 = vadd.f32 0.0, %v2413
      %2415 = vmatmul.f32.gmra.mxu0 %v2304
      %v2416 = vpop.f32.mrf.mxu0
      %v2417 = vadd.f32 0.0, %v2416
      %2418 = vmatmul.f32.gmra.mxu0 %v2307
      %v2419 = vpop.f32.mrf.mxu0
      %v2420 = vadd.f32 0.0, %v2419
      %2421 = vmatmul.f32.gmra.mxu0 %v2310
      %v2422 = vpop.f32.mrf.mxu0
      %v2423 = vadd.f32 0.0, %v2422
      %2424 = vmatmul.f32.gmra.mxu0 %v2313
      %v2425 = vpop.f32.mrf.mxu0
      %v2426 = vadd.f32 0.0, %v2425
      %2427 = vmatmul.f32.gmra.mxu0 %v2316
      %v2428 = vpop.f32.mrf.mxu0
      %v2429 = vadd.f32 0.0, %v2428
      %2430 = vmatmul.f32.gmra.mxu0 %v2319
      %v2431 = vpop.f32.mrf.mxu0
      %v2432 = vadd.f32 0.0, %v2431
      %2433 = vmatmul.f32.gmra.mxu0 %v2322
      %v2434 = vpop.f32.mrf.mxu0
      %v2435 = vadd.f32 0.0, %v2434
      %2436 = vmatmul.f32.gmra.mxu0 %v2325
      %v2437 = vpop.f32.mrf.mxu0
      %v2438 = vadd.f32 0.0, %v2437
      %2439 = vmatmul.f32.gmra.mxu0 %v2328
      %v2440 = vpop.f32.mrf.mxu0
      %v2441 = vadd.f32 0.0, %v2440
      %2442 = vmatmul.f32.gmra.mxu0 %v2331
      %v2443 = vpop.f32.mrf.mxu0
      %v2444 = vadd.f32 0.0, %v2443
      %2445 = vmatmul.f32.gmra.mxu0 %v2334
      %v2446 = vpop.f32.mrf.mxu0
      %v2447 = vadd.f32 0.0, %v2446
      %2448 = vmatmul.f32.gmra.mxu0 %v2337
      %v2449 = vpop.f32.mrf.mxu0
      %v2450 = vadd.f32 0.0, %v2449
      %2451 = vmatmul.f32.gmra.mxu0 %v2340
      %v2452 = vpop.f32.mrf.mxu0
      %v2453 = vadd.f32 0.0, %v2452
      %2454 = vmatmul.f32.gmra.mxu0 %v2343
      %v2455 = vpop.f32.mrf.mxu0
      %v2456 = vadd.f32 0.0, %v2455
      %2457 = vmatmul.f32.gmra.mxu0 %v2346
      %v2458 = vpop.f32.mrf.mxu0
      %v2459 = vadd.f32 0.0, %v2458
      %2460 = vmatmul.f32.gmra.mxu0 %v2349
      %v2461 = vpop.f32.mrf.mxu0
      %v2462 = vadd.f32 0.0, %v2461
      %2463 = vdwg.mxu0
      %v2464 = vadd.f32 %v2189, %v2369
      %v2465 = vadd.f32 %v2190, %v2372
      %v2466 = vadd.f32 %v2191, %v2375
      %v2467 = vadd.f32 %v2192, %v2378
      %v2468 = vadd.f32 %v2193, %v2381
      %v2469 = vadd.f32 %v2194, %v2384
      %v2470 = vadd.f32 %v2195, %v2387
      %v2471 = vadd.f32 %v2196, %v2390
      %v2472 = vadd.f32 %v2197, %v2393
      %v2473 = vadd.f32 %v2198, %v2396
      %v2474 = vadd.f32 %v2199, %v2399
      %v2475 = vadd.f32 %v2200, %v2402
      %v2476 = vadd.f32 %v2201, %v2405
      %v2477 = vadd.f32 %v2202, %v2408
      %v2478 = vadd.f32 %v2203, %v2411
      %v2479 = vadd.f32 %v2204, %v2414
      %v2480 = vadd.f32 %v2205, %v2417
      %v2481 = vadd.f32 %v2206, %v2420
      %v2482 = vadd.f32 %v2207, %v2423
      %v2483 = vadd.f32 %v2208, %v2426
      %v2484 = vadd.f32 %v2209, %v2429
      %v2485 = vadd.f32 %v2210, %v2432
      %v2486 = vadd.f32 %v2211, %v2435
      %v2487 = vadd.f32 %v2212, %v2438
      %v2488 = vadd.f32 %v2213, %v2441
      %v2489 = vadd.f32 %v2214, %v2444
      %v2490 = vadd.f32 %v2215, %v2447
      %v2491 = vadd.f32 %v2216, %v2450
      %v2492 = vadd.f32 %v2217, %v2453
      %v2493 = vadd.f32 %v2218, %v2456
      %v2494 = vadd.f32 %v2219, %v2459
      %v2495 = vadd.f32 %v2220, %v2462
      %v2496 = vld [vmem:[%s1945 + $0x4] sm:$0xff]
      %v2497 = vld [vmem:[%s1945 + $0xc] sm:$0xff]
      %v2498 = vld [vmem:[%s1945 + $0x1c] sm:$0xff]
      %v2499 = vld [vmem:[%s1945 + $0x24] sm:$0xff]
      %v2500 = vld [vmem:[%s1945 + $0x34] sm:$0xff]
      %v2501 = vld [vmem:[%s1945 + $0x3c] sm:$0xff]
      %v2502 = vld [vmem:[%s1945 + $0x4c] sm:$0xff]
      %v2503 = vld [vmem:[%s1945 + $0x54] sm:$0xff]
      %v2504 = vld [vmem:[%s1945 + $0x64] sm:$0xff]
      %v2505 = vld [vmem:[%s1945 + $0x6c] sm:$0xff]
      %v2506 = vld [vmem:[%s1945 + $0x7c] sm:$0xff]
      %v2507 = vld [vmem:[%s1945 + $0x84] sm:$0xff]
      %v2508 = vld [vmem:[%s1945 + $0x94] sm:$0xff]
      %v2509 = vld [vmem:[%s1945 + $0x9c] sm:$0xff]
      %v2510 = vld [vmem:[%s1945 + $0xac] sm:$0xff]
      %v2511 = vld [vmem:[%s1945 + $0xb4] sm:$0xff]
      %v2512 = vld [vmem:[%s1945 + $0xc4] sm:$0xff]
      %v2513 = vld [vmem:[%s1945 + $0xcc] sm:$0xff]
      %v2514 = vld [vmem:[%s1945 + $0xdc] sm:$0xff]
      %v2515 = vld [vmem:[%s1945 + $0xe4] sm:$0xff]
      %v2516 = vld [vmem:[%s1945 + $0xf4] sm:$0xff]
      %v2517 = vld [vmem:[%s1945 + $0xfc] sm:$0xff]
      %v2518 = vld [vmem:[%s1945 + $0x10c] sm:$0xff]
      %v2519 = vld [vmem:[%s1945 + $0x114] sm:$0xff]
      %v2520 = vld [vmem:[%s1945 + $0x124] sm:$0xff]
      %v2521 = vld [vmem:[%s1945 + $0x12c] sm:$0xff]
      %v2522 = vld [vmem:[%s1945 + $0x13c] sm:$0xff]
      %v2523 = vld [vmem:[%s1945 + $0x144] sm:$0xff]
      %v2524 = vld [vmem:[%s1945 + $0x154] sm:$0xff]
      %v2525 = vld [vmem:[%s1945 + $0x15c] sm:$0xff]
      %v2526 = vld [vmem:[%s1945 + $0x16c] sm:$0xff]
      %v2527 = vld [vmem:[%s1945 + $0x174] sm:$0xff]
      %s2528 = scalar_lea.vmem %s2, 64
      %v2529 = vld [vmem:[%s2528] sm:$0xff]
      %v2531 = vsel %vm425, %v2496, 0
      %v2534 = vsel %vm425, %v2497, 0
      %v2537 = vsel %vm425, %v2498, 0
      %v2540 = vsel %vm425, %v2499, 0
      %v2543 = vsel %vm425, %v2500, 0
      %v2546 = vsel %vm425, %v2501, 0
      %v2549 = vsel %vm425, %v2502, 0
      %v2552 = vsel %vm425, %v2503, 0
      %v2555 = vsel %vm425, %v2504, 0
      %v2558 = vsel %vm425, %v2505, 0
      %v2561 = vsel %vm425, %v2506, 0
      %v2564 = vsel %vm425, %v2507, 0
      %v2567 = vsel %vm425, %v2508, 0
      %v2570 = vsel %vm425, %v2509, 0
      %v2573 = vsel %vm425, %v2510, 0
      %v2576 = vsel %vm425, %v2511, 0
      %v2579 = vsel %vm425, %v2512, 0
      %v2582 = vsel %vm425, %v2513, 0
      %v2585 = vsel %vm425, %v2514, 0
      %v2588 = vsel %vm425, %v2515, 0
      %v2591 = vsel %vm425, %v2516, 0
      %v2594 = vsel %vm425, %v2517, 0
      %v2597 = vsel %vm425, %v2518, 0
      %v2600 = vsel %vm425, %v2519, 0
      %v2603 = vsel %vm425, %v2520, 0
      %v2606 = vsel %vm425, %v2521, 0
      %v2609 = vsel %vm425, %v2522, 0
      %v2612 = vsel %vm425, %v2523, 0
      %v2615 = vsel %vm425, %v2524, 0
      %v2618 = vsel %vm425, %v2525, 0
      %v2621 = vsel %vm425, %v2526, 0
      %v2624 = vsel %vm425, %v2527, 0
      %2626 = vmatpush.msra.mxu0 0.0
      %2627 = vmatpush.msra.mxu0 0.0
      %2628 = vmatpush.msra.mxu0 0.0
      %2629 = vmatpush.msra.mxu0 0.0
      %2630 = vmatpush.msra.mxu0 0.0
      %2631 = vmatpush.msra.mxu0 0.0
      %2632 = vmatpush.msra.mxu0 0.0
      %2633 = vmatpush.msra.mxu0 0.0
      %2634 = vmatpush.msra.mxu0 0.0
      %2635 = vmatpush.msra.mxu0 0.0
      %2636 = vmatpush.msra.mxu0 0.0
      %2637 = vmatpush.msra.mxu0 0.0
      %2638 = vmatpush.msra.mxu0 0.0
      %2639 = vmatpush.msra.mxu0 0.0
      %2640 = vmatpush.msra.mxu0 0.0
      %2641 = vmatpush.msra.mxu0 %v2529
      %2642 = vmatmul.f32.gmra.mxu0 %v2531
      %v2643 = vpop.f32.mrf.mxu0
      %v2644 = vadd.f32 0.0, %v2643
      %2645 = vmatmul.f32.gmra.mxu0 %v2534
      %v2646 = vpop.f32.mrf.mxu0
      %v2647 = vadd.f32 0.0, %v2646
      %2648 = vmatmul.f32.gmra.mxu0 %v2537
      %v2649 = vpop.f32.mrf.mxu0
      %v2650 = vadd.f32 0.0, %v2649
      %2651 = vmatmul.f32.gmra.mxu0 %v2540
      %v2652 = vpop.f32.mrf.mxu0
      %v2653 = vadd.f32 0.0, %v2652
      %2654 = vmatmul.f32.gmra.mxu0 %v2543
      %v2655 = vpop.f32.mrf.mxu0
      %v2656 = vadd.f32 0.0, %v2655
      %2657 = vmatmul.f32.gmra.mxu0 %v2546
      %v2658 = vpop.f32.mrf.mxu0
      %v2659 = vadd.f32 0.0, %v2658
      %2660 = vmatmul.f32.gmra.mxu0 %v2549
      %v2661 = vpop.f32.mrf.mxu0
      %v2662 = vadd.f32 0.0, %v2661
      %2663 = vmatmul.f32.gmra.mxu0 %v2552
      %v2664 = vpop.f32.mrf.mxu0
      %v2665 = vadd.f32 0.0, %v2664
      %2666 = vmatmul.f32.gmra.mxu0 %v2555
      %v2667 = vpop.f32.mrf.mxu0
      %v2668 = vadd.f32 0.0, %v2667
      %2669 = vmatmul.f32.gmra.mxu0 %v2558
      %v2670 = vpop.f32.mrf.mxu0
      %v2671 = vadd.f32 0.0, %v2670
      %2672 = vmatmul.f32.gmra.mxu0 %v2561
      %v2673 = vpop.f32.mrf.mxu0
      %v2674 = vadd.f32 0.0, %v2673
      %2675 = vmatmul.f32.gmra.mxu0 %v2564
      %v2676 = vpop.f32.mrf.mxu0
      %v2677 = vadd.f32 0.0, %v2676
      %2678 = vmatmul.f32.gmra.mxu0 %v2567
      %v2679 = vpop.f32.mrf.mxu0
      %v2680 = vadd.f32 0.0, %v2679
      %2681 = vmatmul.f32.gmra.mxu0 %v2570
      %v2682 = vpop.f32.mrf.mxu0
      %v2683 = vadd.f32 0.0, %v2682
      %2684 = vmatmul.f32.gmra.mxu0 %v2573
      %v2685 = vpop.f32.mrf.mxu0
      %v2686 = vadd.f32 0.0, %v2685
      %2687 = vmatmul.f32.gmra.mxu0 %v2576
      %v2688 = vpop.f32.mrf.mxu0
      %v2689 = vadd.f32 0.0, %v2688
      %2690 = vmatmul.f32.gmra.mxu0 %v2579
      %v2691 = vpop.f32.mrf.mxu0
      %v2692 = vadd.f32 0.0, %v2691
      %2693 = vmatmul.f32.gmra.mxu0 %v2582
      %v2694 = vpop.f32.mrf.mxu0
      %v2695 = vadd.f32 0.0, %v2694
      %2696 = vmatmul.f32.gmra.mxu0 %v2585
      %v2697 = vpop.f32.mrf.mxu0
      %v2698 = vadd.f32 0.0, %v2697
      %2699 = vmatmul.f32.gmra.mxu0 %v2588
      %v2700 = vpop.f32.mrf.mxu0
      %v2701 = vadd.f32 0.0, %v2700
      %2702 = vmatmul.f32.gmra.mxu0 %v2591
      %v2703 = vpop.f32.mrf.mxu0
      %v2704 = vadd.f32 0.0, %v2703
      %2705 = vmatmul.f32.gmra.mxu0 %v2594
      %v2706 = vpop.f32.mrf.mxu0
      %v2707 = vadd.f32 0.0, %v2706
      %2708 = vmatmul.f32.gmra.mxu0 %v2597
      %v2709 = vpop.f32.mrf.mxu0
      %v2710 = vadd.f32 0.0, %v2709
      %2711 = vmatmul.f32.gmra.mxu0 %v2600
      %v2712 = vpop.f32.mrf.mxu0
      %v2713 = vadd.f32 0.0, %v2712
      %2714 = vmatmul.f32.gmra.mxu0 %v2603
      %v2715 = vpop.f32.mrf.mxu0
      %v2716 = vadd.f32 0.0, %v2715
      %2717 = vmatmul.f32.gmra.mxu0 %v2606
      %v2718 = vpop.f32.mrf.mxu0
      %v2719 = vadd.f32 0.0, %v2718
      %2720 = vmatmul.f32.gmra.mxu0 %v2609
      %v2721 = vpop.f32.mrf.mxu0
      %v2722 = vadd.f32 0.0, %v2721
      %2723 = vmatmul.f32.gmra.mxu0 %v2612
      %v2724 = vpop.f32.mrf.mxu0
      %v2725 = vadd.f32 0.0, %v2724
      %2726 = vmatmul.f32.gmra.mxu0 %v2615
      %v2727 = vpop.f32.mrf.mxu0
      %v2728 = vadd.f32 0.0, %v2727
      %2729 = vmatmul.f32.gmra.mxu0 %v2618
      %v2730 = vpop.f32.mrf.mxu0
      %v2731 = vadd.f32 0.0, %v2730
      %2732 = vmatmul.f32.gmra.mxu0 %v2621
      %v2733 = vpop.f32.mrf.mxu0
      %v2734 = vadd.f32 0.0, %v2733
      %2735 = vmatmul.f32.gmra.mxu0 %v2624
      %v2736 = vpop.f32.mrf.mxu0
      %v2737 = vadd.f32 0.0, %v2736
      %2738 = vdwg.mxu0
      %v2739 = vadd.f32 %v2464, %v2644
      %v2740 = vadd.f32 %v2465, %v2647
      %v2741 = vadd.f32 %v2466, %v2650
      %v2742 = vadd.f32 %v2467, %v2653
      %v2743 = vadd.f32 %v2468, %v2656
      %v2744 = vadd.f32 %v2469, %v2659
      %v2745 = vadd.f32 %v2470, %v2662
      %v2746 = vadd.f32 %v2471, %v2665
      %v2747 = vadd.f32 %v2472, %v2668
      %v2748 = vadd.f32 %v2473, %v2671
      %v2749 = vadd.f32 %v2474, %v2674
      %v2750 = vadd.f32 %v2475, %v2677
      %v2751 = vadd.f32 %v2476, %v2680
      %v2752 = vadd.f32 %v2477, %v2683
      %v2753 = vadd.f32 %v2478, %v2686
      %v2754 = vadd.f32 %v2479, %v2689
      %v2755 = vadd.f32 %v2480, %v2692
      %v2756 = vadd.f32 %v2481, %v2695
      %v2757 = vadd.f32 %v2482, %v2698
      %v2758 = vadd.f32 %v2483, %v2701
      %v2759 = vadd.f32 %v2484, %v2704
      %v2760 = vadd.f32 %v2485, %v2707
      %v2761 = vadd.f32 %v2486, %v2710
      %v2762 = vadd.f32 %v2487, %v2713
      %v2763 = vadd.f32 %v2488, %v2716
      %v2764 = vadd.f32 %v2489, %v2719
      %v2765 = vadd.f32 %v2490, %v2722
      %v2766 = vadd.f32 %v2491, %v2725
      %v2767 = vadd.f32 %v2492, %v2728
      %v2768 = vadd.f32 %v2493, %v2731
      %v2769 = vadd.f32 %v2494, %v2734
      %v2770 = vadd.f32 %v2495, %v2737
      %v2771 = vld [vmem:[%s334] sm:$0xff]
      %v2772 = vld [vmem:[%s334 + $0x8] sm:$0xff]
      %v2773 = vld [vmem:[%s334 + $0x18] sm:$0xff]
      %v2774 = vld [vmem:[%s334 + $0x20] sm:$0xff]
      %v2775 = vld [vmem:[%s334 + $0x30] sm:$0xff]
      %v2776 = vld [vmem:[%s334 + $0x38] sm:$0xff]
      %v2777 = vld [vmem:[%s334 + $0x48] sm:$0xff]
      %v2778 = vld [vmem:[%s334 + $0x50] sm:$0xff]
      %v2779 = vld [vmem:[%s334 + $0x60] sm:$0xff]
      %v2780 = vld [vmem:[%s334 + $0x68] sm:$0xff]
      %v2781 = vld [vmem:[%s334 + $0x78] sm:$0xff]
      %v2782 = vld [vmem:[%s334 + $0x80] sm:$0xff]
      %v2783 = vld [vmem:[%s334 + $0x90] sm:$0xff]
      %v2784 = vld [vmem:[%s334 + $0x98] sm:$0xff]
      %v2785 = vld [vmem:[%s334 + $0xa8] sm:$0xff]
      %v2786 = vld [vmem:[%s334 + $0xb0] sm:$0xff]
      %v2787 = vld [vmem:[%s334 + $0xc0] sm:$0xff]
      %v2788 = vld [vmem:[%s334 + $0xc8] sm:$0xff]
      %v2789 = vld [vmem:[%s334 + $0xd8] sm:$0xff]
      %v2790 = vld [vmem:[%s334 + $0xe0] sm:$0xff]
      %v2791 = vld [vmem:[%s334 + $0xf0] sm:$0xff]
      %v2792 = vld [vmem:[%s334 + $0xf8] sm:$0xff]
      %v2793 = vld [vmem:[%s334 + $0x108] sm:$0xff]
      %v2794 = vld [vmem:[%s334 + $0x110] sm:$0xff]
      %v2795 = vld [vmem:[%s334 + $0x120] sm:$0xff]
      %v2796 = vld [vmem:[%s334 + $0x128] sm:$0xff]
      %v2797 = vld [vmem:[%s334 + $0x138] sm:$0xff]
      %v2798 = vld [vmem:[%s334 + $0x140] sm:$0xff]
      %v2799 = vld [vmem:[%s334 + $0x150] sm:$0xff]
      %v2800 = vld [vmem:[%s334 + $0x158] sm:$0xff]
      %v2801 = vld [vmem:[%s334 + $0x168] sm:$0xff]
      %v2802 = vld [vmem:[%s334 + $0x170] sm:$0xff]
      %v2803 = vld [vmem:[%s3] sm:$0xff]
      %v2805 = vsel %vm425, %v2771, 0
      %v2808 = vsel %vm425, %v2772, 0
      %v2811 = vsel %vm425, %v2773, 0
      %v2814 = vsel %vm425, %v2774, 0
      %v2817 = vsel %vm425, %v2775, 0
      %v2820 = vsel %vm425, %v2776, 0
      %v2823 = vsel %vm425, %v2777, 0
      %v2826 = vsel %vm425, %v2778, 0
      %v2829 = vsel %vm425, %v2779, 0
      %v2832 = vsel %vm425, %v2780, 0
      %v2835 = vsel %vm425, %v2781, 0
      %v2838 = vsel %vm425, %v2782, 0
      %v2841 = vsel %vm425, %v2783, 0
      %v2844 = vsel %vm425, %v2784, 0
      %v2847 = vsel %vm425, %v2785, 0
      %v2850 = vsel %vm425, %v2786, 0
      %v2853 = vsel %vm425, %v2787, 0
      %v2856 = vsel %vm425, %v2788, 0
      %v2859 = vsel %vm425, %v2789, 0
      %v2862 = vsel %vm425, %v2790, 0
      %v2865 = vsel %vm425, %v2791, 0
      %v2868 = vsel %vm425, %v2792, 0
      %v2871 = vsel %vm425, %v2793, 0
      %v2874 = vsel %vm425, %v2794, 0
      %v2877 = vsel %vm425, %v2795, 0
      %v2880 = vsel %vm425, %v2796, 0
      %v2883 = vsel %vm425, %v2797, 0
      %v2886 = vsel %vm425, %v2798, 0
      %v2889 = vsel %vm425, %v2799, 0
      %v2892 = vsel %vm425, %v2800, 0
      %v2895 = vsel %vm425, %v2801, 0
      %v2898 = vsel %vm425, %v2802, 0
      %2900 = vmatpush.msra.mxu0 0.0
      %2901 = vmatpush.msra.mxu0 0.0
      %2902 = vmatpush.msra.mxu0 0.0
      %2903 = vmatpush.msra.mxu0 0.0
      %2904 = vmatpush.msra.mxu0 0.0
      %2905 = vmatpush.msra.mxu0 0.0
      %2906 = vmatpush.msra.mxu0 0.0
      %2907 = vmatpush.msra.mxu0 0.0
      %2908 = vmatpush.msra.mxu0 0.0
      %2909 = vmatpush.msra.mxu0 0.0
      %2910 = vmatpush.msra.mxu0 0.0
      %2911 = vmatpush.msra.mxu0 0.0
      %2912 = vmatpush.msra.mxu0 0.0
      %2913 = vmatpush.msra.mxu0 0.0
      %2914 = vmatpush.msra.mxu0 0.0
      %2915 = vmatpush.msra.mxu0 %v2803
      %2916 = vmatmul.f32.gmra.mxu0 %v2805
      %v2917 = vpop.f32.mrf.mxu0
      %v2918 = vadd.f32 0.0, %v2917
      %2919 = vmatmul.f32.gmra.mxu0 %v2808
      %v2920 = vpop.f32.mrf.mxu0
      %v2921 = vadd.f32 0.0, %v2920
      %2922 = vmatmul.f32.gmra.mxu0 %v2811
      %v2923 = vpop.f32.mrf.mxu0
      %v2924 = vadd.f32 0.0, %v2923
      %2925 = vmatmul.f32.gmra.mxu0 %v2814
      %v2926 = vpop.f32.mrf.mxu0
      %v2927 = vadd.f32 0.0, %v2926
      %2928 = vmatmul.f32.gmra.mxu0 %v2817
      %v2929 = vpop.f32.mrf.mxu0
      %v2930 = vadd.f32 0.0, %v2929
      %2931 = vmatmul.f32.gmra.mxu0 %v2820
      %v2932 = vpop.f32.mrf.mxu0
      %v2933 = vadd.f32 0.0, %v2932
      %2934 = vmatmul.f32.gmra.mxu0 %v2823
      %v2935 = vpop.f32.mrf.mxu0
      %v2936 = vadd.f32 0.0, %v2935
      %2937 = vmatmul.f32.gmra.mxu0 %v2826
      %v2938 = vpop.f32.mrf.mxu0
      %v2939 = vadd.f32 0.0, %v2938
      %2940 = vmatmul.f32.gmra.mxu0 %v2829
      %v2941 = vpop.f32.mrf.mxu0
      %v2942 = vadd.f32 0.0, %v2941
      %2943 = vmatmul.f32.gmra.mxu0 %v2832
      %v2944 = vpop.f32.mrf.mxu0
      %v2945 = vadd.f32 0.0, %v2944
      %2946 = vmatmul.f32.gmra.mxu0 %v2835
      %v2947 = vpop.f32.mrf.mxu0
      %v2948 = vadd.f32 0.0, %v2947
      %2949 = vmatmul.f32.gmra.mxu0 %v2838
      %v2950 = vpop.f32.mrf.mxu0
      %v2951 = vadd.f32 0.0, %v2950
      %2952 = vmatmul.f32.gmra.mxu0 %v2841
      %v2953 = vpop.f32.mrf.mxu0
      %v2954 = vadd.f32 0.0, %v2953
      %2955 = vmatmul.f32.gmra.mxu0 %v2844
      %v2956 = vpop.f32.mrf.mxu0
      %v2957 = vadd.f32 0.0, %v2956
      %2958 = vmatmul.f32.gmra.mxu0 %v2847
      %v2959 = vpop.f32.mrf.mxu0
      %v2960 = vadd.f32 0.0, %v2959
      %2961 = vmatmul.f32.gmra.mxu0 %v2850
      %v2962 = vpop.f32.mrf.mxu0
      %v2963 = vadd.f32 0.0, %v2962
      %2964 = vmatmul.f32.gmra.mxu0 %v2853
      %v2965 = vpop.f32.mrf.mxu0
      %v2966 = vadd.f32 0.0, %v2965
      %2967 = vmatmul.f32.gmra.mxu0 %v2856
      %v2968 = vpop.f32.mrf.mxu0
      %v2969 = vadd.f32 0.0, %v2968
      %2970 = vmatmul.f32.gmra.mxu0 %v2859
      %v2971 = vpop.f32.mrf.mxu0
      %v2972 = vadd.f32 0.0, %v2971
      %2973 = vmatmul.f32.gmra.mxu0 %v2862
      %v2974 = vpop.f32.mrf.mxu0
      %v2975 = vadd.f32 0.0, %v2974
      %2976 = vmatmul.f32.gmra.mxu0 %v2865
      %v2977 = vpop.f32.mrf.mxu0
      %v2978 = vadd.f32 0.0, %v2977
      %2979 = vmatmul.f32.gmra.mxu0 %v2868
      %v2980 = vpop.f32.mrf.mxu0
      %v2981 = vadd.f32 0.0, %v2980
      %2982 = vmatmul.f32.gmra.mxu0 %v2871
      %v2983 = vpop.f32.mrf.mxu0
      %v2984 = vadd.f32 0.0, %v2983
      %2985 = vmatmul.f32.gmra.mxu0 %v2874
      %v2986 = vpop.f32.mrf.mxu0
      %v2987 = vadd.f32 0.0, %v2986
      %2988 = vmatmul.f32.gmra.mxu0 %v2877
      %v2989 = vpop.f32.mrf.mxu0
      %v2990 = vadd.f32 0.0, %v2989
      %2991 = vmatmul.f32.gmra.mxu0 %v2880
      %v2992 = vpop.f32.mrf.mxu0
      %v2993 = vadd.f32 0.0, %v2992
      %2994 = vmatmul.f32.gmra.mxu0 %v2883
      %v2995 = vpop.f32.mrf.mxu0
      %v2996 = vadd.f32 0.0, %v2995
      %2997 = vmatmul.f32.gmra.mxu0 %v2886
      %v2998 = vpop.f32.mrf.mxu0
      %v2999 = vadd.f32 0.0, %v2998
      %3000 = vmatmul.f32.gmra.mxu0 %v2889
      %v3001 = vpop.f32.mrf.mxu0
      %v3002 = vadd.f32 0.0, %v3001
      %3003 = vmatmul.f32.gmra.mxu0 %v2892
      %v3004 = vpop.f32.mrf.mxu0
      %v3005 = vadd.f32 0.0, %v3004
      %3006 = vmatmul.f32.gmra.mxu0 %v2895
      %v3007 = vpop.f32.mrf.mxu0
      %v3008 = vadd.f32 0.0, %v3007
      %3009 = vmatmul.f32.gmra.mxu0 %v2898
      %v3010 = vpop.f32.mrf.mxu0
      %v3011 = vadd.f32 0.0, %v3010
      %3012 = vdwg.mxu0
      %v3013 = vadd.f32 %v2739, %v2918
      %v3014 = vadd.f32 %v2740, %v2921
      %v3015 = vadd.f32 %v2741, %v2924
      %v3016 = vadd.f32 %v2742, %v2927
      %v3017 = vadd.f32 %v2743, %v2930
      %v3018 = vadd.f32 %v2744, %v2933
      %v3019 = vadd.f32 %v2745, %v2936
      %v3020 = vadd.f32 %v2746, %v2939
      %v3021 = vadd.f32 %v2747, %v2942
      %v3022 = vadd.f32 %v2748, %v2945
      %v3023 = vadd.f32 %v2749, %v2948
      %v3024 = vadd.f32 %v2750, %v2951
      %v3025 = vadd.f32 %v2751, %v2954
      %v3026 = vadd.f32 %v2752, %v2957
      %v3027 = vadd.f32 %v2753, %v2960
      %v3028 = vadd.f32 %v2754, %v2963
      %v3029 = vadd.f32 %v2755, %v2966
      %v3030 = vadd.f32 %v2756, %v2969
      %v3031 = vadd.f32 %v2757, %v2972
      %v3032 = vadd.f32 %v2758, %v2975
      %v3033 = vadd.f32 %v2759, %v2978
      %v3034 = vadd.f32 %v2760, %v2981
      %v3035 = vadd.f32 %v2761, %v2984
      %v3036 = vadd.f32 %v2762, %v2987
      %v3037 = vadd.f32 %v2763, %v2990
      %v3038 = vadd.f32 %v2764, %v2993
      %v3039 = vadd.f32 %v2765, %v2996
      %v3040 = vadd.f32 %v2766, %v2999
      %v3041 = vadd.f32 %v2767, %v3002
      %v3042 = vadd.f32 %v2768, %v3005
      %v3043 = vadd.f32 %v2769, %v3008
      %v3044 = vadd.f32 %v2770, %v3011
      %v3045 = vld [vmem:[%s334 + $0x2] sm:$0xff]
      %v3046 = vld [vmem:[%s334 + $0xa] sm:$0xff]
      %v3047 = vld [vmem:[%s334 + $0x1a] sm:$0xff]
      %v3048 = vld [vmem:[%s334 + $0x22] sm:$0xff]
      %v3049 = vld [vmem:[%s334 + $0x32] sm:$0xff]
      %v3050 = vld [vmem:[%s334 + $0x3a] sm:$0xff]
      %v3051 = vld [vmem:[%s334 + $0x4a] sm:$0xff]
      %v3052 = vld [vmem:[%s334 + $0x52] sm:$0xff]
      %v3053 = vld [vmem:[%s334 + $0x62] sm:$0xff]
      %v3054 = vld [vmem:[%s334 + $0x6a] sm:$0xff]
      %v3055 = vld [vmem:[%s334 + $0x7a] sm:$0xff]
      %v3056 = vld [vmem:[%s334 + $0x82] sm:$0xff]
      %v3057 = vld [vmem:[%s334 + $0x92] sm:$0xff]
      %v3058 = vld [vmem:[%s334 + $0x9a] sm:$0xff]
      %v3059 = vld [vmem:[%s334 + $0xaa] sm:$0xff]
      %v3060 = vld [vmem:[%s334 + $0xb2] sm:$0xff]
      %v3061 = vld [vmem:[%s334 + $0xc2] sm:$0xff]
      %v3062 = vld [vmem:[%s334 + $0xca] sm:$0xff]
      %v3063 = vld [vmem:[%s334 + $0xda] sm:$0xff]
      %v3064 = vld [vmem:[%s334 + $0xe2] sm:$0xff]
      %v3065 = vld [vmem:[%s334 + $0xf2] sm:$0xff]
      %v3066 = vld [vmem:[%s334 + $0xfa] sm:$0xff]
      %v3067 = vld [vmem:[%s334 + $0x10a] sm:$0xff]
      %v3068 = vld [vmem:[%s334 + $0x112] sm:$0xff]
      %v3069 = vld [vmem:[%s334 + $0x122] sm:$0xff]
      %v3070 = vld [vmem:[%s334 + $0x12a] sm:$0xff]
      %v3071 = vld [vmem:[%s334 + $0x13a] sm:$0xff]
      %v3072 = vld [vmem:[%s334 + $0x142] sm:$0xff]
      %v3073 = vld [vmem:[%s334 + $0x152] sm:$0xff]
      %v3074 = vld [vmem:[%s334 + $0x15a] sm:$0xff]
      %v3075 = vld [vmem:[%s334 + $0x16a] sm:$0xff]
      %v3076 = vld [vmem:[%s334 + $0x172] sm:$0xff]
      %s3077 = scalar_lea.vmem %s3, 8
      %v3078 = vld [vmem:[%s3077] sm:$0xff]
      %v3080 = vsel %vm425, %v3045, 0
      %v3083 = vsel %vm425, %v3046, 0
      %v3086 = vsel %vm425, %v3047, 0
      %v3089 = vsel %vm425, %v3048, 0
      %v3092 = vsel %vm425, %v3049, 0
      %v3095 = vsel %vm425, %v3050, 0
      %v3098 = vsel %vm425, %v3051, 0
      %v3101 = vsel %vm425, %v3052, 0
      %v3104 = vsel %vm425, %v3053, 0
      %v3107 = vsel %vm425, %v3054, 0
      %v3110 = vsel %vm425, %v3055, 0
      %v3113 = vsel %vm425, %v3056, 0
      %v3116 = vsel %vm425, %v3057, 0
      %v3119 = vsel %vm425, %v3058, 0
      %v3122 = vsel %vm425, %v3059, 0
      %v3125 = vsel %vm425, %v3060, 0
      %v3128 = vsel %vm425, %v3061, 0
      %v3131 = vsel %vm425, %v3062, 0
      %v3134 = vsel %vm425, %v3063, 0
      %v3137 = vsel %vm425, %v3064, 0
      %v3140 = vsel %vm425, %v3065, 0
      %v3143 = vsel %vm425, %v3066, 0
      %v3146 = vsel %vm425, %v3067, 0
      %v3149 = vsel %vm425, %v3068, 0
      %v3152 = vsel %vm425, %v3069, 0
      %v3155 = vsel %vm425, %v3070, 0
      %v3158 = vsel %vm425, %v3071, 0
      %v3161 = vsel %vm425, %v3072, 0
      %v3164 = vsel %vm425, %v3073, 0
      %v3167 = vsel %vm425, %v3074, 0
      %v3170 = vsel %vm425, %v3075, 0
      %v3173 = vsel %vm425, %v3076, 0
      %3175 = vmatpush.msra.mxu0 0.0
      %3176 = vmatpush.msra.mxu0 0.0
      %3177 = vmatpush.msra.mxu0 0.0
      %3178 = vmatpush.msra.mxu0 0.0
      %3179 = vmatpush.msra.mxu0 0.0
      %3180 = vmatpush.msra.mxu0 0.0
      %3181 = vmatpush.msra.mxu0 0.0
      %3182 = vmatpush.msra.mxu0 0.0
      %3183 = vmatpush.msra.mxu0 0.0
      %3184 = vmatpush.msra.mxu0 0.0
      %3185 = vmatpush.msra.mxu0 0.0
      %3186 = vmatpush.msra.mxu0 0.0
      %3187 = vmatpush.msra.mxu0 0.0
      %3188 = vmatpush.msra.mxu0 0.0
      %3189 = vmatpush.msra.mxu0 0.0
      %3190 = vmatpush.msra.mxu0 %v3078
      %3191 = vmatmul.f32.gmra.mxu0 %v3080
      %v3192 = vpop.f32.mrf.mxu0
      %v3193 = vadd.f32 0.0, %v3192
      %3194 = vmatmul.f32.gmra.mxu0 %v3083
      %v3195 = vpop.f32.mrf.mxu0
      %v3196 = vadd.f32 0.0, %v3195
      %3197 = vmatmul.f32.gmra.mxu0 %v3086
      %v3198 = vpop.f32.mrf.mxu0
      %v3199 = vadd.f32 0.0, %v3198
      %3200 = vmatmul.f32.gmra.mxu0 %v3089
      %v3201 = vpop.f32.mrf.mxu0
      %v3202 = vadd.f32 0.0, %v3201
      %3203 = vmatmul.f32.gmra.mxu0 %v3092
      %v3204 = vpop.f32.mrf.mxu0
      %v3205 = vadd.f32 0.0, %v3204
      %3206 = vmatmul.f32.gmra.mxu0 %v3095
      %v3207 = vpop.f32.mrf.mxu0
      %v3208 = vadd.f32 0.0, %v3207
      %3209 = vmatmul.f32.gmra.mxu0 %v3098
      %v3210 = vpop.f32.mrf.mxu0
      %v3211 = vadd.f32 0.0, %v3210
      %3212 = vmatmul.f32.gmra.mxu0 %v3101
      %v3213 = vpop.f32.mrf.mxu0
      %v3214 = vadd.f32 0.0, %v3213
      %3215 = vmatmul.f32.gmra.mxu0 %v3104
      %v3216 = vpop.f32.mrf.mxu0
      %v3217 = vadd.f32 0.0, %v3216
      %3218 = vmatmul.f32.gmra.mxu0 %v3107
      %v3219 = vpop.f32.mrf.mxu0
      %v3220 = vadd.f32 0.0, %v3219
      %3221 = vmatmul.f32.gmra.mxu0 %v3110
      %v3222 = vpop.f32.mrf.mxu0
      %v3223 = vadd.f32 0.0, %v3222
      %3224 = vmatmul.f32.gmra.mxu0 %v3113
      %v3225 = vpop.f32.mrf.mxu0
      %v3226 = vadd.f32 0.0, %v3225
      %3227 = vmatmul.f32.gmra.mxu0 %v3116
      %v3228 = vpop.f32.mrf.mxu0
      %v3229 = vadd.f32 0.0, %v3228
      %3230 = vmatmul.f32.gmra.mxu0 %v3119
      %v3231 = vpop.f32.mrf.mxu0
      %v3232 = vadd.f32 0.0, %v3231
      %3233 = vmatmul.f32.gmra.mxu0 %v3122
      %v3234 = vpop.f32.mrf.mxu0
      %v3235 = vadd.f32 0.0, %v3234
      %3236 = vmatmul.f32.gmra.mxu0 %v3125
      %v3237 = vpop.f32.mrf.mxu0
      %v3238 = vadd.f32 0.0, %v3237
      %3239 = vmatmul.f32.gmra.mxu0 %v3128
      %v3240 = vpop.f32.mrf.mxu0
      %v3241 = vadd.f32 0.0, %v3240
      %3242 = vmatmul.f32.gmra.mxu0 %v3131
      %v3243 = vpop.f32.mrf.mxu0
      %v3244 = vadd.f32 0.0, %v3243
      %3245 = vmatmul.f32.gmra.mxu0 %v3134
      %v3246 = vpop.f32.mrf.mxu0
      %v3247 = vadd.f32 0.0, %v3246
      %3248 = vmatmul.f32.gmra.mxu0 %v3137
      %v3249 = vpop.f32.mrf.mxu0
      %v3250 = vadd.f32 0.0, %v3249
      %3251 = vmatmul.f32.gmra.mxu0 %v3140
      %v3252 = vpop.f32.mrf.mxu0
      %v3253 = vadd.f32 0.0, %v3252
      %3254 = vmatmul.f32.gmra.mxu0 %v3143
      %v3255 = vpop.f32.mrf.mxu0
      %v3256 = vadd.f32 0.0, %v3255
      %3257 = vmatmul.f32.gmra.mxu0 %v3146
      %v3258 = vpop.f32.mrf.mxu0
      %v3259 = vadd.f32 0.0, %v3258
      %3260 = vmatmul.f32.gmra.mxu0 %v3149
      %v3261 = vpop.f32.mrf.mxu0
      %v3262 = vadd.f32 0.0, %v3261
      %3263 = vmatmul.f32.gmra.mxu0 %v3152
      %v3264 = vpop.f32.mrf.mxu0
      %v3265 = vadd.f32 0.0, %v3264
      %3266 = vmatmul.f32.gmra.mxu0 %v3155
      %v3267 = vpop.f32.mrf.mxu0
      %v3268 = vadd.f32 0.0, %v3267
      %3269 = vmatmul.f32.gmra.mxu0 %v3158
      %v3270 = vpop.f32.mrf.mxu0
      %v3271 = vadd.f32 0.0, %v3270
      %3272 = vmatmul.f32.gmra.mxu0 %v3161
      %v3273 = vpop.f32.mrf.mxu0
      %v3274 = vadd.f32 0.0, %v3273
      %3275 = vmatmul.f32.gmra.mxu0 %v3164
      %v3276 = vpop.f32.mrf.mxu0
      %v3277 = vadd.f32 0.0, %v3276
      %3278 = vmatmul.f32.gmra.mxu0 %v3167
      %v3279 = vpop.f32.mrf.mxu0
      %v3280 = vadd.f32 0.0, %v3279
      %3281 = vmatmul.f32.gmra.mxu0 %v3170
      %v3282 = vpop.f32.mrf.mxu0
      %v3283 = vadd.f32 0.0, %v3282
      %3284 = vmatmul.f32.gmra.mxu0 %v3173
      %v3285 = vpop.f32.mrf.mxu0
      %v3286 = vadd.f32 0.0, %v3285
      %3287 = vdwg.mxu0
      %v3288 = vadd.f32 %v3013, %v3193
      %v3289 = vadd.f32 %v3014, %v3196
      %v3290 = vadd.f32 %v3015, %v3199
      %v3291 = vadd.f32 %v3016, %v3202
      %v3292 = vadd.f32 %v3017, %v3205
      %v3293 = vadd.f32 %v3018, %v3208
      %v3294 = vadd.f32 %v3019, %v3211
      %v3295 = vadd.f32 %v3020, %v3214
      %v3296 = vadd.f32 %v3021, %v3217
      %v3297 = vadd.f32 %v3022, %v3220
      %v3298 = vadd.f32 %v3023, %v3223
      %v3299 = vadd.f32 %v3024, %v3226
      %v3300 = vadd.f32 %v3025, %v3229
      %v3301 = vadd.f32 %v3026, %v3232
      %v3302 = vadd.f32 %v3027, %v3235
      %v3303 = vadd.f32 %v3028, %v3238
      %v3304 = vadd.f32 %v3029, %v3241
      %v3305 = vadd.f32 %v3030, %v3244
      %v3306 = vadd.f32 %v3031, %v3247
      %v3307 = vadd.f32 %v3032, %v3250
      %v3308 = vadd.f32 %v3033, %v3253
      %v3309 = vadd.f32 %v3034, %v3256
      %v3310 = vadd.f32 %v3035, %v3259
      %v3311 = vadd.f32 %v3036, %v3262
      %v3312 = vadd.f32 %v3037, %v3265
      %v3313 = vadd.f32 %v3038, %v3268
      %v3314 = vadd.f32 %v3039, %v3271
      %v3315 = vadd.f32 %v3040, %v3274
      %v3316 = vadd.f32 %v3041, %v3277
      %v3317 = vadd.f32 %v3042, %v3280
      %v3318 = vadd.f32 %v3043, %v3283
      %v3319 = vadd.f32 %v3044, %v3286
      %v3320 = vld [vmem:[%s334 + $0x4] sm:$0xff]
      %v3321 = vld [vmem:[%s334 + $0xc] sm:$0xff]
      %v3322 = vld [vmem:[%s334 + $0x1c] sm:$0xff]
      %v3323 = vld [vmem:[%s334 + $0x24] sm:$0xff]
      %v3324 = vld [vmem:[%s334 + $0x34] sm:$0xff]
      %v3325 = vld [vmem:[%s334 + $0x3c] sm:$0xff]
      %v3326 = vld [vmem:[%s334 + $0x4c] sm:$0xff]
      %v3327 = vld [vmem:[%s334 + $0x54] sm:$0xff]
      %v3328 = vld [vmem:[%s334 + $0x64] sm:$0xff]
      %v3329 = vld [vmem:[%s334 + $0x6c] sm:$0xff]
      %v3330 = vld [vmem:[%s334 + $0x7c] sm:$0xff]
      %v3331 = vld [vmem:[%s334 + $0x84] sm:$0xff]
      %v3332 = vld [vmem:[%s334 + $0x94] sm:$0xff]
      %v3333 = vld [vmem:[%s334 + $0x9c] sm:$0xff]
      %v3334 = vld [vmem:[%s334 + $0xac] sm:$0xff]
      %v3335 = vld [vmem:[%s334 + $0xb4] sm:$0xff]
      %v3336 = vld [vmem:[%s334 + $0xc4] sm:$0xff]
      %v3337 = vld [vmem:[%s334 + $0xcc] sm:$0xff]
      %v3338 = vld [vmem:[%s334 + $0xdc] sm:$0xff]
      %v3339 = vld [vmem:[%s334 + $0xe4] sm:$0xff]
      %v3340 = vld [vmem:[%s334 + $0xf4] sm:$0xff]
      %v3341 = vld [vmem:[%s334 + $0xfc] sm:$0xff]
      %v3342 = vld [vmem:[%s334 + $0x10c] sm:$0xff]
      %v3343 = vld [vmem:[%s334 + $0x114] sm:$0xff]
      %v3344 = vld [vmem:[%s334 + $0x124] sm:$0xff]
      %v3345 = vld [vmem:[%s334 + $0x12c] sm:$0xff]
      %v3346 = vld [vmem:[%s334 + $0x13c] sm:$0xff]
      %v3347 = vld [vmem:[%s334 + $0x144] sm:$0xff]
      %v3348 = vld [vmem:[%s334 + $0x154] sm:$0xff]
      %v3349 = vld [vmem:[%s334 + $0x15c] sm:$0xff]
      %v3350 = vld [vmem:[%s334 + $0x16c] sm:$0xff]
      %v3351 = vld [vmem:[%s334 + $0x174] sm:$0xff]
      %s3352 = scalar_lea.vmem %s3, 16
      %v3353 = vld [vmem:[%s3352] sm:$0xff]
      %v3355 = vsel %vm425, %v3320, 0
      %v3358 = vsel %vm425, %v3321, 0
      %v3361 = vsel %vm425, %v3322, 0
      %v3364 = vsel %vm425, %v3323, 0
      %v3367 = vsel %vm425, %v3324, 0
      %v3370 = vsel %vm425, %v3325, 0
      %v3373 = vsel %vm425, %v3326, 0
      %v3376 = vsel %vm425, %v3327, 0
      %v3379 = vsel %vm425, %v3328, 0
      %v3382 = vsel %vm425, %v3329, 0
      %v3385 = vsel %vm425, %v3330, 0
      %v3388 = vsel %vm425, %v3331, 0
      %v3391 = vsel %vm425, %v3332, 0
      %v3394 = vsel %vm425, %v3333, 0
      %v3397 = vsel %vm425, %v3334, 0
      %v3400 = vsel %vm425, %v3335, 0
      %v3403 = vsel %vm425, %v3336, 0
      %v3406 = vsel %vm425, %v3337, 0
      %v3409 = vsel %vm425, %v3338, 0
      %v3412 = vsel %vm425, %v3339, 0
      %v3415 = vsel %vm425, %v3340, 0
      %v3418 = vsel %vm425, %v3341, 0
      %v3421 = vsel %vm425, %v3342, 0
      %v3424 = vsel %vm425, %v3343, 0
      %v3427 = vsel %vm425, %v3344, 0
      %v3430 = vsel %vm425, %v3345, 0
      %v3433 = vsel %vm425, %v3346, 0
      %v3436 = vsel %vm425, %v3347, 0
      %v3439 = vsel %vm425, %v3348, 0
      %v3442 = vsel %vm425, %v3349, 0
      %v3445 = vsel %vm425, %v3350, 0
      %v3448 = vsel %vm425, %v3351, 0
      %3450 = vmatpush.msra.mxu0 0.0
      %3451 = vmatpush.msra.mxu0 0.0
      %3452 = vmatpush.msra.mxu0 0.0
      %3453 = vmatpush.msra.mxu0 0.0
      %3454 = vmatpush.msra.mxu0 0.0
      %3455 = vmatpush.msra.mxu0 0.0
      %3456 = vmatpush.msra.mxu0 0.0
      %3457 = vmatpush.msra.mxu0 0.0
      %3458 = vmatpush.msra.mxu0 0.0
      %3459 = vmatpush.msra.mxu0 0.0
      %3460 = vmatpush.msra.mxu0 0.0
      %3461 = vmatpush.msra.mxu0 0.0
      %3462 = vmatpush.msra.mxu0 0.0
      %3463 = vmatpush.msra.mxu0 0.0
      %3464 = vmatpush.msra.mxu0 0.0
      %3465 = vmatpush.msra.mxu0 %v3353
      %3466 = vmatmul.f32.gmra.mxu0 %v3355
      %v3467 = vpop.f32.mrf.mxu0
      %v3468 = vadd.f32 0.0, %v3467
      %3469 = vmatmul.f32.gmra.mxu0 %v3358
      %v3470 = vpop.f32.mrf.mxu0
      %v3471 = vadd.f32 0.0, %v3470
      %3472 = vmatmul.f32.gmra.mxu0 %v3361
      %v3473 = vpop.f32.mrf.mxu0
      %v3474 = vadd.f32 0.0, %v3473
      %3475 = vmatmul.f32.gmra.mxu0 %v3364
      %v3476 = vpop.f32.mrf.mxu0
      %v3477 = vadd.f32 0.0, %v3476
      %3478 = vmatmul.f32.gmra.mxu0 %v3367
      %v3479 = vpop.f32.mrf.mxu0
      %v3480 = vadd.f32 0.0, %v3479
      %3481 = vmatmul.f32.gmra.mxu0 %v3370
      %v3482 = vpop.f32.mrf.mxu0
      %v3483 = vadd.f32 0.0, %v3482
      %3484 = vmatmul.f32.gmra.mxu0 %v3373
      %v3485 = vpop.f32.mrf.mxu0
      %v3486 = vadd.f32 0.0, %v3485
      %3487 = vmatmul.f32.gmra.mxu0 %v3376
      %v3488 = vpop.f32.mrf.mxu0
      %v3489 = vadd.f32 0.0, %v3488
      %3490 = vmatmul.f32.gmra.mxu0 %v3379
      %v3491 = vpop.f32.mrf.mxu0
      %v3492 = vadd.f32 0.0, %v3491
      %3493 = vmatmul.f32.gmra.mxu0 %v3382
      %v3494 = vpop.f32.mrf.mxu0
      %v3495 = vadd.f32 0.0, %v3494
      %3496 = vmatmul.f32.gmra.mxu0 %v3385
      %v3497 = vpop.f32.mrf.mxu0
      %v3498 = vadd.f32 0.0, %v3497
      %3499 = vmatmul.f32.gmra.mxu0 %v3388
      %v3500 = vpop.f32.mrf.mxu0
      %v3501 = vadd.f32 0.0, %v3500
      %3502 = vmatmul.f32.gmra.mxu0 %v3391
      %v3503 = vpop.f32.mrf.mxu0
      %v3504 = vadd.f32 0.0, %v3503
      %3505 = vmatmul.f32.gmra.mxu0 %v3394
      %v3506 = vpop.f32.mrf.mxu0
      %v3507 = vadd.f32 0.0, %v3506
      %3508 = vmatmul.f32.gmra.mxu0 %v3397
      %v3509 = vpop.f32.mrf.mxu0
      %v3510 = vadd.f32 0.0, %v3509
      %3511 = vmatmul.f32.gmra.mxu0 %v3400
      %v3512 = vpop.f32.mrf.mxu0
      %v3513 = vadd.f32 0.0, %v3512
      %3514 = vmatmul.f32.gmra.mxu0 %v3403
      %v3515 = vpop.f32.mrf.mxu0
      %v3516 = vadd.f32 0.0, %v3515
      %3517 = vmatmul.f32.gmra.mxu0 %v3406
      %v3518 = vpop.f32.mrf.mxu0
      %v3519 = vadd.f32 0.0, %v3518
      %3520 = vmatmul.f32.gmra.mxu0 %v3409
      %v3521 = vpop.f32.mrf.mxu0
      %v3522 = vadd.f32 0.0, %v3521
      %3523 = vmatmul.f32.gmra.mxu0 %v3412
      %v3524 = vpop.f32.mrf.mxu0
      %v3525 = vadd.f32 0.0, %v3524
      %3526 = vmatmul.f32.gmra.mxu0 %v3415
      %v3527 = vpop.f32.mrf.mxu0
      %v3528 = vadd.f32 0.0, %v3527
      %3529 = vmatmul.f32.gmra.mxu0 %v3418
      %v3530 = vpop.f32.mrf.mxu0
      %v3531 = vadd.f32 0.0, %v3530
      %3532 = vmatmul.f32.gmra.mxu0 %v3421
      %v3533 = vpop.f32.mrf.mxu0
      %v3534 = vadd.f32 0.0, %v3533
      %3535 = vmatmul.f32.gmra.mxu0 %v3424
      %v3536 = vpop.f32.mrf.mxu0
      %v3537 = vadd.f32 0.0, %v3536
      %3538 = vmatmul.f32.gmra.mxu0 %v3427
      %v3539 = vpop.f32.mrf.mxu0
      %v3540 = vadd.f32 0.0, %v3539
      %3541 = vmatmul.f32.gmra.mxu0 %v3430
      %v3542 = vpop.f32.mrf.mxu0
      %v3543 = vadd.f32 0.0, %v3542
      %3544 = vmatmul.f32.gmra.mxu0 %v3433
      %v3545 = vpop.f32.mrf.mxu0
      %v3546 = vadd.f32 0.0, %v3545
      %3547 = vmatmul.f32.gmra.mxu0 %v3436
      %v3548 = vpop.f32.mrf.mxu0
      %v3549 = vadd.f32 0.0, %v3548
      %3550 = vmatmul.f32.gmra.mxu0 %v3439
      %v3551 = vpop.f32.mrf.mxu0
      %v3552 = vadd.f32 0.0, %v3551
      %3553 = vmatmul.f32.gmra.mxu0 %v3442
      %v3554 = vpop.f32.mrf.mxu0
      %v3555 = vadd.f32 0.0, %v3554
      %3556 = vmatmul.f32.gmra.mxu0 %v3445
      %v3557 = vpop.f32.mrf.mxu0
      %v3558 = vadd.f32 0.0, %v3557
      %3559 = vmatmul.f32.gmra.mxu0 %v3448
      %v3560 = vpop.f32.mrf.mxu0
      %v3561 = vadd.f32 0.0, %v3560
      %3562 = vdwg.mxu0
      %v3563 = vadd.f32 %v3288, %v3468
      %v3564 = vadd.f32 %v3289, %v3471
      %v3565 = vadd.f32 %v3290, %v3474
      %v3566 = vadd.f32 %v3291, %v3477
      %v3567 = vadd.f32 %v3292, %v3480
      %v3568 = vadd.f32 %v3293, %v3483
      %v3569 = vadd.f32 %v3294, %v3486
      %v3570 = vadd.f32 %v3295, %v3489
      %v3571 = vadd.f32 %v3296, %v3492
      %v3572 = vadd.f32 %v3297, %v3495
      %v3573 = vadd.f32 %v3298, %v3498
      %v3574 = vadd.f32 %v3299, %v3501
      %v3575 = vadd.f32 %v3300, %v3504
      %v3576 = vadd.f32 %v3301, %v3507
      %v3577 = vadd.f32 %v3302, %v3510
      %v3578 = vadd.f32 %v3303, %v3513
      %v3579 = vadd.f32 %v3304, %v3516
      %v3580 = vadd.f32 %v3305, %v3519
      %v3581 = vadd.f32 %v3306, %v3522
      %v3582 = vadd.f32 %v3307, %v3525
      %v3583 = vadd.f32 %v3308, %v3528
      %v3584 = vadd.f32 %v3309, %v3531
      %v3585 = vadd.f32 %v3310, %v3534
      %v3586 = vadd.f32 %v3311, %v3537
      %v3587 = vadd.f32 %v3312, %v3540
      %v3588 = vadd.f32 %v3313, %v3543
      %v3589 = vadd.f32 %v3314, %v3546
      %v3590 = vadd.f32 %v3315, %v3549
      %v3591 = vadd.f32 %v3316, %v3552
      %v3592 = vadd.f32 %v3317, %v3555
      %v3593 = vadd.f32 %v3318, %v3558
      %v3594 = vadd.f32 %v3319, %v3561
      %s3595 = scalar_lea.vmem %s334, 48
      %v3596 = vld [vmem:[%s3595] sm:$0xff]
      %v3597 = vld [vmem:[%s3595 + $0x8] sm:$0xff]
      %v3598 = vld [vmem:[%s3595 + $0x18] sm:$0xff]
      %v3599 = vld [vmem:[%s3595 + $0x20] sm:$0xff]
      %v3600 = vld [vmem:[%s3595 + $0x30] sm:$0xff]
      %v3601 = vld [vmem:[%s3595 + $0x38] sm:$0xff]
      %v3602 = vld [vmem:[%s3595 + $0x48] sm:$0xff]
      %v3603 = vld [vmem:[%s3595 + $0x50] sm:$0xff]
      %v3604 = vld [vmem:[%s3595 + $0x60] sm:$0xff]
      %v3605 = vld [vmem:[%s3595 + $0x68] sm:$0xff]
      %v3606 = vld [vmem:[%s3595 + $0x78] sm:$0xff]
      %v3607 = vld [vmem:[%s3595 + $0x80] sm:$0xff]
      %v3608 = vld [vmem:[%s3595 + $0x90] sm:$0xff]
      %v3609 = vld [vmem:[%s3595 + $0x98] sm:$0xff]
      %v3610 = vld [vmem:[%s3595 + $0xa8] sm:$0xff]
      %v3611 = vld [vmem:[%s3595 + $0xb0] sm:$0xff]
      %v3612 = vld [vmem:[%s3595 + $0xc0] sm:$0xff]
      %v3613 = vld [vmem:[%s3595 + $0xc8] sm:$0xff]
      %v3614 = vld [vmem:[%s3595 + $0xd8] sm:$0xff]
      %v3615 = vld [vmem:[%s3595 + $0xe0] sm:$0xff]
      %v3616 = vld [vmem:[%s3595 + $0xf0] sm:$0xff]
      %v3617 = vld [vmem:[%s3595 + $0xf8] sm:$0xff]
      %v3618 = vld [vmem:[%s3595 + $0x108] sm:$0xff]
      %v3619 = vld [vmem:[%s3595 + $0x110] sm:$0xff]
      %v3620 = vld [vmem:[%s3595 + $0x120] sm:$0xff]
      %v3621 = vld [vmem:[%s3595 + $0x128] sm:$0xff]
      %v3622 = vld [vmem:[%s3595 + $0x138] sm:$0xff]
      %v3623 = vld [vmem:[%s3595 + $0x140] sm:$0xff]
      %v3624 = vld [vmem:[%s3595 + $0x150] sm:$0xff]
      %v3625 = vld [vmem:[%s3595 + $0x158] sm:$0xff]
      %v3626 = vld [vmem:[%s3595 + $0x168] sm:$0xff]
      %v3627 = vld [vmem:[%s3595 + $0x170] sm:$0xff]
      %s3628 = scalar_lea.vmem %s3, 24
      %v3629 = vld [vmem:[%s3628] sm:$0xff]
      %v3631 = vsel %vm425, %v3596, 0
      %v3634 = vsel %vm425, %v3597, 0
      %v3637 = vsel %vm425, %v3598, 0
      %v3640 = vsel %vm425, %v3599, 0
      %v3643 = vsel %vm425, %v3600, 0
      %v3646 = vsel %vm425, %v3601, 0
      %v3649 = vsel %vm425, %v3602, 0
      %v3652 = vsel %vm425, %v3603, 0
      %v3655 = vsel %vm425, %v3604, 0
      %v3658 = vsel %vm425, %v3605, 0
      %v3661 = vsel %vm425, %v3606, 0
      %v3664 = vsel %vm425, %v3607, 0
      %v3667 = vsel %vm425, %v3608, 0
      %v3670 = vsel %vm425, %v3609, 0
      %v3673 = vsel %vm425, %v3610, 0
      %v3676 = vsel %vm425, %v3611, 0
      %v3679 = vsel %vm425, %v3612, 0
      %v3682 = vsel %vm425, %v3613, 0
      %v3685 = vsel %vm425, %v3614, 0
      %v3688 = vsel %vm425, %v3615, 0
      %v3691 = vsel %vm425, %v3616, 0
      %v3694 = vsel %vm425, %v3617, 0
      %v3697 = vsel %vm425, %v3618, 0
      %v3700 = vsel %vm425, %v3619, 0
      %v3703 = vsel %vm425, %v3620, 0
      %v3706 = vsel %vm425, %v3621, 0
      %v3709 = vsel %vm425, %v3622, 0
      %v3712 = vsel %vm425, %v3623, 0
      %v3715 = vsel %vm425, %v3624, 0
      %v3718 = vsel %vm425, %v3625, 0
      %v3721 = vsel %vm425, %v3626, 0
      %v3724 = vsel %vm425, %v3627, 0
      %3726 = vmatpush.msra.mxu0 0.0
      %3727 = vmatpush.msra.mxu0 0.0
      %3728 = vmatpush.msra.mxu0 0.0
      %3729 = vmatpush.msra.mxu0 0.0
      %3730 = vmatpush.msra.mxu0 0.0
      %3731 = vmatpush.msra.mxu0 0.0
      %3732 = vmatpush.msra.mxu0 0.0
      %3733 = vmatpush.msra.mxu0 0.0
      %3734 = vmatpush.msra.mxu0 0.0
      %3735 = vmatpush.msra.mxu0 0.0
      %3736 = vmatpush.msra.mxu0 0.0
      %3737 = vmatpush.msra.mxu0 0.0
      %3738 = vmatpush.msra.mxu0 0.0
      %3739 = vmatpush.msra.mxu0 0.0
      %3740 = vmatpush.msra.mxu0 0.0
      %3741 = vmatpush.msra.mxu0 %v3629
      %3742 = vmatmul.f32.gmra.mxu0 %v3631
      %v3743 = vpop.f32.mrf.mxu0
      %v3744 = vadd.f32 0.0, %v3743
      %3745 = vmatmul.f32.gmra.mxu0 %v3634
      %v3746 = vpop.f32.mrf.mxu0
      %v3747 = vadd.f32 0.0, %v3746
      %3748 = vmatmul.f32.gmra.mxu0 %v3637
      %v3749 = vpop.f32.mrf.mxu0
      %v3750 = vadd.f32 0.0, %v3749
      %3751 = vmatmul.f32.gmra.mxu0 %v3640
      %v3752 = vpop.f32.mrf.mxu0
      %v3753 = vadd.f32 0.0, %v3752
      %3754 = vmatmul.f32.gmra.mxu0 %v3643
      %v3755 = vpop.f32.mrf.mxu0
      %v3756 = vadd.f32 0.0, %v3755
      %3757 = vmatmul.f32.gmra.mxu0 %v3646
      %v3758 = vpop.f32.mrf.mxu0
      %v3759 = vadd.f32 0.0, %v3758
      %3760 = vmatmul.f32.gmra.mxu0 %v3649
      %v3761 = vpop.f32.mrf.mxu0
      %v3762 = vadd.f32 0.0, %v3761
      %3763 = vmatmul.f32.gmra.mxu0 %v3652
      %v3764 = vpop.f32.mrf.mxu0
      %v3765 = vadd.f32 0.0, %v3764
      %3766 = vmatmul.f32.gmra.mxu0 %v3655
      %v3767 = vpop.f32.mrf.mxu0
      %v3768 = vadd.f32 0.0, %v3767
      %3769 = vmatmul.f32.gmra.mxu0 %v3658
      %v3770 = vpop.f32.mrf.mxu0
      %v3771 = vadd.f32 0.0, %v3770
      %3772 = vmatmul.f32.gmra.mxu0 %v3661
      %v3773 = vpop.f32.mrf.mxu0
      %v3774 = vadd.f32 0.0, %v3773
      %3775 = vmatmul.f32.gmra.mxu0 %v3664
      %v3776 = vpop.f32.mrf.mxu0
      %v3777 = vadd.f32 0.0, %v3776
      %3778 = vmatmul.f32.gmra.mxu0 %v3667
      %v3779 = vpop.f32.mrf.mxu0
      %v3780 = vadd.f32 0.0, %v3779
      %3781 = vmatmul.f32.gmra.mxu0 %v3670
      %v3782 = vpop.f32.mrf.mxu0
      %v3783 = vadd.f32 0.0, %v3782
      %3784 = vmatmul.f32.gmra.mxu0 %v3673
      %v3785 = vpop.f32.mrf.mxu0
      %v3786 = vadd.f32 0.0, %v3785
      %3787 = vmatmul.f32.gmra.mxu0 %v3676
      %v3788 = vpop.f32.mrf.mxu0
      %v3789 = vadd.f32 0.0, %v3788
      %3790 = vmatmul.f32.gmra.mxu0 %v3679
      %v3791 = vpop.f32.mrf.mxu0
      %v3792 = vadd.f32 0.0, %v3791
      %3793 = vmatmul.f32.gmra.mxu0 %v3682
      %v3794 = vpop.f32.mrf.mxu0
      %v3795 = vadd.f32 0.0, %v3794
      %3796 = vmatmul.f32.gmra.mxu0 %v3685
      %v3797 = vpop.f32.mrf.mxu0
      %v3798 = vadd.f32 0.0, %v3797
      %3799 = vmatmul.f32.gmra.mxu0 %v3688
      %v3800 = vpop.f32.mrf.mxu0
      %v3801 = vadd.f32 0.0, %v3800
      %3802 = vmatmul.f32.gmra.mxu0 %v3691
      %v3803 = vpop.f32.mrf.mxu0
      %v3804 = vadd.f32 0.0, %v3803
      %3805 = vmatmul.f32.gmra.mxu0 %v3694
      %v3806 = vpop.f32.mrf.mxu0
      %v3807 = vadd.f32 0.0, %v3806
      %3808 = vmatmul.f32.gmra.mxu0 %v3697
      %v3809 = vpop.f32.mrf.mxu0
      %v3810 = vadd.f32 0.0, %v3809
      %3811 = vmatmul.f32.gmra.mxu0 %v3700
      %v3812 = vpop.f32.mrf.mxu0
      %v3813 = vadd.f32 0.0, %v3812
      %3814 = vmatmul.f32.gmra.mxu0 %v3703
      %v3815 = vpop.f32.mrf.mxu0
      %v3816 = vadd.f32 0.0, %v3815
      %3817 = vmatmul.f32.gmra.mxu0 %v3706
      %v3818 = vpop.f32.mrf.mxu0
      %v3819 = vadd.f32 0.0, %v3818
      %3820 = vmatmul.f32.gmra.mxu0 %v3709
      %v3821 = vpop.f32.mrf.mxu0
      %v3822 = vadd.f32 0.0, %v3821
      %3823 = vmatmul.f32.gmra.mxu0 %v3712
      %v3824 = vpop.f32.mrf.mxu0
      %v3825 = vadd.f32 0.0, %v3824
      %3826 = vmatmul.f32.gmra.mxu0 %v3715
      %v3827 = vpop.f32.mrf.mxu0
      %v3828 = vadd.f32 0.0, %v3827
      %3829 = vmatmul.f32.gmra.mxu0 %v3718
      %v3830 = vpop.f32.mrf.mxu0
      %v3831 = vadd.f32 0.0, %v3830
      %3832 = vmatmul.f32.gmra.mxu0 %v3721
      %v3833 = vpop.f32.mrf.mxu0
      %v3834 = vadd.f32 0.0, %v3833
      %3835 = vmatmul.f32.gmra.mxu0 %v3724
      %v3836 = vpop.f32.mrf.mxu0
      %v3837 = vadd.f32 0.0, %v3836
      %3838 = vdwg.mxu0
      %v3839 = vadd.f32 %v3563, %v3744
      %v3840 = vadd.f32 %v3564, %v3747
      %v3841 = vadd.f32 %v3565, %v3750
      %v3842 = vadd.f32 %v3566, %v3753
      %v3843 = vadd.f32 %v3567, %v3756
      %v3844 = vadd.f32 %v3568, %v3759
      %v3845 = vadd.f32 %v3569, %v3762
      %v3846 = vadd.f32 %v3570, %v3765
      %v3847 = vadd.f32 %v3571, %v3768
      %v3848 = vadd.f32 %v3572, %v3771
      %v3849 = vadd.f32 %v3573, %v3774
      %v3850 = vadd.f32 %v3574, %v3777
      %v3851 = vadd.f32 %v3575, %v3780
      %v3852 = vadd.f32 %v3576, %v3783
      %v3853 = vadd.f32 %v3577, %v3786
      %v3854 = vadd.f32 %v3578, %v3789
      %v3855 = vadd.f32 %v3579, %v3792
      %v3856 = vadd.f32 %v3580, %v3795
      %v3857 = vadd.f32 %v3581, %v3798
      %v3858 = vadd.f32 %v3582, %v3801
      %v3859 = vadd.f32 %v3583, %v3804
      %v3860 = vadd.f32 %v3584, %v3807
      %v3861 = vadd.f32 %v3585, %v3810
      %v3862 = vadd.f32 %v3586, %v3813
      %v3863 = vadd.f32 %v3587, %v3816
      %v3864 = vadd.f32 %v3588, %v3819
      %v3865 = vadd.f32 %v3589, %v3822
      %v3866 = vadd.f32 %v3590, %v3825
      %v3867 = vadd.f32 %v3591, %v3828
      %v3868 = vadd.f32 %v3592, %v3831
      %v3869 = vadd.f32 %v3593, %v3834
      %v3870 = vadd.f32 %v3594, %v3837
      %v3871 = vld [vmem:[%s3595 + $0x2] sm:$0xff]
      %v3872 = vld [vmem:[%s3595 + $0xa] sm:$0xff]
      %v3873 = vld [vmem:[%s3595 + $0x1a] sm:$0xff]
      %v3874 = vld [vmem:[%s3595 + $0x22] sm:$0xff]
      %v3875 = vld [vmem:[%s3595 + $0x32] sm:$0xff]
      %v3876 = vld [vmem:[%s3595 + $0x3a] sm:$0xff]
      %v3877 = vld [vmem:[%s3595 + $0x4a] sm:$0xff]
      %v3878 = vld [vmem:[%s3595 + $0x52] sm:$0xff]
      %v3879 = vld [vmem:[%s3595 + $0x62] sm:$0xff]
      %v3880 = vld [vmem:[%s3595 + $0x6a] sm:$0xff]
      %v3881 = vld [vmem:[%s3595 + $0x7a] sm:$0xff]
      %v3882 = vld [vmem:[%s3595 + $0x82] sm:$0xff]
      %v3883 = vld [vmem:[%s3595 + $0x92] sm:$0xff]
      %v3884 = vld [vmem:[%s3595 + $0x9a] sm:$0xff]
      %v3885 = vld [vmem:[%s3595 + $0xaa] sm:$0xff]
      %v3886 = vld [vmem:[%s3595 + $0xb2] sm:$0xff]
      %v3887 = vld [vmem:[%s3595 + $0xc2] sm:$0xff]
      %v3888 = vld [vmem:[%s3595 + $0xca] sm:$0xff]
      %v3889 = vld [vmem:[%s3595 + $0xda] sm:$0xff]
      %v3890 = vld [vmem:[%s3595 + $0xe2] sm:$0xff]
      %v3891 = vld [vmem:[%s3595 + $0xf2] sm:$0xff]
      %v3892 = vld [vmem:[%s3595 + $0xfa] sm:$0xff]
      %v3893 = vld [vmem:[%s3595 + $0x10a] sm:$0xff]
      %v3894 = vld [vmem:[%s3595 + $0x112] sm:$0xff]
      %v3895 = vld [vmem:[%s3595 + $0x122] sm:$0xff]
      %v3896 = vld [vmem:[%s3595 + $0x12a] sm:$0xff]
      %v3897 = vld [vmem:[%s3595 + $0x13a] sm:$0xff]
      %v3898 = vld [vmem:[%s3595 + $0x142] sm:$0xff]
      %v3899 = vld [vmem:[%s3595 + $0x152] sm:$0xff]
      %v3900 = vld [vmem:[%s3595 + $0x15a] sm:$0xff]
      %v3901 = vld [vmem:[%s3595 + $0x16a] sm:$0xff]
      %v3902 = vld [vmem:[%s3595 + $0x172] sm:$0xff]
      %s3903 = scalar_lea.vmem %s3, 32
      %v3904 = vld [vmem:[%s3903] sm:$0xff]
      %v3906 = vsel %vm425, %v3871, 0
      %v3909 = vsel %vm425, %v3872, 0
      %v3912 = vsel %vm425, %v3873, 0
      %v3915 = vsel %vm425, %v3874, 0
      %v3918 = vsel %vm425, %v3875, 0
      %v3921 = vsel %vm425, %v3876, 0
      %v3924 = vsel %vm425, %v3877, 0
      %v3927 = vsel %vm425, %v3878, 0
      %v3930 = vsel %vm425, %v3879, 0
      %v3933 = vsel %vm425, %v3880, 0
      %v3936 = vsel %vm425, %v3881, 0
      %v3939 = vsel %vm425, %v3882, 0
      %v3942 = vsel %vm425, %v3883, 0
      %v3945 = vsel %vm425, %v3884, 0
      %v3948 = vsel %vm425, %v3885, 0
      %v3951 = vsel %vm425, %v3886, 0
      %v3954 = vsel %vm425, %v3887, 0
      %v3957 = vsel %vm425, %v3888, 0
      %v3960 = vsel %vm425, %v3889, 0
      %v3963 = vsel %vm425, %v3890, 0
      %v3966 = vsel %vm425, %v3891, 0
      %v3969 = vsel %vm425, %v3892, 0
      %v3972 = vsel %vm425, %v3893, 0
      %v3975 = vsel %vm425, %v3894, 0
      %v3978 = vsel %vm425, %v3895, 0
      %v3981 = vsel %vm425, %v3896, 0
      %v3984 = vsel %vm425, %v3897, 0
      %v3987 = vsel %vm425, %v3898, 0
      %v3990 = vsel %vm425, %v3899, 0
      %v3993 = vsel %vm425, %v3900, 0
      %v3996 = vsel %vm425, %v3901, 0
      %v3999 = vsel %vm425, %v3902, 0
      %4001 = vmatpush.msra.mxu0 0.0
      %4002 = vmatpush.msra.mxu0 0.0
      %4003 = vmatpush.msra.mxu0 0.0
      %4004 = vmatpush.msra.mxu0 0.0
      %4005 = vmatpush.msra.mxu0 0.0
      %4006 = vmatpush.msra.mxu0 0.0
      %4007 = vmatpush.msra.mxu0 0.0
      %4008 = vmatpush.msra.mxu0 0.0
      %4009 = vmatpush.msra.mxu0 0.0
      %4010 = vmatpush.msra.mxu0 0.0
      %4011 = vmatpush.msra.mxu0 0.0
      %4012 = vmatpush.msra.mxu0 0.0
      %4013 = vmatpush.msra.mxu0 0.0
      %4014 = vmatpush.msra.mxu0 0.0
      %4015 = vmatpush.msra.mxu0 0.0
      %4016 = vmatpush.msra.mxu0 %v3904
      %4017 = vmatmul.f32.gmra.mxu0 %v3906
      %v4018 = vpop.f32.mrf.mxu0
      %v4019 = vadd.f32 0.0, %v4018
      %4020 = vmatmul.f32.gmra.mxu0 %v3909
      %v4021 = vpop.f32.mrf.mxu0
      %v4022 = vadd.f32 0.0, %v4021
      %4023 = vmatmul.f32.gmra.mxu0 %v3912
      %v4024 = vpop.f32.mrf.mxu0
      %v4025 = vadd.f32 0.0, %v4024
      %4026 = vmatmul.f32.gmra.mxu0 %v3915
      %v4027 = vpop.f32.mrf.mxu0
      %v4028 = vadd.f32 0.0, %v4027
      %4029 = vmatmul.f32.gmra.mxu0 %v3918
      %v4030 = vpop.f32.mrf.mxu0
      %v4031 = vadd.f32 0.0, %v4030
      %4032 = vmatmul.f32.gmra.mxu0 %v3921
      %v4033 = vpop.f32.mrf.mxu0
      %v4034 = vadd.f32 0.0, %v4033
      %4035 = vmatmul.f32.gmra.mxu0 %v3924
      %v4036 = vpop.f32.mrf.mxu0
      %v4037 = vadd.f32 0.0, %v4036
      %4038 = vmatmul.f32.gmra.mxu0 %v3927
      %v4039 = vpop.f32.mrf.mxu0
      %v4040 = vadd.f32 0.0, %v4039
      %4041 = vmatmul.f32.gmra.mxu0 %v3930
      %v4042 = vpop.f32.mrf.mxu0
      %v4043 = vadd.f32 0.0, %v4042
      %4044 = vmatmul.f32.gmra.mxu0 %v3933
      %v4045 = vpop.f32.mrf.mxu0
      %v4046 = vadd.f32 0.0, %v4045
      %4047 = vmatmul.f32.gmra.mxu0 %v3936
      %v4048 = vpop.f32.mrf.mxu0
      %v4049 = vadd.f32 0.0, %v4048
      %4050 = vmatmul.f32.gmra.mxu0 %v3939
      %v4051 = vpop.f32.mrf.mxu0
      %v4052 = vadd.f32 0.0, %v4051
      %4053 = vmatmul.f32.gmra.mxu0 %v3942
      %v4054 = vpop.f32.mrf.mxu0
      %v4055 = vadd.f32 0.0, %v4054
      %4056 = vmatmul.f32.gmra.mxu0 %v3945
      %v4057 = vpop.f32.mrf.mxu0
      %v4058 = vadd.f32 0.0, %v4057
      %4059 = vmatmul.f32.gmra.mxu0 %v3948
      %v4060 = vpop.f32.mrf.mxu0
      %v4061 = vadd.f32 0.0, %v4060
      %4062 = vmatmul.f32.gmra.mxu0 %v3951
      %v4063 = vpop.f32.mrf.mxu0
      %v4064 = vadd.f32 0.0, %v4063
      %4065 = vmatmul.f32.gmra.mxu0 %v3954
      %v4066 = vpop.f32.mrf.mxu0
      %v4067 = vadd.f32 0.0, %v4066
      %4068 = vmatmul.f32.gmra.mxu0 %v3957
      %v4069 = vpop.f32.mrf.mxu0
      %v4070 = vadd.f32 0.0, %v4069
      %4071 = vmatmul.f32.gmra.mxu0 %v3960
      %v4072 = vpop.f32.mrf.mxu0
      %v4073 = vadd.f32 0.0, %v4072
      %4074 = vmatmul.f32.gmra.mxu0 %v3963
      %v4075 = vpop.f32.mrf.mxu0
      %v4076 = vadd.f32 0.0, %v4075
      %4077 = vmatmul.f32.gmra.mxu0 %v3966
      %v4078 = vpop.f32.mrf.mxu0
      %v4079 = vadd.f32 0.0, %v4078
      %4080 = vmatmul.f32.gmra.mxu0 %v3969
      %v4081 = vpop.f32.mrf.mxu0
      %v4082 = vadd.f32 0.0, %v4081
      %4083 = vmatmul.f32.gmra.mxu0 %v3972
      %v4084 = vpop.f32.mrf.mxu0
      %v4085 = vadd.f32 0.0, %v4084
      %4086 = vmatmul.f32.gmra.mxu0 %v3975
      %v4087 = vpop.f32.mrf.mxu0
      %v4088 = vadd.f32 0.0, %v4087
      %4089 = vmatmul.f32.gmra.mxu0 %v3978
      %v4090 = vpop.f32.mrf.mxu0
      %v4091 = vadd.f32 0.0, %v4090
      %4092 = vmatmul.f32.gmra.mxu0 %v3981
      %v4093 = vpop.f32.mrf.mxu0
      %v4094 = vadd.f32 0.0, %v4093
      %4095 = vmatmul.f32.gmra.mxu0 %v3984
      %v4096 = vpop.f32.mrf.mxu0
      %v4097 = vadd.f32 0.0, %v4096
      %4098 = vmatmul.f32.gmra.mxu0 %v3987
      %v4099 = vpop.f32.mrf.mxu0
      %v4100 = vadd.f32 0.0, %v4099
      %4101 = vmatmul.f32.gmra.mxu0 %v3990
      %v4102 = vpop.f32.mrf.mxu0
      %v4103 = vadd.f32 0.0, %v4102
      %4104 = vmatmul.f32.gmra.mxu0 %v3993
      %v4105 = vpop.f32.mrf.mxu0
      %v4106 = vadd.f32 0.0, %v4105
      %4107 = vmatmul.f32.gmra.mxu0 %v3996
      %v4108 = vpop.f32.mrf.mxu0
      %v4109 = vadd.f32 0.0, %v4108
      %4110 = vmatmul.f32.gmra.mxu0 %v3999
      %v4111 = vpop.f32.mrf.mxu0
      %v4112 = vadd.f32 0.0, %v4111
      %4113 = vdwg.mxu0
      %v4114 = vadd.f32 %v3839, %v4019
      %v4115 = vadd.f32 %v3840, %v4022
      %v4116 = vadd.f32 %v3841, %v4025
      %v4117 = vadd.f32 %v3842, %v4028
      %v4118 = vadd.f32 %v3843, %v4031
      %v4119 = vadd.f32 %v3844, %v4034
      %v4120 = vadd.f32 %v3845, %v4037
      %v4121 = vadd.f32 %v3846, %v4040
      %v4122 = vadd.f32 %v3847, %v4043
      %v4123 = vadd.f32 %v3848, %v4046
      %v4124 = vadd.f32 %v3849, %v4049
      %v4125 = vadd.f32 %v3850, %v4052
      %v4126 = vadd.f32 %v3851, %v4055
      %v4127 = vadd.f32 %v3852, %v4058
      %v4128 = vadd.f32 %v3853, %v4061
      %v4129 = vadd.f32 %v3854, %v4064
      %v4130 = vadd.f32 %v3855, %v4067
      %v4131 = vadd.f32 %v3856, %v4070
      %v4132 = vadd.f32 %v3857, %v4073
      %v4133 = vadd.f32 %v3858, %v4076
      %v4134 = vadd.f32 %v3859, %v4079
      %v4135 = vadd.f32 %v3860, %v4082
      %v4136 = vadd.f32 %v3861, %v4085
      %v4137 = vadd.f32 %v3862, %v4088
      %v4138 = vadd.f32 %v3863, %v4091
      %v4139 = vadd.f32 %v3864, %v4094
      %v4140 = vadd.f32 %v3865, %v4097
      %v4141 = vadd.f32 %v3866, %v4100
      %v4142 = vadd.f32 %v3867, %v4103
      %v4143 = vadd.f32 %v3868, %v4106
      %v4144 = vadd.f32 %v3869, %v4109
      %v4145 = vadd.f32 %v3870, %v4112
      %v4146 = vld [vmem:[%s3595 + $0x4] sm:$0xff]
      %v4147 = vld [vmem:[%s3595 + $0xc] sm:$0xff]
      %v4148 = vld [vmem:[%s3595 + $0x1c] sm:$0xff]
      %v4149 = vld [vmem:[%s3595 + $0x24] sm:$0xff]
      %v4150 = vld [vmem:[%s3595 + $0x34] sm:$0xff]
      %v4151 = vld [vmem:[%s3595 + $0x3c] sm:$0xff]
      %v4152 = vld [vmem:[%s3595 + $0x4c] sm:$0xff]
      %v4153 = vld [vmem:[%s3595 + $0x54] sm:$0xff]
      %v4154 = vld [vmem:[%s3595 + $0x64] sm:$0xff]
      %v4155 = vld [vmem:[%s3595 + $0x6c] sm:$0xff]
      %v4156 = vld [vmem:[%s3595 + $0x7c] sm:$0xff]
      %v4157 = vld [vmem:[%s3595 + $0x84] sm:$0xff]
      %v4158 = vld [vmem:[%s3595 + $0x94] sm:$0xff]
      %v4159 = vld [vmem:[%s3595 + $0x9c] sm:$0xff]
      %v4160 = vld [vmem:[%s3595 + $0xac] sm:$0xff]
      %v4161 = vld [vmem:[%s3595 + $0xb4] sm:$0xff]
      %v4162 = vld [vmem:[%s3595 + $0xc4] sm:$0xff]
      %v4163 = vld [vmem:[%s3595 + $0xcc] sm:$0xff]
      %v4164 = vld [vmem:[%s3595 + $0xdc] sm:$0xff]
      %v4165 = vld [vmem:[%s3595 + $0xe4] sm:$0xff]
      %v4166 = vld [vmem:[%s3595 + $0xf4] sm:$0xff]
      %v4167 = vld [vmem:[%s3595 + $0xfc] sm:$0xff]
      %v4168 = vld [vmem:[%s3595 + $0x10c] sm:$0xff]
      %v4169 = vld [vmem:[%s3595 + $0x114] sm:$0xff]
      %v4170 = vld [vmem:[%s3595 + $0x124] sm:$0xff]
      %v4171 = vld [vmem:[%s3595 + $0x12c] sm:$0xff]
      %v4172 = vld [vmem:[%s3595 + $0x13c] sm:$0xff]
      %v4173 = vld [vmem:[%s3595 + $0x144] sm:$0xff]
      %v4174 = vld [vmem:[%s3595 + $0x154] sm:$0xff]
      %v4175 = vld [vmem:[%s3595 + $0x15c] sm:$0xff]
      %v4176 = vld [vmem:[%s3595 + $0x16c] sm:$0xff]
      %v4177 = vld [vmem:[%s3595 + $0x174] sm:$0xff]
      %s4178 = scalar_lea.vmem %s3, 40
      %v4179 = vld [vmem:[%s4178] sm:$0xff]
      %v4181 = vsel %vm425, %v4146, 0
      %v4184 = vsel %vm425, %v4147, 0
      %v4187 = vsel %vm425, %v4148, 0
      %v4190 = vsel %vm425, %v4149, 0
      %v4193 = vsel %vm425, %v4150, 0
      %v4196 = vsel %vm425, %v4151, 0
      %v4199 = vsel %vm425, %v4152, 0
      %v4202 = vsel %vm425, %v4153, 0
      %v4205 = vsel %vm425, %v4154, 0
      %v4208 = vsel %vm425, %v4155, 0
      %v4211 = vsel %vm425, %v4156, 0
      %v4214 = vsel %vm425, %v4157, 0
      %v4217 = vsel %vm425, %v4158, 0
      %v4220 = vsel %vm425, %v4159, 0
      %v4223 = vsel %vm425, %v4160, 0
      %v4226 = vsel %vm425, %v4161, 0
      %v4229 = vsel %vm425, %v4162, 0
      %v4232 = vsel %vm425, %v4163, 0
      %v4235 = vsel %vm425, %v4164, 0
      %v4238 = vsel %vm425, %v4165, 0
      %v4241 = vsel %vm425, %v4166, 0
      %v4244 = vsel %vm425, %v4167, 0
      %v4247 = vsel %vm425, %v4168, 0
      %v4250 = vsel %vm425, %v4169, 0
      %v4253 = vsel %vm425, %v4170, 0
      %v4256 = vsel %vm425, %v4171, 0
      %v4259 = vsel %vm425, %v4172, 0
      %v4262 = vsel %vm425, %v4173, 0
      %v4265 = vsel %vm425, %v4174, 0
      %v4268 = vsel %vm425, %v4175, 0
      %v4271 = vsel %vm425, %v4176, 0
      %v4274 = vsel %vm425, %v4177, 0
      %4276 = vmatpush.msra.mxu0 0.0
      %4277 = vmatpush.msra.mxu0 0.0
      %4278 = vmatpush.msra.mxu0 0.0
      %4279 = vmatpush.msra.mxu0 0.0
      %4280 = vmatpush.msra.mxu0 0.0
      %4281 = vmatpush.msra.mxu0 0.0
      %4282 = vmatpush.msra.mxu0 0.0
      %4283 = vmatpush.msra.mxu0 0.0
      %4284 = vmatpush.msra.mxu0 0.0
      %4285 = vmatpush.msra.mxu0 0.0
      %4286 = vmatpush.msra.mxu0 0.0
      %4287 = vmatpush.msra.mxu0 0.0
      %4288 = vmatpush.msra.mxu0 0.0
      %4289 = vmatpush.msra.mxu0 0.0
      %4290 = vmatpush.msra.mxu0 0.0
      %4291 = vmatpush.msra.mxu0 %v4179
      %4292 = vmatmul.f32.gmra.mxu0 %v4181
      %v4293 = vpop.f32.mrf.mxu0
      %v4294 = vadd.f32 0.0, %v4293
      %4295 = vmatmul.f32.gmra.mxu0 %v4184
      %v4296 = vpop.f32.mrf.mxu0
      %v4297 = vadd.f32 0.0, %v4296
      %4298 = vmatmul.f32.gmra.mxu0 %v4187
      %v4299 = vpop.f32.mrf.mxu0
      %v4300 = vadd.f32 0.0, %v4299
      %4301 = vmatmul.f32.gmra.mxu0 %v4190
      %v4302 = vpop.f32.mrf.mxu0
      %v4303 = vadd.f32 0.0, %v4302
      %4304 = vmatmul.f32.gmra.mxu0 %v4193
      %v4305 = vpop.f32.mrf.mxu0
      %v4306 = vadd.f32 0.0, %v4305
      %4307 = vmatmul.f32.gmra.mxu0 %v4196
      %v4308 = vpop.f32.mrf.mxu0
      %v4309 = vadd.f32 0.0, %v4308
      %4310 = vmatmul.f32.gmra.mxu0 %v4199
      %v4311 = vpop.f32.mrf.mxu0
      %v4312 = vadd.f32 0.0, %v4311
      %4313 = vmatmul.f32.gmra.mxu0 %v4202
      %v4314 = vpop.f32.mrf.mxu0
      %v4315 = vadd.f32 0.0, %v4314
      %4316 = vmatmul.f32.gmra.mxu0 %v4205
      %v4317 = vpop.f32.mrf.mxu0
      %v4318 = vadd.f32 0.0, %v4317
      %4319 = vmatmul.f32.gmra.mxu0 %v4208
      %v4320 = vpop.f32.mrf.mxu0
      %v4321 = vadd.f32 0.0, %v4320
      %4322 = vmatmul.f32.gmra.mxu0 %v4211
      %v4323 = vpop.f32.mrf.mxu0
      %v4324 = vadd.f32 0.0, %v4323
      %4325 = vmatmul.f32.gmra.mxu0 %v4214
      %v4326 = vpop.f32.mrf.mxu0
      %v4327 = vadd.f32 0.0, %v4326
      %4328 = vmatmul.f32.gmra.mxu0 %v4217
      %v4329 = vpop.f32.mrf.mxu0
      %v4330 = vadd.f32 0.0, %v4329
      %4331 = vmatmul.f32.gmra.mxu0 %v4220
      %v4332 = vpop.f32.mrf.mxu0
      %v4333 = vadd.f32 0.0, %v4332
      %4334 = vmatmul.f32.gmra.mxu0 %v4223
      %v4335 = vpop.f32.mrf.mxu0
      %v4336 = vadd.f32 0.0, %v4335
      %4337 = vmatmul.f32.gmra.mxu0 %v4226
      %v4338 = vpop.f32.mrf.mxu0
      %v4339 = vadd.f32 0.0, %v4338
      %4340 = vmatmul.f32.gmra.mxu0 %v4229
      %v4341 = vpop.f32.mrf.mxu0
      %v4342 = vadd.f32 0.0, %v4341
      %4343 = vmatmul.f32.gmra.mxu0 %v4232
      %v4344 = vpop.f32.mrf.mxu0
      %v4345 = vadd.f32 0.0, %v4344
      %4346 = vmatmul.f32.gmra.mxu0 %v4235
      %v4347 = vpop.f32.mrf.mxu0
      %v4348 = vadd.f32 0.0, %v4347
      %4349 = vmatmul.f32.gmra.mxu0 %v4238
      %v4350 = vpop.f32.mrf.mxu0
      %v4351 = vadd.f32 0.0, %v4350
      %4352 = vmatmul.f32.gmra.mxu0 %v4241
      %v4353 = vpop.f32.mrf.mxu0
      %v4354 = vadd.f32 0.0, %v4353
      %4355 = vmatmul.f32.gmra.mxu0 %v4244
      %v4356 = vpop.f32.mrf.mxu0
      %v4357 = vadd.f32 0.0, %v4356
      %4358 = vmatmul.f32.gmra.mxu0 %v4247
      %v4359 = vpop.f32.mrf.mxu0
      %v4360 = vadd.f32 0.0, %v4359
      %4361 = vmatmul.f32.gmra.mxu0 %v4250
      %v4362 = vpop.f32.mrf.mxu0
      %v4363 = vadd.f32 0.0, %v4362
      %4364 = vmatmul.f32.gmra.mxu0 %v4253
      %v4365 = vpop.f32.mrf.mxu0
      %v4366 = vadd.f32 0.0, %v4365
      %4367 = vmatmul.f32.gmra.mxu0 %v4256
      %v4368 = vpop.f32.mrf.mxu0
      %v4369 = vadd.f32 0.0, %v4368
      %4370 = vmatmul.f32.gmra.mxu0 %v4259
      %v4371 = vpop.f32.mrf.mxu0
      %v4372 = vadd.f32 0.0, %v4371
      %4373 = vmatmul.f32.gmra.mxu0 %v4262
      %v4374 = vpop.f32.mrf.mxu0
      %v4375 = vadd.f32 0.0, %v4374
      %4376 = vmatmul.f32.gmra.mxu0 %v4265
      %v4377 = vpop.f32.mrf.mxu0
      %v4378 = vadd.f32 0.0, %v4377
      %4379 = vmatmul.f32.gmra.mxu0 %v4268
      %v4380 = vpop.f32.mrf.mxu0
      %v4381 = vadd.f32 0.0, %v4380
      %4382 = vmatmul.f32.gmra.mxu0 %v4271
      %v4383 = vpop.f32.mrf.mxu0
      %v4384 = vadd.f32 0.0, %v4383
      %4385 = vmatmul.f32.gmra.mxu0 %v4274
      %v4386 = vpop.f32.mrf.mxu0
      %v4387 = vadd.f32 0.0, %v4386
      %4388 = vdwg.mxu0
      %v4389 = vadd.f32 %v4114, %v4294
      %v4390 = vadd.f32 %v4115, %v4297
      %v4391 = vadd.f32 %v4116, %v4300
      %v4392 = vadd.f32 %v4117, %v4303
      %v4393 = vadd.f32 %v4118, %v4306
      %v4394 = vadd.f32 %v4119, %v4309
      %v4395 = vadd.f32 %v4120, %v4312
      %v4396 = vadd.f32 %v4121, %v4315
      %v4397 = vadd.f32 %v4122, %v4318
      %v4398 = vadd.f32 %v4123, %v4321
      %v4399 = vadd.f32 %v4124, %v4324
      %v4400 = vadd.f32 %v4125, %v4327
      %v4401 = vadd.f32 %v4126, %v4330
      %v4402 = vadd.f32 %v4127, %v4333
      %v4403 = vadd.f32 %v4128, %v4336
      %v4404 = vadd.f32 %v4129, %v4339
      %v4405 = vadd.f32 %v4130, %v4342
      %v4406 = vadd.f32 %v4131, %v4345
      %v4407 = vadd.f32 %v4132, %v4348
      %v4408 = vadd.f32 %v4133, %v4351
      %v4409 = vadd.f32 %v4134, %v4354
      %v4410 = vadd.f32 %v4135, %v4357
      %v4411 = vadd.f32 %v4136, %v4360
      %v4412 = vadd.f32 %v4137, %v4363
      %v4413 = vadd.f32 %v4138, %v4366
      %v4414 = vadd.f32 %v4139, %v4369
      %v4415 = vadd.f32 %v4140, %v4372
      %v4416 = vadd.f32 %v4141, %v4375
      %v4417 = vadd.f32 %v4142, %v4378
      %v4418 = vadd.f32 %v4143, %v4381
      %v4419 = vadd.f32 %v4144, %v4384
      %v4420 = vadd.f32 %v4145, %v4387
      %s4421 = scalar_lea.vmem %s334, 96
      %v4422 = vld [vmem:[%s4421] sm:$0xff]
      %v4423 = vld [vmem:[%s4421 + $0x8] sm:$0xff]
      %v4424 = vld [vmem:[%s4421 + $0x18] sm:$0xff]
      %v4425 = vld [vmem:[%s4421 + $0x20] sm:$0xff]
      %v4426 = vld [vmem:[%s4421 + $0x30] sm:$0xff]
      %v4427 = vld [vmem:[%s4421 + $0x38] sm:$0xff]
      %v4428 = vld [vmem:[%s4421 + $0x48] sm:$0xff]
      %v4429 = vld [vmem:[%s4421 + $0x50] sm:$0xff]
      %v4430 = vld [vmem:[%s4421 + $0x60] sm:$0xff]
      %v4431 = vld [vmem:[%s4421 + $0x68] sm:$0xff]
      %v4432 = vld [vmem:[%s4421 + $0x78] sm:$0xff]
      %v4433 = vld [vmem:[%s4421 + $0x80] sm:$0xff]
      %v4434 = vld [vmem:[%s4421 + $0x90] sm:$0xff]
      %v4435 = vld [vmem:[%s4421 + $0x98] sm:$0xff]
      %v4436 = vld [vmem:[%s4421 + $0xa8] sm:$0xff]
      %v4437 = vld [vmem:[%s4421 + $0xb0] sm:$0xff]
      %v4438 = vld [vmem:[%s4421 + $0xc0] sm:$0xff]
      %v4439 = vld [vmem:[%s4421 + $0xc8] sm:$0xff]
      %v4440 = vld [vmem:[%s4421 + $0xd8] sm:$0xff]
      %v4441 = vld [vmem:[%s4421 + $0xe0] sm:$0xff]
      %v4442 = vld [vmem:[%s4421 + $0xf0] sm:$0xff]
      %v4443 = vld [vmem:[%s4421 + $0xf8] sm:$0xff]
      %v4444 = vld [vmem:[%s4421 + $0x108] sm:$0xff]
      %v4445 = vld [vmem:[%s4421 + $0x110] sm:$0xff]
      %v4446 = vld [vmem:[%s4421 + $0x120] sm:$0xff]
      %v4447 = vld [vmem:[%s4421 + $0x128] sm:$0xff]
      %v4448 = vld [vmem:[%s4421 + $0x138] sm:$0xff]
      %v4449 = vld [vmem:[%s4421 + $0x140] sm:$0xff]
      %v4450 = vld [vmem:[%s4421 + $0x150] sm:$0xff]
      %v4451 = vld [vmem:[%s4421 + $0x158] sm:$0xff]
      %v4452 = vld [vmem:[%s4421 + $0x168] sm:$0xff]
      %v4453 = vld [vmem:[%s4421 + $0x170] sm:$0xff]
      %s4454 = scalar_lea.vmem %s3, 48
      %v4455 = vld [vmem:[%s4454] sm:$0xff]
      %v4457 = vsel %vm425, %v4422, 0
      %v4460 = vsel %vm425, %v4423, 0
      %v4463 = vsel %vm425, %v4424, 0
      %v4466 = vsel %vm425, %v4425, 0
      %v4469 = vsel %vm425, %v4426, 0
      %v4472 = vsel %vm425, %v4427, 0
      %v4475 = vsel %vm425, %v4428, 0
      %v4478 = vsel %vm425, %v4429, 0
      %v4481 = vsel %vm425, %v4430, 0
      %v4484 = vsel %vm425, %v4431, 0
      %v4487 = vsel %vm425, %v4432, 0
      %v4490 = vsel %vm425, %v4433, 0
      %v4493 = vsel %vm425, %v4434, 0
      %v4496 = vsel %vm425, %v4435, 0
      %v4499 = vsel %vm425, %v4436, 0
      %v4502 = vsel %vm425, %v4437, 0
      %v4505 = vsel %vm425, %v4438, 0
      %v4508 = vsel %vm425, %v4439, 0
      %v4511 = vsel %vm425, %v4440, 0
      %v4514 = vsel %vm425, %v4441, 0
      %v4517 = vsel %vm425, %v4442, 0
      %v4520 = vsel %vm425, %v4443, 0
      %v4523 = vsel %vm425, %v4444, 0
      %v4526 = vsel %vm425, %v4445, 0
      %v4529 = vsel %vm425, %v4446, 0
      %v4532 = vsel %vm425, %v4447, 0
      %v4535 = vsel %vm425, %v4448, 0
      %v4538 = vsel %vm425, %v4449, 0
      %v4541 = vsel %vm425, %v4450, 0
      %v4544 = vsel %vm425, %v4451, 0
      %v4547 = vsel %vm425, %v4452, 0
      %v4550 = vsel %vm425, %v4453, 0
      %4552 = vmatpush.msra.mxu0 0.0
      %4553 = vmatpush.msra.mxu0 0.0
      %4554 = vmatpush.msra.mxu0 0.0
      %4555 = vmatpush.msra.mxu0 0.0
      %4556 = vmatpush.msra.mxu0 0.0
      %4557 = vmatpush.msra.mxu0 0.0
      %4558 = vmatpush.msra.mxu0 0.0
      %4559 = vmatpush.msra.mxu0 0.0
      %4560 = vmatpush.msra.mxu0 0.0
      %4561 = vmatpush.msra.mxu0 0.0
      %4562 = vmatpush.msra.mxu0 0.0
      %4563 = vmatpush.msra.mxu0 0.0
      %4564 = vmatpush.msra.mxu0 0.0
      %4565 = vmatpush.msra.mxu0 0.0
      %4566 = vmatpush.msra.mxu0 0.0
      %4567 = vmatpush.msra.mxu0 %v4455
      %4568 = vmatmul.f32.gmra.mxu0 %v4457
      %v4569 = vpop.f32.mrf.mxu0
      %v4570 = vadd.f32 0.0, %v4569
      %4571 = vmatmul.f32.gmra.mxu0 %v4460
      %v4572 = vpop.f32.mrf.mxu0
      %v4573 = vadd.f32 0.0, %v4572
      %4574 = vmatmul.f32.gmra.mxu0 %v4463
      %v4575 = vpop.f32.mrf.mxu0
      %v4576 = vadd.f32 0.0, %v4575
      %4577 = vmatmul.f32.gmra.mxu0 %v4466
      %v4578 = vpop.f32.mrf.mxu0
      %v4579 = vadd.f32 0.0, %v4578
      %4580 = vmatmul.f32.gmra.mxu0 %v4469
      %v4581 = vpop.f32.mrf.mxu0
      %v4582 = vadd.f32 0.0, %v4581
      %4583 = vmatmul.f32.gmra.mxu0 %v4472
      %v4584 = vpop.f32.mrf.mxu0
      %v4585 = vadd.f32 0.0, %v4584
      %4586 = vmatmul.f32.gmra.mxu0 %v4475
      %v4587 = vpop.f32.mrf.mxu0
      %v4588 = vadd.f32 0.0, %v4587
      %4589 = vmatmul.f32.gmra.mxu0 %v4478
      %v4590 = vpop.f32.mrf.mxu0
      %v4591 = vadd.f32 0.0, %v4590
      %4592 = vmatmul.f32.gmra.mxu0 %v4481
      %v4593 = vpop.f32.mrf.mxu0
      %v4594 = vadd.f32 0.0, %v4593
      %4595 = vmatmul.f32.gmra.mxu0 %v4484
      %v4596 = vpop.f32.mrf.mxu0
      %v4597 = vadd.f32 0.0, %v4596
      %4598 = vmatmul.f32.gmra.mxu0 %v4487
      %v4599 = vpop.f32.mrf.mxu0
      %v4600 = vadd.f32 0.0, %v4599
      %4601 = vmatmul.f32.gmra.mxu0 %v4490
      %v4602 = vpop.f32.mrf.mxu0
      %v4603 = vadd.f32 0.0, %v4602
      %4604 = vmatmul.f32.gmra.mxu0 %v4493
      %v4605 = vpop.f32.mrf.mxu0
      %v4606 = vadd.f32 0.0, %v4605
      %4607 = vmatmul.f32.gmra.mxu0 %v4496
      %v4608 = vpop.f32.mrf.mxu0
      %v4609 = vadd.f32 0.0, %v4608
      %4610 = vmatmul.f32.gmra.mxu0 %v4499
      %v4611 = vpop.f32.mrf.mxu0
      %v4612 = vadd.f32 0.0, %v4611
      %4613 = vmatmul.f32.gmra.mxu0 %v4502
      %v4614 = vpop.f32.mrf.mxu0
      %v4615 = vadd.f32 0.0, %v4614
      %4616 = vmatmul.f32.gmra.mxu0 %v4505
      %v4617 = vpop.f32.mrf.mxu0
      %v4618 = vadd.f32 0.0, %v4617
      %4619 = vmatmul.f32.gmra.mxu0 %v4508
      %v4620 = vpop.f32.mrf.mxu0
      %v4621 = vadd.f32 0.0, %v4620
      %4622 = vmatmul.f32.gmra.mxu0 %v4511
      %v4623 = vpop.f32.mrf.mxu0
      %v4624 = vadd.f32 0.0, %v4623
      %4625 = vmatmul.f32.gmra.mxu0 %v4514
      %v4626 = vpop.f32.mrf.mxu0
      %v4627 = vadd.f32 0.0, %v4626
      %4628 = vmatmul.f32.gmra.mxu0 %v4517
      %v4629 = vpop.f32.mrf.mxu0
      %v4630 = vadd.f32 0.0, %v4629
      %4631 = vmatmul.f32.gmra.mxu0 %v4520
      %v4632 = vpop.f32.mrf.mxu0
      %v4633 = vadd.f32 0.0, %v4632
      %4634 = vmatmul.f32.gmra.mxu0 %v4523
      %v4635 = vpop.f32.mrf.mxu0
      %v4636 = vadd.f32 0.0, %v4635
      %4637 = vmatmul.f32.gmra.mxu0 %v4526
      %v4638 = vpop.f32.mrf.mxu0
      %v4639 = vadd.f32 0.0, %v4638
      %4640 = vmatmul.f32.gmra.mxu0 %v4529
      %v4641 = vpop.f32.mrf.mxu0
      %v4642 = vadd.f32 0.0, %v4641
      %4643 = vmatmul.f32.gmra.mxu0 %v4532
      %v4644 = vpop.f32.mrf.mxu0
      %v4645 = vadd.f32 0.0, %v4644
      %4646 = vmatmul.f32.gmra.mxu0 %v4535
      %v4647 = vpop.f32.mrf.mxu0
      %v4648 = vadd.f32 0.0, %v4647
      %4649 = vmatmul.f32.gmra.mxu0 %v4538
      %v4650 = vpop.f32.mrf.mxu0
      %v4651 = vadd.f32 0.0, %v4650
      %4652 = vmatmul.f32.gmra.mxu0 %v4541
      %v4653 = vpop.f32.mrf.mxu0
      %v4654 = vadd.f32 0.0, %v4653
      %4655 = vmatmul.f32.gmra.mxu0 %v4544
      %v4656 = vpop.f32.mrf.mxu0
      %v4657 = vadd.f32 0.0, %v4656
      %4658 = vmatmul.f32.gmra.mxu0 %v4547
      %v4659 = vpop.f32.mrf.mxu0
      %v4660 = vadd.f32 0.0, %v4659
      %4661 = vmatmul.f32.gmra.mxu0 %v4550
      %v4662 = vpop.f32.mrf.mxu0
      %v4663 = vadd.f32 0.0, %v4662
      %4664 = vdwg.mxu0
      %v4665 = vadd.f32 %v4389, %v4570
      %v4666 = vadd.f32 %v4390, %v4573
      %v4667 = vadd.f32 %v4391, %v4576
      %v4668 = vadd.f32 %v4392, %v4579
      %v4669 = vadd.f32 %v4393, %v4582
      %v4670 = vadd.f32 %v4394, %v4585
      %v4671 = vadd.f32 %v4395, %v4588
      %v4672 = vadd.f32 %v4396, %v4591
      %v4673 = vadd.f32 %v4397, %v4594
      %v4674 = vadd.f32 %v4398, %v4597
      %v4675 = vadd.f32 %v4399, %v4600
      %v4676 = vadd.f32 %v4400, %v4603
      %v4677 = vadd.f32 %v4401, %v4606
      %v4678 = vadd.f32 %v4402, %v4609
      %v4679 = vadd.f32 %v4403, %v4612
      %v4680 = vadd.f32 %v4404, %v4615
      %v4681 = vadd.f32 %v4405, %v4618
      %v4682 = vadd.f32 %v4406, %v4621
      %v4683 = vadd.f32 %v4407, %v4624
      %v4684 = vadd.f32 %v4408, %v4627
      %v4685 = vadd.f32 %v4409, %v4630
      %v4686 = vadd.f32 %v4410, %v4633
      %v4687 = vadd.f32 %v4411, %v4636
      %v4688 = vadd.f32 %v4412, %v4639
      %v4689 = vadd.f32 %v4413, %v4642
      %v4690 = vadd.f32 %v4414, %v4645
      %v4691 = vadd.f32 %v4415, %v4648
      %v4692 = vadd.f32 %v4416, %v4651
      %v4693 = vadd.f32 %v4417, %v4654
      %v4694 = vadd.f32 %v4418, %v4657
      %v4695 = vadd.f32 %v4419, %v4660
      %v4696 = vadd.f32 %v4420, %v4663
      %v4697 = vld [vmem:[%s4421 + $0x2] sm:$0xff]
      %v4698 = vld [vmem:[%s4421 + $0xa] sm:$0xff]
      %v4699 = vld [vmem:[%s4421 + $0x1a] sm:$0xff]
      %v4700 = vld [vmem:[%s4421 + $0x22] sm:$0xff]
      %v4701 = vld [vmem:[%s4421 + $0x32] sm:$0xff]
      %v4702 = vld [vmem:[%s4421 + $0x3a] sm:$0xff]
      %v4703 = vld [vmem:[%s4421 + $0x4a] sm:$0xff]
      %v4704 = vld [vmem:[%s4421 + $0x52] sm:$0xff]
      %v4705 = vld [vmem:[%s4421 + $0x62] sm:$0xff]
      %v4706 = vld [vmem:[%s4421 + $0x6a] sm:$0xff]
      %v4707 = vld [vmem:[%s4421 + $0x7a] sm:$0xff]
      %v4708 = vld [vmem:[%s4421 + $0x82] sm:$0xff]
      %v4709 = vld [vmem:[%s4421 + $0x92] sm:$0xff]
      %v4710 = vld [vmem:[%s4421 + $0x9a] sm:$0xff]
      %v4711 = vld [vmem:[%s4421 + $0xaa] sm:$0xff]
      %v4712 = vld [vmem:[%s4421 + $0xb2] sm:$0xff]
      %v4713 = vld [vmem:[%s4421 + $0xc2] sm:$0xff]
      %v4714 = vld [vmem:[%s4421 + $0xca] sm:$0xff]
      %v4715 = vld [vmem:[%s4421 + $0xda] sm:$0xff]
      %v4716 = vld [vmem:[%s4421 + $0xe2] sm:$0xff]
      %v4717 = vld [vmem:[%s4421 + $0xf2] sm:$0xff]
      %v4718 = vld [vmem:[%s4421 + $0xfa] sm:$0xff]
      %v4719 = vld [vmem:[%s4421 + $0x10a] sm:$0xff]
      %v4720 = vld [vmem:[%s4421 + $0x112] sm:$0xff]
      %v4721 = vld [vmem:[%s4421 + $0x122] sm:$0xff]
      %v4722 = vld [vmem:[%s4421 + $0x12a] sm:$0xff]
      %v4723 = vld [vmem:[%s4421 + $0x13a] sm:$0xff]
      %v4724 = vld [vmem:[%s4421 + $0x142] sm:$0xff]
      %v4725 = vld [vmem:[%s4421 + $0x152] sm:$0xff]
      %v4726 = vld [vmem:[%s4421 + $0x15a] sm:$0xff]
      %v4727 = vld [vmem:[%s4421 + $0x16a] sm:$0xff]
      %v4728 = vld [vmem:[%s4421 + $0x172] sm:$0xff]
      %s4729 = scalar_lea.vmem %s3, 56
      %v4730 = vld [vmem:[%s4729] sm:$0xff]
      %v4732 = vsel %vm425, %v4697, 0
      %v4735 = vsel %vm425, %v4698, 0
      %v4738 = vsel %vm425, %v4699, 0
      %v4741 = vsel %vm425, %v4700, 0
      %v4744 = vsel %vm425, %v4701, 0
      %v4747 = vsel %vm425, %v4702, 0
      %v4750 = vsel %vm425, %v4703, 0
      %v4753 = vsel %vm425, %v4704, 0
      %v4756 = vsel %vm425, %v4705, 0
      %v4759 = vsel %vm425, %v4706, 0
      %v4762 = vsel %vm425, %v4707, 0
      %v4765 = vsel %vm425, %v4708, 0
      %v4768 = vsel %vm425, %v4709, 0
      %v4771 = vsel %vm425, %v4710, 0
      %v4774 = vsel %vm425, %v4711, 0
      %v4777 = vsel %vm425, %v4712, 0
      %v4780 = vsel %vm425, %v4713, 0
      %v4783 = vsel %vm425, %v4714, 0
      %v4786 = vsel %vm425, %v4715, 0
      %v4789 = vsel %vm425, %v4716, 0
      %v4792 = vsel %vm425, %v4717, 0
      %v4795 = vsel %vm425, %v4718, 0
      %v4798 = vsel %vm425, %v4719, 0
      %v4801 = vsel %vm425, %v4720, 0
      %v4804 = vsel %vm425, %v4721, 0
      %v4807 = vsel %vm425, %v4722, 0
      %v4810 = vsel %vm425, %v4723, 0
      %v4813 = vsel %vm425, %v4724, 0
      %v4816 = vsel %vm425, %v4725, 0
      %v4819 = vsel %vm425, %v4726, 0
      %v4822 = vsel %vm425, %v4727, 0
      %v4825 = vsel %vm425, %v4728, 0
      %4827 = vmatpush.msra.mxu0 0.0
      %4828 = vmatpush.msra.mxu0 0.0
      %4829 = vmatpush.msra.mxu0 0.0
      %4830 = vmatpush.msra.mxu0 0.0
      %4831 = vmatpush.msra.mxu0 0.0
      %4832 = vmatpush.msra.mxu0 0.0
      %4833 = vmatpush.msra.mxu0 0.0
      %4834 = vmatpush.msra.mxu0 0.0
      %4835 = vmatpush.msra.mxu0 0.0
      %4836 = vmatpush.msra.mxu0 0.0
      %4837 = vmatpush.msra.mxu0 0.0
      %4838 = vmatpush.msra.mxu0 0.0
      %4839 = vmatpush.msra.mxu0 0.0
      %4840 = vmatpush.msra.mxu0 0.0
      %4841 = vmatpush.msra.mxu0 0.0
      %4842 = vmatpush.msra.mxu0 %v4730
      %4843 = vmatmul.f32.gmra.mxu0 %v4732
      %v4844 = vpop.f32.mrf.mxu0
      %v4845 = vadd.f32 0.0, %v4844
      %4846 = vmatmul.f32.gmra.mxu0 %v4735
      %v4847 = vpop.f32.mrf.mxu0
      %v4848 = vadd.f32 0.0, %v4847
      %4849 = vmatmul.f32.gmra.mxu0 %v4738
      %v4850 = vpop.f32.mrf.mxu0
      %v4851 = vadd.f32 0.0, %v4850
      %4852 = vmatmul.f32.gmra.mxu0 %v4741
      %v4853 = vpop.f32.mrf.mxu0
      %v4854 = vadd.f32 0.0, %v4853
      %4855 = vmatmul.f32.gmra.mxu0 %v4744
      %v4856 = vpop.f32.mrf.mxu0
      %v4857 = vadd.f32 0.0, %v4856
      %4858 = vmatmul.f32.gmra.mxu0 %v4747
      %v4859 = vpop.f32.mrf.mxu0
      %v4860 = vadd.f32 0.0, %v4859
      %4861 = vmatmul.f32.gmra.mxu0 %v4750
      %v4862 = vpop.f32.mrf.mxu0
      %v4863 = vadd.f32 0.0, %v4862
      %4864 = vmatmul.f32.gmra.mxu0 %v4753
      %v4865 = vpop.f32.mrf.mxu0
      %v4866 = vadd.f32 0.0, %v4865
      %4867 = vmatmul.f32.gmra.mxu0 %v4756
      %v4868 = vpop.f32.mrf.mxu0
      %v4869 = vadd.f32 0.0, %v4868
      %4870 = vmatmul.f32.gmra.mxu0 %v4759
      %v4871 = vpop.f32.mrf.mxu0
      %v4872 = vadd.f32 0.0, %v4871
      %4873 = vmatmul.f32.gmra.mxu0 %v4762
      %v4874 = vpop.f32.mrf.mxu0
      %v4875 = vadd.f32 0.0, %v4874
      %4876 = vmatmul.f32.gmra.mxu0 %v4765
      %v4877 = vpop.f32.mrf.mxu0
      %v4878 = vadd.f32 0.0, %v4877
      %4879 = vmatmul.f32.gmra.mxu0 %v4768
      %v4880 = vpop.f32.mrf.mxu0
      %v4881 = vadd.f32 0.0, %v4880
      %4882 = vmatmul.f32.gmra.mxu0 %v4771
      %v4883 = vpop.f32.mrf.mxu0
      %v4884 = vadd.f32 0.0, %v4883
      %4885 = vmatmul.f32.gmra.mxu0 %v4774
      %v4886 = vpop.f32.mrf.mxu0
      %v4887 = vadd.f32 0.0, %v4886
      %4888 = vmatmul.f32.gmra.mxu0 %v4777
      %v4889 = vpop.f32.mrf.mxu0
      %v4890 = vadd.f32 0.0, %v4889
      %4891 = vmatmul.f32.gmra.mxu0 %v4780
      %v4892 = vpop.f32.mrf.mxu0
      %v4893 = vadd.f32 0.0, %v4892
      %4894 = vmatmul.f32.gmra.mxu0 %v4783
      %v4895 = vpop.f32.mrf.mxu0
      %v4896 = vadd.f32 0.0, %v4895
      %4897 = vmatmul.f32.gmra.mxu0 %v4786
      %v4898 = vpop.f32.mrf.mxu0
      %v4899 = vadd.f32 0.0, %v4898
      %4900 = vmatmul.f32.gmra.mxu0 %v4789
      %v4901 = vpop.f32.mrf.mxu0
      %v4902 = vadd.f32 0.0, %v4901
      %4903 = vmatmul.f32.gmra.mxu0 %v4792
      %v4904 = vpop.f32.mrf.mxu0
      %v4905 = vadd.f32 0.0, %v4904
      %4906 = vmatmul.f32.gmra.mxu0 %v4795
      %v4907 = vpop.f32.mrf.mxu0
      %v4908 = vadd.f32 0.0, %v4907
      %4909 = vmatmul.f32.gmra.mxu0 %v4798
      %v4910 = vpop.f32.mrf.mxu0
      %v4911 = vadd.f32 0.0, %v4910
      %4912 = vmatmul.f32.gmra.mxu0 %v4801
      %v4913 = vpop.f32.mrf.mxu0
      %v4914 = vadd.f32 0.0, %v4913
      %4915 = vmatmul.f32.gmra.mxu0 %v4804
      %v4916 = vpop.f32.mrf.mxu0
      %v4917 = vadd.f32 0.0, %v4916
      %4918 = vmatmul.f32.gmra.mxu0 %v4807
      %v4919 = vpop.f32.mrf.mxu0
      %v4920 = vadd.f32 0.0, %v4919
      %4921 = vmatmul.f32.gmra.mxu0 %v4810
      %v4922 = vpop.f32.mrf.mxu0
      %v4923 = vadd.f32 0.0, %v4922
      %4924 = vmatmul.f32.gmra.mxu0 %v4813
      %v4925 = vpop.f32.mrf.mxu0
      %v4926 = vadd.f32 0.0, %v4925
      %4927 = vmatmul.f32.gmra.mxu0 %v4816
      %v4928 = vpop.f32.mrf.mxu0
      %v4929 = vadd.f32 0.0, %v4928
      %4930 = vmatmul.f32.gmra.mxu0 %v4819
      %v4931 = vpop.f32.mrf.mxu0
      %v4932 = vadd.f32 0.0, %v4931
      %4933 = vmatmul.f32.gmra.mxu0 %v4822
      %v4934 = vpop.f32.mrf.mxu0
      %v4935 = vadd.f32 0.0, %v4934
      %4936 = vmatmul.f32.gmra.mxu0 %v4825
      %v4937 = vpop.f32.mrf.mxu0
      %v4938 = vadd.f32 0.0, %v4937
      %4939 = vdwg.mxu0
      %v4940 = vadd.f32 %v4665, %v4845
      %v4941 = vadd.f32 %v4666, %v4848
      %v4942 = vadd.f32 %v4667, %v4851
      %v4943 = vadd.f32 %v4668, %v4854
      %v4944 = vadd.f32 %v4669, %v4857
      %v4945 = vadd.f32 %v4670, %v4860
      %v4946 = vadd.f32 %v4671, %v4863
      %v4947 = vadd.f32 %v4672, %v4866
      %v4948 = vadd.f32 %v4673, %v4869
      %v4949 = vadd.f32 %v4674, %v4872
      %v4950 = vadd.f32 %v4675, %v4875
      %v4951 = vadd.f32 %v4676, %v4878
      %v4952 = vadd.f32 %v4677, %v4881
      %v4953 = vadd.f32 %v4678, %v4884
      %v4954 = vadd.f32 %v4679, %v4887
      %v4955 = vadd.f32 %v4680, %v4890
      %v4956 = vadd.f32 %v4681, %v4893
      %v4957 = vadd.f32 %v4682, %v4896
      %v4958 = vadd.f32 %v4683, %v4899
      %v4959 = vadd.f32 %v4684, %v4902
      %v4960 = vadd.f32 %v4685, %v4905
      %v4961 = vadd.f32 %v4686, %v4908
      %v4962 = vadd.f32 %v4687, %v4911
      %v4963 = vadd.f32 %v4688, %v4914
      %v4964 = vadd.f32 %v4689, %v4917
      %v4965 = vadd.f32 %v4690, %v4920
      %v4966 = vadd.f32 %v4691, %v4923
      %v4967 = vadd.f32 %v4692, %v4926
      %v4968 = vadd.f32 %v4693, %v4929
      %v4969 = vadd.f32 %v4694, %v4932
      %v4970 = vadd.f32 %v4695, %v4935
      %v4971 = vadd.f32 %v4696, %v4938
      %v4972 = vld [vmem:[%s4421 + $0x4] sm:$0xff]
      %v4973 = vld [vmem:[%s4421 + $0xc] sm:$0xff]
      %v4974 = vld [vmem:[%s4421 + $0x1c] sm:$0xff]
      %v4975 = vld [vmem:[%s4421 + $0x24] sm:$0xff]
      %v4976 = vld [vmem:[%s4421 + $0x34] sm:$0xff]
      %v4977 = vld [vmem:[%s4421 + $0x3c] sm:$0xff]
      %v4978 = vld [vmem:[%s4421 + $0x4c] sm:$0xff]
      %v4979 = vld [vmem:[%s4421 + $0x54] sm:$0xff]
      %v4980 = vld [vmem:[%s4421 + $0x64] sm:$0xff]
      %v4981 = vld [vmem:[%s4421 + $0x6c] sm:$0xff]
      %v4982 = vld [vmem:[%s4421 + $0x7c] sm:$0xff]
      %v4983 = vld [vmem:[%s4421 + $0x84] sm:$0xff]
      %v4984 = vld [vmem:[%s4421 + $0x94] sm:$0xff]
      %v4985 = vld [vmem:[%s4421 + $0x9c] sm:$0xff]
      %v4986 = vld [vmem:[%s4421 + $0xac] sm:$0xff]
      %v4987 = vld [vmem:[%s4421 + $0xb4] sm:$0xff]
      %v4988 = vld [vmem:[%s4421 + $0xc4] sm:$0xff]
      %v4989 = vld [vmem:[%s4421 + $0xcc] sm:$0xff]
      %v4990 = vld [vmem:[%s4421 + $0xdc] sm:$0xff]
      %v4991 = vld [vmem:[%s4421 + $0xe4] sm:$0xff]
      %v4992 = vld [vmem:[%s4421 + $0xf4] sm:$0xff]
      %v4993 = vld [vmem:[%s4421 + $0xfc] sm:$0xff]
      %v4994 = vld [vmem:[%s4421 + $0x10c] sm:$0xff]
      %v4995 = vld [vmem:[%s4421 + $0x114] sm:$0xff]
      %v4996 = vld [vmem:[%s4421 + $0x124] sm:$0xff]
      %v4997 = vld [vmem:[%s4421 + $0x12c] sm:$0xff]
      %v4998 = vld [vmem:[%s4421 + $0x13c] sm:$0xff]
      %v4999 = vld [vmem:[%s4421 + $0x144] sm:$0xff]
      %v5000 = vld [vmem:[%s4421 + $0x154] sm:$0xff]
      %v5001 = vld [vmem:[%s4421 + $0x15c] sm:$0xff]
      %v5002 = vld [vmem:[%s4421 + $0x16c] sm:$0xff]
      %v5003 = vld [vmem:[%s4421 + $0x174] sm:$0xff]
      %s5004 = scalar_lea.vmem %s3, 64
      %v5005 = vld [vmem:[%s5004] sm:$0xff]
      %v5007 = vsel %vm425, %v4972, 0
      %v5010 = vsel %vm425, %v4973, 0
      %v5013 = vsel %vm425, %v4974, 0
      %v5016 = vsel %vm425, %v4975, 0
      %v5019 = vsel %vm425, %v4976, 0
      %v5022 = vsel %vm425, %v4977, 0
      %v5025 = vsel %vm425, %v4978, 0
      %v5028 = vsel %vm425, %v4979, 0
      %v5031 = vsel %vm425, %v4980, 0
      %v5034 = vsel %vm425, %v4981, 0
      %v5037 = vsel %vm425, %v4982, 0
      %v5040 = vsel %vm425, %v4983, 0
      %v5043 = vsel %vm425, %v4984, 0
      %v5046 = vsel %vm425, %v4985, 0
      %v5049 = vsel %vm425, %v4986, 0
      %v5052 = vsel %vm425, %v4987, 0
      %v5055 = vsel %vm425, %v4988, 0
      %v5058 = vsel %vm425, %v4989, 0
      %v5061 = vsel %vm425, %v4990, 0
      %v5064 = vsel %vm425, %v4991, 0
      %v5067 = vsel %vm425, %v4992, 0
      %v5070 = vsel %vm425, %v4993, 0
      %v5073 = vsel %vm425, %v4994, 0
      %v5076 = vsel %vm425, %v4995, 0
      %v5079 = vsel %vm425, %v4996, 0
      %v5082 = vsel %vm425, %v4997, 0
      %v5085 = vsel %vm425, %v4998, 0
      %v5088 = vsel %vm425, %v4999, 0
      %v5091 = vsel %vm425, %v5000, 0
      %v5094 = vsel %vm425, %v5001, 0
      %v5097 = vsel %vm425, %v5002, 0
      %v5100 = vsel %vm425, %v5003, 0
      %5102 = vmatpush.msra.mxu0 0.0
      %5103 = vmatpush.msra.mxu0 0.0
      %5104 = vmatpush.msra.mxu0 0.0
      %5105 = vmatpush.msra.mxu0 0.0
      %5106 = vmatpush.msra.mxu0 0.0
      %5107 = vmatpush.msra.mxu0 0.0
      %5108 = vmatpush.msra.mxu0 0.0
      %5109 = vmatpush.msra.mxu0 0.0
      %5110 = vmatpush.msra.mxu0 0.0
      %5111 = vmatpush.msra.mxu0 0.0
      %5112 = vmatpush.msra.mxu0 0.0
      %5113 = vmatpush.msra.mxu0 0.0
      %5114 = vmatpush.msra.mxu0 0.0
      %5115 = vmatpush.msra.mxu0 0.0
      %5116 = vmatpush.msra.mxu0 0.0
      %5117 = vmatpush.msra.mxu0 %v5005
      %5118 = vmatmul.f32.gmra.mxu0 %v5007
      %v5119 = vpop.f32.mrf.mxu0
      %v5120 = vadd.f32 0.0, %v5119
      %5121 = vmatmul.f32.gmra.mxu0 %v5010
      %v5122 = vpop.f32.mrf.mxu0
      %v5123 = vadd.f32 0.0, %v5122
      %5124 = vmatmul.f32.gmra.mxu0 %v5013
      %v5125 = vpop.f32.mrf.mxu0
      %v5126 = vadd.f32 0.0, %v5125
      %5127 = vmatmul.f32.gmra.mxu0 %v5016
      %v5128 = vpop.f32.mrf.mxu0
      %v5129 = vadd.f32 0.0, %v5128
      %5130 = vmatmul.f32.gmra.mxu0 %v5019
      %v5131 = vpop.f32.mrf.mxu0
      %v5132 = vadd.f32 0.0, %v5131
      %5133 = vmatmul.f32.gmra.mxu0 %v5022
      %v5134 = vpop.f32.mrf.mxu0
      %v5135 = vadd.f32 0.0, %v5134
      %5136 = vmatmul.f32.gmra.mxu0 %v5025
      %v5137 = vpop.f32.mrf.mxu0
      %v5138 = vadd.f32 0.0, %v5137
      %5139 = vmatmul.f32.gmra.mxu0 %v5028
      %v5140 = vpop.f32.mrf.mxu0
      %v5141 = vadd.f32 0.0, %v5140
      %5142 = vmatmul.f32.gmra.mxu0 %v5031
      %v5143 = vpop.f32.mrf.mxu0
      %v5144 = vadd.f32 0.0, %v5143
      %5145 = vmatmul.f32.gmra.mxu0 %v5034
      %v5146 = vpop.f32.mrf.mxu0
      %v5147 = vadd.f32 0.0, %v5146
      %5148 = vmatmul.f32.gmra.mxu0 %v5037
      %v5149 = vpop.f32.mrf.mxu0
      %v5150 = vadd.f32 0.0, %v5149
      %5151 = vmatmul.f32.gmra.mxu0 %v5040
      %v5152 = vpop.f32.mrf.mxu0
      %v5153 = vadd.f32 0.0, %v5152
      %5154 = vmatmul.f32.gmra.mxu0 %v5043
      %v5155 = vpop.f32.mrf.mxu0
      %v5156 = vadd.f32 0.0, %v5155
      %5157 = vmatmul.f32.gmra.mxu0 %v5046
      %v5158 = vpop.f32.mrf.mxu0
      %v5159 = vadd.f32 0.0, %v5158
      %5160 = vmatmul.f32.gmra.mxu0 %v5049
      %v5161 = vpop.f32.mrf.mxu0
      %v5162 = vadd.f32 0.0, %v5161
      %5163 = vmatmul.f32.gmra.mxu0 %v5052
      %v5164 = vpop.f32.mrf.mxu0
      %v5165 = vadd.f32 0.0, %v5164
      %5166 = vmatmul.f32.gmra.mxu0 %v5055
      %v5167 = vpop.f32.mrf.mxu0
      %v5168 = vadd.f32 0.0, %v5167
      %5169 = vmatmul.f32.gmra.mxu0 %v5058
      %v5170 = vpop.f32.mrf.mxu0
      %v5171 = vadd.f32 0.0, %v5170
      %5172 = vmatmul.f32.gmra.mxu0 %v5061
      %v5173 = vpop.f32.mrf.mxu0
      %v5174 = vadd.f32 0.0, %v5173
      %5175 = vmatmul.f32.gmra.mxu0 %v5064
      %v5176 = vpop.f32.mrf.mxu0
      %v5177 = vadd.f32 0.0, %v5176
      %5178 = vmatmul.f32.gmra.mxu0 %v5067
      %v5179 = vpop.f32.mrf.mxu0
      %v5180 = vadd.f32 0.0, %v5179
      %5181 = vmatmul.f32.gmra.mxu0 %v5070
      %v5182 = vpop.f32.mrf.mxu0
      %v5183 = vadd.f32 0.0, %v5182
      %5184 = vmatmul.f32.gmra.mxu0 %v5073
      %v5185 = vpop.f32.mrf.mxu0
      %v5186 = vadd.f32 0.0, %v5185
      %5187 = vmatmul.f32.gmra.mxu0 %v5076
      %v5188 = vpop.f32.mrf.mxu0
      %v5189 = vadd.f32 0.0, %v5188
      %5190 = vmatmul.f32.gmra.mxu0 %v5079
      %v5191 = vpop.f32.mrf.mxu0
      %v5192 = vadd.f32 0.0, %v5191
      %5193 = vmatmul.f32.gmra.mxu0 %v5082
      %v5194 = vpop.f32.mrf.mxu0
      %v5195 = vadd.f32 0.0, %v5194
      %5196 = vmatmul.f32.gmra.mxu0 %v5085
      %v5197 = vpop.f32.mrf.mxu0
      %v5198 = vadd.f32 0.0, %v5197
      %5199 = vmatmul.f32.gmra.mxu0 %v5088
      %v5200 = vpop.f32.mrf.mxu0
      %v5201 = vadd.f32 0.0, %v5200
      %5202 = vmatmul.f32.gmra.mxu0 %v5091
      %v5203 = vpop.f32.mrf.mxu0
      %v5204 = vadd.f32 0.0, %v5203
      %5205 = vmatmul.f32.gmra.mxu0 %v5094
      %v5206 = vpop.f32.mrf.mxu0
      %v5207 = vadd.f32 0.0, %v5206
      %5208 = vmatmul.f32.gmra.mxu0 %v5097
      %v5209 = vpop.f32.mrf.mxu0
      %v5210 = vadd.f32 0.0, %v5209
      %5211 = vmatmul.f32.gmra.mxu0 %v5100
      %v5212 = vpop.f32.mrf.mxu0
      %v5213 = vadd.f32 0.0, %v5212
      %5214 = vdwg.mxu0
      %v5215 = vadd.f32 %v4940, %v5120
      %v5216 = vadd.f32 %v4941, %v5123
      %v5217 = vadd.f32 %v4942, %v5126
      %v5218 = vadd.f32 %v4943, %v5129
      %v5219 = vadd.f32 %v4944, %v5132
      %v5220 = vadd.f32 %v4945, %v5135
      %v5221 = vadd.f32 %v4946, %v5138
      %v5222 = vadd.f32 %v4947, %v5141
      %v5223 = vadd.f32 %v4948, %v5144
      %v5224 = vadd.f32 %v4949, %v5147
      %v5225 = vadd.f32 %v4950, %v5150
      %v5226 = vadd.f32 %v4951, %v5153
      %v5227 = vadd.f32 %v4952, %v5156
      %v5228 = vadd.f32 %v4953, %v5159
      %v5229 = vadd.f32 %v4954, %v5162
      %v5230 = vadd.f32 %v4955, %v5165
      %v5231 = vadd.f32 %v4956, %v5168
      %v5232 = vadd.f32 %v4957, %v5171
      %v5233 = vadd.f32 %v4958, %v5174
      %v5234 = vadd.f32 %v4959, %v5177
      %v5235 = vadd.f32 %v4960, %v5180
      %v5236 = vadd.f32 %v4961, %v5183
      %v5237 = vadd.f32 %v4962, %v5186
      %v5238 = vadd.f32 %v4963, %v5189
      %v5239 = vadd.f32 %v4964, %v5192
      %v5240 = vadd.f32 %v4965, %v5195
      %v5241 = vadd.f32 %v4966, %v5198
      %v5242 = vadd.f32 %v4967, %v5201
      %v5243 = vadd.f32 %v4968, %v5204
      %v5244 = vadd.f32 %v4969, %v5207
      %v5245 = vadd.f32 %v4970, %v5210
      %v5246 = vadd.f32 %v4971, %v5213
      %5247 = vst.msk [vmem:[%s344] sm:$0xff] %vm425, %v5215
      %5248 = vst.msk [vmem:[%s344 + $0x8] sm:$0xff] %vm425, %v5216
      %5249 = vst.msk [vmem:[%s344 + $0x10] sm:$0xff] %vm425, %v5217
      %5250 = vst.msk [vmem:[%s344 + $0x18] sm:$0xff] %vm425, %v5218
      %5251 = vst.msk [vmem:[%s344 + $0x20] sm:$0xff] %vm425, %v5219
      %5252 = vst.msk [vmem:[%s344 + $0x28] sm:$0xff] %vm425, %v5220
      %5253 = vst.msk [vmem:[%s344 + $0x30] sm:$0xff] %vm425, %v5221
      %5254 = vst.msk [vmem:[%s344 + $0x38] sm:$0xff] %vm425, %v5222
      %5255 = vst.msk [vmem:[%s344 + $0x40] sm:$0xff] %vm425, %v5223
      %5256 = vst.msk [vmem:[%s344 + $0x48] sm:$0xff] %vm425, %v5224
      %5257 = vst.msk [vmem:[%s344 + $0x50] sm:$0xff] %vm425, %v5225
      %5258 = vst.msk [vmem:[%s344 + $0x58] sm:$0xff] %vm425, %v5226
      %5259 = vst.msk [vmem:[%s344 + $0x60] sm:$0xff] %vm425, %v5227
      %5260 = vst.msk [vmem:[%s344 + $0x68] sm:$0xff] %vm425, %v5228
      %5261 = vst.msk [vmem:[%s344 + $0x70] sm:$0xff] %vm425, %v5229
      %5262 = vst.msk [vmem:[%s344 + $0x78] sm:$0xff] %vm425, %v5230
      %5263 = vst.msk [vmem:[%s344 + $0x80] sm:$0xff] %vm425, %v5231
      %5264 = vst.msk [vmem:[%s344 + $0x88] sm:$0xff] %vm425, %v5232
      %5265 = vst.msk [vmem:[%s344 + $0x90] sm:$0xff] %vm425, %v5233
      %5266 = vst.msk [vmem:[%s344 + $0x98] sm:$0xff] %vm425, %v5234
      %5267 = vst.msk [vmem:[%s344 + $0xa0] sm:$0xff] %vm425, %v5235
      %5268 = vst.msk [vmem:[%s344 + $0xa8] sm:$0xff] %vm425, %v5236
      %5269 = vst.msk [vmem:[%s344 + $0xb0] sm:$0xff] %vm425, %v5237
      %5270 = vst.msk [vmem:[%s344 + $0xb8] sm:$0xff] %vm425, %v5238
      %5271 = vst.msk [vmem:[%s344 + $0xc0] sm:$0xff] %vm425, %v5239
      %5272 = vst.msk [vmem:[%s344 + $0xc8] sm:$0xff] %vm425, %v5240
      %5273 = vst.msk [vmem:[%s344 + $0xd0] sm:$0xff] %vm425, %v5241
      %5274 = vst.msk [vmem:[%s344 + $0xd8] sm:$0xff] %vm425, %v5242
      %5275 = vst.msk [vmem:[%s344 + $0xe0] sm:$0xff] %vm425, %v5243
      %5276 = vst.msk [vmem:[%s344 + $0xe8] sm:$0xff] %vm425, %v5244
      %5277 = vst.msk [vmem:[%s344 + $0xf0] sm:$0xff] %vm425, %v5245
      %5278 = vst.msk [vmem:[%s344 + $0xf8] sm:$0xff] %vm425, %v5246
      %v5279 = vsel %vm425, %v5215, 0.0
      %v5280 = vsel %vm425, %v5216, 0.0
      %v5281 = vadd.f32 %v5279, %v5280
      %v5282 = vsel %vm425, %v5217, 0.0
      %v5283 = vadd.f32 %v5281, %v5282
      %v5284 = vsel %vm425, %v5218, 0.0
      %v5285 = vadd.f32 %v5283, %v5284
      %v5286 = vsel %vm425, %v5219, 0.0
      %v5287 = vadd.f32 %v5285, %v5286
      %v5288 = vsel %vm425, %v5220, 0.0
      %v5289 = vadd.f32 %v5287, %v5288
      %v5290 = vsel %vm425, %v5221, 0.0
      %v5291 = vadd.f32 %v5289, %v5290
      %v5292 = vsel %vm425, %v5222, 0.0
      %v5293 = vadd.f32 %v5291, %v5292
      %v5294 = vsel %vm425, %v5223, 0.0
      %v5295 = vadd.f32 %v5293, %v5294
      %v5296 = vsel %vm425, %v5224, 0.0
      %v5297 = vadd.f32 %v5295, %v5296
      %v5298 = vsel %vm425, %v5225, 0.0
      %v5299 = vadd.f32 %v5297, %v5298
      %v5300 = vsel %vm425, %v5226, 0.0
      %v5301 = vadd.f32 %v5299, %v5300
      %v5302 = vsel %vm425, %v5227, 0.0
      %v5303 = vadd.f32 %v5301, %v5302
      %v5304 = vsel %vm425, %v5228, 0.0
      %v5305 = vadd.f32 %v5303, %v5304
      %v5306 = vsel %vm425, %v5229, 0.0
      %v5307 = vadd.f32 %v5305, %v5306
      %v5308 = vsel %vm425, %v5230, 0.0
      %v5309 = vadd.f32 %v5307, %v5308
      %v5310 = vsel %vm425, %v5231, 0.0
      %v5311 = vadd.f32 %v5309, %v5310
      %v5312 = vsel %vm425, %v5232, 0.0
      %v5313 = vadd.f32 %v5311, %v5312
      %v5314 = vsel %vm425, %v5233, 0.0
      %v5315 = vadd.f32 %v5313, %v5314
      %v5316 = vsel %vm425, %v5234, 0.0
      %v5317 = vadd.f32 %v5315, %v5316
      %v5318 = vsel %vm425, %v5235, 0.0
      %v5319 = vadd.f32 %v5317, %v5318
      %v5320 = vsel %vm425, %v5236, 0.0
      %v5321 = vadd.f32 %v5319, %v5320
      %v5322 = vsel %vm425, %v5237, 0.0
      %v5323 = vadd.f32 %v5321, %v5322
      %v5324 = vsel %vm425, %v5238, 0.0
      %v5325 = vadd.f32 %v5323, %v5324
      %v5326 = vsel %vm425, %v5239, 0.0
      %v5327 = vadd.f32 %v5325, %v5326
      %v5328 = vsel %vm425, %v5240, 0.0
      %v5329 = vadd.f32 %v5327, %v5328
      %v5330 = vsel %vm425, %v5241, 0.0
      %v5331 = vadd.f32 %v5329, %v5330
      %v5332 = vsel %vm425, %v5242, 0.0
      %v5333 = vadd.f32 %v5331, %v5332
      %v5334 = vsel %vm425, %v5243, 0.0
      %v5335 = vadd.f32 %v5333, %v5334
      %v5336 = vsel %vm425, %v5244, 0.0
      %v5337 = vadd.f32 %v5335, %v5336
      %v5338 = vsel %vm425, %v5245, 0.0
      %v5339 = vadd.f32 %v5337, %v5338
      %v5340 = vsel %vm425, %v5246, 0.0
      %v5341 = vadd.f32 %v5339, %v5340
      %v5342 = vrot.slane %v5341, 4
      %v5343 = vadd.f32 %v5341, %v5342
      %v5344 = vrot.slane %v5343, 2
      %v5345 = vadd.f32 %v5343, %v5344
      %v5346 = vrot.slane %v5345, 1
      %v5347 = vadd.f32 %v5345, %v5346
      %vm5348 = vcmask 57344
      %5349 = vst.msk [vmem:[%s351] sm:$0x1] %vm5348, %v5347
      %v5350 = vmul.f32 %v5215, %v5215
      %v5351 = vmul.f32 %v5216, %v5216
      %v5352 = vmul.f32 %v5217, %v5217
      %v5353 = vmul.f32 %v5218, %v5218
      %v5354 = vmul.f32 %v5219, %v5219
      %v5355 = vmul.f32 %v5220, %v5220
      %v5356 = vmul.f32 %v5221, %v5221
      %v5357 = vmul.f32 %v5222, %v5222
      %v5358 = vmul.f32 %v5223, %v5223
      %v5359 = vmul.f32 %v5224, %v5224
      %v5360 = vmul.f32 %v5225, %v5225
      %v5361 = vmul.f32 %v5226, %v5226
      %v5362 = vmul.f32 %v5227, %v5227
      %v5363 = vmul.f32 %v5228, %v5228
      %v5364 = vmul.f32 %v5229, %v5229
      %v5365 = vmul.f32 %v5230, %v5230
      %v5366 = vmul.f32 %v5231, %v5231
      %v5367 = vmul.f32 %v5232, %v5232
      %v5368 = vmul.f32 %v5233, %v5233
      %v5369 = vmul.f32 %v5234, %v5234
      %v5370 = vmul.f32 %v5235, %v5235
      %v5371 = vmul.f32 %v5236, %v5236
      %v5372 = vmul.f32 %v5237, %v5237
      %v5373 = vmul.f32 %v5238, %v5238
      %v5374 = vmul.f32 %v5239, %v5239
      %v5375 = vmul.f32 %v5240, %v5240
      %v5376 = vmul.f32 %v5241, %v5241
      %v5377 = vmul.f32 %v5242, %v5242
      %v5378 = vmul.f32 %v5243, %v5243
      %v5379 = vmul.f32 %v5244, %v5244
      %v5380 = vmul.f32 %v5245, %v5245
      %v5381 = vmul.f32 %v5246, %v5246
      %v5382 = vsel %vm425, %v5350, 0.0
      %v5383 = vsel %vm425, %v5351, 0.0
      %v5384 = vadd.f32 %v5382, %v5383
      %v5385 = vsel %vm425, %v5352, 0.0
      %v5386 = vadd.f32 %v5384, %v5385
      %v5387 = vsel %vm425, %v5353, 0.0
      %v5388 = vadd.f32 %v5386, %v5387
      %v5389 = vsel %vm425, %v5354, 0.0
      %v5390 = vadd.f32 %v5388, %v5389
      %v5391 = vsel %vm425, %v5355, 0.0
      %v5392 = vadd.f32 %v5390, %v5391
      %v5393 = vsel %vm425, %v5356, 0.0
      %v5394 = vadd.f32 %v5392, %v5393
      %v5395 = vsel %vm425, %v5357, 0.0
      %v5396 = vadd.f32 %v5394, %v5395
      %v5397 = vsel %vm425, %v5358, 0.0
      %v5398 = vadd.f32 %v5396, %v5397
      %v5399 = vsel %vm425, %v5359, 0.0
      %v5400 = vadd.f32 %v5398, %v5399
      %v5401 = vsel %vm425, %v5360, 0.0
      %v5402 = vadd.f32 %v5400, %v5401
      %v5403 = vsel %vm425, %v5361, 0.0
      %v5404 = vadd.f32 %v5402, %v5403
      %v5405 = vsel %vm425, %v5362, 0.0
      %v5406 = vadd.f32 %v5404, %v5405
      %v5407 = vsel %vm425, %v5363, 0.0
      %v5408 = vadd.f32 %v5406, %v5407
      %v5409 = vsel %vm425, %v5364, 0.0
      %v5410 = vadd.f32 %v5408, %v5409
      %v5411 = vsel %vm425, %v5365, 0.0
      %v5412 = vadd.f32 %v5410, %v5411
      %v5413 = vsel %vm425, %v5366, 0.0
      %v5414 = vadd.f32 %v5412, %v5413
      %v5415 = vsel %vm425, %v5367, 0.0
      %v5416 = vadd.f32 %v5414, %v5415
      %v5417 = vsel %vm425, %v5368, 0.0
      %v5418 = vadd.f32 %v5416, %v5417
      %v5419 = vsel %vm425, %v5369, 0.0
      %v5420 = vadd.f32 %v5418, %v5419
      %v5421 = vsel %vm425, %v5370, 0.0
      %v5422 = vadd.f32 %v5420, %v5421
      %v5423 = vsel %vm425, %v5371, 0.0
      %v5424 = vadd.f32 %v5422, %v5423
      %v5425 = vsel %vm425, %v5372, 0.0
      %v5426 = vadd.f32 %v5424, %v5425
      %v5427 = vsel %vm425, %v5373, 0.0
      %v5428 = vadd.f32 %v5426, %v5427
      %v5429 = vsel %vm425, %v5374, 0.0
      %v5430 = vadd.f32 %v5428, %v5429
      %v5431 = vsel %vm425, %v5375, 0.0
      %v5432 = vadd.f32 %v5430, %v5431
      %v5433 = vsel %vm425, %v5376, 0.0
      %v5434 = vadd.f32 %v5432, %v5433
      %v5435 = vsel %vm425, %v5377, 0.0
      %v5436 = vadd.f32 %v5434, %v5435
      %v5437 = vsel %vm425, %v5378, 0.0
      %v5438 = vadd.f32 %v5436, %v5437
      %v5439 = vsel %vm425, %v5379, 0.0
      %v5440 = vadd.f32 %v5438, %v5439
      %v5441 = vsel %vm425, %v5380, 0.0
      %v5442 = vadd.f32 %v5440, %v5441
      %v5443 = vsel %vm425, %v5381, 0.0
      %v5444 = vadd.f32 %v5442, %v5443
      %v5445 = vrot.slane %v5444, 4
      %v5446 = vadd.f32 %v5444, %v5445
      %v5447 = vrot.slane %v5446, 2
      %v5448 = vadd.f32 %v5446, %v5447
      %v5449 = vrot.slane %v5448, 1
      %v5450 = vadd.f32 %v5448, %v5449
      %5451 = vst.msk [vmem:[%s357] sm:$0x1] %vm5348, %v5450
      %s5452 = smul.u32 16, %s23
      %p5453 = scmp.lt.s32.totalorder %s22, 1
      %s5454 = scalar_select %p5453, %s22, 1
      %p5455 = scmp.lt.s32.totalorder %s5452, 15
      %s5456 = scalar_select %p5455, %s5452, 15
      %s5457 = smul.addr %s5456, 2
      %s5458 = smul.addr %s5454, 32
      %s5459 = sadd.s32 %s5457, %s5458
      %s5460 = smul.addr %s5459, 8
      %s5461 = scalar_lea.vmem %s4, %s5460
      %p5462 = scmp.lt.s32.totalorder %s22, 1
      %s5463 = scalar_select %p5462, %s22, 1
      %p5464 = scmp.lt.s32.totalorder %s23, 0
      %s5465 = scalar_select %p5464, %s23, 0
      %s5466 = sadd.s32 %s5465, %s5463
      %s5467 = scalar_lea.vmem %s5, %s5466
      %p5468 = scmp.lt.s32.totalorder %s22, 1
      %s5469 = scalar_select %p5468, %s22, 1
      %p5470 = scmp.lt.s32.totalorder %s23, 0
      %s5471 = scalar_select %p5470, %s23, 0
      %s5472 = sadd.s32 %s5471, %s5469
      %s5473 = scalar_lea.vmem %s6, %s5472
      // Predicated region
      $region37: #{up_forward.10} parent=35 // pred_check
        %p5474 = pneg %p148
      $region38: #{up_forward.10} parent=35 // pred_check_branch
        %5476 = sbr.rel (%p5474) target = $region40
      $region39: #{up_forward.10} parent=35 // pred_region
        %s5477 = smul.u32 16, %s23
      $region40: #{up_forward.10} parent=35 // pred_fallthru
        _
      // Predicated region
      $region41: #{up_forward.10} parent=35 // pred_check
        %p5478 = pneg %p176
      $region42: #{up_forward.10} parent=35 // pred_check_branch
        %5480 = sbr.rel (%p5478) target = $region44
      $region43: #{up_forward.10} parent=35 // pred_region
        _
      $region44: #{up_forward.10} parent=35 // pred_fallthru
        _
      // Predicated region
      $region45: #{up_forward.10} parent=35 // pred_check
        %p5481 = pneg %p204
      $region46: #{up_forward.10} parent=35 // pred_check_branch
        %5483 = sbr.rel (%p5481) target = $region48
      $region47: #{up_forward.10} parent=35 // pred_region
        _
      $region48: #{up_forward.10} parent=35 // pred_fallthru
        _
    $region36: #{up_forward.10} parent=5 // pred_fallthru
      _
    %p5484 = scmp.le.s32.totalorder 2, %s13
    // Predicated region
    $region49: #{up_forward.10} parent=5 // pred_check
      %p5485 = pneg %p5484
    $region50: #{up_forward.10} parent=5 // pred_check_branch
      %5487 = sbr.rel (%p5485) target = $region52
    $region51: #{up_forward.10} parent=5 // pred_region
      %s5488 = ssub.s32 %s13, 2
      // Predicated region
      $region53: #{up_forward.10} parent=51 // pred_check
        %p5489 = pneg %p154
      $region54: #{up_forward.10} parent=51 // pred_check_branch
        %5491 = sbr.rel (%p5489) target = $region56
      $region55: #{up_forward.10} parent=51 // pred_region
        %s5492 = smul.u32 16, %s25
        %p5493 = scmp.lt.s32.totalorder %s24, 1
        %s5494 = scalar_select %p5493, %s24, 1
        %p5495 = scmp.lt.s32.totalorder %s5492, 15
        %s5496 = scalar_select %p5495, %s5492, 15
        %s5497 = smul.addr %s5496, 2
        %s5498 = smul.addr %s5494, 32
        %s5499 = sadd.s32 %s5497, %s5498
        %s5500 = smul.addr %s5499, 8
        %s5501 = scalar_lea.vmem %s4, %s5500
      $region56: #{up_forward.10} parent=51 // pred_fallthru
        _
      // Predicated region
      $region57: #{up_forward.10} parent=51 // pred_check
        %p5502 = pneg %p182
      $region58: #{up_forward.10} parent=51 // pred_check_branch
        %5504 = sbr.rel (%p5502) target = $region60
      $region59: #{up_forward.10} parent=51 // pred_region
        %p5505 = scmp.lt.s32.totalorder %s24, 1
        %s5506 = scalar_select %p5505, %s24, 1
        %p5507 = scmp.lt.s32.totalorder %s25, 0
        %s5508 = scalar_select %p5507, %s25, 0
        %s5509 = sadd.s32 %s5508, %s5506
        %s5510 = scalar_lea.vmem %s5, %s5509
      $region60: #{up_forward.10} parent=51 // pred_fallthru
        _
      // Predicated region
      $region61: #{up_forward.10} parent=51 // pred_check
        %p5511 = pneg %p210
      $region62: #{up_forward.10} parent=51 // pred_check_branch
        %5513 = sbr.rel (%p5511) target = $region64
      $region63: #{up_forward.10} parent=51 // pred_region
        %p5514 = scmp.lt.s32.totalorder %s24, 1
        %s5515 = scalar_select %p5514, %s24, 1
        %p5516 = scmp.lt.s32.totalorder %s25, 0
        %s5517 = scalar_select %p5516, %s25, 0
        %s5518 = sadd.s32 %s5517, %s5515
        %s5519 = scalar_lea.vmem %s6, %s5518
      $region64: #{up_forward.10} parent=51 // pred_fallthru
        _
    $region52: #{up_forward.10} parent=5 // pred_fallthru
      _
  $region6: #{up_forward.10} parent=0 // loop_footer
    %s17 = sadd.s32 1, %s13
  $region7: #{up_forward.10} parent=0 // loop_footer_branch
    %12 = sbr.rel target = $region3
  $region8: #{up_forward.10} parent=0 // loop_exit
    _

</llo_original>
